<compile_context>
chip_gen: v6e
topology: v6e:2x2x1
jax: 0.10.0
libtpu: 0.0.40
codegen_flags: <defaults>
</compile_context>

<pallas_src>
import functools

import jax
import jax.numpy as jnp
from jax.experimental import pallas as pl
from jax.experimental.pallas import tpu as pltpu

BN_EPS = 1e-5
# Conservative budget (in padded-VMEM-tile bytes) for taking the fully fused
# single-kernel path; well under the 32 MiB scoped default and v7x's 64 MiB/TC.
_FUSED_VMEM_BUDGET = 16 * 1024 * 1024
_VMEM_LIMIT = 32 * 1024 * 1024


# ---------------------------------------------------------------------------
# In-kernel helpers
# ---------------------------------------------------------------------------
def _conv3x3_im2col(xpad, w_flat):
    """3x3 'same' conv as ONE im2col matmul.

    xpad:   (N, H+2, W+2, Cin) f32 zero-padded activations (a value).
    w_flat: (9*Cin, Cout) weights, K ordered (dh, dw, cin); dtype sets the
            MXU operand dtype (f32 or bf16).
    Returns (N*H*W, Cout) f32.
    """
    n, hp, wp, cin = xpad.shape
    h, w = hp - 2, wp - 2
    # One W-shifted slab per dw, concatenated on the lane axis -> K = 3*Cin.
    slab3 = jnp.concatenate(
        [xpad[:, :, dw:dw + w, :] for dw in range(3)], axis=-1)
    # The 3 dh taps are sublane-aligned row slices of the flat slab (W % 8 == 0
    # asserted by the wrapper); concatenating them gives the full (N*H*W,
    # 9*Cin) im2col matrix so the whole conv is a single MXU push.
    parts = [slab3[:, dh:dh + h, :, :].reshape(n * h * w, 3 * cin)
             for dh in range(3)]
    slab9 = jnp.concatenate(parts, axis=-1)
    return jnp.dot(slab9.astype(w_flat.dtype), w_flat,
                   preferred_element_type=jnp.float32)


def _fill_padded(pad_ref, interior):
    """Fill an (N, H+2, W+2, C) VMEM scratch: zero the 1-pixel halo only and
    write the interior exactly once."""
    n, hp, wp, c = pad_ref.shape
    h, w = hp - 2, wp - 2
    zrow = jnp.zeros((n, 1, wp, c), jnp.float32)
    pad_ref[:, 0:1, :, :] = zrow
    pad_ref[:, hp - 1:hp, :, :] = zrow
    zcol = jnp.zeros((n, h, 1, c), jnp.float32)
    pad_ref[:, 1:h + 1, 0:1, :] = zcol
    pad_ref[:, 1:h + 1, wp - 1:wp, :] = zcol
    pad_ref[:, 1:h + 1, 1:w + 1, :] = interior


def _pool2x2(y, pool_type):
    """2x2 pooling of an (N, H, W, C) f32 value (H, W even)."""
    n, h, w, c = y.shape
    # H half first: the reshape only splits a major axis (layout-free) and
    # halves the data before any sublane-axis work.
    yh = y.reshape(n, h // 2, 2, w, c)
    top, bot = yh[:, :, 0, :, :], yh[:, :, 1, :, :]
    if pool_type == "avg":
        pw = (top + bot).reshape(n, h // 2, w // 2, 2, c)
        return (pw[:, :, :, 0, :] + pw[:, :, :, 1, :]) * 0.25
    if pool_type == "max":
        pw = jnp.maximum(top, bot).reshape(n, h // 2, w // 2, 2, c)
        return jnp.maximum(pw[:, :, :, 0, :], pw[:, :, :, 1, :])
    # "avg+max"
    pa = (top + bot).reshape(n, h // 2, w // 2, 2, c)
    pm = jnp.maximum(top, bot).reshape(n, h // 2, w // 2, 2, c)
    return (pa[:, :, :, 0, :] + pa[:, :, :, 1, :]) * 0.25 + \
        jnp.maximum(pm[:, :, :, 0, :], pm[:, :, :, 1, :])


# ---------------------------------------------------------------------------
# Fully fused single-kernel path (small workloads, grid=(1,))
# ---------------------------------------------------------------------------
def _fused_convblock_kernel(xpad_ref, w1_ref, w2_ref, bn_ref, out_ref,
                            pad2_ref, *, pool_type):
    n, hp, wp, _ = xpad_ref.shape
    h, w = hp - 2, wp - 2
    cout = w1_ref.shape[-1]
    bn = bn_ref[...]                      # (4, Cout): g1, b1, g2, b2

    def bn_relu(y, gamma, beta):
        # Training-mode BatchNorm over the whole batch; all rows are resident
        # in VMEM so use the exact two-pass mean/variance.
        mean = jnp.mean(y, axis=0, keepdims=True)
        var = jnp.mean(jnp.square(y - mean), axis=0, keepdims=True)
        inv = jax.lax.rsqrt(var + BN_EPS)
        return jnp.maximum((y - mean) * inv * gamma + beta, 0.0)

    # conv1: single im2col matmul over the whole (pre-padded) batch.
    y1 = _conv3x3_im2col(xpad_ref[...], w1_ref[...])       # (N*H*W, Cout)
    y1 = bn_relu(y1, bn[0:1, :], bn[1:2, :])

    # conv2: zero-pad BN1 output in a VMEM scratch (halo only), im2col matmul.
    _fill_padded(pad2_ref, y1.reshape(n, h, w, cout))
    y2 = _conv3x3_im2col(pad2_ref[...], w2_ref[...])        # (N*H*W, Cout)
    y2 = bn_relu(y2, bn[2:3, :], bn[3:4, :])

    out = _pool2x2(y2.reshape(n, h, w, cout), pool_type)
    out_ref[...] = out.astype(out_ref.dtype)


def _conv_block_fused(xpad, w1_flat, w2_flat, bn_params, pool_type):
    n, hp, wp, cin = xpad.shape
    h, w = hp - 2, wp - 2
    cout = bn_params.shape[-1]
    kernel = functools.partial(_fused_convblock_kernel, pool_type=pool_type)
    return pl.pallas_call(
        kernel,
        out_shape=jax.ShapeDtypeStruct((n, h // 2, w // 2, cout), jnp.float32),
        grid_spec=pltpu.PrefetchScalarGridSpec(
            num_scalar_prefetch=0,
            grid=(1,),
            in_specs=[
                pl.BlockSpec((n, hp, wp, cin), lambda i: (0, 0, 0, 0)),
                pl.BlockSpec(w1_flat.shape, lambda i: (0, 0)),
                pl.BlockSpec(w2_flat.shape, lambda i: (0, 0)),
                pl.BlockSpec((4, cout), lambda i: (0, 0)),
            ],
            out_specs=pl.BlockSpec((n, h // 2, w // 2, cout),
                                   lambda i: (0, 0, 0, 0)),
            scratch_shapes=[pltpu.VMEM((n, hp, wp, cout), jnp.float32)],
        ),
        compiler_params=pltpu.CompilerParams(
            dimension_semantics=("arbitrary",),
            vmem_limit_bytes=_VMEM_LIMIT,
        ),
    )(xpad, w1_flat, w2_flat, bn_params)


# ---------------------------------------------------------------------------
# Three-phase fallback (per-image grid; BN is a two-level reduction)
# ---------------------------------------------------------------------------
def _conv_stats_kernel(xpad_ref, w_ref, acc_ref, stats_ref):
    """One image: conv1 (input pre-padded host-side) + partial BN stats."""
    _, hp, wp, _ = xpad_ref.shape
    h, w = hp - 2, wp - 2
    cout = w_ref.shape[-1]
    y = _conv3x3_im2col(xpad_ref[...], w_ref[...])           # (H*W, Cout)
    acc_ref[...] = y.reshape(1, h, w, cout)
    s = jnp.sum(y, axis=0, keepdims=True)
    sq = jnp.sum(y * y, axis=0, keepdims=True)
    # Lane-packed (1, 1, 2*Cout) partial-stats row -> one tiny DMA per step.
    stats_ref[...] = jnp.concatenate([s, sq], axis=-1).reshape(1, 1, 2 * cout)


def _bn_conv_stats_kernel(a_ref, ss_ref, w_ref, acc_ref, stats_ref, pad_ref):
    """One image: BN1 (pre-folded scale/shift) + ReLU + conv2 + partial stats."""
    _, h, w, cout = a_ref.shape
    scale = ss_ref[0:1, :]                                    # (1, Cout)
    shift = ss_ref[1:2, :]
    y1 = jnp.maximum(a_ref[...] * scale + shift, 0.0)
    _fill_padded(pad_ref, y1)
    y = _conv3x3_im2col(pad_ref[...], w_ref[...])             # (H*W, Cout)
    acc_ref[...] = y.reshape(1, h, w, cout)
    s = jnp.sum(y, axis=0, keepdims=True)
    sq = jnp.sum(y * y, axis=0, keepdims=True)
    stats_ref[...] = jnp.concatenate([s, sq], axis=-1).reshape(1, 1, 2 * cout)


def _bn_pool_kernel(a_ref, ss_ref, out_ref, *, pool_type):
    scale = ss_ref[0:1, :]
    shift = ss_ref[1:2, :]
    y = jnp.maximum(a_ref[...] * scale + shift, 0.0)
    out_ref[...] = _pool2x2(y, pool_type).astype(out_ref.dtype)


def _fold_bn(stats, count, gamma, beta):
    """Per-image (sum, sum_sq) partials -> per-channel (scale, shift), (2, C)."""
    cout = gamma.shape[0]
    flat = stats.reshape(stats.shape[0], 2 * cout)
    s = jnp.sum(flat[:, :cout], axis=0)
    sq = jnp.sum(flat[:, cout:], axis=0)
    mean = s / count
    var = jnp.maximum(sq / count - mean * mean, 0.0)   # biased, training-mode
    inv = jax.lax.rsqrt(var + BN_EPS)
    scale = gamma * inv
    shift = beta - mean * scale
    return jnp.stack([scale, shift], axis=0)


def _conv_block_multiphase(xpad, w1_flat, w2_flat, g1, b1, g2, b2, pool_type):
    n, hp, wp, cin = xpad.shape
    h, w = hp - 2, wp - 2
    cout = g1.shape[0]
    grid = (n,)   # one image per grid step -> pipelined DMA
    cparams = pltpu.CompilerParams(
        dimension_semantics=("parallel",),
        vmem_limit_bytes=_VMEM_LIMIT,
    )

    # ---- phase 1: conv1 + per-image partial BN1 statistics ----------------
    acc1, stats1 = pl.pallas_call(
        _conv_stats_kernel,
        out_shape=(jax.ShapeDtypeStruct((n, h, w, cout), jnp.float32),
                   jax.ShapeDtypeStruct((n, 1, 2 * cout), jnp.float32)),
        grid_spec=pltpu.PrefetchScalarGridSpec(
            num_scalar_prefetch=0, grid=grid,
            in_specs=[
                pl.BlockSpec((1, hp, wp, cin), lambda i: (i, 0, 0, 0)),
                pl.BlockSpec(w1_flat.shape, lambda i: (0, 0)),
            ],
            out_specs=(
                pl.BlockSpec((1, h, w, cout), lambda i: (i, 0, 0, 0)),
                pl.BlockSpec((1, 1, 2 * cout), lambda i: (i, 0, 0)),
            ),
        ),
        compiler_params=cparams,
    )(xpad, w1_flat)

    count = float(n * h * w)
    ss1 = _fold_bn(stats1, count, g1, b1)

    # ---- phase 2: BN1+ReLU -> conv2 + partial BN2 statistics ---------------
    acc2, stats2 = pl.pallas_call(
        _bn_conv_stats_kernel,
        out_shape=(jax.ShapeDtypeStruct((n, h, w, cout), jnp.float32),
                   jax.ShapeDtypeStruct((n, 1, 2 * cout), jnp.float32)),
        grid_spec=pltpu.PrefetchScalarGridSpec(
            num_scalar_prefetch=0, grid=grid,
            in_specs=[
                pl.BlockSpec((1, h, w, cout), lambda i: (i, 0, 0, 0)),
                pl.BlockSpec((2, cout), lambda i: (0, 0)),
                pl.BlockSpec(w2_flat.shape, lambda i: (0, 0)),
            ],
            out_specs=(
                pl.BlockSpec((1, h, w, cout), lambda i: (i, 0, 0, 0)),
                pl.BlockSpec((1, 1, 2 * cout), lambda i: (i, 0, 0)),
            ),
            scratch_shapes=[pltpu.VMEM((1, hp, wp, cout), jnp.float32)],
        ),
        compiler_params=cparams,
    )(acc1, ss1, w2_flat)

    ss2 = _fold_bn(stats2, count, g2, b2)

    # ---- phase 3: BN2 + ReLU + fused 2x2 pool -------------------------------
    out = pl.pallas_call(
        functools.partial(_bn_pool_kernel, pool_type=pool_type),
        out_shape=jax.ShapeDtypeStruct((n, h // 2, w // 2, cout), jnp.float32),
        grid_spec=pltpu.PrefetchScalarGridSpec(
            num_scalar_prefetch=0, grid=grid,
            in_specs=[
                pl.BlockSpec((1, h, w, cout), lambda i: (i, 0, 0, 0)),
                pl.BlockSpec((2, cout), lambda i: (0, 0)),
            ],
            out_specs=pl.BlockSpec((1, h // 2, w // 2, cout),
                                   lambda i: (i, 0, 0, 0)),
        ),
        compiler_params=cparams,
    )(acc2, ss2)
    return out


# ---------------------------------------------------------------------------
# Host-side glue
# ---------------------------------------------------------------------------
def _round_up(v, m):
    return (v + m - 1) // m * m


def _padded_vmem_bytes(shape, itemsize=4):
    """Bytes of an f32 array once padded to (8, 128) VMEM tiles."""
    shape = tuple(shape)
    if len(shape) < 2:
        shape = (1,) * (2 - len(shape)) + shape
    lead = 1
    for d in shape[:-2]:
        lead *= d
    return lead * _round_up(shape[-2], 8) * _round_up(shape[-1], 128) * itemsize


def _fused_path_fits(n, h, w, cin, cout):
    est = (_padded_vmem_bytes((n, h + 2, w + 2, cin))        # padded input
           + _padded_vmem_bytes((n, h + 2, w + 2, cout))     # conv2 scratch
           + _padded_vmem_bytes((n, h // 2, w // 2, cout))   # output block
           + 4 * _padded_vmem_bytes((n * h * w, 9 * max(cin, cout))))
    return est <= _FUSED_VMEM_BUDGET


@functools.partial(jax.jit, static_argnames=("pool_type", "force_multiphase",
                                              "use_bf16_matmul"))
def conv_block_forward_nhwc(x_nhwc, w1_hwio, w2_hwio, gamma1, beta1,
                            gamma2, beta2, pool_type="avg",
                            force_multiphase=False, use_bf16_matmul=None):
    """ConvBlock.forward in NHWC (channels on the 128-lane axis)."""
    if pool_type not in ("avg", "max", "avg+max"):
        raise Exception("Incorrect argument!")
    n, h, w, cin = x_nhwc.shape
    cout = w1_hwio.shape[-1]
    assert h % 2 == 0 and w % 2 == 0, "2x2 pool needs even spatial dims"
    # The flat im2col row slices are only sublane-aligned (zero-copy) for
    # W % 8 == 0.  TODO(synk): relax via width padding for other widths.
    assert w % 8 == 0, "kernel requires W % 8 == 0"

    # bf16 MXU operands only pay off for wide channel dims; elementwise/BN math
    # stays f32 either way (v5e has no bf16 VPU/EUP).
    if use_bf16_matmul is None:
        use_bf16_matmul = min(cin, cout) >= 64
    mm_dtype = jnp.bfloat16 if use_bf16_matmul else jnp.float32

    x = x_nhwc.astype(jnp.float32)
    xpad = jnp.pad(x, ((0, 0), (1, 1), (1, 1), (0, 0)))      # pad once, host-side
    # HWIO -> (9*Cin, Cout), K ordered (dh, dw, cin), matching the im2col slab.
    w1_flat = w1_hwio.astype(jnp.float32).reshape(9 * cin, cout).astype(mm_dtype)
    w2_flat = w2_hwio.astype(jnp.float32).reshape(9 * cout, cout).astype(mm_dtype)
    g1 = gamma1.astype(jnp.float32)
    b1 = beta1.astype(jnp.float32)
    g2 = gamma2.astype(jnp.float32)
    b2 = beta2.astype(jnp.float32)

    if (not force_multiphase) and _fused_path_fits(n, h, w, cin, cout):
        bn_params = jnp.stack([g1, b1, g2, b2], axis=0)       # (4, Cout)
        return _conv_block_fused(xpad, w1_flat, w2_flat, bn_params, pool_type)
    return _conv_block_multiphase(xpad, w1_flat, w2_flat, g1, b1, g2, b2,
                                  pool_type)


def conv_block_forward(x_nchw, w1_oihw, w2_oihw, gamma1, beta1, gamma2, beta2,
                       pool_type="avg", force_multiphase=False):
    """PyTorch-semantics ConvBlock.forward; input/output are NCHW."""
    x = jnp.transpose(x_nchw, (0, 2, 3, 1))
    w1 = jnp.transpose(w1_oihw, (2, 3, 1, 0))   # OIHW -> HWIO
    w2 = jnp.transpose(w2_oihw, (2, 3, 1, 0))
    out = conv_block_forward_nhwc(x, w1, w2, gamma1, beta1, gamma2, beta2,
                                  pool_type=pool_type,
                                  force_multiphase=force_multiphase)
    return jnp.transpose(out, (0, 3, 1, 2))


# ---------------------------------------------------------------------------
# Test harness
# ---------------------------------------------------------------------------
def _xavier_uniform_conv(key, out_ch, in_ch, kh, kw):
    fan_in = in_ch * kh * kw
    fan_out = out_ch * kh * kw
    bound = (6.0 / (fan_in + fan_out)) ** 0.5
    return jax.random.uniform(key, (out_ch, in_ch, kh, kw),
                              minval=-bound, maxval=bound, dtype=jnp.float32)


def _reference(x, w1, w2, g1, b1, g2, b2, pool_type):
    """Plain-JAX reference of the same forward (NCHW, training-mode BN)."""
    def bn_relu(y, g, b):
        mean = jnp.mean(y, axis=(0, 2, 3), keepdims=True)
        var = jnp.mean((y - mean) ** 2, axis=(0, 2, 3), keepdims=True)
        y = (y - mean) * jax.lax.rsqrt(var + BN_EPS)
        y = y * g.reshape(1, -1, 1, 1) + b.reshape(1, -1, 1, 1)
        return jnp.maximum(y, 0.0)

    dn = jax.lax.conv_dimension_numbers(x.shape, w1.shape,
                                        ("NCHW", "OIHW", "NCHW"))
    y = jax.lax.conv_general_dilated(x, w1, (1, 1), ((1, 1), (1, 1)),
                                     dimension_numbers=dn)
    y = bn_relu(y, g1, b1)
    y = jax.lax.conv_general_dilated(y, w2, (1, 1), ((1, 1), (1, 1)),
                                     dimension_numbers=dn)
    y = bn_relu(y, g2, b2)
    n, c, h, w = y.shape
    y5 = y.reshape(n, c, h // 2, 2, w // 2, 2)
    avg = y5.mean(axis=(3, 5))
    mx = y5.max(axis=(3, 5))
    if pool_type == "avg":
        return avg
    if pool_type == "max":
        return mx
    return avg + mx


if __name__ == "__main__":
    key = jax.random.PRNGKey(0)
    k_x, k_w1, k_w2 = jax.random.split(key, 3)

    N, CIN, COUT, H, W = 2, 4, 8, 16, 16
    x = jax.random.normal(k_x, (N, CIN, H, W), dtype=jnp.float32)

    # Parameters exactly as in ConvBlock.__init__ / init_weight()
    w1 = _xavier_uniform_conv(k_w1, COUT, CIN, 3, 3)      # conv1.weight
    w2 = _xavier_uniform_conv(k_w2, COUT, COUT, 3, 3)     # conv2.weight
    gamma1 = jnp.ones((COUT,), jnp.float32)               # bn1.weight
    beta1 = jnp.zeros((COUT,), jnp.float32)               # bn1.bias
    gamma2 = jnp.ones((COUT,), jnp.float32)               # bn2.weight
    beta2 = jnp.zeros((COUT,), jnp.float32)                # bn2.bias

    for pt in ("avg", "max", "avg+max"):
        ref = jax.block_until_ready(
            _reference(x, w1, w2, gamma1, beta1, gamma2, beta2, pt))
        # Exercise both the fused single-kernel path and the three-phase
        # fallback (used when the activation set does not fit VMEM).
        for force in (False, True):
            out = jax.block_until_ready(
                conv_block_forward(x, w1, w2, gamma1, beta1, gamma2, beta2,
                                   pt, force_multiphase=force))
            assert out.shape == (N, COUT, H // 2, W // 2)
            err = float(jnp.max(jnp.abs(out - ref)))
            assert err < 5e-4, (pt, force, err)

    print("KERNEL_OK")
</pallas_src>

<mosaic_0001>
module attributes {stable_mosaic.version = 11 : i64} {
  func.func @_fused_convblock_kernel(%arg0: i32, %arg1: memref<2x18x18x4xf32, #tpu.memory_space<vmem>>, %arg2: memref<36x8xf32, #tpu.memory_space<vmem>>, %arg3: memref<72x8xf32, #tpu.memory_space<vmem>>, %arg4: memref<4x8xf32, #tpu.memory_space<vmem>>, %arg5: memref<2x8x8x8xf32, #tpu.memory_space<vmem>>, %arg6: memref<2x18x18x8xf32, #tpu.memory_space<vmem>>) attributes {dimension_semantics = [#tpu.dimension_semantics<arbitrary>], iteration_bounds = array<i64: 1>, scalar_prefetch = 0 : i64, scratch_operands = 1 : i64, tpu.core_type = #tpu.core_type<tc>, window_params = [{pipeline_mode = #tpu.pipeline_mode<synchronous>, transform_indices = @transform_0, window_bounds = array<i64: 2, 18, 18, 4>}, {pipeline_mode = #tpu.pipeline_mode<synchronous>, transform_indices = @transform_1, window_bounds = array<i64: 36, 8>}, {pipeline_mode = #tpu.pipeline_mode<synchronous>, transform_indices = @transform_2, window_bounds = array<i64: 72, 8>}, {pipeline_mode = #tpu.pipeline_mode<synchronous>, transform_indices = @transform_3, window_bounds = array<i64: 4, 8>}, {pipeline_mode = #tpu.pipeline_mode<synchronous>, transform_indices = @transform_4, window_bounds = array<i64: 2, 8, 8, 8>}]} {
    %c0 = arith.constant 0 : index
    %c0_0 = arith.constant 0 : index
    %0 = vector.load %arg4[%c0, %c0_0] : memref<4x8xf32, #tpu.memory_space<vmem>>, vector<4x8xf32>
    %c0_1 = arith.constant 0 : index
    %c0_2 = arith.constant 0 : index
    %c0_3 = arith.constant 0 : index
    %c0_4 = arith.constant 0 : index
    %1 = vector.load %arg1[%c0_1, %c0_2, %c0_3, %c0_4] : memref<2x18x18x4xf32, #tpu.memory_space<vmem>>, vector<2x18x18x4xf32>
    %c0_5 = arith.constant 0 : index
    %c0_6 = arith.constant 0 : index
    %2 = vector.load %arg2[%c0_5, %c0_6] : memref<36x8xf32, #tpu.memory_space<vmem>>, vector<36x8xf32>
    %3 = vector.extract_strided_slice %1 {offsets = [0, 0, 0, 0], sizes = [2, 18, 16, 4], strides = [1, 1, 1, 1]} : vector<2x18x18x4xf32> to vector<2x18x16x4xf32>
    %4 = vector.extract_strided_slice %1 {offsets = [0, 0, 1, 0], sizes = [2, 18, 16, 4], strides = [1, 1, 1, 1]} : vector<2x18x18x4xf32> to vector<2x18x16x4xf32>
    %5 = vector.extract_strided_slice %1 {offsets = [0, 0, 2, 0], sizes = [2, 18, 16, 4], strides = [1, 1, 1, 1]} : vector<2x18x18x4xf32> to vector<2x18x16x4xf32>
    %6 = tpu.concatenate %3, %4, %5 in 3 : vector<2x18x16x4xf32>, vector<2x18x16x4xf32>, vector<2x18x16x4xf32> -> vector<2x18x16x12xf32>
    %7 = vector.extract_strided_slice %6 {offsets = [0, 0, 0, 0], sizes = [2, 16, 16, 12], strides = [1, 1, 1, 1]} : vector<2x18x16x12xf32> to vector<2x16x16x12xf32>
    %8 = vector.shape_cast %7 : vector<2x16x16x12xf32> to vector<512x12xf32>
    %9 = vector.extract_strided_slice %6 {offsets = [0, 1, 0, 0], sizes = [2, 16, 16, 12], strides = [1, 1, 1, 1]} : vector<2x18x16x12xf32> to vector<2x16x16x12xf32>
    %10 = vector.shape_cast %9 : vector<2x16x16x12xf32> to vector<512x12xf32>
    %11 = vector.extract_strided_slice %6 {offsets = [0, 2, 0, 0], sizes = [2, 16, 16, 12], strides = [1, 1, 1, 1]} : vector<2x18x16x12xf32> to vector<2x16x16x12xf32>
    %12 = vector.shape_cast %11 : vector<2x16x16x12xf32> to vector<512x12xf32>
    %13 = tpu.concatenate %8, %10, %12 in 1 : vector<512x12xf32>, vector<512x12xf32>, vector<512x12xf32> -> vector<512x36xf32>
    %cst = arith.constant dense<0.000000e+00> : vector<512x8xf32>
    %14 = tpu.matmul %13, %2, %cst {dimension_numbers = #tpu.dot_dimension_numbers<[1], [0], [0], [1], [0, 0, 1, 1], [], []>} : vector<512x36xf32>, vector<36x8xf32>, vector<512x8xf32> -> vector<512x8xf32>
    %15 = vector.extract_strided_slice %0 {offsets = [0, 0], sizes = [1, 8], strides = [1, 1]} : vector<4x8xf32> to vector<1x8xf32>
    %16 = vector.extract_strided_slice %0 {offsets = [1, 0], sizes = [1, 8], strides = [1, 1]} : vector<4x8xf32> to vector<1x8xf32>
    %cst_7 = arith.constant dense<0.000000e+00> : vector<8xf32>
    %17 = vector.multi_reduction <add>, %14, %cst_7 [0] : vector<512x8xf32> to vector<8xf32>
    %18 = vector.shape_cast %17 : vector<8xf32> to vector<1x8xf32>
    %cst_8 = arith.constant 5.120000e+02 : f32
    %19 = vector.broadcast %cst_8 : f32 to vector<1x8xf32>
    %20 = arith.divf %18, %19 : vector<1x8xf32>
    %21 = vector.broadcast %20 : vector<1x8xf32> to vector<512x8xf32>
    %22 = arith.subf %14, %21 : vector<512x8xf32>
    %23 = arith.mulf %22, %22 : vector<512x8xf32>
    %cst_9 = arith.constant dense<0.000000e+00> : vector<8xf32>
    %24 = vector.multi_reduction <add>, %23, %cst_9 [0] : vector<512x8xf32> to vector<8xf32>
    %25 = vector.shape_cast %24 : vector<8xf32> to vector<1x8xf32>
    %cst_10 = arith.constant 5.120000e+02 : f32
    %26 = vector.broadcast %cst_10 : f32 to vector<1x8xf32>
    %27 = arith.divf %25, %26 : vector<1x8xf32>
    %cst_11 = arith.constant 9.99999974E-6 : f32
    %28 = vector.broadcast %cst_11 : f32 to vector<1x8xf32>
    %29 = arith.addf %27, %28 : vector<1x8xf32>
    %30 = math.rsqrt %29 : vector<1x8xf32>
    %31 = vector.broadcast %20 : vector<1x8xf32> to vector<512x8xf32>
    %32 = arith.subf %14, %31 : vector<512x8xf32>
    %33 = vector.broadcast %30 : vector<1x8xf32> to vector<512x8xf32>
    %34 = arith.mulf %32, %33 : vector<512x8xf32>
    %35 = vector.broadcast %15 : vector<1x8xf32> to vector<512x8xf32>
    %36 = arith.mulf %34, %35 : vector<512x8xf32>
    %37 = vector.broadcast %16 : vector<1x8xf32> to vector<512x8xf32>
    %38 = arith.addf %36, %37 : vector<512x8xf32>
    %cst_12 = arith.constant 0.000000e+00 : f32
    %39 = vector.broadcast %cst_12 : f32 to vector<512x8xf32>
    %40 = arith.maximumf %38, %39 : vector<512x8xf32>
    %41 = vector.shape_cast %40 : vector<512x8xf32> to vector<2x16x16x8xf32>
    %cst_13 = arith.constant 0.000000e+00 : f32
    %42 = vector.broadcast %cst_13 : f32 to vector<2x1x18x8xf32>
    %c0_14 = arith.constant 0 : index
    %c0_15 = arith.constant 0 : index
    %c0_16 = arith.constant 0 : index
    %c0_17 = arith.constant 0 : index
    %43 = vector.load %arg6[%c0_14, %c0_15, %c0_16, %c0_17] : memref<2x18x18x8xf32, #tpu.memory_space<vmem>>, vector<2x1x18x8xf32>
    tpu.vector_store %arg6[%c0_14, %c0_15, %c0_16, %c0_17], %42 {strides = array<i32>} : memref<2x18x18x8xf32, #tpu.memory_space<vmem>>, vector<2x1x18x8xf32>,
    %c0_18 = arith.constant 0 : index
    %c17 = arith.constant 17 : index
    %c0_19 = arith.constant 0 : index
    %c0_20 = arith.constant 0 : index
    %44 = vector.load %arg6[%c0_18, %c17, %c0_19, %c0_20] : memref<2x18x18x8xf32, #tpu.memory_space<vmem>>, vector<2x1x18x8xf32>
    tpu.vector_store %arg6[%c0_18, %c17, %c0_19, %c0_20], %42 {strides = array<i32>} : memref<2x18x18x8xf32, #tpu.memory_space<vmem>>, vector<2x1x18x8xf32>,
    %cst_21 = arith.constant 0.000000e+00 : f32
    %45 = vector.broadcast %cst_21 : f32 to vector<2x16x1x8xf32>
    %c0_22 = arith.constant 0 : index
    %c1 = arith.constant 1 : index
    %c0_23 = arith.constant 0 : index
    %c0_24 = arith.constant 0 : index
    %46 = vector.load %arg6[%c0_22, %c1, %c0_23, %c0_24] : memref<2x18x18x8xf32, #tpu.memory_space<vmem>>, vector<2x16x1x8xf32>
    tpu.vector_store %arg6[%c0_22, %c1, %c0_23, %c0_24], %45 {strides = array<i32>} : memref<2x18x18x8xf32, #tpu.memory_space<vmem>>, vector<2x16x1x8xf32>,
    %c0_25 = arith.constant 0 : index
    %c1_26 = arith.constant 1 : index
    %c17_27 = arith.constant 17 : index
    %c0_28 = arith.constant 0 : index
    %47 = vector.load %arg6[%c0_25, %c1_26, %c17_27, %c0_28] : memref<2x18x18x8xf32, #tpu.memory_space<vmem>>, vector<2x16x1x8xf32>
    tpu.vector_store %arg6[%c0_25, %c1_26, %c17_27, %c0_28], %45 {strides = array<i32>} : memref<2x18x18x8xf32, #tpu.memory_space<vmem>>, vector<2x16x1x8xf32>,
    %c0_29 = arith.constant 0 : index
    %c1_30 = arith.constant 1 : index
    %c1_31 = arith.constant 1 : index
    %c0_32 = arith.constant 0 : index
    %48 = vector.load %arg6[%c0_29, %c1_30, %c1_31, %c0_32] : memref<2x18x18x8xf32, #tpu.memory_space<vmem>>, vector<2x16x16x8xf32>
    tpu.vector_store %arg6[%c0_29, %c1_30, %c1_31, %c0_32], %41 {strides = array<i32>} : memref<2x18x18x8xf32, #tpu.memory_space<vmem>>, vector<2x16x16x8xf32>,
    %c0_33 = arith.constant 0 : index
    %c0_34 = arith.constant 0 : index
    %c0_35 = arith.constant 0 : index
    %c0_36 = arith.constant 0 : index
    %49 = vector.load %arg6[%c0_33, %c0_34, %c0_35, %c0_36] : memref<2x18x18x8xf32, #tpu.memory_space<vmem>>, vector<2x18x18x8xf32>
    %c0_37 = arith.constant 0 : index
    %c0_38 = arith.constant 0 : index
    %50 = vector.load %arg3[%c0_37, %c0_38] : memref<72x8xf32, #tpu.memory_space<vmem>>, vector<72x8xf32>
    %51 = vector.extract_strided_slice %49 {offsets = [0, 0, 0, 0], sizes = [2, 18, 16, 8], strides = [1, 1, 1, 1]} : vector<2x18x18x8xf32> to vector<2x18x16x8xf32>
    %52 = vector.extract_strided_slice %49 {offsets = [0, 0, 1, 0], sizes = [2, 18, 16, 8], strides = [1, 1, 1, 1]} : vector<2x18x18x8xf32> to vector<2x18x16x8xf32>
    %53 = vector.extract_strided_slice %49 {offsets = [0, 0, 2, 0], sizes = [2, 18, 16, 8], strides = [1, 1, 1, 1]} : vector<2x18x18x8xf32> to vector<2x18x16x8xf32>
    %54 = tpu.concatenate %51, %52, %53 in 3 : vector<2x18x16x8xf32>, vector<2x18x16x8xf32>, vector<2x18x16x8xf32> -> vector<2x18x16x24xf32>
    %55 = vector.extract_strided_slice %54 {offsets = [0, 0, 0, 0], sizes = [2, 16, 16, 24], strides = [1, 1, 1, 1]} : vector<2x18x16x24xf32> to vector<2x16x16x24xf32>
    %56 = vector.shape_cast %55 : vector<2x16x16x24xf32> to vector<512x24xf32>
    %57 = vector.extract_strided_slice %54 {offsets = [0, 1, 0, 0], sizes = [2, 16, 16, 24], strides = [1, 1, 1, 1]} : vector<2x18x16x24xf32> to vector<2x16x16x24xf32>
    %58 = vector.shape_cast %57 : vector<2x16x16x24xf32> to vector<512x24xf32>
    %59 = vector.extract_strided_slice %54 {offsets = [0, 2, 0, 0], sizes = [2, 16, 16, 24], strides = [1, 1, 1, 1]} : vector<2x18x16x24xf32> to vector<2x16x16x24xf32>
    %60 = vector.shape_cast %59 : vector<2x16x16x24xf32> to vector<512x24xf32>
    %61 = tpu.concatenate %56, %58, %60 in 1 : vector<512x24xf32>, vector<512x24xf32>, vector<512x24xf32> -> vector<512x72xf32>
    %cst_39 = arith.constant dense<0.000000e+00> : vector<512x8xf32>
    %62 = tpu.matmul %61, %50, %cst_39 {dimension_numbers = #tpu.dot_dimension_numbers<[1], [0], [0], [1], [0, 0, 1, 1], [], []>} : vector<512x72xf32>, vector<72x8xf32>, vector<512x8xf32> -> vector<512x8xf32>
    %63 = vector.extract_strided_slice %0 {offsets = [2, 0], sizes = [1, 8], strides = [1, 1]} : vector<4x8xf32> to vector<1x8xf32>
    %64 = vector.extract_strided_slice %0 {offsets = [3, 0], sizes = [1, 8], strides = [1, 1]} : vector<4x8xf32> to vector<1x8xf32>
    %cst_40 = arith.constant dense<0.000000e+00> : vector<8xf32>
    %65 = vector.multi_reduction <add>, %62, %cst_40 [0] : vector<512x8xf32> to vector<8xf32>
    %66 = vector.shape_cast %65 : vector<8xf32> to vector<1x8xf32>
    %cst_41 = arith.constant 5.120000e+02 : f32
    %67 = vector.broadcast %cst_41 : f32 to vector<1x8xf32>
    %68 = arith.divf %66, %67 : vector<1x8xf32>
    %69 = vector.broadcast %68 : vector<1x8xf32> to vector<512x8xf32>
    %70 = arith.subf %62, %69 : vector<512x8xf32>
    %71 = arith.mulf %70, %70 : vector<512x8xf32>
    %cst_42 = arith.constant dense<0.000000e+00> : vector<8xf32>
    %72 = vector.multi_reduction <add>, %71, %cst_42 [0] : vector<512x8xf32> to vector<8xf32>
    %73 = vector.shape_cast %72 : vector<8xf32> to vector<1x8xf32>
    %cst_43 = arith.constant 5.120000e+02 : f32
    %74 = vector.broadcast %cst_43 : f32 to vector<1x8xf32>
    %75 = arith.divf %73, %74 : vector<1x8xf32>
    %cst_44 = arith.constant 9.99999974E-6 : f32
    %76 = vector.broadcast %cst_44 : f32 to vector<1x8xf32>
    %77 = arith.addf %75, %76 : vector<1x8xf32>
    %78 = math.rsqrt %77 : vector<1x8xf32>
    %79 = vector.broadcast %68 : vector<1x8xf32> to vector<512x8xf32>
    %80 = arith.subf %62, %79 : vector<512x8xf32>
    %81 = vector.broadcast %78 : vector<1x8xf32> to vector<512x8xf32>
    %82 = arith.mulf %80, %81 : vector<512x8xf32>
    %83 = vector.broadcast %63 : vector<1x8xf32> to vector<512x8xf32>
    %84 = arith.mulf %82, %83 : vector<512x8xf32>
    %85 = vector.broadcast %64 : vector<1x8xf32> to vector<512x8xf32>
    %86 = arith.addf %84, %85 : vector<512x8xf32>
    %cst_45 = arith.constant 0.000000e+00 : f32
    %87 = vector.broadcast %cst_45 : f32 to vector<512x8xf32>
    %88 = arith.maximumf %86, %87 : vector<512x8xf32>
    %89 = vector.shape_cast %88 : vector<512x8xf32> to vector<2x16x16x8xf32>
    %90 = vector.shape_cast %89 : vector<2x16x16x8xf32> to vector<2x8x2x16x8xf32>
    %91 = vector.extract_strided_slice %90 {offsets = [0, 0, 0, 0, 0], sizes = [2, 8, 1, 16, 8], strides = [1, 1, 1, 1, 1]} : vector<2x8x2x16x8xf32> to vector<2x8x1x16x8xf32>
    %92 = vector.shape_cast %91 : vector<2x8x1x16x8xf32> to vector<2x8x16x8xf32>
    %93 = vector.extract_strided_slice %90 {offsets = [0, 0, 1, 0, 0], sizes = [2, 8, 1, 16, 8], strides = [1, 1, 1, 1, 1]} : vector<2x8x2x16x8xf32> to vector<2x8x1x16x8xf32>
    %94 = vector.shape_cast %93 : vector<2x8x1x16x8xf32> to vector<2x8x16x8xf32>
    %95 = arith.addf %92, %94 : vector<2x8x16x8xf32>
    %96 = vector.shape_cast %95 : vector<2x8x16x8xf32> to vector<2x8x8x2x8xf32>
    %97 = vector.extract_strided_slice %96 {offsets = [0, 0, 0, 0, 0], sizes = [2, 8, 8, 1, 8], strides = [1, 1, 1, 1, 1]} : vector<2x8x8x2x8xf32> to vector<2x8x8x1x8xf32>
    %98 = vector.shape_cast %97 : vector<2x8x8x1x8xf32> to vector<2x8x8x8xf32>
    %99 = vector.extract_strided_slice %96 {offsets = [0, 0, 0, 1, 0], sizes = [2, 8, 8, 1, 8], strides = [1, 1, 1, 1, 1]} : vector<2x8x8x2x8xf32> to vector<2x8x8x1x8xf32>
    %100 = vector.shape_cast %99 : vector<2x8x8x1x8xf32> to vector<2x8x8x8xf32>
    %101 = arith.addf %98, %100 : vector<2x8x8x8xf32>
    %cst_46 = arith.constant 2.500000e-01 : f32
    %102 = vector.broadcast %cst_46 : f32 to vector<2x8x8x8xf32>
    %103 = arith.mulf %101, %102 : vector<2x8x8x8xf32>
    %c0_47 = arith.constant 0 : index
    %c0_48 = arith.constant 0 : index
    %c0_49 = arith.constant 0 : index
    %c0_50 = arith.constant 0 : index
    %104 = vector.load %arg5[%c0_47, %c0_48, %c0_49, %c0_50] : memref<2x8x8x8xf32, #tpu.memory_space<vmem>>, vector<2x8x8x8xf32>
    tpu.vector_store %arg5[%c0_47, %c0_48, %c0_49, %c0_50], %103 {strides = array<i32>} : memref<2x8x8x8xf32, #tpu.memory_space<vmem>>, vector<2x8x8x8xf32>,
    return
  }
  func.func @transform_0(%arg0: i32) -> (i32, i32, i32, i32) {
    %c0_i32 = arith.constant 0 : i32
    %c0_i32_0 = arith.constant 0 : i32
    %c0_i32_1 = arith.constant 0 : i32
    %c0_i32_2 = arith.constant 0 : i32
    %c0_i32_3 = arith.constant 0 : i32
    return %c0_i32, %c0_i32_0, %c0_i32_1, %c0_i32_2 : i32, i32, i32, i32
  }
  func.func @transform_1(%arg0: i32) -> (i32, i32) {
    %c0_i32 = arith.constant 0 : i32
    %c0_i32_0 = arith.constant 0 : i32
    %c0_i32_1 = arith.constant 0 : i32
    return %c0_i32, %c0_i32_0 : i32, i32
  }
  func.func @transform_2(%arg0: i32) -> (i32, i32) {
    %c0_i32 = arith.constant 0 : i32
    %c0_i32_0 = arith.constant 0 : i32
    %c0_i32_1 = arith.constant 0 : i32
    return %c0_i32, %c0_i32_0 : i32, i32
  }
  func.func @transform_3(%arg0: i32) -> (i32, i32) {
    %c0_i32 = arith.constant 0 : i32
    %c0_i32_0 = arith.constant 0 : i32
    %c0_i32_1 = arith.constant 0 : i32
    return %c0_i32, %c0_i32_0 : i32, i32
  }
  func.func @transform_4(%arg0: i32) -> (i32, i32, i32, i32) {
    %c0_i32 = arith.constant 0 : i32
    %c0_i32_0 = arith.constant 0 : i32
    %c0_i32_1 = arith.constant 0 : i32
    %c0_i32_2 = arith.constant 0 : i32
    %c0_i32_3 = arith.constant 0 : i32
    return %c0_i32, %c0_i32_0, %c0_i32_1, %c0_i32_2 : i32, i32, i32, i32
  }
}

</mosaic_0001>

<llo_original>
// kernel: conv_block_forward_nhwc.1
$region0: #{conv_block_forward_nhwc.1}
  #allocation0 [shape = 'u32[]', space=smem, size = 0x4, offset = 0x4, fixed_abs, tag = 'smem constant byte address 0x4 - core index']
  #allocation1 [shape = 'u32[144,128]{1,0:T(1,128)}', space=vmem, size = 0x12000, scoped, tag = 'internal scratch']
  #allocation2 [shape = 'f32[2,18,18,8]{3,2,1,0:T(8,128)}', space=vmem, size = 0x6c000, scoped, tag = 'scratch operand']
  %s0 = inlined_call_operand.vmem [shape: f32[2,18,18,4], index: 0, kind: input, shape index: {}]
  %s1 = inlined_call_operand.vmem [shape: f32[36,8], index: 1, kind: input, shape index: {}]
  %s2 = inlined_call_operand.vmem [shape: f32[72,8], index: 2, kind: input, shape index: {}]
  %s3 = inlined_call_operand.vmem [shape: f32[4,8], index: 3, kind: input, shape index: {}]
  %s4 = inlined_call_operand.hbm [shape: f32[2,8,8,8], index: 4, kind: output, shape index: {}]
  %s5 = sld [smem:[#allocation0]]
  $region26: #{conv_block_forward_nhwc.1} parent=0
    _
  %s7 = ssub.s32 1, %s5
  %s8 = scalar_select 0, %s7, %s5
  $region1: #{conv_block_forward_nhwc.1} parent=0
    #allocation3 [shape = 'u8[65536]{0}', space=vmem, size = 0x10000, scoped, tag = 'output window, operand 0, single buffered']
    #allocation4 [shape = 's32[1]{0}', space=sflag, size = 0x4, scoped, tag = 'scoped memory for conv_block_forward_nhwc.1']
    %9 = vsyncpa [#allocation4], 0
    // Predicated region
    $region2: #{conv_block_forward_nhwc.1} parent=1 // pred_check
      _
    $region3: #{conv_block_forward_nhwc.1} parent=1 // pred_check_branch
      %11 = sbr.rel (0) target = $region5
    $region4: #{conv_block_forward_nhwc.1} parent=1 // pred_region
      _
    $region5: #{conv_block_forward_nhwc.1} parent=1 // pred_fallthru
      _
    // Predicated region
    $region6: #{conv_block_forward_nhwc.1} parent=1 // pred_check
      _
    $region7: #{conv_block_forward_nhwc.1} parent=1 // pred_check_branch
      %13 = sbr.rel (0) target = $region9
    $region8: #{conv_block_forward_nhwc.1} parent=1 // pred_region
      _
    $region9: #{conv_block_forward_nhwc.1} parent=1 // pred_fallthru
      _
    // Predicated region
    $region10: #{conv_block_forward_nhwc.1} parent=1 // pred_check
      _
    $region11: #{conv_block_forward_nhwc.1} parent=1 // pred_check_branch
      %15 = sbr.rel (0) target = $region13
    $region12: #{conv_block_forward_nhwc.1} parent=1 // pred_region
      _
    $region13: #{conv_block_forward_nhwc.1} parent=1 // pred_fallthru
      _
    // Predicated region
    $region14: #{conv_block_forward_nhwc.1} parent=1 // pred_check
      _
    $region15: #{conv_block_forward_nhwc.1} parent=1 // pred_check_branch
      %17 = sbr.rel (0) target = $region17
    $region16: #{conv_block_forward_nhwc.1} parent=1 // pred_region
      _
    $region17: #{conv_block_forward_nhwc.1} parent=1 // pred_fallthru
      _
    %v18 = vld [vmem:[%s3] sm:$0xf]
    %v19 = vld [vmem:[%s0] sm:$0xff]
    %v20 = vld [vmem:[%s0 + $0x8] sm:$0xff]
    %v21 = vld [vmem:[%s0 + $0x10] sm:$0x3]
    %v22 = vld [vmem:[%s0 + $0x18] sm:$0xff]
    %v23 = vld [vmem:[%s0 + $0x20] sm:$0xff]
    %v24 = vld [vmem:[%s0 + $0x28] sm:$0x3]
    %v25 = vld [vmem:[%s0 + $0x30] sm:$0xff]
    %v26 = vld [vmem:[%s0 + $0x38] sm:$0xff]
    %v27 = vld [vmem:[%s0 + $0x40] sm:$0x3]
    %v28 = vld [vmem:[%s0 + $0x48] sm:$0xff]
    %v29 = vld [vmem:[%s0 + $0x50] sm:$0xff]
    %v30 = vld [vmem:[%s0 + $0x58] sm:$0x3]
    %v31 = vld [vmem:[%s0 + $0x60] sm:$0xff]
    %v32 = vld [vmem:[%s0 + $0x68] sm:$0xff]
    %v33 = vld [vmem:[%s0 + $0x70] sm:$0x3]
    %v34 = vld [vmem:[%s0 + $0x78] sm:$0xff]
    %v35 = vld [vmem:[%s0 + $0x80] sm:$0xff]
    %v36 = vld [vmem:[%s0 + $0x88] sm:$0x3]
    %v37 = vld [vmem:[%s0 + $0x90] sm:$0xff]
    %v38 = vld [vmem:[%s0 + $0x98] sm:$0xff]
    %v39 = vld [vmem:[%s0 + $0xa0] sm:$0x3]
    %v40 = vld [vmem:[%s0 + $0xa8] sm:$0xff]
    %v41 = vld [vmem:[%s0 + $0xb0] sm:$0xff]
    %v42 = vld [vmem:[%s0 + $0xb8] sm:$0x3]
    %v43 = vld [vmem:[%s0 + $0xc0] sm:$0xff]
    %v44 = vld [vmem:[%s0 + $0xc8] sm:$0xff]
    %v45 = vld [vmem:[%s0 + $0xd0] sm:$0x3]
    %v46 = vld [vmem:[%s0 + $0xd8] sm:$0xff]
    %v47 = vld [vmem:[%s0 + $0xe0] sm:$0xff]
    %v48 = vld [vmem:[%s0 + $0xe8] sm:$0x3]
    %v49 = vld [vmem:[%s0 + $0xf0] sm:$0xff]
    %v50 = vld [vmem:[%s0 + $0xf8] sm:$0xff]
    %v51 = vld [vmem:[%s0 + $0x100] sm:$0x3]
    %v52 = vld [vmem:[%s0 + $0x108] sm:$0xff]
    %v53 = vld [vmem:[%s0 + $0x110] sm:$0xff]
    %v54 = vld [vmem:[%s0 + $0x118] sm:$0x3]
    %v55 = vld [vmem:[%s0 + $0x120] sm:$0xff]
    %v56 = vld [vmem:[%s0 + $0x128] sm:$0xff]
    %v57 = vld [vmem:[%s0 + $0x130] sm:$0x3]
    %v58 = vld [vmem:[%s0 + $0x138] sm:$0xff]
    %v59 = vld [vmem:[%s0 + $0x140] sm:$0xff]
    %v60 = vld [vmem:[%s0 + $0x148] sm:$0x3]
    %v61 = vld [vmem:[%s0 + $0x150] sm:$0xff]
    %v62 = vld [vmem:[%s0 + $0x158] sm:$0xff]
    %v63 = vld [vmem:[%s0 + $0x160] sm:$0x3]
    %v64 = vld [vmem:[%s0 + $0x168] sm:$0xff]
    %v65 = vld [vmem:[%s0 + $0x170] sm:$0xff]
    %v66 = vld [vmem:[%s0 + $0x178] sm:$0x3]
    %v67 = vld [vmem:[%s0 + $0x180] sm:$0xff]
    %v68 = vld [vmem:[%s0 + $0x188] sm:$0xff]
    %v69 = vld [vmem:[%s0 + $0x190] sm:$0x3]
    %v70 = vld [vmem:[%s0 + $0x198] sm:$0xff]
    %v71 = vld [vmem:[%s0 + $0x1a0] sm:$0xff]
    %v72 = vld [vmem:[%s0 + $0x1a8] sm:$0x3]
    %v73 = vld [vmem:[%s0 + $0x1b0] sm:$0xff]
    %v74 = vld [vmem:[%s0 + $0x1b8] sm:$0xff]
    %v75 = vld [vmem:[%s0 + $0x1c0] sm:$0x3]
    %v76 = vld [vmem:[%s0 + $0x1c8] sm:$0xff]
    %v77 = vld [vmem:[%s0 + $0x1d0] sm:$0xff]
    %v78 = vld [vmem:[%s0 + $0x1d8] sm:$0x3]
    %v79 = vld [vmem:[%s0 + $0x1e0] sm:$0xff]
    %v80 = vld [vmem:[%s0 + $0x1e8] sm:$0xff]
    %v81 = vld [vmem:[%s0 + $0x1f0] sm:$0x3]
    %v82 = vld [vmem:[%s0 + $0x1f8] sm:$0xff]
    %v83 = vld [vmem:[%s0 + $0x200] sm:$0xff]
    %v84 = vld [vmem:[%s0 + $0x208] sm:$0x3]
    %v85 = vld [vmem:[%s0 + $0x210] sm:$0xff]
    %v86 = vld [vmem:[%s0 + $0x218] sm:$0xff]
    %v87 = vld [vmem:[%s0 + $0x220] sm:$0x3]
    %v88 = vld [vmem:[%s0 + $0x228] sm:$0xff]
    %v89 = vld [vmem:[%s0 + $0x230] sm:$0xff]
    %v90 = vld [vmem:[%s0 + $0x238] sm:$0x3]
    %v91 = vld [vmem:[%s0 + $0x240] sm:$0xff]
    %v92 = vld [vmem:[%s0 + $0x248] sm:$0xff]
    %v93 = vld [vmem:[%s0 + $0x250] sm:$0x3]
    %v94 = vld [vmem:[%s0 + $0x258] sm:$0xff]
    %v95 = vld [vmem:[%s0 + $0x260] sm:$0xff]
    %v96 = vld [vmem:[%s0 + $0x268] sm:$0x3]
    %v97 = vld [vmem:[%s0 + $0x270] sm:$0xff]
    %v98 = vld [vmem:[%s0 + $0x278] sm:$0xff]
    %v99 = vld [vmem:[%s0 + $0x280] sm:$0x3]
    %v100 = vld [vmem:[%s0 + $0x288] sm:$0xff]
    %v101 = vld [vmem:[%s0 + $0x290] sm:$0xff]
    %v102 = vld [vmem:[%s0 + $0x298] sm:$0x3]
    %v103 = vld [vmem:[%s0 + $0x2a0] sm:$0xff]
    %v104 = vld [vmem:[%s0 + $0x2a8] sm:$0xff]
    %v105 = vld [vmem:[%s0 + $0x2b0] sm:$0x3]
    %v106 = vld [vmem:[%s0 + $0x2b8] sm:$0xff]
    %v107 = vld [vmem:[%s0 + $0x2c0] sm:$0xff]
    %v108 = vld [vmem:[%s0 + $0x2c8] sm:$0x3]
    %v109 = vld [vmem:[%s0 + $0x2d0] sm:$0xff]
    %v110 = vld [vmem:[%s0 + $0x2d8] sm:$0xff]
    %v111 = vld [vmem:[%s0 + $0x2e0] sm:$0x3]
    %v112 = vld [vmem:[%s0 + $0x2e8] sm:$0xff]
    %v113 = vld [vmem:[%s0 + $0x2f0] sm:$0xff]
    %v114 = vld [vmem:[%s0 + $0x2f8] sm:$0x3]
    %v115 = vld [vmem:[%s0 + $0x300] sm:$0xff]
    %v116 = vld [vmem:[%s0 + $0x308] sm:$0xff]
    %v117 = vld [vmem:[%s0 + $0x310] sm:$0x3]
    %v118 = vld [vmem:[%s0 + $0x318] sm:$0xff]
    %v119 = vld [vmem:[%s0 + $0x320] sm:$0xff]
    %v120 = vld [vmem:[%s0 + $0x328] sm:$0x3]
    %v121 = vld [vmem:[%s0 + $0x330] sm:$0xff]
    %v122 = vld [vmem:[%s0 + $0x338] sm:$0xff]
    %v123 = vld [vmem:[%s0 + $0x340] sm:$0x3]
    %v124 = vld [vmem:[%s0 + $0x348] sm:$0xff]
    %v125 = vld [vmem:[%s0 + $0x350] sm:$0xff]
    %v126 = vld [vmem:[%s0 + $0x358] sm:$0x3]
    %v127 = vld [vmem:[%s1] sm:$0xff]
    %v128 = vld [vmem:[%s1 + $0x8] sm:$0xff]
    %v129 = vld [vmem:[%s1 + $0x10] sm:$0xff]
    %v130 = vld [vmem:[%s1 + $0x18] sm:$0xff]
    %v131 = vld [vmem:[%s1 + $0x20] sm:$0xf]
    %vm240 = vcmask 1046528
    %v241 = vrot.slane %v19, 1
    %v242 = vrot.slane %v20, 1
    %v243 = vsel %vm240, %v241, %v242
    %v244 = vrot.slane %v21, 1
    %v245 = vsel %vm240, %v242, %v244
    %v246 = vrot.slane %v22, 1
    %v247 = vrot.slane %v23, 1
    %v248 = vsel %vm240, %v246, %v247
    %v249 = vrot.slane %v24, 1
    %v250 = vsel %vm240, %v247, %v249
    %v251 = vrot.slane %v25, 1
    %v252 = vrot.slane %v26, 1
    %v253 = vsel %vm240, %v251, %v252
    %v254 = vrot.slane %v27, 1
    %v255 = vsel %vm240, %v252, %v254
    %v256 = vrot.slane %v28, 1
    %v257 = vrot.slane %v29, 1
    %v258 = vsel %vm240, %v256, %v257
    %v259 = vrot.slane %v30, 1
    %v260 = vsel %vm240, %v257, %v259
    %v261 = vrot.slane %v31, 1
    %v262 = vrot.slane %v32, 1
    %v263 = vsel %vm240, %v261, %v262
    %v264 = vrot.slane %v33, 1
    %v265 = vsel %vm240, %v262, %v264
    %v266 = vrot.slane %v34, 1
    %v267 = vrot.slane %v35, 1
    %v268 = vsel %vm240, %v266, %v267
    %v269 = vrot.slane %v36, 1
    %v270 = vsel %vm240, %v267, %v269
    %v271 = vrot.slane %v37, 1
    %v272 = vrot.slane %v38, 1
    %v273 = vsel %vm240, %v271, %v272
    %v274 = vrot.slane %v39, 1
    %v275 = vsel %vm240, %v272, %v274
    %v276 = vrot.slane %v40, 1
    %v277 = vrot.slane %v41, 1
    %v278 = vsel %vm240, %v276, %v277
    %v279 = vrot.slane %v42, 1
    %v280 = vsel %vm240, %v277, %v279
    %v281 = vrot.slane %v43, 1
    %v282 = vrot.slane %v44, 1
    %v283 = vsel %vm240, %v281, %v282
    %v284 = vrot.slane %v45, 1
    %v285 = vsel %vm240, %v282, %v284
    %v286 = vrot.slane %v46, 1
    %v287 = vrot.slane %v47, 1
    %v288 = vsel %vm240, %v286, %v287
    %v289 = vrot.slane %v48, 1
    %v290 = vsel %vm240, %v287, %v289
    %v291 = vrot.slane %v49, 1
    %v292 = vrot.slane %v50, 1
    %v293 = vsel %vm240, %v291, %v292
    %v294 = vrot.slane %v51, 1
    %v295 = vsel %vm240, %v292, %v294
    %v296 = vrot.slane %v52, 1
    %v297 = vrot.slane %v53, 1
    %v298 = vsel %vm240, %v296, %v297
    %v299 = vrot.slane %v54, 1
    %v300 = vsel %vm240, %v297, %v299
    %v301 = vrot.slane %v55, 1
    %v302 = vrot.slane %v56, 1
    %v303 = vsel %vm240, %v301, %v302
    %v304 = vrot.slane %v57, 1
    %v305 = vsel %vm240, %v302, %v304
    %v306 = vrot.slane %v58, 1
    %v307 = vrot.slane %v59, 1
    %v308 = vsel %vm240, %v306, %v307
    %v309 = vrot.slane %v60, 1
    %v310 = vsel %vm240, %v307, %v309
    %v311 = vrot.slane %v61, 1
    %v312 = vrot.slane %v62, 1
    %v313 = vsel %vm240, %v311, %v312
    %v314 = vrot.slane %v63, 1
    %v315 = vsel %vm240, %v312, %v314
    %v316 = vrot.slane %v64, 1
    %v317 = vrot.slane %v65, 1
    %v318 = vsel %vm240, %v316, %v317
    %v319 = vrot.slane %v66, 1
    %v320 = vsel %vm240, %v317, %v319
    %v321 = vrot.slane %v67, 1
    %v322 = vrot.slane %v68, 1
    %v323 = vsel %vm240, %v321, %v322
    %v324 = vrot.slane %v69, 1
    %v325 = vsel %vm240, %v322, %v324
    %v326 = vrot.slane %v70, 1
    %v327 = vrot.slane %v71, 1
    %v328 = vsel %vm240, %v326, %v327
    %v329 = vrot.slane %v72, 1
    %v330 = vsel %vm240, %v327, %v329
    %v331 = vrot.slane %v73, 1
    %v332 = vrot.slane %v74, 1
    %v333 = vsel %vm240, %v331, %v332
    %v334 = vrot.slane %v75, 1
    %v335 = vsel %vm240, %v332, %v334
    %v336 = vrot.slane %v76, 1
    %v337 = vrot.slane %v77, 1
    %v338 = vsel %vm240, %v336, %v337
    %v339 = vrot.slane %v78, 1
    %v340 = vsel %vm240, %v337, %v339
    %v341 = vrot.slane %v79, 1
    %v342 = vrot.slane %v80, 1
    %v343 = vsel %vm240, %v341, %v342
    %v344 = vrot.slane %v81, 1
    %v345 = vsel %vm240, %v342, %v344
    %v346 = vrot.slane %v82, 1
    %v347 = vrot.slane %v83, 1
    %v348 = vsel %vm240, %v346, %v347
    %v349 = vrot.slane %v84, 1
    %v350 = vsel %vm240, %v347, %v349
    %v351 = vrot.slane %v85, 1
    %v352 = vrot.slane %v86, 1
    %v353 = vsel %vm240, %v351, %v352
    %v354 = vrot.slane %v87, 1
    %v355 = vsel %vm240, %v352, %v354
    %v356 = vrot.slane %v88, 1
    %v357 = vrot.slane %v89, 1
    %v358 = vsel %vm240, %v356, %v357
    %v359 = vrot.slane %v90, 1
    %v360 = vsel %vm240, %v357, %v359
    %v361 = vrot.slane %v91, 1
    %v362 = vrot.slane %v92, 1
    %v363 = vsel %vm240, %v361, %v362
    %v364 = vrot.slane %v93, 1
    %v365 = vsel %vm240, %v362, %v364
    %v366 = vrot.slane %v94, 1
    %v367 = vrot.slane %v95, 1
    %v368 = vsel %vm240, %v366, %v367
    %v369 = vrot.slane %v96, 1
    %v370 = vsel %vm240, %v367, %v369
    %v371 = vrot.slane %v97, 1
    %v372 = vrot.slane %v98, 1
    %v373 = vsel %vm240, %v371, %v372
    %v374 = vrot.slane %v99, 1
    %v375 = vsel %vm240, %v372, %v374
    %v376 = vrot.slane %v100, 1
    %v377 = vrot.slane %v101, 1
    %v378 = vsel %vm240, %v376, %v377
    %v379 = vrot.slane %v102, 1
    %v380 = vsel %vm240, %v377, %v379
    %v381 = vrot.slane %v103, 1
    %v382 = vrot.slane %v104, 1
    %v383 = vsel %vm240, %v381, %v382
    %v384 = vrot.slane %v105, 1
    %v385 = vsel %vm240, %v382, %v384
    %v386 = vrot.slane %v106, 1
    %v387 = vrot.slane %v107, 1
    %v388 = vsel %vm240, %v386, %v387
    %v389 = vrot.slane %v108, 1
    %v390 = vsel %vm240, %v387, %v389
    %v391 = vrot.slane %v109, 1
    %v392 = vrot.slane %v110, 1
    %v393 = vsel %vm240, %v391, %v392
    %v394 = vrot.slane %v111, 1
    %v395 = vsel %vm240, %v392, %v394
    %v396 = vrot.slane %v112, 1
    %v397 = vrot.slane %v113, 1
    %v398 = vsel %vm240, %v396, %v397
    %v399 = vrot.slane %v114, 1
    %v400 = vsel %vm240, %v397, %v399
    %v401 = vrot.slane %v115, 1
    %v402 = vrot.slane %v116, 1
    %v403 = vsel %vm240, %v401, %v402
    %v404 = vrot.slane %v117, 1
    %v405 = vsel %vm240, %v402, %v404
    %v406 = vrot.slane %v118, 1
    %v407 = vrot.slane %v119, 1
    %v408 = vsel %vm240, %v406, %v407
    %v409 = vrot.slane %v120, 1
    %v410 = vsel %vm240, %v407, %v409
    %v411 = vrot.slane %v121, 1
    %v412 = vrot.slane %v122, 1
    %v413 = vsel %vm240, %v411, %v412
    %v414 = vrot.slane %v123, 1
    %v415 = vsel %vm240, %v412, %v414
    %v416 = vrot.slane %v124, 1
    %v417 = vrot.slane %v125, 1
    %v418 = vsel %vm240, %v416, %v417
    %v419 = vrot.slane %v126, 1
    %v420 = vsel %vm240, %v417, %v419
    %421 = vrot.lane.b32.xlu0 %v243, 4
    %v422 = vpop.permute.xlu0 %421
    %423 = vrot.lane.b32.xlu0 %v245, 4
    %v424 = vpop.permute.xlu0 %423
    %425 = vrot.lane.b32.xlu0 %v248, 4
    %v426 = vpop.permute.xlu0 %425
    %427 = vrot.lane.b32.xlu0 %v250, 4
    %v428 = vpop.permute.xlu0 %427
    %429 = vrot.lane.b32.xlu0 %v253, 4
    %v430 = vpop.permute.xlu0 %429
    %431 = vrot.lane.b32.xlu0 %v255, 4
    %v432 = vpop.permute.xlu0 %431
    %433 = vrot.lane.b32.xlu0 %v258, 4
    %v434 = vpop.permute.xlu0 %433
    %435 = vrot.lane.b32.xlu0 %v260, 4
    %v436 = vpop.permute.xlu0 %435
    %437 = vrot.lane.b32.xlu0 %v263, 4
    %v438 = vpop.permute.xlu0 %437
    %439 = vrot.lane.b32.xlu0 %v265, 4
    %v440 = vpop.permute.xlu0 %439
    %441 = vrot.lane.b32.xlu0 %v268, 4
    %v442 = vpop.permute.xlu0 %441
    %443 = vrot.lane.b32.xlu0 %v270, 4
    %v444 = vpop.permute.xlu0 %443
    %445 = vrot.lane.b32.xlu0 %v273, 4
    %v446 = vpop.permute.xlu0 %445
    %447 = vrot.lane.b32.xlu0 %v275, 4
    %v448 = vpop.permute.xlu0 %447
    %449 = vrot.lane.b32.xlu0 %v278, 4
    %v450 = vpop.permute.xlu0 %449
    %451 = vrot.lane.b32.xlu0 %v280, 4
    %v452 = vpop.permute.xlu0 %451
    %453 = vrot.lane.b32.xlu0 %v283, 4
    %v454 = vpop.permute.xlu0 %453
    %455 = vrot.lane.b32.xlu0 %v285, 4
    %v456 = vpop.permute.xlu0 %455
    %457 = vrot.lane.b32.xlu0 %v288, 4
    %v458 = vpop.permute.xlu0 %457
    %459 = vrot.lane.b32.xlu0 %v290, 4
    %v460 = vpop.permute.xlu0 %459
    %461 = vrot.lane.b32.xlu0 %v293, 4
    %v462 = vpop.permute.xlu0 %461
    %463 = vrot.lane.b32.xlu0 %v295, 4
    %v464 = vpop.permute.xlu0 %463
    %465 = vrot.lane.b32.xlu0 %v298, 4
    %v466 = vpop.permute.xlu0 %465
    %467 = vrot.lane.b32.xlu0 %v300, 4
    %v468 = vpop.permute.xlu0 %467
    %469 = vrot.lane.b32.xlu0 %v303, 4
    %v470 = vpop.permute.xlu0 %469
    %471 = vrot.lane.b32.xlu0 %v305, 4
    %v472 = vpop.permute.xlu0 %471
    %473 = vrot.lane.b32.xlu0 %v308, 4
    %v474 = vpop.permute.xlu0 %473
    %475 = vrot.lane.b32.xlu0 %v310, 4
    %v476 = vpop.permute.xlu0 %475
    %477 = vrot.lane.b32.xlu0 %v313, 4
    %v478 = vpop.permute.xlu0 %477
    %479 = vrot.lane.b32.xlu0 %v315, 4
    %v480 = vpop.permute.xlu0 %479
    %481 = vrot.lane.b32.xlu0 %v318, 4
    %v482 = vpop.permute.xlu0 %481
    %483 = vrot.lane.b32.xlu0 %v320, 4
    %v484 = vpop.permute.xlu0 %483
    %485 = vrot.lane.b32.xlu0 %v323, 4
    %v486 = vpop.permute.xlu0 %485
    %487 = vrot.lane.b32.xlu0 %v325, 4
    %v488 = vpop.permute.xlu0 %487
    %489 = vrot.lane.b32.xlu0 %v328, 4
    %v490 = vpop.permute.xlu0 %489
    %491 = vrot.lane.b32.xlu0 %v330, 4
    %v492 = vpop.permute.xlu0 %491
    %493 = vrot.lane.b32.xlu0 %v333, 4
    %v494 = vpop.permute.xlu0 %493
    %495 = vrot.lane.b32.xlu0 %v335, 4
    %v496 = vpop.permute.xlu0 %495
    %497 = vrot.lane.b32.xlu0 %v338, 4
    %v498 = vpop.permute.xlu0 %497
    %499 = vrot.lane.b32.xlu0 %v340, 4
    %v500 = vpop.permute.xlu0 %499
    %501 = vrot.lane.b32.xlu0 %v343, 4
    %v502 = vpop.permute.xlu0 %501
    %503 = vrot.lane.b32.xlu0 %v345, 4
    %v504 = vpop.permute.xlu0 %503
    %505 = vrot.lane.b32.xlu0 %v348, 4
    %v506 = vpop.permute.xlu0 %505
    %507 = vrot.lane.b32.xlu0 %v350, 4
    %v508 = vpop.permute.xlu0 %507
    %509 = vrot.lane.b32.xlu0 %v353, 4
    %v510 = vpop.permute.xlu0 %509
    %511 = vrot.lane.b32.xlu0 %v355, 4
    %v512 = vpop.permute.xlu0 %511
    %513 = vrot.lane.b32.xlu0 %v358, 4
    %v514 = vpop.permute.xlu0 %513
    %515 = vrot.lane.b32.xlu0 %v360, 4
    %v516 = vpop.permute.xlu0 %515
    %517 = vrot.lane.b32.xlu0 %v363, 4
    %v518 = vpop.permute.xlu0 %517
    %519 = vrot.lane.b32.xlu0 %v365, 4
    %v520 = vpop.permute.xlu0 %519
    %521 = vrot.lane.b32.xlu0 %v368, 4
    %v522 = vpop.permute.xlu0 %521
    %523 = vrot.lane.b32.xlu0 %v370, 4
    %v524 = vpop.permute.xlu0 %523
    %525 = vrot.lane.b32.xlu0 %v373, 4
    %v526 = vpop.permute.xlu0 %525
    %527 = vrot.lane.b32.xlu0 %v375, 4
    %v528 = vpop.permute.xlu0 %527
    %529 = vrot.lane.b32.xlu0 %v378, 4
    %v530 = vpop.permute.xlu0 %529
    %531 = vrot.lane.b32.xlu0 %v380, 4
    %v532 = vpop.permute.xlu0 %531
    %533 = vrot.lane.b32.xlu0 %v383, 4
    %v534 = vpop.permute.xlu0 %533
    %535 = vrot.lane.b32.xlu0 %v385, 4
    %v536 = vpop.permute.xlu0 %535
    %537 = vrot.lane.b32.xlu0 %v388, 4
    %v538 = vpop.permute.xlu0 %537
    %539 = vrot.lane.b32.xlu0 %v390, 4
    %v540 = vpop.permute.xlu0 %539
    %541 = vrot.lane.b32.xlu0 %v393, 4
    %v542 = vpop.permute.xlu0 %541
    %543 = vrot.lane.b32.xlu0 %v395, 4
    %v544 = vpop.permute.xlu0 %543
    %545 = vrot.lane.b32.xlu0 %v398, 4
    %v546 = vpop.permute.xlu0 %545
    %547 = vrot.lane.b32.xlu0 %v400, 4
    %v548 = vpop.permute.xlu0 %547
    %549 = vrot.lane.b32.xlu0 %v403, 4
    %v550 = vpop.permute.xlu0 %549
    %551 = vrot.lane.b32.xlu0 %v405, 4
    %v552 = vpop.permute.xlu0 %551
    %553 = vrot.lane.b32.xlu0 %v408, 4
    %v554 = vpop.permute.xlu0 %553
    %555 = vrot.lane.b32.xlu0 %v410, 4
    %v556 = vpop.permute.xlu0 %555
    %557 = vrot.lane.b32.xlu0 %v413, 4
    %v558 = vpop.permute.xlu0 %557
    %559 = vrot.lane.b32.xlu0 %v415, 4
    %v560 = vpop.permute.xlu0 %559
    %561 = vrot.lane.b32.xlu0 %v418, 4
    %v562 = vpop.permute.xlu0 %561
    %563 = vrot.lane.b32.xlu0 %v420, 4
    %v564 = vpop.permute.xlu0 %563
    %vm637 = vcmask 1045504
    %v638 = vrot.slane %v19, 2
    %v639 = vrot.slane %v20, 2
    %v640 = vsel %vm637, %v638, %v639
    %v641 = vrot.slane %v21, 2
    %v642 = vsel %vm637, %v639, %v641
    %v643 = vrot.slane %v22, 2
    %v644 = vrot.slane %v23, 2
    %v645 = vsel %vm637, %v643, %v644
    %v646 = vrot.slane %v24, 2
    %v647 = vsel %vm637, %v644, %v646
    %v648 = vrot.slane %v25, 2
    %v649 = vrot.slane %v26, 2
    %v650 = vsel %vm637, %v648, %v649
    %v651 = vrot.slane %v27, 2
    %v652 = vsel %vm637, %v649, %v651
    %v653 = vrot.slane %v28, 2
    %v654 = vrot.slane %v29, 2
    %v655 = vsel %vm637, %v653, %v654
    %v656 = vrot.slane %v30, 2
    %v657 = vsel %vm637, %v654, %v656
    %v658 = vrot.slane %v31, 2
    %v659 = vrot.slane %v32, 2
    %v660 = vsel %vm637, %v658, %v659
    %v661 = vrot.slane %v33, 2
    %v662 = vsel %vm637, %v659, %v661
    %v663 = vrot.slane %v34, 2
    %v664 = vrot.slane %v35, 2
    %v665 = vsel %vm637, %v663, %v664
    %v666 = vrot.slane %v36, 2
    %v667 = vsel %vm637, %v664, %v666
    %v668 = vrot.slane %v37, 2
    %v669 = vrot.slane %v38, 2
    %v670 = vsel %vm637, %v668, %v669
    %v671 = vrot.slane %v39, 2
    %v672 = vsel %vm637, %v669, %v671
    %v673 = vrot.slane %v40, 2
    %v674 = vrot.slane %v41, 2
    %v675 = vsel %vm637, %v673, %v674
    %v676 = vrot.slane %v42, 2
    %v677 = vsel %vm637, %v674, %v676
    %v678 = vrot.slane %v43, 2
    %v679 = vrot.slane %v44, 2
    %v680 = vsel %vm637, %v678, %v679
    %v681 = vrot.slane %v45, 2
    %v682 = vsel %vm637, %v679, %v681
    %v683 = vrot.slane %v46, 2
    %v684 = vrot.slane %v47, 2
    %v685 = vsel %vm637, %v683, %v684
    %v686 = vrot.slane %v48, 2
    %v687 = vsel %vm637, %v684, %v686
    %v688 = vrot.slane %v49, 2
    %v689 = vrot.slane %v50, 2
    %v690 = vsel %vm637, %v688, %v689
    %v691 = vrot.slane %v51, 2
    %v692 = vsel %vm637, %v689, %v691
    %v693 = vrot.slane %v52, 2
    %v694 = vrot.slane %v53, 2
    %v695 = vsel %vm637, %v693, %v694
    %v696 = vrot.slane %v54, 2
    %v697 = vsel %vm637, %v694, %v696
    %v698 = vrot.slane %v55, 2
    %v699 = vrot.slane %v56, 2
    %v700 = vsel %vm637, %v698, %v699
    %v701 = vrot.slane %v57, 2
    %v702 = vsel %vm637, %v699, %v701
    %v703 = vrot.slane %v58, 2
    %v704 = vrot.slane %v59, 2
    %v705 = vsel %vm637, %v703, %v704
    %v706 = vrot.slane %v60, 2
    %v707 = vsel %vm637, %v704, %v706
    %v708 = vrot.slane %v61, 2
    %v709 = vrot.slane %v62, 2
    %v710 = vsel %vm637, %v708, %v709
    %v711 = vrot.slane %v63, 2
    %v712 = vsel %vm637, %v709, %v711
    %v713 = vrot.slane %v64, 2
    %v714 = vrot.slane %v65, 2
    %v715 = vsel %vm637, %v713, %v714
    %v716 = vrot.slane %v66, 2
    %v717 = vsel %vm637, %v714, %v716
    %v718 = vrot.slane %v67, 2
    %v719 = vrot.slane %v68, 2
    %v720 = vsel %vm637, %v718, %v719
    %v721 = vrot.slane %v69, 2
    %v722 = vsel %vm637, %v719, %v721
    %v723 = vrot.slane %v70, 2
    %v724 = vrot.slane %v71, 2
    %v725 = vsel %vm637, %v723, %v724
    %v726 = vrot.slane %v72, 2
    %v727 = vsel %vm637, %v724, %v726
    %v728 = vrot.slane %v73, 2
    %v729 = vrot.slane %v74, 2
    %v730 = vsel %vm637, %v728, %v729
    %v731 = vrot.slane %v75, 2
    %v732 = vsel %vm637, %v729, %v731
    %v733 = vrot.slane %v76, 2
    %v734 = vrot.slane %v77, 2
    %v735 = vsel %vm637, %v733, %v734
    %v736 = vrot.slane %v78, 2
    %v737 = vsel %vm637, %v734, %v736
    %v738 = vrot.slane %v79, 2
    %v739 = vrot.slane %v80, 2
    %v740 = vsel %vm637, %v738, %v739
    %v741 = vrot.slane %v81, 2
    %v742 = vsel %vm637, %v739, %v741
    %v743 = vrot.slane %v82, 2
    %v744 = vrot.slane %v83, 2
    %v745 = vsel %vm637, %v743, %v744
    %v746 = vrot.slane %v84, 2
    %v747 = vsel %vm637, %v744, %v746
    %v748 = vrot.slane %v85, 2
    %v749 = vrot.slane %v86, 2
    %v750 = vsel %vm637, %v748, %v749
    %v751 = vrot.slane %v87, 2
    %v752 = vsel %vm637, %v749, %v751
    %v753 = vrot.slane %v88, 2
    %v754 = vrot.slane %v89, 2
    %v755 = vsel %vm637, %v753, %v754
    %v756 = vrot.slane %v90, 2
    %v757 = vsel %vm637, %v754, %v756
    %v758 = vrot.slane %v91, 2
    %v759 = vrot.slane %v92, 2
    %v760 = vsel %vm637, %v758, %v759
    %v761 = vrot.slane %v93, 2
    %v762 = vsel %vm637, %v759, %v761
    %v763 = vrot.slane %v94, 2
    %v764 = vrot.slane %v95, 2
    %v765 = vsel %vm637, %v763, %v764
    %v766 = vrot.slane %v96, 2
    %v767 = vsel %vm637, %v764, %v766
    %v768 = vrot.slane %v97, 2
    %v769 = vrot.slane %v98, 2
    %v770 = vsel %vm637, %v768, %v769
    %v771 = vrot.slane %v99, 2
    %v772 = vsel %vm637, %v769, %v771
    %v773 = vrot.slane %v100, 2
    %v774 = vrot.slane %v101, 2
    %v775 = vsel %vm637, %v773, %v774
    %v776 = vrot.slane %v102, 2
    %v777 = vsel %vm637, %v774, %v776
    %v778 = vrot.slane %v103, 2
    %v779 = vrot.slane %v104, 2
    %v780 = vsel %vm637, %v778, %v779
    %v781 = vrot.slane %v105, 2
    %v782 = vsel %vm637, %v779, %v781
    %v783 = vrot.slane %v106, 2
    %v784 = vrot.slane %v107, 2
    %v785 = vsel %vm637, %v783, %v784
    %v786 = vrot.slane %v108, 2
    %v787 = vsel %vm637, %v784, %v786
    %v788 = vrot.slane %v109, 2
    %v789 = vrot.slane %v110, 2
    %v790 = vsel %vm637, %v788, %v789
    %v791 = vrot.slane %v111, 2
    %v792 = vsel %vm637, %v789, %v791
    %v793 = vrot.slane %v112, 2
    %v794 = vrot.slane %v113, 2
    %v795 = vsel %vm637, %v793, %v794
    %v796 = vrot.slane %v114, 2
    %v797 = vsel %vm637, %v794, %v796
    %v798 = vrot.slane %v115, 2
    %v799 = vrot.slane %v116, 2
    %v800 = vsel %vm637, %v798, %v799
    %v801 = vrot.slane %v117, 2
    %v802 = vsel %vm637, %v799, %v801
    %v803 = vrot.slane %v118, 2
    %v804 = vrot.slane %v119, 2
    %v805 = vsel %vm637, %v803, %v804
    %v806 = vrot.slane %v120, 2
    %v807 = vsel %vm637, %v804, %v806
    %v808 = vrot.slane %v121, 2
    %v809 = vrot.slane %v122, 2
    %v810 = vsel %vm637, %v808, %v809
    %v811 = vrot.slane %v123, 2
    %v812 = vsel %vm637, %v809, %v811
    %v813 = vrot.slane %v124, 2
    %v814 = vrot.slane %v125, 2
    %v815 = vsel %vm637, %v813, %v814
    %v816 = vrot.slane %v126, 2
    %v817 = vsel %vm637, %v814, %v816
    %818 = vrot.lane.b32.xlu0 %v640, 8
    %v819 = vpop.permute.xlu0 %818
    %820 = vrot.lane.b32.xlu0 %v642, 8
    %v821 = vpop.permute.xlu0 %820
    %822 = vrot.lane.b32.xlu0 %v645, 8
    %v823 = vpop.permute.xlu0 %822
    %824 = vrot.lane.b32.xlu0 %v647, 8
    %v825 = vpop.permute.xlu0 %824
    %826 = vrot.lane.b32.xlu0 %v650, 8
    %v827 = vpop.permute.xlu0 %826
    %828 = vrot.lane.b32.xlu0 %v652, 8
    %v829 = vpop.permute.xlu0 %828
    %830 = vrot.lane.b32.xlu0 %v655, 8
    %v831 = vpop.permute.xlu0 %830
    %832 = vrot.lane.b32.xlu0 %v657, 8
    %v833 = vpop.permute.xlu0 %832
    %834 = vrot.lane.b32.xlu0 %v660, 8
    %v835 = vpop.permute.xlu0 %834
    %836 = vrot.lane.b32.xlu0 %v662, 8
    %v837 = vpop.permute.xlu0 %836
    %838 = vrot.lane.b32.xlu0 %v665, 8
    %v839 = vpop.permute.xlu0 %838
    %840 = vrot.lane.b32.xlu0 %v667, 8
    %v841 = vpop.permute.xlu0 %840
    %842 = vrot.lane.b32.xlu0 %v670, 8
    %v843 = vpop.permute.xlu0 %842
    %844 = vrot.lane.b32.xlu0 %v672, 8
    %v845 = vpop.permute.xlu0 %844
    %846 = vrot.lane.b32.xlu0 %v675, 8
    %v847 = vpop.permute.xlu0 %846
    %848 = vrot.lane.b32.xlu0 %v677, 8
    %v849 = vpop.permute.xlu0 %848
    %850 = vrot.lane.b32.xlu0 %v680, 8
    %v851 = vpop.permute.xlu0 %850
    %852 = vrot.lane.b32.xlu0 %v682, 8
    %v853 = vpop.permute.xlu0 %852
    %854 = vrot.lane.b32.xlu0 %v685, 8
    %v855 = vpop.permute.xlu0 %854
    %856 = vrot.lane.b32.xlu0 %v687, 8
    %v857 = vpop.permute.xlu0 %856
    %858 = vrot.lane.b32.xlu0 %v690, 8
    %v859 = vpop.permute.xlu0 %858
    %860 = vrot.lane.b32.xlu0 %v692, 8
    %v861 = vpop.permute.xlu0 %860
    %862 = vrot.lane.b32.xlu0 %v695, 8
    %v863 = vpop.permute.xlu0 %862
    %864 = vrot.lane.b32.xlu0 %v697, 8
    %v865 = vpop.permute.xlu0 %864
    %866 = vrot.lane.b32.xlu0 %v700, 8
    %v867 = vpop.permute.xlu0 %866
    %868 = vrot.lane.b32.xlu0 %v702, 8
    %v869 = vpop.permute.xlu0 %868
    %870 = vrot.lane.b32.xlu0 %v705, 8
    %v871 = vpop.permute.xlu0 %870
    %872 = vrot.lane.b32.xlu0 %v707, 8
    %v873 = vpop.permute.xlu0 %872
    %874 = vrot.lane.b32.xlu0 %v710, 8
    %v875 = vpop.permute.xlu0 %874
    %876 = vrot.lane.b32.xlu0 %v712, 8
    %v877 = vpop.permute.xlu0 %876
    %878 = vrot.lane.b32.xlu0 %v715, 8
    %v879 = vpop.permute.xlu0 %878
    %880 = vrot.lane.b32.xlu0 %v717, 8
    %v881 = vpop.permute.xlu0 %880
    %882 = vrot.lane.b32.xlu0 %v720, 8
    %v883 = vpop.permute.xlu0 %882
    %884 = vrot.lane.b32.xlu0 %v722, 8
    %v885 = vpop.permute.xlu0 %884
    %886 = vrot.lane.b32.xlu0 %v725, 8
    %v887 = vpop.permute.xlu0 %886
    %888 = vrot.lane.b32.xlu0 %v727, 8
    %v889 = vpop.permute.xlu0 %888
    %890 = vrot.lane.b32.xlu0 %v730, 8
    %v891 = vpop.permute.xlu0 %890
    %892 = vrot.lane.b32.xlu0 %v732, 8
    %v893 = vpop.permute.xlu0 %892
    %894 = vrot.lane.b32.xlu0 %v735, 8
    %v895 = vpop.permute.xlu0 %894
    %896 = vrot.lane.b32.xlu0 %v737, 8
    %v897 = vpop.permute.xlu0 %896
    %898 = vrot.lane.b32.xlu0 %v740, 8
    %v899 = vpop.permute.xlu0 %898
    %900 = vrot.lane.b32.xlu0 %v742, 8
    %v901 = vpop.permute.xlu0 %900
    %902 = vrot.lane.b32.xlu0 %v745, 8
    %v903 = vpop.permute.xlu0 %902
    %904 = vrot.lane.b32.xlu0 %v747, 8
    %v905 = vpop.permute.xlu0 %904
    %906 = vrot.lane.b32.xlu0 %v750, 8
    %v907 = vpop.permute.xlu0 %906
    %908 = vrot.lane.b32.xlu0 %v752, 8
    %v909 = vpop.permute.xlu0 %908
    %910 = vrot.lane.b32.xlu0 %v755, 8
    %v911 = vpop.permute.xlu0 %910
    %912 = vrot.lane.b32.xlu0 %v757, 8
    %v913 = vpop.permute.xlu0 %912
    %914 = vrot.lane.b32.xlu0 %v760, 8
    %v915 = vpop.permute.xlu0 %914
    %916 = vrot.lane.b32.xlu0 %v762, 8
    %v917 = vpop.permute.xlu0 %916
    %918 = vrot.lane.b32.xlu0 %v765, 8
    %v919 = vpop.permute.xlu0 %918
    %920 = vrot.lane.b32.xlu0 %v767, 8
    %v921 = vpop.permute.xlu0 %920
    %922 = vrot.lane.b32.xlu0 %v770, 8
    %v923 = vpop.permute.xlu0 %922
    %924 = vrot.lane.b32.xlu0 %v772, 8
    %v925 = vpop.permute.xlu0 %924
    %926 = vrot.lane.b32.xlu0 %v775, 8
    %v927 = vpop.permute.xlu0 %926
    %928 = vrot.lane.b32.xlu0 %v777, 8
    %v929 = vpop.permute.xlu0 %928
    %930 = vrot.lane.b32.xlu0 %v780, 8
    %v931 = vpop.permute.xlu0 %930
    %932 = vrot.lane.b32.xlu0 %v782, 8
    %v933 = vpop.permute.xlu0 %932
    %934 = vrot.lane.b32.xlu0 %v785, 8
    %v935 = vpop.permute.xlu0 %934
    %936 = vrot.lane.b32.xlu0 %v787, 8
    %v937 = vpop.permute.xlu0 %936
    %938 = vrot.lane.b32.xlu0 %v790, 8
    %v939 = vpop.permute.xlu0 %938
    %940 = vrot.lane.b32.xlu0 %v792, 8
    %v941 = vpop.permute.xlu0 %940
    %942 = vrot.lane.b32.xlu0 %v795, 8
    %v943 = vpop.permute.xlu0 %942
    %944 = vrot.lane.b32.xlu0 %v797, 8
    %v945 = vpop.permute.xlu0 %944
    %946 = vrot.lane.b32.xlu0 %v800, 8
    %v947 = vpop.permute.xlu0 %946
    %948 = vrot.lane.b32.xlu0 %v802, 8
    %v949 = vpop.permute.xlu0 %948
    %950 = vrot.lane.b32.xlu0 %v805, 8
    %v951 = vpop.permute.xlu0 %950
    %952 = vrot.lane.b32.xlu0 %v807, 8
    %v953 = vpop.permute.xlu0 %952
    %954 = vrot.lane.b32.xlu0 %v810, 8
    %v955 = vpop.permute.xlu0 %954
    %956 = vrot.lane.b32.xlu0 %v812, 8
    %v957 = vpop.permute.xlu0 %956
    %958 = vrot.lane.b32.xlu0 %v815, 8
    %v959 = vpop.permute.xlu0 %958
    %960 = vrot.lane.b32.xlu0 %v817, 8
    %v961 = vpop.permute.xlu0 %960
    %vm1034 = vcmask 31744
    %v1035 = vsel %vm1034, %v19, %v422
    %v1036 = vsel %vm1034, %v20, %v424
    %v1037 = vsel %vm1034, %v22, %v426
    %v1038 = vsel %vm1034, %v23, %v428
    %v1039 = vsel %vm1034, %v25, %v430
    %v1040 = vsel %vm1034, %v26, %v432
    %v1041 = vsel %vm1034, %v28, %v434
    %v1042 = vsel %vm1034, %v29, %v436
    %v1043 = vsel %vm1034, %v31, %v438
    %v1044 = vsel %vm1034, %v32, %v440
    %v1045 = vsel %vm1034, %v34, %v442
    %v1046 = vsel %vm1034, %v35, %v444
    %v1047 = vsel %vm1034, %v37, %v446
    %v1048 = vsel %vm1034, %v38, %v448
    %v1049 = vsel %vm1034, %v40, %v450
    %v1050 = vsel %vm1034, %v41, %v452
    %v1051 = vsel %vm1034, %v43, %v454
    %v1052 = vsel %vm1034, %v44, %v456
    %v1053 = vsel %vm1034, %v46, %v458
    %v1054 = vsel %vm1034, %v47, %v460
    %v1055 = vsel %vm1034, %v49, %v462
    %v1056 = vsel %vm1034, %v50, %v464
    %v1057 = vsel %vm1034, %v52, %v466
    %v1058 = vsel %vm1034, %v53, %v468
    %v1059 = vsel %vm1034, %v55, %v470
    %v1060 = vsel %vm1034, %v56, %v472
    %v1061 = vsel %vm1034, %v58, %v474
    %v1062 = vsel %vm1034, %v59, %v476
    %v1063 = vsel %vm1034, %v61, %v478
    %v1064 = vsel %vm1034, %v62, %v480
    %v1065 = vsel %vm1034, %v64, %v482
    %v1066 = vsel %vm1034, %v65, %v484
    %v1067 = vsel %vm1034, %v67, %v486
    %v1068 = vsel %vm1034, %v68, %v488
    %v1069 = vsel %vm1034, %v70, %v490
    %v1070 = vsel %vm1034, %v71, %v492
    %v1071 = vsel %vm1034, %v73, %v494
    %v1072 = vsel %vm1034, %v74, %v496
    %v1073 = vsel %vm1034, %v76, %v498
    %v1074 = vsel %vm1034, %v77, %v500
    %v1075 = vsel %vm1034, %v79, %v502
    %v1076 = vsel %vm1034, %v80, %v504
    %v1077 = vsel %vm1034, %v82, %v506
    %v1078 = vsel %vm1034, %v83, %v508
    %v1079 = vsel %vm1034, %v85, %v510
    %v1080 = vsel %vm1034, %v86, %v512
    %v1081 = vsel %vm1034, %v88, %v514
    %v1082 = vsel %vm1034, %v89, %v516
    %v1083 = vsel %vm1034, %v91, %v518
    %v1084 = vsel %vm1034, %v92, %v520
    %v1085 = vsel %vm1034, %v94, %v522
    %v1086 = vsel %vm1034, %v95, %v524
    %v1087 = vsel %vm1034, %v97, %v526
    %v1088 = vsel %vm1034, %v98, %v528
    %v1089 = vsel %vm1034, %v100, %v530
    %v1090 = vsel %vm1034, %v101, %v532
    %v1091 = vsel %vm1034, %v103, %v534
    %v1092 = vsel %vm1034, %v104, %v536
    %v1093 = vsel %vm1034, %v106, %v538
    %v1094 = vsel %vm1034, %v107, %v540
    %v1095 = vsel %vm1034, %v109, %v542
    %v1096 = vsel %vm1034, %v110, %v544
    %v1097 = vsel %vm1034, %v112, %v546
    %v1098 = vsel %vm1034, %v113, %v548
    %v1099 = vsel %vm1034, %v115, %v550
    %v1100 = vsel %vm1034, %v116, %v552
    %v1101 = vsel %vm1034, %v118, %v554
    %v1102 = vsel %vm1034, %v119, %v556
    %v1103 = vsel %vm1034, %v121, %v558
    %v1104 = vsel %vm1034, %v122, %v560
    %v1105 = vsel %vm1034, %v124, %v562
    %v1106 = vsel %vm1034, %v125, %v564
    %vm1107 = vcmask 64512
    %v1108 = vsel %vm1107, %v1035, %v819
    %v1109 = vsel %vm1107, %v1036, %v821
    %v1110 = vsel %vm1107, %v1037, %v823
    %v1111 = vsel %vm1107, %v1038, %v825
    %v1112 = vsel %vm1107, %v1039, %v827
    %v1113 = vsel %vm1107, %v1040, %v829
    %v1114 = vsel %vm1107, %v1041, %v831
    %v1115 = vsel %vm1107, %v1042, %v833
    %v1116 = vsel %vm1107, %v1043, %v835
    %v1117 = vsel %vm1107, %v1044, %v837
    %v1118 = vsel %vm1107, %v1045, %v839
    %v1119 = vsel %vm1107, %v1046, %v841
    %v1120 = vsel %vm1107, %v1047, %v843
    %v1121 = vsel %vm1107, %v1048, %v845
    %v1122 = vsel %vm1107, %v1049, %v847
    %v1123 = vsel %vm1107, %v1050, %v849
    %v1124 = vsel %vm1107, %v1051, %v851
    %v1125 = vsel %vm1107, %v1052, %v853
    %v1126 = vsel %vm1107, %v1053, %v855
    %v1127 = vsel %vm1107, %v1054, %v857
    %v1128 = vsel %vm1107, %v1055, %v859
    %v1129 = vsel %vm1107, %v1056, %v861
    %v1130 = vsel %vm1107, %v1057, %v863
    %v1131 = vsel %vm1107, %v1058, %v865
    %v1132 = vsel %vm1107, %v1059, %v867
    %v1133 = vsel %vm1107, %v1060, %v869
    %v1134 = vsel %vm1107, %v1061, %v871
    %v1135 = vsel %vm1107, %v1062, %v873
    %v1136 = vsel %vm1107, %v1063, %v875
    %v1137 = vsel %vm1107, %v1064, %v877
    %v1138 = vsel %vm1107, %v1065, %v879
    %v1139 = vsel %vm1107, %v1066, %v881
    %v1140 = vsel %vm1107, %v1067, %v883
    %v1141 = vsel %vm1107, %v1068, %v885
    %v1142 = vsel %vm1107, %v1069, %v887
    %v1143 = vsel %vm1107, %v1070, %v889
    %v1144 = vsel %vm1107, %v1071, %v891
    %v1145 = vsel %vm1107, %v1072, %v893
    %v1146 = vsel %vm1107, %v1073, %v895
    %v1147 = vsel %vm1107, %v1074, %v897
    %v1148 = vsel %vm1107, %v1075, %v899
    %v1149 = vsel %vm1107, %v1076, %v901
    %v1150 = vsel %vm1107, %v1077, %v903
    %v1151 = vsel %vm1107, %v1078, %v905
    %v1152 = vsel %vm1107, %v1079, %v907
    %v1153 = vsel %vm1107, %v1080, %v909
    %v1154 = vsel %vm1107, %v1081, %v911
    %v1155 = vsel %vm1107, %v1082, %v913
    %v1156 = vsel %vm1107, %v1083, %v915
    %v1157 = vsel %vm1107, %v1084, %v917
    %v1158 = vsel %vm1107, %v1085, %v919
    %v1159 = vsel %vm1107, %v1086, %v921
    %v1160 = vsel %vm1107, %v1087, %v923
    %v1161 = vsel %vm1107, %v1088, %v925
    %v1162 = vsel %vm1107, %v1089, %v927
    %v1163 = vsel %vm1107, %v1090, %v929
    %v1164 = vsel %vm1107, %v1091, %v931
    %v1165 = vsel %vm1107, %v1092, %v933
    %v1166 = vsel %vm1107, %v1093, %v935
    %v1167 = vsel %vm1107, %v1094, %v937
    %v1168 = vsel %vm1107, %v1095, %v939
    %v1169 = vsel %vm1107, %v1096, %v941
    %v1170 = vsel %vm1107, %v1097, %v943
    %v1171 = vsel %vm1107, %v1098, %v945
    %v1172 = vsel %vm1107, %v1099, %v947
    %v1173 = vsel %vm1107, %v1100, %v949
    %v1174 = vsel %vm1107, %v1101, %v951
    %v1175 = vsel %vm1107, %v1102, %v953
    %v1176 = vsel %vm1107, %v1103, %v955
    %v1177 = vsel %vm1107, %v1104, %v957
    %v1178 = vsel %vm1107, %v1105, %v959
    %v1179 = vsel %vm1107, %v1106, %v961
    %1244 = vrot.lane.b32.xlu0 %v1110, 12
    %v1245 = vpop.permute.xlu0 %1244
    %1246 = vrot.lane.b32.xlu0 %v1111, 12
    %v1247 = vpop.permute.xlu0 %1246
    %1248 = vrot.lane.b32.xlu0 %v1112, 12
    %v1249 = vpop.permute.xlu0 %1248
    %1250 = vrot.lane.b32.xlu0 %v1113, 12
    %v1251 = vpop.permute.xlu0 %1250
    %1252 = vrot.lane.b32.xlu0 %v1114, 12
    %v1253 = vpop.permute.xlu0 %1252
    %1254 = vrot.lane.b32.xlu0 %v1115, 12
    %v1255 = vpop.permute.xlu0 %1254
    %1256 = vrot.lane.b32.xlu0 %v1116, 12
    %v1257 = vpop.permute.xlu0 %1256
    %1258 = vrot.lane.b32.xlu0 %v1117, 12
    %v1259 = vpop.permute.xlu0 %1258
    %1260 = vrot.lane.b32.xlu0 %v1118, 12
    %v1261 = vpop.permute.xlu0 %1260
    %1262 = vrot.lane.b32.xlu0 %v1119, 12
    %v1263 = vpop.permute.xlu0 %1262
    %1264 = vrot.lane.b32.xlu0 %v1120, 12
    %v1265 = vpop.permute.xlu0 %1264
    %1266 = vrot.lane.b32.xlu0 %v1121, 12
    %v1267 = vpop.permute.xlu0 %1266
    %1268 = vrot.lane.b32.xlu0 %v1122, 12
    %v1269 = vpop.permute.xlu0 %1268
    %1270 = vrot.lane.b32.xlu0 %v1123, 12
    %v1271 = vpop.permute.xlu0 %1270
    %1272 = vrot.lane.b32.xlu0 %v1124, 12
    %v1273 = vpop.permute.xlu0 %1272
    %1274 = vrot.lane.b32.xlu0 %v1125, 12
    %v1275 = vpop.permute.xlu0 %1274
    %1276 = vrot.lane.b32.xlu0 %v1126, 12
    %v1277 = vpop.permute.xlu0 %1276
    %1278 = vrot.lane.b32.xlu0 %v1127, 12
    %v1279 = vpop.permute.xlu0 %1278
    %1280 = vrot.lane.b32.xlu0 %v1128, 12
    %v1281 = vpop.permute.xlu0 %1280
    %1282 = vrot.lane.b32.xlu0 %v1129, 12
    %v1283 = vpop.permute.xlu0 %1282
    %1284 = vrot.lane.b32.xlu0 %v1130, 12
    %v1285 = vpop.permute.xlu0 %1284
    %1286 = vrot.lane.b32.xlu0 %v1131, 12
    %v1287 = vpop.permute.xlu0 %1286
    %1288 = vrot.lane.b32.xlu0 %v1132, 12
    %v1289 = vpop.permute.xlu0 %1288
    %1290 = vrot.lane.b32.xlu0 %v1133, 12
    %v1291 = vpop.permute.xlu0 %1290
    %1292 = vrot.lane.b32.xlu0 %v1134, 12
    %v1293 = vpop.permute.xlu0 %1292
    %1294 = vrot.lane.b32.xlu0 %v1135, 12
    %v1295 = vpop.permute.xlu0 %1294
    %1296 = vrot.lane.b32.xlu0 %v1136, 12
    %v1297 = vpop.permute.xlu0 %1296
    %1298 = vrot.lane.b32.xlu0 %v1137, 12
    %v1299 = vpop.permute.xlu0 %1298
    %1300 = vrot.lane.b32.xlu0 %v1138, 12
    %v1301 = vpop.permute.xlu0 %1300
    %1302 = vrot.lane.b32.xlu0 %v1139, 12
    %v1303 = vpop.permute.xlu0 %1302
    %1304 = vrot.lane.b32.xlu0 %v1140, 12
    %v1305 = vpop.permute.xlu0 %1304
    %1306 = vrot.lane.b32.xlu0 %v1141, 12
    %v1307 = vpop.permute.xlu0 %1306
    %1308 = vrot.lane.b32.xlu0 %v1146, 12
    %v1309 = vpop.permute.xlu0 %1308
    %1310 = vrot.lane.b32.xlu0 %v1147, 12
    %v1311 = vpop.permute.xlu0 %1310
    %1312 = vrot.lane.b32.xlu0 %v1148, 12
    %v1313 = vpop.permute.xlu0 %1312
    %1314 = vrot.lane.b32.xlu0 %v1149, 12
    %v1315 = vpop.permute.xlu0 %1314
    %1316 = vrot.lane.b32.xlu0 %v1150, 12
    %v1317 = vpop.permute.xlu0 %1316
    %1318 = vrot.lane.b32.xlu0 %v1151, 12
    %v1319 = vpop.permute.xlu0 %1318
    %1320 = vrot.lane.b32.xlu0 %v1152, 12
    %v1321 = vpop.permute.xlu0 %1320
    %1322 = vrot.lane.b32.xlu0 %v1153, 12
    %v1323 = vpop.permute.xlu0 %1322
    %1324 = vrot.lane.b32.xlu0 %v1154, 12
    %v1325 = vpop.permute.xlu0 %1324
    %1326 = vrot.lane.b32.xlu0 %v1155, 12
    %v1327 = vpop.permute.xlu0 %1326
    %1328 = vrot.lane.b32.xlu0 %v1156, 12
    %v1329 = vpop.permute.xlu0 %1328
    %1330 = vrot.lane.b32.xlu0 %v1157, 12
    %v1331 = vpop.permute.xlu0 %1330
    %1332 = vrot.lane.b32.xlu0 %v1158, 12
    %v1333 = vpop.permute.xlu0 %1332
    %1334 = vrot.lane.b32.xlu0 %v1159, 12
    %v1335 = vpop.permute.xlu0 %1334
    %1336 = vrot.lane.b32.xlu0 %v1160, 12
    %v1337 = vpop.permute.xlu0 %1336
    %1338 = vrot.lane.b32.xlu0 %v1161, 12
    %v1339 = vpop.permute.xlu0 %1338
    %1340 = vrot.lane.b32.xlu0 %v1162, 12
    %v1341 = vpop.permute.xlu0 %1340
    %1342 = vrot.lane.b32.xlu0 %v1163, 12
    %v1343 = vpop.permute.xlu0 %1342
    %1344 = vrot.lane.b32.xlu0 %v1164, 12
    %v1345 = vpop.permute.xlu0 %1344
    %1346 = vrot.lane.b32.xlu0 %v1165, 12
    %v1347 = vpop.permute.xlu0 %1346
    %1348 = vrot.lane.b32.xlu0 %v1166, 12
    %v1349 = vpop.permute.xlu0 %1348
    %1350 = vrot.lane.b32.xlu0 %v1167, 12
    %v1351 = vpop.permute.xlu0 %1350
    %1352 = vrot.lane.b32.xlu0 %v1168, 12
    %v1353 = vpop.permute.xlu0 %1352
    %1354 = vrot.lane.b32.xlu0 %v1169, 12
    %v1355 = vpop.permute.xlu0 %1354
    %1356 = vrot.lane.b32.xlu0 %v1170, 12
    %v1357 = vpop.permute.xlu0 %1356
    %1358 = vrot.lane.b32.xlu0 %v1171, 12
    %v1359 = vpop.permute.xlu0 %1358
    %1360 = vrot.lane.b32.xlu0 %v1172, 12
    %v1361 = vpop.permute.xlu0 %1360
    %1362 = vrot.lane.b32.xlu0 %v1173, 12
    %v1363 = vpop.permute.xlu0 %1362
    %1364 = vrot.lane.b32.xlu0 %v1174, 12
    %v1365 = vpop.permute.xlu0 %1364
    %1366 = vrot.lane.b32.xlu0 %v1175, 12
    %v1367 = vpop.permute.xlu0 %1366
    %1368 = vrot.lane.b32.xlu0 %v1176, 12
    %v1369 = vpop.permute.xlu0 %1368
    %1370 = vrot.lane.b32.xlu0 %v1177, 12
    %v1371 = vpop.permute.xlu0 %1370
    %1440 = vrot.lane.b32.xlu0 %v1112, 24
    %v1441 = vpop.permute.xlu0 %1440
    %1442 = vrot.lane.b32.xlu0 %v1113, 24
    %v1443 = vpop.permute.xlu0 %1442
    %1444 = vrot.lane.b32.xlu0 %v1114, 24
    %v1445 = vpop.permute.xlu0 %1444
    %1446 = vrot.lane.b32.xlu0 %v1115, 24
    %v1447 = vpop.permute.xlu0 %1446
    %1448 = vrot.lane.b32.xlu0 %v1116, 24
    %v1449 = vpop.permute.xlu0 %1448
    %1450 = vrot.lane.b32.xlu0 %v1117, 24
    %v1451 = vpop.permute.xlu0 %1450
    %1452 = vrot.lane.b32.xlu0 %v1118, 24
    %v1453 = vpop.permute.xlu0 %1452
    %1454 = vrot.lane.b32.xlu0 %v1119, 24
    %v1455 = vpop.permute.xlu0 %1454
    %1456 = vrot.lane.b32.xlu0 %v1120, 24
    %v1457 = vpop.permute.xlu0 %1456
    %1458 = vrot.lane.b32.xlu0 %v1121, 24
    %v1459 = vpop.permute.xlu0 %1458
    %1460 = vrot.lane.b32.xlu0 %v1122, 24
    %v1461 = vpop.permute.xlu0 %1460
    %1462 = vrot.lane.b32.xlu0 %v1123, 24
    %v1463 = vpop.permute.xlu0 %1462
    %1464 = vrot.lane.b32.xlu0 %v1124, 24
    %v1465 = vpop.permute.xlu0 %1464
    %1466 = vrot.lane.b32.xlu0 %v1125, 24
    %v1467 = vpop.permute.xlu0 %1466
    %1468 = vrot.lane.b32.xlu0 %v1126, 24
    %v1469 = vpop.permute.xlu0 %1468
    %1470 = vrot.lane.b32.xlu0 %v1127, 24
    %v1471 = vpop.permute.xlu0 %1470
    %1472 = vrot.lane.b32.xlu0 %v1128, 24
    %v1473 = vpop.permute.xlu0 %1472
    %1474 = vrot.lane.b32.xlu0 %v1129, 24
    %v1475 = vpop.permute.xlu0 %1474
    %1476 = vrot.lane.b32.xlu0 %v1130, 24
    %v1477 = vpop.permute.xlu0 %1476
    %1478 = vrot.lane.b32.xlu0 %v1131, 24
    %v1479 = vpop.permute.xlu0 %1478
    %1480 = vrot.lane.b32.xlu0 %v1132, 24
    %v1481 = vpop.permute.xlu0 %1480
    %1482 = vrot.lane.b32.xlu0 %v1133, 24
    %v1483 = vpop.permute.xlu0 %1482
    %1484 = vrot.lane.b32.xlu0 %v1134, 24
    %v1485 = vpop.permute.xlu0 %1484
    %1486 = vrot.lane.b32.xlu0 %v1135, 24
    %v1487 = vpop.permute.xlu0 %1486
    %1488 = vrot.lane.b32.xlu0 %v1136, 24
    %v1489 = vpop.permute.xlu0 %1488
    %1490 = vrot.lane.b32.xlu0 %v1137, 24
    %v1491 = vpop.permute.xlu0 %1490
    %1492 = vrot.lane.b32.xlu0 %v1138, 24
    %v1493 = vpop.permute.xlu0 %1492
    %1494 = vrot.lane.b32.xlu0 %v1139, 24
    %v1495 = vpop.permute.xlu0 %1494
    %1496 = vrot.lane.b32.xlu0 %v1140, 24
    %v1497 = vpop.permute.xlu0 %1496
    %1498 = vrot.lane.b32.xlu0 %v1141, 24
    %v1499 = vpop.permute.xlu0 %1498
    %1500 = vrot.lane.b32.xlu0 %v1142, 24
    %v1501 = vpop.permute.xlu0 %1500
    %1502 = vrot.lane.b32.xlu0 %v1143, 24
    %v1503 = vpop.permute.xlu0 %1502
    %1504 = vrot.lane.b32.xlu0 %v1148, 24
    %v1505 = vpop.permute.xlu0 %1504
    %1506 = vrot.lane.b32.xlu0 %v1149, 24
    %v1507 = vpop.permute.xlu0 %1506
    %1508 = vrot.lane.b32.xlu0 %v1150, 24
    %v1509 = vpop.permute.xlu0 %1508
    %1510 = vrot.lane.b32.xlu0 %v1151, 24
    %v1511 = vpop.permute.xlu0 %1510
    %1512 = vrot.lane.b32.xlu0 %v1152, 24
    %v1513 = vpop.permute.xlu0 %1512
    %1514 = vrot.lane.b32.xlu0 %v1153, 24
    %v1515 = vpop.permute.xlu0 %1514
    %1516 = vrot.lane.b32.xlu0 %v1154, 24
    %v1517 = vpop.permute.xlu0 %1516
    %1518 = vrot.lane.b32.xlu0 %v1155, 24
    %v1519 = vpop.permute.xlu0 %1518
    %1520 = vrot.lane.b32.xlu0 %v1156, 24
    %v1521 = vpop.permute.xlu0 %1520
    %1522 = vrot.lane.b32.xlu0 %v1157, 24
    %v1523 = vpop.permute.xlu0 %1522
    %1524 = vrot.lane.b32.xlu0 %v1158, 24
    %v1525 = vpop.permute.xlu0 %1524
    %1526 = vrot.lane.b32.xlu0 %v1159, 24
    %v1527 = vpop.permute.xlu0 %1526
    %1528 = vrot.lane.b32.xlu0 %v1160, 24
    %v1529 = vpop.permute.xlu0 %1528
    %1530 = vrot.lane.b32.xlu0 %v1161, 24
    %v1531 = vpop.permute.xlu0 %1530
    %1532 = vrot.lane.b32.xlu0 %v1162, 24
    %v1533 = vpop.permute.xlu0 %1532
    %1534 = vrot.lane.b32.xlu0 %v1163, 24
    %v1535 = vpop.permute.xlu0 %1534
    %1536 = vrot.lane.b32.xlu0 %v1164, 24
    %v1537 = vpop.permute.xlu0 %1536
    %1538 = vrot.lane.b32.xlu0 %v1165, 24
    %v1539 = vpop.permute.xlu0 %1538
    %1540 = vrot.lane.b32.xlu0 %v1166, 24
    %v1541 = vpop.permute.xlu0 %1540
    %1542 = vrot.lane.b32.xlu0 %v1167, 24
    %v1543 = vpop.permute.xlu0 %1542
    %1544 = vrot.lane.b32.xlu0 %v1168, 24
    %v1545 = vpop.permute.xlu0 %1544
    %1546 = vrot.lane.b32.xlu0 %v1169, 24
    %v1547 = vpop.permute.xlu0 %1546
    %1548 = vrot.lane.b32.xlu0 %v1170, 24
    %v1549 = vpop.permute.xlu0 %1548
    %1550 = vrot.lane.b32.xlu0 %v1171, 24
    %v1551 = vpop.permute.xlu0 %1550
    %1552 = vrot.lane.b32.xlu0 %v1172, 24
    %v1553 = vpop.permute.xlu0 %1552
    %1554 = vrot.lane.b32.xlu0 %v1173, 24
    %v1555 = vpop.permute.xlu0 %1554
    %1556 = vrot.lane.b32.xlu0 %v1174, 24
    %v1557 = vpop.permute.xlu0 %1556
    %1558 = vrot.lane.b32.xlu0 %v1175, 24
    %v1559 = vpop.permute.xlu0 %1558
    %1560 = vrot.lane.b32.xlu0 %v1176, 24
    %v1561 = vpop.permute.xlu0 %1560
    %1562 = vrot.lane.b32.xlu0 %v1177, 24
    %v1563 = vpop.permute.xlu0 %1562
    %1564 = vrot.lane.b32.xlu0 %v1178, 24
    %v1565 = vpop.permute.xlu0 %1564
    %1566 = vrot.lane.b32.xlu0 %v1179, 24
    %v1567 = vpop.permute.xlu0 %1566
    %vm1632 = vcmask 97280
    %v1633 = vsel %vm1632, %v1108, %v1245
    %v1634 = vsel %vm1632, %v1109, %v1247
    %v1635 = vsel %vm1632, %v1110, %v1249
    %v1636 = vsel %vm1632, %v1111, %v1251
    %v1637 = vsel %vm1632, %v1112, %v1253
    %v1638 = vsel %vm1632, %v1113, %v1255
    %v1639 = vsel %vm1632, %v1114, %v1257
    %v1640 = vsel %vm1632, %v1115, %v1259
    %v1641 = vsel %vm1632, %v1116, %v1261
    %v1642 = vsel %vm1632, %v1117, %v1263
    %v1643 = vsel %vm1632, %v1118, %v1265
    %v1644 = vsel %vm1632, %v1119, %v1267
    %v1645 = vsel %vm1632, %v1120, %v1269
    %v1646 = vsel %vm1632, %v1121, %v1271
    %v1647 = vsel %vm1632, %v1122, %v1273
    %v1648 = vsel %vm1632, %v1123, %v1275
    %v1649 = vsel %vm1632, %v1124, %v1277
    %v1650 = vsel %vm1632, %v1125, %v1279
    %v1651 = vsel %vm1632, %v1126, %v1281
    %v1652 = vsel %vm1632, %v1127, %v1283
    %v1653 = vsel %vm1632, %v1128, %v1285
    %v1654 = vsel %vm1632, %v1129, %v1287
    %v1655 = vsel %vm1632, %v1130, %v1289
    %v1656 = vsel %vm1632, %v1131, %v1291
    %v1657 = vsel %vm1632, %v1132, %v1293
    %v1658 = vsel %vm1632, %v1133, %v1295
    %v1659 = vsel %vm1632, %v1134, %v1297
    %v1660 = vsel %vm1632, %v1135, %v1299
    %v1661 = vsel %vm1632, %v1136, %v1301
    %v1662 = vsel %vm1632, %v1137, %v1303
    %v1663 = vsel %vm1632, %v1138, %v1305
    %v1664 = vsel %vm1632, %v1139, %v1307
    %v1665 = vsel %vm1632, %v1144, %v1309
    %v1666 = vsel %vm1632, %v1145, %v1311
    %v1667 = vsel %vm1632, %v1146, %v1313
    %v1668 = vsel %vm1632, %v1147, %v1315
    %v1669 = vsel %vm1632, %v1148, %v1317
    %v1670 = vsel %vm1632, %v1149, %v1319
    %v1671 = vsel %vm1632, %v1150, %v1321
    %v1672 = vsel %vm1632, %v1151, %v1323
    %v1673 = vsel %vm1632, %v1152, %v1325
    %v1674 = vsel %vm1632, %v1153, %v1327
    %v1675 = vsel %vm1632, %v1154, %v1329
    %v1676 = vsel %vm1632, %v1155, %v1331
    %v1677 = vsel %vm1632, %v1156, %v1333
    %v1678 = vsel %vm1632, %v1157, %v1335
    %v1679 = vsel %vm1632, %v1158, %v1337
    %v1680 = vsel %vm1632, %v1159, %v1339
    %v1681 = vsel %vm1632, %v1160, %v1341
    %v1682 = vsel %vm1632, %v1161, %v1343
    %v1683 = vsel %vm1632, %v1162, %v1345
    %v1684 = vsel %vm1632, %v1163, %v1347
    %v1685 = vsel %vm1632, %v1164, %v1349
    %v1686 = vsel %vm1632, %v1165, %v1351
    %v1687 = vsel %vm1632, %v1166, %v1353
    %v1688 = vsel %vm1632, %v1167, %v1355
    %v1689 = vsel %vm1632, %v1168, %v1357
    %v1690 = vsel %vm1632, %v1169, %v1359
    %v1691 = vsel %vm1632, %v1170, %v1361
    %v1692 = vsel %vm1632, %v1171, %v1363
    %v1693 = vsel %vm1632, %v1172, %v1365
    %v1694 = vsel %vm1632, %v1173, %v1367
    %v1695 = vsel %vm1632, %v1174, %v1369
    %v1696 = vsel %vm1632, %v1175, %v1371
    %vm1697 = vcmask 195584
    %v1698 = vsel %vm1697, %v1633, %v1441
    %v1699 = vsel %vm1697, %v1634, %v1443
    %v1700 = vsel %vm1697, %v1635, %v1445
    %v1701 = vsel %vm1697, %v1636, %v1447
    %v1702 = vsel %vm1697, %v1637, %v1449
    %v1703 = vsel %vm1697, %v1638, %v1451
    %v1704 = vsel %vm1697, %v1639, %v1453
    %v1705 = vsel %vm1697, %v1640, %v1455
    %v1706 = vsel %vm1697, %v1641, %v1457
    %v1707 = vsel %vm1697, %v1642, %v1459
    %v1708 = vsel %vm1697, %v1643, %v1461
    %v1709 = vsel %vm1697, %v1644, %v1463
    %v1710 = vsel %vm1697, %v1645, %v1465
    %v1711 = vsel %vm1697, %v1646, %v1467
    %v1712 = vsel %vm1697, %v1647, %v1469
    %v1713 = vsel %vm1697, %v1648, %v1471
    %v1714 = vsel %vm1697, %v1649, %v1473
    %v1715 = vsel %vm1697, %v1650, %v1475
    %v1716 = vsel %vm1697, %v1651, %v1477
    %v1717 = vsel %vm1697, %v1652, %v1479
    %v1718 = vsel %vm1697, %v1653, %v1481
    %v1719 = vsel %vm1697, %v1654, %v1483
    %v1720 = vsel %vm1697, %v1655, %v1485
    %v1721 = vsel %vm1697, %v1656, %v1487
    %v1722 = vsel %vm1697, %v1657, %v1489
    %v1723 = vsel %vm1697, %v1658, %v1491
    %v1724 = vsel %vm1697, %v1659, %v1493
    %v1725 = vsel %vm1697, %v1660, %v1495
    %v1726 = vsel %vm1697, %v1661, %v1497
    %v1727 = vsel %vm1697, %v1662, %v1499
    %v1728 = vsel %vm1697, %v1663, %v1501
    %v1729 = vsel %vm1697, %v1664, %v1503
    %v1730 = vsel %vm1697, %v1665, %v1505
    %v1731 = vsel %vm1697, %v1666, %v1507
    %v1732 = vsel %vm1697, %v1667, %v1509
    %v1733 = vsel %vm1697, %v1668, %v1511
    %v1734 = vsel %vm1697, %v1669, %v1513
    %v1735 = vsel %vm1697, %v1670, %v1515
    %v1736 = vsel %vm1697, %v1671, %v1517
    %v1737 = vsel %vm1697, %v1672, %v1519
    %v1738 = vsel %vm1697, %v1673, %v1521
    %v1739 = vsel %vm1697, %v1674, %v1523
    %v1740 = vsel %vm1697, %v1675, %v1525
    %v1741 = vsel %vm1697, %v1676, %v1527
    %v1742 = vsel %vm1697, %v1677, %v1529
    %v1743 = vsel %vm1697, %v1678, %v1531
    %v1744 = vsel %vm1697, %v1679, %v1533
    %v1745 = vsel %vm1697, %v1680, %v1535
    %v1746 = vsel %vm1697, %v1681, %v1537
    %v1747 = vsel %vm1697, %v1682, %v1539
    %v1748 = vsel %vm1697, %v1683, %v1541
    %v1749 = vsel %vm1697, %v1684, %v1543
    %v1750 = vsel %vm1697, %v1685, %v1545
    %v1751 = vsel %vm1697, %v1686, %v1547
    %v1752 = vsel %vm1697, %v1687, %v1549
    %v1753 = vsel %vm1697, %v1688, %v1551
    %v1754 = vsel %vm1697, %v1689, %v1553
    %v1755 = vsel %vm1697, %v1690, %v1555
    %v1756 = vsel %vm1697, %v1691, %v1557
    %v1757 = vsel %vm1697, %v1692, %v1559
    %v1758 = vsel %vm1697, %v1693, %v1561
    %v1759 = vsel %vm1697, %v1694, %v1563
    %v1760 = vsel %vm1697, %v1695, %v1565
    %v1761 = vsel %vm1697, %v1696, %v1567
    %vm1762 = vcmask 293888
    %v1764 = vsel %vm1762, %v1698, 0
    %v1767 = vsel %vm1762, %v1699, 0
    %v1770 = vsel %vm1762, %v1700, 0
    %v1773 = vsel %vm1762, %v1701, 0
    %v1776 = vsel %vm1762, %v1702, 0
    %v1779 = vsel %vm1762, %v1703, 0
    %v1782 = vsel %vm1762, %v1704, 0
    %v1785 = vsel %vm1762, %v1705, 0
    %v1788 = vsel %vm1762, %v1706, 0
    %v1791 = vsel %vm1762, %v1707, 0
    %v1794 = vsel %vm1762, %v1708, 0
    %v1797 = vsel %vm1762, %v1709, 0
    %v1800 = vsel %vm1762, %v1710, 0
    %v1803 = vsel %vm1762, %v1711, 0
    %v1806 = vsel %vm1762, %v1712, 0
    %v1809 = vsel %vm1762, %v1713, 0
    %v1812 = vsel %vm1762, %v1714, 0
    %v1815 = vsel %vm1762, %v1715, 0
    %v1818 = vsel %vm1762, %v1716, 0
    %v1821 = vsel %vm1762, %v1717, 0
    %v1824 = vsel %vm1762, %v1718, 0
    %v1827 = vsel %vm1762, %v1719, 0
    %v1830 = vsel %vm1762, %v1720, 0
    %v1833 = vsel %vm1762, %v1721, 0
    %v1836 = vsel %vm1762, %v1722, 0
    %v1839 = vsel %vm1762, %v1723, 0
    %v1842 = vsel %vm1762, %v1724, 0
    %v1845 = vsel %vm1762, %v1725, 0
    %v1848 = vsel %vm1762, %v1726, 0
    %v1851 = vsel %vm1762, %v1727, 0
    %v1854 = vsel %vm1762, %v1728, 0
    %v1857 = vsel %vm1762, %v1729, 0
    %v1860 = vsel %vm1762, %v1730, 0
    %v1863 = vsel %vm1762, %v1731, 0
    %v1866 = vsel %vm1762, %v1732, 0
    %v1869 = vsel %vm1762, %v1733, 0
    %v1872 = vsel %vm1762, %v1734, 0
    %v1875 = vsel %vm1762, %v1735, 0
    %v1878 = vsel %vm1762, %v1736, 0
    %v1881 = vsel %vm1762, %v1737, 0
    %v1884 = vsel %vm1762, %v1738, 0
    %v1887 = vsel %vm1762, %v1739, 0
    %v1890 = vsel %vm1762, %v1740, 0
    %v1893 = vsel %vm1762, %v1741, 0
    %v1896 = vsel %vm1762, %v1742, 0
    %v1899 = vsel %vm1762, %v1743, 0
    %v1902 = vsel %vm1762, %v1744, 0
    %v1905 = vsel %vm1762, %v1745, 0
    %v1908 = vsel %vm1762, %v1746, 0
    %v1911 = vsel %vm1762, %v1747, 0
    %v1914 = vsel %vm1762, %v1748, 0
    %v1917 = vsel %vm1762, %v1749, 0
    %v1920 = vsel %vm1762, %v1750, 0
    %v1923 = vsel %vm1762, %v1751, 0
    %v1926 = vsel %vm1762, %v1752, 0
    %v1929 = vsel %vm1762, %v1753, 0
    %v1932 = vsel %vm1762, %v1754, 0
    %v1935 = vsel %vm1762, %v1755, 0
    %v1938 = vsel %vm1762, %v1756, 0
    %v1941 = vsel %vm1762, %v1757, 0
    %v1944 = vsel %vm1762, %v1758, 0
    %v1947 = vsel %vm1762, %v1759, 0
    %v1950 = vsel %vm1762, %v1760, 0
    %v1953 = vsel %vm1762, %v1761, 0
    %vm1955 = vcmask 1043456
    %v1957 = vsel %vm1955, %v131, 0
    %1959 = vmatprep.subr.mxu0 0.0
    %1960 = vmatpush1.msra.mxu0 0.0
    %1961 = vmatprep.subr.mxu0 0.0
    %1962 = vmatpush1.msra.mxu0 0.0
    %1963 = vmatprep.subr.mxu0 0.0
    %1964 = vmatpush1.msra.mxu0 0.0
    %1965 = vmatprep.subr.mxu0 0.0
    %1966 = vmatpush1.msra.mxu0 0.0
    %1967 = vmatprep.subr.mxu0 0.0
    %1968 = vmatpush1.msra.mxu0 0.0
    %1969 = vmatprep.subr.mxu0 0.0
    %1970 = vmatpush1.msra.mxu0 0.0
    %1971 = vmatprep.subr.mxu0 0.0
    %1972 = vmatpush1.msra.mxu0 0.0
    %1973 = vmatprep.subr.mxu0 0.0
    %1974 = vmatpush1.msra.mxu0 0.0
    %1975 = vmatprep.subr.mxu0 0.0
    %1976 = vmatpush1.msra.mxu0 0.0
    %1977 = vmatprep.subr.mxu0 0.0
    %1978 = vmatpush1.msra.mxu0 0.0
    %1979 = vmatprep.subr.mxu0 0.0
    %1980 = vmatpush1.msra.mxu0 0.0
    %1981 = vmatprep.subr.mxu0 0.0
    %1982 = vmatpush1.msra.mxu0 %v1957
    %1983 = vmatprep.subr.mxu0 0.0
    %1984 = vmatpush1.msra.mxu0 %v130
    %1985 = vmatprep.subr.mxu0 0.0
    %1986 = vmatpush1.msra.mxu0 %v129
    %1987 = vmatprep.subr.mxu0 0.0
    %1988 = vmatpush1.msra.mxu0 %v128
    %1989 = vmatprep.subr.mxu0 0.0
    %1990 = vmatpush1.msra.mxu0 %v127
    %1991 = vmatprep.subr.mxu0 0.0
    %1992 = vmatpush2.msra.mxu0 0.0
    %1993 = vmatprep.subr.mxu0 0.0
    %1994 = vmatpush2.msra.mxu0 0.0
    %1995 = vmatprep.subr.mxu0 0.0
    %1996 = vmatpush2.msra.mxu0 0.0
    %1997 = vmatprep.subr.mxu0 0.0
    %1998 = vmatpush2.msra.mxu0 0.0
    %1999 = vmatprep.subr.mxu0 0.0
    %2000 = vmatpush2.msra.mxu0 0.0
    %2001 = vmatprep.subr.mxu0 0.0
    %2002 = vmatpush2.msra.mxu0 0.0
    %2003 = vmatprep.subr.mxu0 0.0
    %2004 = vmatpush2.msra.mxu0 0.0
    %2005 = vmatprep.subr.mxu0 0.0
    %2006 = vmatpush2.msra.mxu0 0.0
    %2007 = vmatprep.subr.mxu0 0.0
    %2008 = vmatpush2.msra.mxu0 0.0
    %2009 = vmatprep.subr.mxu0 0.0
    %2010 = vmatpush2.msra.mxu0 0.0
    %2011 = vmatprep.subr.mxu0 0.0
    %2012 = vmatpush2.msra.mxu0 0.0
    %2013 = vmatprep.subr.mxu0 0.0
    %2014 = vmatpush2.msra.mxu0 0.0
    %2015 = vmatprep.subr.mxu0 0.0
    %2016 = vmatpush2.msra.mxu0 0.0
    %2017 = vmatprep.subr.mxu0 0.0
    %2018 = vmatpush2.msra.mxu0 0.0
    %2019 = vmatprep.subr.mxu0 0.0
    %2020 = vmatpush2.msra.mxu0 0.0
    %2021 = vmatprep.subr.mxu0 0.0
    %2022 = vmatpush2.msra.mxu0 0.0
    %2023 = vmatprep.mubr.f32.mxu0 0.0
    %2024 = vmatmul.mubr.f32.gmra.mxu0 %v1764
    %v2025 = vpop.f32.mrf.mxu0
    %v2026 = vadd.f32 0.0, %v2025
    %v2027 = vpop.f32.mrf.mxu0
    %2028 = vmatprep.mubr.f32.mxu0 0.0
    %2029 = vmatmul.mubr.f32.gmra.mxu0 %v1767
    %v2030 = vpop.f32.mrf.mxu0
    %v2031 = vadd.f32 0.0, %v2030
    %v2032 = vpop.f32.mrf.mxu0
    %2033 = vmatprep.mubr.f32.mxu0 0.0
    %2034 = vmatmul.mubr.f32.gmra.mxu0 %v1770
    %v2035 = vpop.f32.mrf.mxu0
    %v2036 = vadd.f32 0.0, %v2035
    %v2037 = vpop.f32.mrf.mxu0
    %2038 = vmatprep.mubr.f32.mxu0 0.0
    %2039 = vmatmul.mubr.f32.gmra.mxu0 %v1773
    %v2040 = vpop.f32.mrf.mxu0
    %v2041 = vadd.f32 0.0, %v2040
    %v2042 = vpop.f32.mrf.mxu0
    %2043 = vmatprep.mubr.f32.mxu0 0.0
    %2044 = vmatmul.mubr.f32.gmra.mxu0 %v1776
    %v2045 = vpop.f32.mrf.mxu0
    %v2046 = vadd.f32 0.0, %v2045
    %v2047 = vpop.f32.mrf.mxu0
    %2048 = vmatprep.mubr.f32.mxu0 0.0
    %2049 = vmatmul.mubr.f32.gmra.mxu0 %v1779
    %v2050 = vpop.f32.mrf.mxu0
    %v2051 = vadd.f32 0.0, %v2050
    %v2052 = vpop.f32.mrf.mxu0
    %2053 = vmatprep.mubr.f32.mxu0 0.0
    %2054 = vmatmul.mubr.f32.gmra.mxu0 %v1782
    %v2055 = vpop.f32.mrf.mxu0
    %v2056 = vadd.f32 0.0, %v2055
    %v2057 = vpop.f32.mrf.mxu0
    %2058 = vmatprep.mubr.f32.mxu0 0.0
    %2059 = vmatmul.mubr.f32.gmra.mxu0 %v1785
    %v2060 = vpop.f32.mrf.mxu0
    %v2061 = vadd.f32 0.0, %v2060
    %v2062 = vpop.f32.mrf.mxu0
    %2063 = vmatprep.mubr.f32.mxu0 0.0
    %2064 = vmatmul.mubr.f32.gmra.mxu0 %v1788
    %v2065 = vpop.f32.mrf.mxu0
    %v2066 = vadd.f32 0.0, %v2065
    %v2067 = vpop.f32.mrf.mxu0
    %2068 = vmatprep.mubr.f32.mxu0 0.0
    %2069 = vmatmul.mubr.f32.gmra.mxu0 %v1791
    %v2070 = vpop.f32.mrf.mxu0
    %v2071 = vadd.f32 0.0, %v2070
    %v2072 = vpop.f32.mrf.mxu0
    %2073 = vmatprep.mubr.f32.mxu0 0.0
    %2074 = vmatmul.mubr.f32.gmra.mxu0 %v1794
    %v2075 = vpop.f32.mrf.mxu0
    %v2076 = vadd.f32 0.0, %v2075
    %v2077 = vpop.f32.mrf.mxu0
    %2078 = vmatprep.mubr.f32.mxu0 0.0
    %2079 = vmatmul.mubr.f32.gmra.mxu0 %v1797
    %v2080 = vpop.f32.mrf.mxu0
    %v2081 = vadd.f32 0.0, %v2080
    %v2082 = vpop.f32.mrf.mxu0
    %2083 = vmatprep.mubr.f32.mxu0 0.0
    %2084 = vmatmul.mubr.f32.gmra.mxu0 %v1800
    %v2085 = vpop.f32.mrf.mxu0
    %v2086 = vadd.f32 0.0, %v2085
    %v2087 = vpop.f32.mrf.mxu0
    %2088 = vmatprep.mubr.f32.mxu0 0.0
    %2089 = vmatmul.mubr.f32.gmra.mxu0 %v1803
    %v2090 = vpop.f32.mrf.mxu0
    %v2091 = vadd.f32 0.0, %v2090
    %v2092 = vpop.f32.mrf.mxu0
    %2093 = vmatprep.mubr.f32.mxu0 0.0
    %2094 = vmatmul.mubr.f32.gmra.mxu0 %v1806
    %v2095 = vpop.f32.mrf.mxu0
    %v2096 = vadd.f32 0.0, %v2095
    %v2097 = vpop.f32.mrf.mxu0
    %2098 = vmatprep.mubr.f32.mxu0 0.0
    %2099 = vmatmul.mubr.f32.gmra.mxu0 %v1809
    %v2100 = vpop.f32.mrf.mxu0
    %v2101 = vadd.f32 0.0, %v2100
    %v2102 = vpop.f32.mrf.mxu0
    %2103 = vmatprep.mubr.f32.mxu0 0.0
    %2104 = vmatmul.mubr.f32.gmra.mxu0 %v1812
    %v2105 = vpop.f32.mrf.mxu0
    %v2106 = vadd.f32 0.0, %v2105
    %v2107 = vpop.f32.mrf.mxu0
    %2108 = vmatprep.mubr.f32.mxu0 0.0
    %2109 = vmatmul.mubr.f32.gmra.mxu0 %v1815
    %v2110 = vpop.f32.mrf.mxu0
    %v2111 = vadd.f32 0.0, %v2110
    %v2112 = vpop.f32.mrf.mxu0
    %2113 = vmatprep.mubr.f32.mxu0 0.0
    %2114 = vmatmul.mubr.f32.gmra.mxu0 %v1818
    %v2115 = vpop.f32.mrf.mxu0
    %v2116 = vadd.f32 0.0, %v2115
    %v2117 = vpop.f32.mrf.mxu0
    %2118 = vmatprep.mubr.f32.mxu0 0.0
    %2119 = vmatmul.mubr.f32.gmra.mxu0 %v1821
    %v2120 = vpop.f32.mrf.mxu0
    %v2121 = vadd.f32 0.0, %v2120
    %v2122 = vpop.f32.mrf.mxu0
    %2123 = vmatprep.mubr.f32.mxu0 0.0
    %2124 = vmatmul.mubr.f32.gmra.mxu0 %v1824
    %v2125 = vpop.f32.mrf.mxu0
    %v2126 = vadd.f32 0.0, %v2125
    %v2127 = vpop.f32.mrf.mxu0
    %2128 = vmatprep.mubr.f32.mxu0 0.0
    %2129 = vmatmul.mubr.f32.gmra.mxu0 %v1827
    %v2130 = vpop.f32.mrf.mxu0
    %v2131 = vadd.f32 0.0, %v2130
    %v2132 = vpop.f32.mrf.mxu0
    %2133 = vmatprep.mubr.f32.mxu0 0.0
    %2134 = vmatmul.mubr.f32.gmra.mxu0 %v1830
    %v2135 = vpop.f32.mrf.mxu0
    %v2136 = vadd.f32 0.0, %v2135
    %v2137 = vpop.f32.mrf.mxu0
    %2138 = vmatprep.mubr.f32.mxu0 0.0
    %2139 = vmatmul.mubr.f32.gmra.mxu0 %v1833
    %v2140 = vpop.f32.mrf.mxu0
    %v2141 = vadd.f32 0.0, %v2140
    %v2142 = vpop.f32.mrf.mxu0
    %2143 = vmatprep.mubr.f32.mxu0 0.0
    %2144 = vmatmul.mubr.f32.gmra.mxu0 %v1836
    %v2145 = vpop.f32.mrf.mxu0
    %v2146 = vadd.f32 0.0, %v2145
    %v2147 = vpop.f32.mrf.mxu0
    %2148 = vmatprep.mubr.f32.mxu0 0.0
    %2149 = vmatmul.mubr.f32.gmra.mxu0 %v1839
    %v2150 = vpop.f32.mrf.mxu0
    %v2151 = vadd.f32 0.0, %v2150
    %v2152 = vpop.f32.mrf.mxu0
    %2153 = vmatprep.mubr.f32.mxu0 0.0
    %2154 = vmatmul.mubr.f32.gmra.mxu0 %v1842
    %v2155 = vpop.f32.mrf.mxu0
    %v2156 = vadd.f32 0.0, %v2155
    %v2157 = vpop.f32.mrf.mxu0
    %2158 = vmatprep.mubr.f32.mxu0 0.0
    %2159 = vmatmul.mubr.f32.gmra.mxu0 %v1845
    %v2160 = vpop.f32.mrf.mxu0
    %v2161 = vadd.f32 0.0, %v2160
    %v2162 = vpop.f32.mrf.mxu0
    %2163 = vmatprep.mubr.f32.mxu0 0.0
    %2164 = vmatmul.mubr.f32.gmra.mxu0 %v1848
    %v2165 = vpop.f32.mrf.mxu0
    %v2166 = vadd.f32 0.0, %v2165
    %v2167 = vpop.f32.mrf.mxu0
    %2168 = vmatprep.mubr.f32.mxu0 0.0
    %2169 = vmatmul.mubr.f32.gmra.mxu0 %v1851
    %v2170 = vpop.f32.mrf.mxu0
    %v2171 = vadd.f32 0.0, %v2170
    %v2172 = vpop.f32.mrf.mxu0
    %2173 = vmatprep.mubr.f32.mxu0 0.0
    %2174 = vmatmul.mubr.f32.gmra.mxu0 %v1854
    %v2175 = vpop.f32.mrf.mxu0
    %v2176 = vadd.f32 0.0, %v2175
    %v2177 = vpop.f32.mrf.mxu0
    %2178 = vmatprep.mubr.f32.mxu0 0.0
    %2179 = vmatmul.mubr.f32.gmra.mxu0 %v1857
    %v2180 = vpop.f32.mrf.mxu0
    %v2181 = vadd.f32 0.0, %v2180
    %v2182 = vpop.f32.mrf.mxu0
    %2183 = vmatprep.mubr.f32.mxu0 0.0
    %2184 = vmatmul.mubr.f32.gmra.mxu0 %v1860
    %v2185 = vpop.f32.mrf.mxu0
    %v2186 = vadd.f32 0.0, %v2185
    %v2187 = vpop.f32.mrf.mxu0
    %2188 = vmatprep.mubr.f32.mxu0 0.0
    %2189 = vmatmul.mubr.f32.gmra.mxu0 %v1863
    %v2190 = vpop.f32.mrf.mxu0
    %v2191 = vadd.f32 0.0, %v2190
    %v2192 = vpop.f32.mrf.mxu0
    %2193 = vmatprep.mubr.f32.mxu0 0.0
    %2194 = vmatmul.mubr.f32.gmra.mxu0 %v1866
    %v2195 = vpop.f32.mrf.mxu0
    %v2196 = vadd.f32 0.0, %v2195
    %v2197 = vpop.f32.mrf.mxu0
    %2198 = vmatprep.mubr.f32.mxu0 0.0
    %2199 = vmatmul.mubr.f32.gmra.mxu0 %v1869
    %v2200 = vpop.f32.mrf.mxu0
    %v2201 = vadd.f32 0.0, %v2200
    %v2202 = vpop.f32.mrf.mxu0
    %2203 = vmatprep.mubr.f32.mxu0 0.0
    %2204 = vmatmul.mubr.f32.gmra.mxu0 %v1872
    %v2205 = vpop.f32.mrf.mxu0
    %v2206 = vadd.f32 0.0, %v2205
    %v2207 = vpop.f32.mrf.mxu0
    %2208 = vmatprep.mubr.f32.mxu0 0.0
    %2209 = vmatmul.mubr.f32.gmra.mxu0 %v1875
    %v2210 = vpop.f32.mrf.mxu0
    %v2211 = vadd.f32 0.0, %v2210
    %v2212 = vpop.f32.mrf.mxu0
    %2213 = vmatprep.mubr.f32.mxu0 0.0
    %2214 = vmatmul.mubr.f32.gmra.mxu0 %v1878
    %v2215 = vpop.f32.mrf.mxu0
    %v2216 = vadd.f32 0.0, %v2215
    %v2217 = vpop.f32.mrf.mxu0
    %2218 = vmatprep.mubr.f32.mxu0 0.0
    %2219 = vmatmul.mubr.f32.gmra.mxu0 %v1881
    %v2220 = vpop.f32.mrf.mxu0
    %v2221 = vadd.f32 0.0, %v2220
    %v2222 = vpop.f32.mrf.mxu0
    %2223 = vmatprep.mubr.f32.mxu0 0.0
    %2224 = vmatmul.mubr.f32.gmra.mxu0 %v1884
    %v2225 = vpop.f32.mrf.mxu0
    %v2226 = vadd.f32 0.0, %v2225
    %v2227 = vpop.f32.mrf.mxu0
    %2228 = vmatprep.mubr.f32.mxu0 0.0
    %2229 = vmatmul.mubr.f32.gmra.mxu0 %v1887
    %v2230 = vpop.f32.mrf.mxu0
    %v2231 = vadd.f32 0.0, %v2230
    %v2232 = vpop.f32.mrf.mxu0
    %2233 = vmatprep.mubr.f32.mxu0 0.0
    %2234 = vmatmul.mubr.f32.gmra.mxu0 %v1890
    %v2235 = vpop.f32.mrf.mxu0
    %v2236 = vadd.f32 0.0, %v2235
    %v2237 = vpop.f32.mrf.mxu0
    %2238 = vmatprep.mubr.f32.mxu0 0.0
    %2239 = vmatmul.mubr.f32.gmra.mxu0 %v1893
    %v2240 = vpop.f32.mrf.mxu0
    %v2241 = vadd.f32 0.0, %v2240
    %v2242 = vpop.f32.mrf.mxu0
    %2243 = vmatprep.mubr.f32.mxu0 0.0
    %2244 = vmatmul.mubr.f32.gmra.mxu0 %v1896
    %v2245 = vpop.f32.mrf.mxu0
    %v2246 = vadd.f32 0.0, %v2245
    %v2247 = vpop.f32.mrf.mxu0
    %2248 = vmatprep.mubr.f32.mxu0 0.0
    %2249 = vmatmul.mubr.f32.gmra.mxu0 %v1899
    %v2250 = vpop.f32.mrf.mxu0
    %v2251 = vadd.f32 0.0, %v2250
    %v2252 = vpop.f32.mrf.mxu0
    %2253 = vmatprep.mubr.f32.mxu0 0.0
    %2254 = vmatmul.mubr.f32.gmra.mxu0 %v1902
    %v2255 = vpop.f32.mrf.mxu0
    %v2256 = vadd.f32 0.0, %v2255
    %v2257 = vpop.f32.mrf.mxu0
    %2258 = vmatprep.mubr.f32.mxu0 0.0
    %2259 = vmatmul.mubr.f32.gmra.mxu0 %v1905
    %v2260 = vpop.f32.mrf.mxu0
    %v2261 = vadd.f32 0.0, %v2260
    %v2262 = vpop.f32.mrf.mxu0
    %2263 = vmatprep.mubr.f32.mxu0 0.0
    %2264 = vmatmul.mubr.f32.gmra.mxu0 %v1908
    %v2265 = vpop.f32.mrf.mxu0
    %v2266 = vadd.f32 0.0, %v2265
    %v2267 = vpop.f32.mrf.mxu0
    %2268 = vmatprep.mubr.f32.mxu0 0.0
    %2269 = vmatmul.mubr.f32.gmra.mxu0 %v1911
    %v2270 = vpop.f32.mrf.mxu0
    %v2271 = vadd.f32 0.0, %v2270
    %v2272 = vpop.f32.mrf.mxu0
    %2273 = vmatprep.mubr.f32.mxu0 0.0
    %2274 = vmatmul.mubr.f32.gmra.mxu0 %v1914
    %v2275 = vpop.f32.mrf.mxu0
    %v2276 = vadd.f32 0.0, %v2275
    %v2277 = vpop.f32.mrf.mxu0
    %2278 = vmatprep.mubr.f32.mxu0 0.0
    %2279 = vmatmul.mubr.f32.gmra.mxu0 %v1917
    %v2280 = vpop.f32.mrf.mxu0
    %v2281 = vadd.f32 0.0, %v2280
    %v2282 = vpop.f32.mrf.mxu0
    %2283 = vmatprep.mubr.f32.mxu0 0.0
    %2284 = vmatmul.mubr.f32.gmra.mxu0 %v1920
    %v2285 = vpop.f32.mrf.mxu0
    %v2286 = vadd.f32 0.0, %v2285
    %v2287 = vpop.f32.mrf.mxu0
    %2288 = vmatprep.mubr.f32.mxu0 0.0
    %2289 = vmatmul.mubr.f32.gmra.mxu0 %v1923
    %v2290 = vpop.f32.mrf.mxu0
    %v2291 = vadd.f32 0.0, %v2290
    %v2292 = vpop.f32.mrf.mxu0
    %2293 = vmatprep.mubr.f32.mxu0 0.0
    %2294 = vmatmul.mubr.f32.gmra.mxu0 %v1926
    %v2295 = vpop.f32.mrf.mxu0
    %v2296 = vadd.f32 0.0, %v2295
    %v2297 = vpop.f32.mrf.mxu0
    %2298 = vmatprep.mubr.f32.mxu0 0.0
    %2299 = vmatmul.mubr.f32.gmra.mxu0 %v1929
    %v2300 = vpop.f32.mrf.mxu0
    %v2301 = vadd.f32 0.0, %v2300
    %v2302 = vpop.f32.mrf.mxu0
    %2303 = vmatprep.mubr.f32.mxu0 0.0
    %2304 = vmatmul.mubr.f32.gmra.mxu0 %v1932
    %v2305 = vpop.f32.mrf.mxu0
    %v2306 = vadd.f32 0.0, %v2305
    %v2307 = vpop.f32.mrf.mxu0
    %2308 = vmatprep.mubr.f32.mxu0 0.0
    %2309 = vmatmul.mubr.f32.gmra.mxu0 %v1935
    %v2310 = vpop.f32.mrf.mxu0
    %v2311 = vadd.f32 0.0, %v2310
    %v2312 = vpop.f32.mrf.mxu0
    %2313 = vmatprep.mubr.f32.mxu0 0.0
    %2314 = vmatmul.mubr.f32.gmra.mxu0 %v1938
    %v2315 = vpop.f32.mrf.mxu0
    %v2316 = vadd.f32 0.0, %v2315
    %v2317 = vpop.f32.mrf.mxu0
    %2318 = vmatprep.mubr.f32.mxu0 0.0
    %2319 = vmatmul.mubr.f32.gmra.mxu0 %v1941
    %v2320 = vpop.f32.mrf.mxu0
    %v2321 = vadd.f32 0.0, %v2320
    %v2322 = vpop.f32.mrf.mxu0
    %2323 = vmatprep.mubr.f32.mxu0 0.0
    %2324 = vmatmul.mubr.f32.gmra.mxu0 %v1944
    %v2325 = vpop.f32.mrf.mxu0
    %v2326 = vadd.f32 0.0, %v2325
    %v2327 = vpop.f32.mrf.mxu0
    %2328 = vmatprep.mubr.f32.mxu0 0.0
    %2329 = vmatmul.mubr.f32.gmra.mxu0 %v1947
    %v2330 = vpop.f32.mrf.mxu0
    %v2331 = vadd.f32 0.0, %v2330
    %v2332 = vpop.f32.mrf.mxu0
    %2333 = vmatprep.mubr.f32.mxu0 0.0
    %2334 = vmatmul.mubr.f32.gmra.mxu0 %v1950
    %v2335 = vpop.f32.mrf.mxu0
    %v2336 = vadd.f32 0.0, %v2335
    %v2337 = vpop.f32.mrf.mxu0
    %2338 = vmatprep.mubr.f32.mxu0 0.0
    %2339 = vmatmul.mubr.f32.gmra.mxu0 %v1953
    %v2340 = vpop.f32.mrf.mxu0
    %v2341 = vadd.f32 0.0, %v2340
    %v2342 = vpop.f32.mrf.mxu0
    %2343 = vdwg.mxu0
    %v2344 = vsel %vm1107, %v2026, 0.0
    %v2345 = vsel %vm1107, %v2031, 0.0
    %v2346 = vadd.f32 %v2344, %v2345
    %v2347 = vsel %vm1107, %v2036, 0.0
    %v2348 = vadd.f32 %v2346, %v2347
    %v2349 = vsel %vm1107, %v2041, 0.0
    %v2350 = vadd.f32 %v2348, %v2349
    %v2351 = vsel %vm1107, %v2046, 0.0
    %v2352 = vadd.f32 %v2350, %v2351
    %v2353 = vsel %vm1107, %v2051, 0.0
    %v2354 = vadd.f32 %v2352, %v2353
    %v2355 = vsel %vm1107, %v2056, 0.0
    %v2356 = vadd.f32 %v2354, %v2355
    %v2357 = vsel %vm1107, %v2061, 0.0
    %v2358 = vadd.f32 %v2356, %v2357
    %v2359 = vsel %vm1107, %v2066, 0.0
    %v2360 = vadd.f32 %v2358, %v2359
    %v2361 = vsel %vm1107, %v2071, 0.0
    %v2362 = vadd.f32 %v2360, %v2361
    %v2363 = vsel %vm1107, %v2076, 0.0
    %v2364 = vadd.f32 %v2362, %v2363
    %v2365 = vsel %vm1107, %v2081, 0.0
    %v2366 = vadd.f32 %v2364, %v2365
    %v2367 = vsel %vm1107, %v2086, 0.0
    %v2368 = vadd.f32 %v2366, %v2367
    %v2369 = vsel %vm1107, %v2091, 0.0
    %v2370 = vadd.f32 %v2368, %v2369
    %v2371 = vsel %vm1107, %v2096, 0.0
    %v2372 = vadd.f32 %v2370, %v2371
    %v2373 = vsel %vm1107, %v2101, 0.0
    %v2374 = vadd.f32 %v2372, %v2373
    %v2375 = vsel %vm1107, %v2106, 0.0
    %v2376 = vadd.f32 %v2374, %v2375
    %v2377 = vsel %vm1107, %v2111, 0.0
    %v2378 = vadd.f32 %v2376, %v2377
    %v2379 = vsel %vm1107, %v2116, 0.0
    %v2380 = vadd.f32 %v2378, %v2379
    %v2381 = vsel %vm1107, %v2121, 0.0
    %v2382 = vadd.f32 %v2380, %v2381
    %v2383 = vsel %vm1107, %v2126, 0.0
    %v2384 = vadd.f32 %v2382, %v2383
    %v2385 = vsel %vm1107, %v2131, 0.0
    %v2386 = vadd.f32 %v2384, %v2385
    %v2387 = vsel %vm1107, %v2136, 0.0
    %v2388 = vadd.f32 %v2386, %v2387
    %v2389 = vsel %vm1107, %v2141, 0.0
    %v2390 = vadd.f32 %v2388, %v2389
    %v2391 = vsel %vm1107, %v2146, 0.0
    %v2392 = vadd.f32 %v2390, %v2391
    %v2393 = vsel %vm1107, %v2151, 0.0
    %v2394 = vadd.f32 %v2392, %v2393
    %v2395 = vsel %vm1107, %v2156, 0.0
    %v2396 = vadd.f32 %v2394, %v2395
    %v2397 = vsel %vm1107, %v2161, 0.0
    %v2398 = vadd.f32 %v2396, %v2397
    %v2399 = vsel %vm1107, %v2166, 0.0
    %v2400 = vadd.f32 %v2398, %v2399
    %v2401 = vsel %vm1107, %v2171, 0.0
    %v2402 = vadd.f32 %v2400, %v2401
    %v2403 = vsel %vm1107, %v2176, 0.0
    %v2404 = vadd.f32 %v2402, %v2403
    %v2405 = vsel %vm1107, %v2181, 0.0
    %v2406 = vadd.f32 %v2404, %v2405
    %v2407 = vsel %vm1107, %v2186, 0.0
    %v2408 = vadd.f32 %v2406, %v2407
    %v2409 = vsel %vm1107, %v2191, 0.0
    %v2410 = vadd.f32 %v2408, %v2409
    %v2411 = vsel %vm1107, %v2196, 0.0
    %v2412 = vadd.f32 %v2410, %v2411
    %v2413 = vsel %vm1107, %v2201, 0.0
    %v2414 = vadd.f32 %v2412, %v2413
    %v2415 = vsel %vm1107, %v2206, 0.0
    %v2416 = vadd.f32 %v2414, %v2415
    %v2417 = vsel %vm1107, %v2211, 0.0
    %v2418 = vadd.f32 %v2416, %v2417
    %v2419 = vsel %vm1107, %v2216, 0.0
    %v2420 = vadd.f32 %v2418, %v2419
    %v2421 = vsel %vm1107, %v2221, 0.0
    %v2422 = vadd.f32 %v2420, %v2421
    %v2423 = vsel %vm1107, %v2226, 0.0
    %v2424 = vadd.f32 %v2422, %v2423
    %v2425 = vsel %vm1107, %v2231, 0.0
    %v2426 = vadd.f32 %v2424, %v2425
    %v2427 = vsel %vm1107, %v2236, 0.0
    %v2428 = vadd.f32 %v2426, %v2427
    %v2429 = vsel %vm1107, %v2241, 0.0
    %v2430 = vadd.f32 %v2428, %v2429
    %v2431 = vsel %vm1107, %v2246, 0.0
    %v2432 = vadd.f32 %v2430, %v2431
    %v2433 = vsel %vm1107, %v2251, 0.0
    %v2434 = vadd.f32 %v2432, %v2433
    %v2435 = vsel %vm1107, %v2256, 0.0
    %v2436 = vadd.f32 %v2434, %v2435
    %v2437 = vsel %vm1107, %v2261, 0.0
    %v2438 = vadd.f32 %v2436, %v2437
    %v2439 = vsel %vm1107, %v2266, 0.0
    %v2440 = vadd.f32 %v2438, %v2439
    %v2441 = vsel %vm1107, %v2271, 0.0
    %v2442 = vadd.f32 %v2440, %v2441
    %v2443 = vsel %vm1107, %v2276, 0.0
    %v2444 = vadd.f32 %v2442, %v2443
    %v2445 = vsel %vm1107, %v2281, 0.0
    %v2446 = vadd.f32 %v2444, %v2445
    %v2447 = vsel %vm1107, %v2286, 0.0
    %v2448 = vadd.f32 %v2446, %v2447
    %v2449 = vsel %vm1107, %v2291, 0.0
    %v2450 = vadd.f32 %v2448, %v2449
    %v2451 = vsel %vm1107, %v2296, 0.0
    %v2452 = vadd.f32 %v2450, %v2451
    %v2453 = vsel %vm1107, %v2301, 0.0
    %v2454 = vadd.f32 %v2452, %v2453
    %v2455 = vsel %vm1107, %v2306, 0.0
    %v2456 = vadd.f32 %v2454, %v2455
    %v2457 = vsel %vm1107, %v2311, 0.0
    %v2458 = vadd.f32 %v2456, %v2457
    %v2459 = vsel %vm1107, %v2316, 0.0
    %v2460 = vadd.f32 %v2458, %v2459
    %v2461 = vsel %vm1107, %v2321, 0.0
    %v2462 = vadd.f32 %v2460, %v2461
    %v2463 = vsel %vm1107, %v2326, 0.0
    %v2464 = vadd.f32 %v2462, %v2463
    %v2465 = vsel %vm1107, %v2331, 0.0
    %v2466 = vadd.f32 %v2464, %v2465
    %v2467 = vsel %vm1107, %v2336, 0.0
    %v2468 = vadd.f32 %v2466, %v2467
    %v2469 = vsel %vm1107, %v2341, 0.0
    %v2470 = vadd.f32 %v2468, %v2469
    %v2471 = vrot.slane %v2470, 4
    %v2472 = vadd.f32 %v2470, %v2471
    %v2473 = vrot.slane %v2472, 2
    %v2474 = vadd.f32 %v2472, %v2473
    %v2475 = vrot.slane %v2474, 1
    %v2476 = vadd.f32 %v2474, %v2475
    %v2477 = vrcp.pop 512.0
    %v2478 = vmul.f32 %v2476, %v2477
    %v2479 = vsub.f32 %v2026, %v2478
    %v2480 = vsub.f32 %v2031, %v2478
    %v2481 = vsub.f32 %v2036, %v2478
    %v2482 = vsub.f32 %v2041, %v2478
    %v2483 = vsub.f32 %v2046, %v2478
    %v2484 = vsub.f32 %v2051, %v2478
    %v2485 = vsub.f32 %v2056, %v2478
    %v2486 = vsub.f32 %v2061, %v2478
    %v2487 = vsub.f32 %v2066, %v2478
    %v2488 = vsub.f32 %v2071, %v2478
    %v2489 = vsub.f32 %v2076, %v2478
    %v2490 = vsub.f32 %v2081, %v2478
    %v2491 = vsub.f32 %v2086, %v2478
    %v2492 = vsub.f32 %v2091, %v2478
    %v2493 = vsub.f32 %v2096, %v2478
    %v2494 = vsub.f32 %v2101, %v2478
    %v2495 = vsub.f32 %v2106, %v2478
    %v2496 = vsub.f32 %v2111, %v2478
    %v2497 = vsub.f32 %v2116, %v2478
    %v2498 = vsub.f32 %v2121, %v2478
    %v2499 = vsub.f32 %v2126, %v2478
    %v2500 = vsub.f32 %v2131, %v2478
    %v2501 = vsub.f32 %v2136, %v2478
    %v2502 = vsub.f32 %v2141, %v2478
    %v2503 = vsub.f32 %v2146, %v2478
    %v2504 = vsub.f32 %v2151, %v2478
    %v2505 = vsub.f32 %v2156, %v2478
    %v2506 = vsub.f32 %v2161, %v2478
    %v2507 = vsub.f32 %v2166, %v2478
    %v2508 = vsub.f32 %v2171, %v2478
    %v2509 = vsub.f32 %v2176, %v2478
    %v2510 = vsub.f32 %v2181, %v2478
    %v2511 = vsub.f32 %v2186, %v2478
    %v2512 = vsub.f32 %v2191, %v2478
    %v2513 = vsub.f32 %v2196, %v2478
    %v2514 = vsub.f32 %v2201, %v2478
    %v2515 = vsub.f32 %v2206, %v2478
    %v2516 = vsub.f32 %v2211, %v2478
    %v2517 = vsub.f32 %v2216, %v2478
    %v2518 = vsub.f32 %v2221, %v2478
    %v2519 = vsub.f32 %v2226, %v2478
    %v2520 = vsub.f32 %v2231, %v2478
    %v2521 = vsub.f32 %v2236, %v2478
    %v2522 = vsub.f32 %v2241, %v2478
    %v2523 = vsub.f32 %v2246, %v2478
    %v2524 = vsub.f32 %v2251, %v2478
    %v2525 = vsub.f32 %v2256, %v2478
    %v2526 = vsub.f32 %v2261, %v2478
    %v2527 = vsub.f32 %v2266, %v2478
    %v2528 = vsub.f32 %v2271, %v2478
    %v2529 = vsub.f32 %v2276, %v2478
    %v2530 = vsub.f32 %v2281, %v2478
    %v2531 = vsub.f32 %v2286, %v2478
    %v2532 = vsub.f32 %v2291, %v2478
    %v2533 = vsub.f32 %v2296, %v2478
    %v2534 = vsub.f32 %v2301, %v2478
    %v2535 = vsub.f32 %v2306, %v2478
    %v2536 = vsub.f32 %v2311, %v2478
    %v2537 = vsub.f32 %v2316, %v2478
    %v2538 = vsub.f32 %v2321, %v2478
    %v2539 = vsub.f32 %v2326, %v2478
    %v2540 = vsub.f32 %v2331, %v2478
    %v2541 = vsub.f32 %v2336, %v2478
    %v2542 = vsub.f32 %v2341, %v2478
    %v2543 = vmul.f32 %v2479, %v2479
    %v2544 = vmul.f32 %v2480, %v2480
    %v2545 = vmul.f32 %v2481, %v2481
    %v2546 = vmul.f32 %v2482, %v2482
    %v2547 = vmul.f32 %v2483, %v2483
    %v2548 = vmul.f32 %v2484, %v2484
    %v2549 = vmul.f32 %v2485, %v2485
    %v2550 = vmul.f32 %v2486, %v2486
    %v2551 = vmul.f32 %v2487, %v2487
    %v2552 = vmul.f32 %v2488, %v2488
    %v2553 = vmul.f32 %v2489, %v2489
    %v2554 = vmul.f32 %v2490, %v2490
    %v2555 = vmul.f32 %v2491, %v2491
    %v2556 = vmul.f32 %v2492, %v2492
    %v2557 = vmul.f32 %v2493, %v2493
    %v2558 = vmul.f32 %v2494, %v2494
    %v2559 = vmul.f32 %v2495, %v2495
    %v2560 = vmul.f32 %v2496, %v2496
    %v2561 = vmul.f32 %v2497, %v2497
    %v2562 = vmul.f32 %v2498, %v2498
    %v2563 = vmul.f32 %v2499, %v2499
    %v2564 = vmul.f32 %v2500, %v2500
    %v2565 = vmul.f32 %v2501, %v2501
    %v2566 = vmul.f32 %v2502, %v2502
    %v2567 = vmul.f32 %v2503, %v2503
    %v2568 = vmul.f32 %v2504, %v2504
    %v2569 = vmul.f32 %v2505, %v2505
    %v2570 = vmul.f32 %v2506, %v2506
    %v2571 = vmul.f32 %v2507, %v2507
    %v2572 = vmul.f32 %v2508, %v2508
    %v2573 = vmul.f32 %v2509, %v2509
    %v2574 = vmul.f32 %v2510, %v2510
    %v2575 = vmul.f32 %v2511, %v2511
    %v2576 = vmul.f32 %v2512, %v2512
    %v2577 = vmul.f32 %v2513, %v2513
    %v2578 = vmul.f32 %v2514, %v2514
    %v2579 = vmul.f32 %v2515, %v2515
    %v2580 = vmul.f32 %v2516, %v2516
    %v2581 = vmul.f32 %v2517, %v2517
    %v2582 = vmul.f32 %v2518, %v2518
    %v2583 = vmul.f32 %v2519, %v2519
    %v2584 = vmul.f32 %v2520, %v2520
    %v2585 = vmul.f32 %v2521, %v2521
    %v2586 = vmul.f32 %v2522, %v2522
    %v2587 = vmul.f32 %v2523, %v2523
    %v2588 = vmul.f32 %v2524, %v2524
    %v2589 = vmul.f32 %v2525, %v2525
    %v2590 = vmul.f32 %v2526, %v2526
    %v2591 = vmul.f32 %v2527, %v2527
    %v2592 = vmul.f32 %v2528, %v2528
    %v2593 = vmul.f32 %v2529, %v2529
    %v2594 = vmul.f32 %v2530, %v2530
    %v2595 = vmul.f32 %v2531, %v2531
    %v2596 = vmul.f32 %v2532, %v2532
    %v2597 = vmul.f32 %v2533, %v2533
    %v2598 = vmul.f32 %v2534, %v2534
    %v2599 = vmul.f32 %v2535, %v2535
    %v2600 = vmul.f32 %v2536, %v2536
    %v2601 = vmul.f32 %v2537, %v2537
    %v2602 = vmul.f32 %v2538, %v2538
    %v2603 = vmul.f32 %v2539, %v2539
    %v2604 = vmul.f32 %v2540, %v2540
    %v2605 = vmul.f32 %v2541, %v2541
    %v2606 = vmul.f32 %v2542, %v2542
    %v2607 = vsel %vm1107, %v2543, 0.0
    %v2608 = vsel %vm1107, %v2544, 0.0
    %v2609 = vadd.f32 %v2607, %v2608
    %v2610 = vsel %vm1107, %v2545, 0.0
    %v2611 = vadd.f32 %v2609, %v2610
    %v2612 = vsel %vm1107, %v2546, 0.0
    %v2613 = vadd.f32 %v2611, %v2612
    %v2614 = vsel %vm1107, %v2547, 0.0
    %v2615 = vadd.f32 %v2613, %v2614
    %v2616 = vsel %vm1107, %v2548, 0.0
    %v2617 = vadd.f32 %v2615, %v2616
    %v2618 = vsel %vm1107, %v2549, 0.0
    %v2619 = vadd.f32 %v2617, %v2618
    %v2620 = vsel %vm1107, %v2550, 0.0
    %v2621 = vadd.f32 %v2619, %v2620
    %v2622 = vsel %vm1107, %v2551, 0.0
    %v2623 = vadd.f32 %v2621, %v2622
    %v2624 = vsel %vm1107, %v2552, 0.0
    %v2625 = vadd.f32 %v2623, %v2624
    %v2626 = vsel %vm1107, %v2553, 0.0
    %v2627 = vadd.f32 %v2625, %v2626
    %v2628 = vsel %vm1107, %v2554, 0.0
    %v2629 = vadd.f32 %v2627, %v2628
    %v2630 = vsel %vm1107, %v2555, 0.0
    %v2631 = vadd.f32 %v2629, %v2630
    %v2632 = vsel %vm1107, %v2556, 0.0
    %v2633 = vadd.f32 %v2631, %v2632
    %v2634 = vsel %vm1107, %v2557, 0.0
    %v2635 = vadd.f32 %v2633, %v2634
    %v2636 = vsel %vm1107, %v2558, 0.0
    %v2637 = vadd.f32 %v2635, %v2636
    %v2638 = vsel %vm1107, %v2559, 0.0
    %v2639 = vadd.f32 %v2637, %v2638
    %v2640 = vsel %vm1107, %v2560, 0.0
    %v2641 = vadd.f32 %v2639, %v2640
    %v2642 = vsel %vm1107, %v2561, 0.0
    %v2643 = vadd.f32 %v2641, %v2642
    %v2644 = vsel %vm1107, %v2562, 0.0
    %v2645 = vadd.f32 %v2643, %v2644
    %v2646 = vsel %vm1107, %v2563, 0.0
    %v2647 = vadd.f32 %v2645, %v2646
    %v2648 = vsel %vm1107, %v2564, 0.0
    %v2649 = vadd.f32 %v2647, %v2648
    %v2650 = vsel %vm1107, %v2565, 0.0
    %v2651 = vadd.f32 %v2649, %v2650
    %v2652 = vsel %vm1107, %v2566, 0.0
    %v2653 = vadd.f32 %v2651, %v2652
    %v2654 = vsel %vm1107, %v2567, 0.0
    %v2655 = vadd.f32 %v2653, %v2654
    %v2656 = vsel %vm1107, %v2568, 0.0
    %v2657 = vadd.f32 %v2655, %v2656
    %v2658 = vsel %vm1107, %v2569, 0.0
    %v2659 = vadd.f32 %v2657, %v2658
    %v2660 = vsel %vm1107, %v2570, 0.0
    %v2661 = vadd.f32 %v2659, %v2660
    %v2662 = vsel %vm1107, %v2571, 0.0
    %v2663 = vadd.f32 %v2661, %v2662
    %v2664 = vsel %vm1107, %v2572, 0.0
    %v2665 = vadd.f32 %v2663, %v2664
    %v2666 = vsel %vm1107, %v2573, 0.0
    %v2667 = vadd.f32 %v2665, %v2666
    %v2668 = vsel %vm1107, %v2574, 0.0
    %v2669 = vadd.f32 %v2667, %v2668
    %v2670 = vsel %vm1107, %v2575, 0.0
    %v2671 = vadd.f32 %v2669, %v2670
    %v2672 = vsel %vm1107, %v2576, 0.0
    %v2673 = vadd.f32 %v2671, %v2672
    %v2674 = vsel %vm1107, %v2577, 0.0
    %v2675 = vadd.f32 %v2673, %v2674
    %v2676 = vsel %vm1107, %v2578, 0.0
    %v2677 = vadd.f32 %v2675, %v2676
    %v2678 = vsel %vm1107, %v2579, 0.0
    %v2679 = vadd.f32 %v2677, %v2678
    %v2680 = vsel %vm1107, %v2580, 0.0
    %v2681 = vadd.f32 %v2679, %v2680
    %v2682 = vsel %vm1107, %v2581, 0.0
    %v2683 = vadd.f32 %v2681, %v2682
    %v2684 = vsel %vm1107, %v2582, 0.0
    %v2685 = vadd.f32 %v2683, %v2684
    %v2686 = vsel %vm1107, %v2583, 0.0
    %v2687 = vadd.f32 %v2685, %v2686
    %v2688 = vsel %vm1107, %v2584, 0.0
    %v2689 = vadd.f32 %v2687, %v2688
    %v2690 = vsel %vm1107, %v2585, 0.0
    %v2691 = vadd.f32 %v2689, %v2690
    %v2692 = vsel %vm1107, %v2586, 0.0
    %v2693 = vadd.f32 %v2691, %v2692
    %v2694 = vsel %vm1107, %v2587, 0.0
    %v2695 = vadd.f32 %v2693, %v2694
    %v2696 = vsel %vm1107, %v2588, 0.0
    %v2697 = vadd.f32 %v2695, %v2696
    %v2698 = vsel %vm1107, %v2589, 0.0
    %v2699 = vadd.f32 %v2697, %v2698
    %v2700 = vsel %vm1107, %v2590, 0.0
    %v2701 = vadd.f32 %v2699, %v2700
    %v2702 = vsel %vm1107, %v2591, 0.0
    %v2703 = vadd.f32 %v2701, %v2702
    %v2704 = vsel %vm1107, %v2592, 0.0
    %v2705 = vadd.f32 %v2703, %v2704
    %v2706 = vsel %vm1107, %v2593, 0.0
    %v2707 = vadd.f32 %v2705, %v2706
    %v2708 = vsel %vm1107, %v2594, 0.0
    %v2709 = vadd.f32 %v2707, %v2708
    %v2710 = vsel %vm1107, %v2595, 0.0
    %v2711 = vadd.f32 %v2709, %v2710
    %v2712 = vsel %vm1107, %v2596, 0.0
    %v2713 = vadd.f32 %v2711, %v2712
    %v2714 = vsel %vm1107, %v2597, 0.0
    %v2715 = vadd.f32 %v2713, %v2714
    %v2716 = vsel %vm1107, %v2598, 0.0
    %v2717 = vadd.f32 %v2715, %v2716
    %v2718 = vsel %vm1107, %v2599, 0.0
    %v2719 = vadd.f32 %v2717, %v2718
    %v2720 = vsel %vm1107, %v2600, 0.0
    %v2721 = vadd.f32 %v2719, %v2720
    %v2722 = vsel %vm1107, %v2601, 0.0
    %v2723 = vadd.f32 %v2721, %v2722
    %v2724 = vsel %vm1107, %v2602, 0.0
    %v2725 = vadd.f32 %v2723, %v2724
    %v2726 = vsel %vm1107, %v2603, 0.0
    %v2727 = vadd.f32 %v2725, %v2726
    %v2728 = vsel %vm1107, %v2604, 0.0
    %v2729 = vadd.f32 %v2727, %v2728
    %v2730 = vsel %vm1107, %v2605, 0.0
    %v2731 = vadd.f32 %v2729, %v2730
    %v2732 = vsel %vm1107, %v2606, 0.0
    %v2733 = vadd.f32 %v2731, %v2732
    %v2734 = vrot.slane %v2733, 4
    %v2735 = vadd.f32 %v2733, %v2734
    %v2736 = vrot.slane %v2735, 2
    %v2737 = vadd.f32 %v2735, %v2736
    %v2738 = vrot.slane %v2737, 1
    %v2739 = vadd.f32 %v2737, %v2738
    %v2740 = vmul.f32 %v2739, %v2477
    %v2741 = vadd.f32 %v2740, 1e-05
    %v2742 = vrsqrt.pop %v2741
    %v2743 = vmul.f32 %v2479, %v2742
    %v2744 = vmul.f32 %v2480, %v2742
    %v2745 = vmul.f32 %v2481, %v2742
    %v2746 = vmul.f32 %v2482, %v2742
    %v2747 = vmul.f32 %v2483, %v2742
    %v2748 = vmul.f32 %v2484, %v2742
    %v2749 = vmul.f32 %v2485, %v2742
    %v2750 = vmul.f32 %v2486, %v2742
    %v2751 = vmul.f32 %v2487, %v2742
    %v2752 = vmul.f32 %v2488, %v2742
    %v2753 = vmul.f32 %v2489, %v2742
    %v2754 = vmul.f32 %v2490, %v2742
    %v2755 = vmul.f32 %v2491, %v2742
    %v2756 = vmul.f32 %v2492, %v2742
    %v2757 = vmul.f32 %v2493, %v2742
    %v2758 = vmul.f32 %v2494, %v2742
    %v2759 = vmul.f32 %v2495, %v2742
    %v2760 = vmul.f32 %v2496, %v2742
    %v2761 = vmul.f32 %v2497, %v2742
    %v2762 = vmul.f32 %v2498, %v2742
    %v2763 = vmul.f32 %v2499, %v2742
    %v2764 = vmul.f32 %v2500, %v2742
    %v2765 = vmul.f32 %v2501, %v2742
    %v2766 = vmul.f32 %v2502, %v2742
    %v2767 = vmul.f32 %v2503, %v2742
    %v2768 = vmul.f32 %v2504, %v2742
    %v2769 = vmul.f32 %v2505, %v2742
    %v2770 = vmul.f32 %v2506, %v2742
    %v2771 = vmul.f32 %v2507, %v2742
    %v2772 = vmul.f32 %v2508, %v2742
    %v2773 = vmul.f32 %v2509, %v2742
    %v2774 = vmul.f32 %v2510, %v2742
    %v2775 = vmul.f32 %v2511, %v2742
    %v2776 = vmul.f32 %v2512, %v2742
    %v2777 = vmul.f32 %v2513, %v2742
    %v2778 = vmul.f32 %v2514, %v2742
    %v2779 = vmul.f32 %v2515, %v2742
    %v2780 = vmul.f32 %v2516, %v2742
    %v2781 = vmul.f32 %v2517, %v2742
    %v2782 = vmul.f32 %v2518, %v2742
    %v2783 = vmul.f32 %v2519, %v2742
    %v2784 = vmul.f32 %v2520, %v2742
    %v2785 = vmul.f32 %v2521, %v2742
    %v2786 = vmul.f32 %v2522, %v2742
    %v2787 = vmul.f32 %v2523, %v2742
    %v2788 = vmul.f32 %v2524, %v2742
    %v2789 = vmul.f32 %v2525, %v2742
    %v2790 = vmul.f32 %v2526, %v2742
    %v2791 = vmul.f32 %v2527, %v2742
    %v2792 = vmul.f32 %v2528, %v2742
    %v2793 = vmul.f32 %v2529, %v2742
    %v2794 = vmul.f32 %v2530, %v2742
    %v2795 = vmul.f32 %v2531, %v2742
    %v2796 = vmul.f32 %v2532, %v2742
    %v2797 = vmul.f32 %v2533, %v2742
    %v2798 = vmul.f32 %v2534, %v2742
    %v2799 = vmul.f32 %v2535, %v2742
    %v2800 = vmul.f32 %v2536, %v2742
    %v2801 = vmul.f32 %v2537, %v2742
    %v2802 = vmul.f32 %v2538, %v2742
    %v2803 = vmul.f32 %v2539, %v2742
    %v2804 = vmul.f32 %v2540, %v2742
    %v2805 = vmul.f32 %v2541, %v2742
    %v2806 = vmul.f32 %v2542, %v2742
    %v2807 = vlaneseq
    %v2808 = vshrl.u32 %v2807, 7
    %v2809 = vsub.s32 0, %v2808
    %v2810 = vrot.slane %v18, %v2809
    %v2811 = vmul.f32 %v2743, %v2810
    %v2812 = vmul.f32 %v2744, %v2810
    %v2813 = vmul.f32 %v2745, %v2810
    %v2814 = vmul.f32 %v2746, %v2810
    %v2815 = vmul.f32 %v2747, %v2810
    %v2816 = vmul.f32 %v2748, %v2810
    %v2817 = vmul.f32 %v2749, %v2810
    %v2818 = vmul.f32 %v2750, %v2810
    %v2819 = vmul.f32 %v2751, %v2810
    %v2820 = vmul.f32 %v2752, %v2810
    %v2821 = vmul.f32 %v2753, %v2810
    %v2822 = vmul.f32 %v2754, %v2810
    %v2823 = vmul.f32 %v2755, %v2810
    %v2824 = vmul.f32 %v2756, %v2810
    %v2825 = vmul.f32 %v2757, %v2810
    %v2826 = vmul.f32 %v2758, %v2810
    %v2827 = vmul.f32 %v2759, %v2810
    %v2828 = vmul.f32 %v2760, %v2810
    %v2829 = vmul.f32 %v2761, %v2810
    %v2830 = vmul.f32 %v2762, %v2810
    %v2831 = vmul.f32 %v2763, %v2810
    %v2832 = vmul.f32 %v2764, %v2810
    %v2833 = vmul.f32 %v2765, %v2810
    %v2834 = vmul.f32 %v2766, %v2810
    %v2835 = vmul.f32 %v2767, %v2810
    %v2836 = vmul.f32 %v2768, %v2810
    %v2837 = vmul.f32 %v2769, %v2810
    %v2838 = vmul.f32 %v2770, %v2810
    %v2839 = vmul.f32 %v2771, %v2810
    %v2840 = vmul.f32 %v2772, %v2810
    %v2841 = vmul.f32 %v2773, %v2810
    %v2842 = vmul.f32 %v2774, %v2810
    %v2843 = vmul.f32 %v2775, %v2810
    %v2844 = vmul.f32 %v2776, %v2810
    %v2845 = vmul.f32 %v2777, %v2810
    %v2846 = vmul.f32 %v2778, %v2810
    %v2847 = vmul.f32 %v2779, %v2810
    %v2848 = vmul.f32 %v2780, %v2810
    %v2849 = vmul.f32 %v2781, %v2810
    %v2850 = vmul.f32 %v2782, %v2810
    %v2851 = vmul.f32 %v2783, %v2810
    %v2852 = vmul.f32 %v2784, %v2810
    %v2853 = vmul.f32 %v2785, %v2810
    %v2854 = vmul.f32 %v2786, %v2810
    %v2855 = vmul.f32 %v2787, %v2810
    %v2856 = vmul.f32 %v2788, %v2810
    %v2857 = vmul.f32 %v2789, %v2810
    %v2858 = vmul.f32 %v2790, %v2810
    %v2859 = vmul.f32 %v2791, %v2810
    %v2860 = vmul.f32 %v2792, %v2810
    %v2861 = vmul.f32 %v2793, %v2810
    %v2862 = vmul.f32 %v2794, %v2810
    %v2863 = vmul.f32 %v2795, %v2810
    %v2864 = vmul.f32 %v2796, %v2810
    %v2865 = vmul.f32 %v2797, %v2810
    %v2866 = vmul.f32 %v2798, %v2810
    %v2867 = vmul.f32 %v2799, %v2810
    %v2868 = vmul.f32 %v2800, %v2810
    %v2869 = vmul.f32 %v2801, %v2810
    %v2870 = vmul.f32 %v2802, %v2810
    %v2871 = vmul.f32 %v2803, %v2810
    %v2872 = vmul.f32 %v2804, %v2810
    %v2873 = vmul.f32 %v2805, %v2810
    %v2874 = vmul.f32 %v2806, %v2810
    %v2875 = vlaneseq
    %v2876 = vshrl.u32 %v2875, 7
    %v2877 = vsub.s32 1, %v2876
    %v2878 = vrot.slane %v18, %v2877
    %v2879 = vadd.f32 %v2811, %v2878
    %v2880 = vadd.f32 %v2812, %v2878
    %v2881 = vadd.f32 %v2813, %v2878
    %v2882 = vadd.f32 %v2814, %v2878
    %v2883 = vadd.f32 %v2815, %v2878
    %v2884 = vadd.f32 %v2816, %v2878
    %v2885 = vadd.f32 %v2817, %v2878
    %v2886 = vadd.f32 %v2818, %v2878
    %v2887 = vadd.f32 %v2819, %v2878
    %v2888 = vadd.f32 %v2820, %v2878
    %v2889 = vadd.f32 %v2821, %v2878
    %v2890 = vadd.f32 %v2822, %v2878
    %v2891 = vadd.f32 %v2823, %v2878
    %v2892 = vadd.f32 %v2824, %v2878
    %v2893 = vadd.f32 %v2825, %v2878
    %v2894 = vadd.f32 %v2826, %v2878
    %v2895 = vadd.f32 %v2827, %v2878
    %v2896 = vadd.f32 %v2828, %v2878
    %v2897 = vadd.f32 %v2829, %v2878
    %v2898 = vadd.f32 %v2830, %v2878
    %v2899 = vadd.f32 %v2831, %v2878
    %v2900 = vadd.f32 %v2832, %v2878
    %v2901 = vadd.f32 %v2833, %v2878
    %v2902 = vadd.f32 %v2834, %v2878
    %v2903 = vadd.f32 %v2835, %v2878
    %v2904 = vadd.f32 %v2836, %v2878
    %v2905 = vadd.f32 %v2837, %v2878
    %v2906 = vadd.f32 %v2838, %v2878
    %v2907 = vadd.f32 %v2839, %v2878
    %v2908 = vadd.f32 %v2840, %v2878
    %v2909 = vadd.f32 %v2841, %v2878
    %v2910 = vadd.f32 %v2842, %v2878
    %v2911 = vadd.f32 %v2843, %v2878
    %v2912 = vadd.f32 %v2844, %v2878
    %v2913 = vadd.f32 %v2845, %v2878
    %v2914 = vadd.f32 %v2846, %v2878
    %v2915 = vadd.f32 %v2847, %v2878
    %v2916 = vadd.f32 %v2848, %v2878
    %v2917 = vadd.f32 %v2849, %v2878
    %v2918 = vadd.f32 %v2850, %v2878
    %v2919 = vadd.f32 %v2851, %v2878
    %v2920 = vadd.f32 %v2852, %v2878
    %v2921 = vadd.f32 %v2853, %v2878
    %v2922 = vadd.f32 %v2854, %v2878
    %v2923 = vadd.f32 %v2855, %v2878
    %v2924 = vadd.f32 %v2856, %v2878
    %v2925 = vadd.f32 %v2857, %v2878
    %v2926 = vadd.f32 %v2858, %v2878
    %v2927 = vadd.f32 %v2859, %v2878
    %v2928 = vadd.f32 %v2860, %v2878
    %v2929 = vadd.f32 %v2861, %v2878
    %v2930 = vadd.f32 %v2862, %v2878
    %v2931 = vadd.f32 %v2863, %v2878
    %v2932 = vadd.f32 %v2864, %v2878
    %v2933 = vadd.f32 %v2865, %v2878
    %v2934 = vadd.f32 %v2866, %v2878
    %v2935 = vadd.f32 %v2867, %v2878
    %v2936 = vadd.f32 %v2868, %v2878
    %v2937 = vadd.f32 %v2869, %v2878
    %v2938 = vadd.f32 %v2870, %v2878
    %v2939 = vadd.f32 %v2871, %v2878
    %v2940 = vadd.f32 %v2872, %v2878
    %v2941 = vadd.f32 %v2873, %v2878
    %v2942 = vadd.f32 %v2874, %v2878
    %v2943 = vmax.f32 %v2879, 0.0
    %v2944 = vmax.f32 %v2880, 0.0
    %v2945 = vmax.f32 %v2881, 0.0
    %v2946 = vmax.f32 %v2882, 0.0
    %v2947 = vmax.f32 %v2883, 0.0
    %v2948 = vmax.f32 %v2884, 0.0
    %v2949 = vmax.f32 %v2885, 0.0
    %v2950 = vmax.f32 %v2886, 0.0
    %v2951 = vmax.f32 %v2887, 0.0
    %v2952 = vmax.f32 %v2888, 0.0
    %v2953 = vmax.f32 %v2889, 0.0
    %v2954 = vmax.f32 %v2890, 0.0
    %v2955 = vmax.f32 %v2891, 0.0
    %v2956 = vmax.f32 %v2892, 0.0
    %v2957 = vmax.f32 %v2893, 0.0
    %v2958 = vmax.f32 %v2894, 0.0
    %v2959 = vmax.f32 %v2895, 0.0
    %v2960 = vmax.f32 %v2896, 0.0
    %v2961 = vmax.f32 %v2897, 0.0
    %v2962 = vmax.f32 %v2898, 0.0
    %v2963 = vmax.f32 %v2899, 0.0
    %v2964 = vmax.f32 %v2900, 0.0
    %v2965 = vmax.f32 %v2901, 0.0
    %v2966 = vmax.f32 %v2902, 0.0
    %v2967 = vmax.f32 %v2903, 0.0
    %v2968 = vmax.f32 %v2904, 0.0
    %v2969 = vmax.f32 %v2905, 0.0
    %v2970 = vmax.f32 %v2906, 0.0
    %v2971 = vmax.f32 %v2907, 0.0
    %v2972 = vmax.f32 %v2908, 0.0
    %v2973 = vmax.f32 %v2909, 0.0
    %v2974 = vmax.f32 %v2910, 0.0
    %v2975 = vmax.f32 %v2911, 0.0
    %v2976 = vmax.f32 %v2912, 0.0
    %v2977 = vmax.f32 %v2913, 0.0
    %v2978 = vmax.f32 %v2914, 0.0
    %v2979 = vmax.f32 %v2915, 0.0
    %v2980 = vmax.f32 %v2916, 0.0
    %v2981 = vmax.f32 %v2917, 0.0
    %v2982 = vmax.f32 %v2918, 0.0
    %v2983 = vmax.f32 %v2919, 0.0
    %v2984 = vmax.f32 %v2920, 0.0
    %v2985 = vmax.f32 %v2921, 0.0
    %v2986 = vmax.f32 %v2922, 0.0
    %v2987 = vmax.f32 %v2923, 0.0
    %v2988 = vmax.f32 %v2924, 0.0
    %v2989 = vmax.f32 %v2925, 0.0
    %v2990 = vmax.f32 %v2926, 0.0
    %v2991 = vmax.f32 %v2927, 0.0
    %v2992 = vmax.f32 %v2928, 0.0
    %v2993 = vmax.f32 %v2929, 0.0
    %v2994 = vmax.f32 %v2930, 0.0
    %v2995 = vmax.f32 %v2931, 0.0
    %v2996 = vmax.f32 %v2932, 0.0
    %v2997 = vmax.f32 %v2933, 0.0
    %v2998 = vmax.f32 %v2934, 0.0
    %v2999 = vmax.f32 %v2935, 0.0
    %v3000 = vmax.f32 %v2936, 0.0
    %v3001 = vmax.f32 %v2937, 0.0
    %v3002 = vmax.f32 %v2938, 0.0
    %v3003 = vmax.f32 %v2939, 0.0
    %v3004 = vmax.f32 %v2940, 0.0
    %v3005 = vmax.f32 %v2941, 0.0
    %v3006 = vmax.f32 %v2942, 0.0
    %3007 = vst.msk [vmem:[#allocation2] sm:$0xff] %vm1107, 0.0
    %3008 = vst.msk [vmem:[#allocation2 + $0x8] sm:$0xff] %vm1107, 0.0
    %vm3009 = vcmask 58368
    %3010 = vst.msk [vmem:[#allocation2 + $0x10] sm:$0x3] %vm3009, 0.0
    %3011 = vst.msk [vmem:[#allocation2 + $0x1b0] sm:$0xff] %vm1107, 0.0
    %3012 = vst.msk [vmem:[#allocation2 + $0x1b8] sm:$0xff] %vm1107, 0.0
    %3013 = vst.msk [vmem:[#allocation2 + $0x1c0] sm:$0x3] %vm3009, 0.0
    %s3014 = scalar_lea.vmem [#allocation2], 408
    %3015 = vst.msk [vmem:[%s3014] sm:$0xff] %vm1107, 0.0
    %3016 = vst.msk [vmem:[%s3014 + $0x8] sm:$0xff] %vm1107, 0.0
    %3017 = vst.msk [vmem:[%s3014 + $0x10] sm:$0x3] %vm3009, 0.0
    %3018 = vst.msk [vmem:[%s3014 + $0x1b0] sm:$0xff] %vm1107, 0.0
    %3019 = vst.msk [vmem:[%s3014 + $0x1b8] sm:$0xff] %vm1107, 0.0
    %3020 = vst.msk [vmem:[%s3014 + $0x1c0] sm:$0x3] %vm3009, 0.0
    %s3021 = scalar_lea.vmem [#allocation2], 24
    %vm3022 = vcmask 57344
    %3023 = vst.msk [vmem:[%s3021] sm:$0x1] %vm3022, 0.0
    %3024 = vst.msk [vmem:[%s3021 + $0x18] sm:$0x1] %vm3022, 0.0
    %3025 = vst.msk [vmem:[%s3021 + $0x30] sm:$0x1] %vm3022, 0.0
    %3026 = vst.msk [vmem:[%s3021 + $0x48] sm:$0x1] %vm3022, 0.0
    %3027 = vst.msk [vmem:[%s3021 + $0x60] sm:$0x1] %vm3022, 0.0
    %3028 = vst.msk [vmem:[%s3021 + $0x78] sm:$0x1] %vm3022, 0.0
    %3029 = vst.msk [vmem:[%s3021 + $0x90] sm:$0x1] %vm3022, 0.0
    %3030 = vst.msk [vmem:[%s3021 + $0xa8] sm:$0x1] %vm3022, 0.0
    %3031 = vst.msk [vmem:[%s3021 + $0xc0] sm:$0x1] %vm3022, 0.0
    %3032 = vst.msk [vmem:[%s3021 + $0xd8] sm:$0x1] %vm3022, 0.0
    %3033 = vst.msk [vmem:[%s3021 + $0xf0] sm:$0x1] %vm3022, 0.0
    %3034 = vst.msk [vmem:[%s3021 + $0x108] sm:$0x1] %vm3022, 0.0
    %3035 = vst.msk [vmem:[%s3021 + $0x120] sm:$0x1] %vm3022, 0.0
    %3036 = vst.msk [vmem:[%s3021 + $0x138] sm:$0x1] %vm3022, 0.0
    %3037 = vst.msk [vmem:[%s3021 + $0x150] sm:$0x1] %vm3022, 0.0
    %3038 = vst.msk [vmem:[%s3021 + $0x168] sm:$0x1] %vm3022, 0.0
    %3039 = vst.msk [vmem:[%s3021 + $0x1b0] sm:$0x1] %vm3022, 0.0
    %3040 = vst.msk [vmem:[%s3021 + $0x1c8] sm:$0x1] %vm3022, 0.0
    %3041 = vst.msk [vmem:[%s3021 + $0x1e0] sm:$0x1] %vm3022, 0.0
    %3042 = vst.msk [vmem:[%s3021 + $0x1f8] sm:$0x1] %vm3022, 0.0
    %3043 = vst.msk [vmem:[%s3021 + $0x210] sm:$0x1] %vm3022, 0.0
    %3044 = vst.msk [vmem:[%s3021 + $0x228] sm:$0x1] %vm3022, 0.0
    %3045 = vst.msk [vmem:[%s3021 + $0x240] sm:$0x1] %vm3022, 0.0
    %3046 = vst.msk [vmem:[%s3021 + $0x258] sm:$0x1] %vm3022, 0.0
    %3047 = vst.msk [vmem:[%s3021 + $0x270] sm:$0x1] %vm3022, 0.0
    %3048 = vst.msk [vmem:[%s3021 + $0x288] sm:$0x1] %vm3022, 0.0
    %3049 = vst.msk [vmem:[%s3021 + $0x2a0] sm:$0x1] %vm3022, 0.0
    %3050 = vst.msk [vmem:[%s3021 + $0x2b8] sm:$0x1] %vm3022, 0.0
    %3051 = vst.msk [vmem:[%s3021 + $0x2d0] sm:$0x1] %vm3022, 0.0
    %3052 = vst.msk [vmem:[%s3021 + $0x2e8] sm:$0x1] %vm3022, 0.0
    %3053 = vst.msk [vmem:[%s3021 + $0x300] sm:$0x1] %vm3022, 0.0
    %3054 = vst.msk [vmem:[%s3021 + $0x318] sm:$0x1] %vm3022, 0.0
    %3055 = vst.msk [vmem:[%s3021 + $0x11] sm:$0x1] %vm3022, 0.0
    %3056 = vst.msk [vmem:[%s3021 + $0x29] sm:$0x1] %vm3022, 0.0
    %3057 = vst.msk [vmem:[%s3021 + $0x41] sm:$0x1] %vm3022, 0.0
    %3058 = vst.msk [vmem:[%s3021 + $0x59] sm:$0x1] %vm3022, 0.0
    %3059 = vst.msk [vmem:[%s3021 + $0x71] sm:$0x1] %vm3022, 0.0
    %3060 = vst.msk [vmem:[%s3021 + $0x89] sm:$0x1] %vm3022, 0.0
    %3061 = vst.msk [vmem:[%s3021 + $0xa1] sm:$0x1] %vm3022, 0.0
    %3062 = vst.msk [vmem:[%s3021 + $0xb9] sm:$0x1] %vm3022, 0.0
    %3063 = vst.msk [vmem:[%s3021 + $0xd1] sm:$0x1] %vm3022, 0.0
    %3064 = vst.msk [vmem:[%s3021 + $0xe9] sm:$0x1] %vm3022, 0.0
    %3065 = vst.msk [vmem:[%s3021 + $0x101] sm:$0x1] %vm3022, 0.0
    %3066 = vst.msk [vmem:[%s3021 + $0x119] sm:$0x1] %vm3022, 0.0
    %3067 = vst.msk [vmem:[%s3021 + $0x131] sm:$0x1] %vm3022, 0.0
    %3068 = vst.msk [vmem:[%s3021 + $0x149] sm:$0x1] %vm3022, 0.0
    %3069 = vst.msk [vmem:[%s3021 + $0x161] sm:$0x1] %vm3022, 0.0
    %3070 = vst.msk [vmem:[%s3021 + $0x179] sm:$0x1] %vm3022, 0.0
    %3071 = vst.msk [vmem:[%s3021 + $0x1c1] sm:$0x1] %vm3022, 0.0
    %3072 = vst.msk [vmem:[%s3021 + $0x1d9] sm:$0x1] %vm3022, 0.0
    %3073 = vst.msk [vmem:[%s3021 + $0x1f1] sm:$0x1] %vm3022, 0.0
    %3074 = vst.msk [vmem:[%s3021 + $0x209] sm:$0x1] %vm3022, 0.0
    %3075 = vst.msk [vmem:[%s3021 + $0x221] sm:$0x1] %vm3022, 0.0
    %3076 = vst.msk [vmem:[%s3021 + $0x239] sm:$0x1] %vm3022, 0.0
    %3077 = vst.msk [vmem:[%s3021 + $0x251] sm:$0x1] %vm3022, 0.0
    %3078 = vst.msk [vmem:[%s3021 + $0x269] sm:$0x1] %vm3022, 0.0
    %3079 = vst.msk [vmem:[%s3021 + $0x281] sm:$0x1] %vm3022, 0.0
    %3080 = vst.msk [vmem:[%s3021 + $0x299] sm:$0x1] %vm3022, 0.0
    %3081 = vst.msk [vmem:[%s3021 + $0x2b1] sm:$0x1] %vm3022, 0.0
    %3082 = vst.msk [vmem:[%s3021 + $0x2c9] sm:$0x1] %vm3022, 0.0
    %3083 = vst.msk [vmem:[%s3021 + $0x2e1] sm:$0x1] %vm3022, 0.0
    %3084 = vst.msk [vmem:[%s3021 + $0x2f9] sm:$0x1] %vm3022, 0.0
    %3085 = vst.msk [vmem:[%s3021 + $0x311] sm:$0x1] %vm3022, 0.0
    %3086 = vst.msk [vmem:[%s3021 + $0x329] sm:$0x1] %vm3022, 0.0
    %3087 = vst.msk [vmem:[%s3021 + $0x1] sm:$0xff] %vm1107, %v2943
    %3088 = vst.msk [vmem:[%s3021 + $0x9] sm:$0xff] %vm1107, %v2944
    %3089 = vst.msk [vmem:[%s3021 + $0x19] sm:$0xff] %vm1107, %v2945
    %3090 = vst.msk [vmem:[%s3021 + $0x21] sm:$0xff] %vm1107, %v2946
    %3091 = vst.msk [vmem:[%s3021 + $0x31] sm:$0xff] %vm1107, %v2947
    %3092 = vst.msk [vmem:[%s3021 + $0x39] sm:$0xff] %vm1107, %v2948
    %3093 = vst.msk [vmem:[%s3021 + $0x49] sm:$0xff] %vm1107, %v2949
    %3094 = vst.msk [vmem:[%s3021 + $0x51] sm:$0xff] %vm1107, %v2950
    %3095 = vst.msk [vmem:[%s3021 + $0x61] sm:$0xff] %vm1107, %v2951
    %3096 = vst.msk [vmem:[%s3021 + $0x69] sm:$0xff] %vm1107, %v2952
    %3097 = vst.msk [vmem:[%s3021 + $0x79] sm:$0xff] %vm1107, %v2953
    %3098 = vst.msk [vmem:[%s3021 + $0x81] sm:$0xff] %vm1107, %v2954
    %3099 = vst.msk [vmem:[%s3021 + $0x91] sm:$0xff] %vm1107, %v2955
    %3100 = vst.msk [vmem:[%s3021 + $0x99] sm:$0xff] %vm1107, %v2956
    %3101 = vst.msk [vmem:[%s3021 + $0xa9] sm:$0xff] %vm1107, %v2957
    %3102 = vst.msk [vmem:[%s3021 + $0xb1] sm:$0xff] %vm1107, %v2958
    %3103 = vst.msk [vmem:[%s3021 + $0xc1] sm:$0xff] %vm1107, %v2959
    %3104 = vst.msk [vmem:[%s3021 + $0xc9] sm:$0xff] %vm1107, %v2960
    %3105 = vst.msk [vmem:[%s3021 + $0xd9] sm:$0xff] %vm1107, %v2961
    %3106 = vst.msk [vmem:[%s3021 + $0xe1] sm:$0xff] %vm1107, %v2962
    %3107 = vst.msk [vmem:[%s3021 + $0xf1] sm:$0xff] %vm1107, %v2963
    %3108 = vst.msk [vmem:[%s3021 + $0xf9] sm:$0xff] %vm1107, %v2964
    %3109 = vst.msk [vmem:[%s3021 + $0x109] sm:$0xff] %vm1107, %v2965
    %3110 = vst.msk [vmem:[%s3021 + $0x111] sm:$0xff] %vm1107, %v2966
    %3111 = vst.msk [vmem:[%s3021 + $0x121] sm:$0xff] %vm1107, %v2967
    %3112 = vst.msk [vmem:[%s3021 + $0x129] sm:$0xff] %vm1107, %v2968
    %3113 = vst.msk [vmem:[%s3021 + $0x139] sm:$0xff] %vm1107, %v2969
    %3114 = vst.msk [vmem:[%s3021 + $0x141] sm:$0xff] %vm1107, %v2970
    %3115 = vst.msk [vmem:[%s3021 + $0x151] sm:$0xff] %vm1107, %v2971
    %3116 = vst.msk [vmem:[%s3021 + $0x159] sm:$0xff] %vm1107, %v2972
    %3117 = vst.msk [vmem:[%s3021 + $0x169] sm:$0xff] %vm1107, %v2973
    %3118 = vst.msk [vmem:[%s3021 + $0x171] sm:$0xff] %vm1107, %v2974
    %3119 = vst.msk [vmem:[%s3021 + $0x1b1] sm:$0xff] %vm1107, %v2975
    %3120 = vst.msk [vmem:[%s3021 + $0x1b9] sm:$0xff] %vm1107, %v2976
    %3121 = vst.msk [vmem:[%s3021 + $0x1c9] sm:$0xff] %vm1107, %v2977
    %3122 = vst.msk [vmem:[%s3021 + $0x1d1] sm:$0xff] %vm1107, %v2978
    %3123 = vst.msk [vmem:[%s3021 + $0x1e1] sm:$0xff] %vm1107, %v2979
    %3124 = vst.msk [vmem:[%s3021 + $0x1e9] sm:$0xff] %vm1107, %v2980
    %3125 = vst.msk [vmem:[%s3021 + $0x1f9] sm:$0xff] %vm1107, %v2981
    %3126 = vst.msk [vmem:[%s3021 + $0x201] sm:$0xff] %vm1107, %v2982
    %3127 = vst.msk [vmem:[%s3021 + $0x211] sm:$0xff] %vm1107, %v2983
    %3128 = vst.msk [vmem:[%s3021 + $0x219] sm:$0xff] %vm1107, %v2984
    %3129 = vst.msk [vmem:[%s3021 + $0x229] sm:$0xff] %vm1107, %v2985
    %3130 = vst.msk [vmem:[%s3021 + $0x231] sm:$0xff] %vm1107, %v2986
    %3131 = vst.msk [vmem:[%s3021 + $0x241] sm:$0xff] %vm1107, %v2987
    %3132 = vst.msk [vmem:[%s3021 + $0x249] sm:$0xff] %vm1107, %v2988
    %3133 = vst.msk [vmem:[%s3021 + $0x259] sm:$0xff] %vm1107, %v2989
    %3134 = vst.msk [vmem:[%s3021 + $0x261] sm:$0xff] %vm1107, %v2990
    %3135 = vst.msk [vmem:[%s3021 + $0x271] sm:$0xff] %vm1107, %v2991
    %3136 = vst.msk [vmem:[%s3021 + $0x279] sm:$0xff] %vm1107, %v2992
    %3137 = vst.msk [vmem:[%s3021 + $0x289] sm:$0xff] %vm1107, %v2993
    %3138 = vst.msk [vmem:[%s3021 + $0x291] sm:$0xff] %vm1107, %v2994
    %3139 = vst.msk [vmem:[%s3021 + $0x2a1] sm:$0xff] %vm1107, %v2995
    %3140 = vst.msk [vmem:[%s3021 + $0x2a9] sm:$0xff] %vm1107, %v2996
    %3141 = vst.msk [vmem:[%s3021 + $0x2b9] sm:$0xff] %vm1107, %v2997
    %3142 = vst.msk [vmem:[%s3021 + $0x2c1] sm:$0xff] %vm1107, %v2998
    %3143 = vst.msk [vmem:[%s3021 + $0x2d1] sm:$0xff] %vm1107, %v2999
    %3144 = vst.msk [vmem:[%s3021 + $0x2d9] sm:$0xff] %vm1107, %v3000
    %3145 = vst.msk [vmem:[%s3021 + $0x2e9] sm:$0xff] %vm1107, %v3001
    %3146 = vst.msk [vmem:[%s3021 + $0x2f1] sm:$0xff] %vm1107, %v3002
    %3147 = vst.msk [vmem:[%s3021 + $0x301] sm:$0xff] %vm1107, %v3003
    %3148 = vst.msk [vmem:[%s3021 + $0x309] sm:$0xff] %vm1107, %v3004
    %3149 = vst.msk [vmem:[%s3021 + $0x319] sm:$0xff] %vm1107, %v3005
    %3150 = vst.msk [vmem:[%s3021 + $0x321] sm:$0xff] %vm1107, %v3006
    %v3151 = vld [vmem:[#allocation2] sm:$0xff]
    %v3152 = vld [vmem:[#allocation2 + $0x8] sm:$0xff]
    %v3153 = vld [vmem:[#allocation2 + $0x10] sm:$0x3]
    %v3154 = vld [vmem:[#allocation2 + $0x18] sm:$0xff]
    %v3155 = vld [vmem:[#allocation2 + $0x20] sm:$0xff]
    %v3156 = vld [vmem:[#allocation2 + $0x28] sm:$0x3]
    %v3157 = vld [vmem:[#allocation2 + $0x30] sm:$0xff]
    %v3158 = vld [vmem:[#allocation2 + $0x38] sm:$0xff]
    %v3159 = vld [vmem:[#allocation2 + $0x40] sm:$0x3]
    %v3160 = vld [vmem:[#allocation2 + $0x48] sm:$0xff]
    %v3161 = vld [vmem:[#allocation2 + $0x50] sm:$0xff]
    %v3162 = vld [vmem:[#allocation2 + $0x58] sm:$0x3]
    %v3163 = vld [vmem:[#allocation2 + $0x60] sm:$0xff]
    %v3164 = vld [vmem:[#allocation2 + $0x68] sm:$0xff]
    %v3165 = vld [vmem:[#allocation2 + $0x70] sm:$0x3]
    %v3166 = vld [vmem:[#allocation2 + $0x78] sm:$0xff]
    %v3167 = vld [vmem:[#allocation2 + $0x80] sm:$0xff]
    %v3168 = vld [vmem:[#allocation2 + $0x88] sm:$0x3]
    %v3169 = vld [vmem:[#allocation2 + $0x90] sm:$0xff]
    %v3170 = vld [vmem:[#allocation2 + $0x98] sm:$0xff]
    %v3171 = vld [vmem:[#allocation2 + $0xa0] sm:$0x3]
    %v3172 = vld [vmem:[#allocation2 + $0xa8] sm:$0xff]
    %v3173 = vld [vmem:[#allocation2 + $0xb0] sm:$0xff]
    %v3174 = vld [vmem:[#allocation2 + $0xb8] sm:$0x3]
    %v3175 = vld [vmem:[#allocation2 + $0xc0] sm:$0xff]
    %v3176 = vld [vmem:[#allocation2 + $0xc8] sm:$0xff]
    %v3177 = vld [vmem:[#allocation2 + $0xd0] sm:$0x3]
    %v3178 = vld [vmem:[#allocation2 + $0xd8] sm:$0xff]
    %v3179 = vld [vmem:[#allocation2 + $0xe0] sm:$0xff]
    %v3180 = vld [vmem:[#allocation2 + $0xe8] sm:$0x3]
    %v3181 = vld [vmem:[#allocation2 + $0xf0] sm:$0xff]
    %v3182 = vld [vmem:[#allocation2 + $0xf8] sm:$0xff]
    %v3183 = vld [vmem:[#allocation2 + $0x100] sm:$0x3]
    %v3184 = vld [vmem:[#allocation2 + $0x108] sm:$0xff]
    %v3185 = vld [vmem:[#allocation2 + $0x110] sm:$0xff]
    %v3186 = vld [vmem:[#allocation2 + $0x118] sm:$0x3]
    %v3187 = vld [vmem:[#allocation2 + $0x120] sm:$0xff]
    %v3188 = vld [vmem:[#allocation2 + $0x128] sm:$0xff]
    %v3189 = vld [vmem:[#allocation2 + $0x130] sm:$0x3]
    %v3190 = vld [vmem:[#allocation2 + $0x138] sm:$0xff]
    %v3191 = vld [vmem:[#allocation2 + $0x140] sm:$0xff]
    %v3192 = vld [vmem:[#allocation2 + $0x148] sm:$0x3]
    %v3193 = vld [vmem:[#allocation2 + $0x150] sm:$0xff]
    %v3194 = vld [vmem:[#allocation2 + $0x158] sm:$0xff]
    %v3195 = vld [vmem:[#allocation2 + $0x160] sm:$0x3]
    %v3196 = vld [vmem:[#allocation2 + $0x168] sm:$0xff]
    %v3197 = vld [vmem:[#allocation2 + $0x170] sm:$0xff]
    %v3198 = vld [vmem:[#allocation2 + $0x178] sm:$0x3]
    %v3199 = vld [vmem:[#allocation2 + $0x180] sm:$0xff]
    %v3200 = vld [vmem:[#allocation2 + $0x188] sm:$0xff]
    %v3201 = vld [vmem:[#allocation2 + $0x190] sm:$0x3]
    %v3202 = vld [vmem:[#allocation2 + $0x198] sm:$0xff]
    %v3203 = vld [vmem:[#allocation2 + $0x1a0] sm:$0xff]
    %v3204 = vld [vmem:[#allocation2 + $0x1a8] sm:$0x3]
    %v3205 = vld [vmem:[#allocation2 + $0x1b0] sm:$0xff]
    %v3206 = vld [vmem:[#allocation2 + $0x1b8] sm:$0xff]
    %v3207 = vld [vmem:[#allocation2 + $0x1c0] sm:$0x3]
    %v3208 = vld [vmem:[#allocation2 + $0x1c8] sm:$0xff]
    %v3209 = vld [vmem:[#allocation2 + $0x1d0] sm:$0xff]
    %v3210 = vld [vmem:[#allocation2 + $0x1d8] sm:$0x3]
    %v3211 = vld [vmem:[#allocation2 + $0x1e0] sm:$0xff]
    %v3212 = vld [vmem:[#allocation2 + $0x1e8] sm:$0xff]
    %v3213 = vld [vmem:[#allocation2 + $0x1f0] sm:$0x3]
    %v3214 = vld [vmem:[#allocation2 + $0x1f8] sm:$0xff]
    %v3215 = vld [vmem:[#allocation2 + $0x200] sm:$0xff]
    %v3216 = vld [vmem:[#allocation2 + $0x208] sm:$0x3]
    %v3217 = vld [vmem:[#allocation2 + $0x210] sm:$0xff]
    %v3218 = vld [vmem:[#allocation2 + $0x218] sm:$0xff]
    %v3219 = vld [vmem:[#allocation2 + $0x220] sm:$0x3]
    %v3220 = vld [vmem:[#allocation2 + $0x228] sm:$0xff]
    %v3221 = vld [vmem:[#allocation2 + $0x230] sm:$0xff]
    %v3222 = vld [vmem:[#allocation2 + $0x238] sm:$0x3]
    %v3223 = vld [vmem:[#allocation2 + $0x240] sm:$0xff]
    %v3224 = vld [vmem:[#allocation2 + $0x248] sm:$0xff]
    %v3225 = vld [vmem:[#allocation2 + $0x250] sm:$0x3]
    %v3226 = vld [vmem:[#allocation2 + $0x258] sm:$0xff]
    %v3227 = vld [vmem:[#allocation2 + $0x260] sm:$0xff]
    %v3228 = vld [vmem:[#allocation2 + $0x268] sm:$0x3]
    %v3229 = vld [vmem:[#allocation2 + $0x270] sm:$0xff]
    %v3230 = vld [vmem:[#allocation2 + $0x278] sm:$0xff]
    %v3231 = vld [vmem:[#allocation2 + $0x280] sm:$0x3]
    %v3232 = vld [vmem:[#allocation2 + $0x288] sm:$0xff]
    %v3233 = vld [vmem:[#allocation2 + $0x290] sm:$0xff]
    %v3234 = vld [vmem:[#allocation2 + $0x298] sm:$0x3]
    %v3235 = vld [vmem:[#allocation2 + $0x2a0] sm:$0xff]
    %v3236 = vld [vmem:[#allocation2 + $0x2a8] sm:$0xff]
    %v3237 = vld [vmem:[#allocation2 + $0x2b0] sm:$0x3]
    %v3238 = vld [vmem:[#allocation2 + $0x2b8] sm:$0xff]
    %v3239 = vld [vmem:[#allocation2 + $0x2c0] sm:$0xff]
    %v3240 = vld [vmem:[#allocation2 + $0x2c8] sm:$0x3]
    %v3241 = vld [vmem:[#allocation2 + $0x2d0] sm:$0xff]
    %v3242 = vld [vmem:[#allocation2 + $0x2d8] sm:$0xff]
    %v3243 = vld [vmem:[#allocation2 + $0x2e0] sm:$0x3]
    %v3244 = vld [vmem:[#allocation2 + $0x2e8] sm:$0xff]
    %v3245 = vld [vmem:[#allocation2 + $0x2f0] sm:$0xff]
    %v3246 = vld [vmem:[#allocation2 + $0x2f8] sm:$0x3]
    %v3247 = vld [vmem:[#allocation2 + $0x300] sm:$0xff]
    %v3248 = vld [vmem:[#allocation2 + $0x308] sm:$0xff]
    %v3249 = vld [vmem:[#allocation2 + $0x310] sm:$0x3]
    %v3250 = vld [vmem:[#allocation2 + $0x318] sm:$0xff]
    %v3251 = vld [vmem:[#allocation2 + $0x320] sm:$0xff]
    %v3252 = vld [vmem:[#allocation2 + $0x328] sm:$0x3]
    %v3253 = vld [vmem:[#allocation2 + $0x330] sm:$0xff]
    %v3254 = vld [vmem:[#allocation2 + $0x338] sm:$0xff]
    %v3255 = vld [vmem:[#allocation2 + $0x340] sm:$0x3]
    %v3256 = vld [vmem:[#allocation2 + $0x348] sm:$0xff]
    %v3257 = vld [vmem:[#allocation2 + $0x350] sm:$0xff]
    %v3258 = vld [vmem:[#allocation2 + $0x358] sm:$0x3]
    %v3259 = vld [vmem:[%s2] sm:$0xff]
    %v3260 = vld [vmem:[%s2 + $0x8] sm:$0xff]
    %v3261 = vld [vmem:[%s2 + $0x10] sm:$0xff]
    %v3262 = vld [vmem:[%s2 + $0x18] sm:$0xff]
    %v3263 = vld [vmem:[%s2 + $0x20] sm:$0xff]
    %v3264 = vld [vmem:[%s2 + $0x28] sm:$0xff]
    %v3265 = vld [vmem:[%s2 + $0x30] sm:$0xff]
    %v3266 = vld [vmem:[%s2 + $0x38] sm:$0xff]
    %v3267 = vld [vmem:[%s2 + $0x40] sm:$0xff]
    %v3376 = vrot.slane %v3151, 1
    %v3377 = vrot.slane %v3152, 1
    %v3378 = vsel %vm240, %v3376, %v3377
    %v3379 = vrot.slane %v3153, 1
    %v3380 = vsel %vm240, %v3377, %v3379
    %v3381 = vrot.slane %v3154, 1
    %v3382 = vrot.slane %v3155, 1
    %v3383 = vsel %vm240, %v3381, %v3382
    %v3384 = vrot.slane %v3156, 1
    %v3385 = vsel %vm240, %v3382, %v3384
    %v3386 = vrot.slane %v3157, 1
    %v3387 = vrot.slane %v3158, 1
    %v3388 = vsel %vm240, %v3386, %v3387
    %v3389 = vrot.slane %v3159, 1
    %v3390 = vsel %vm240, %v3387, %v3389
    %v3391 = vrot.slane %v3160, 1
    %v3392 = vrot.slane %v3161, 1
    %v3393 = vsel %vm240, %v3391, %v3392
    %v3394 = vrot.slane %v3162, 1
    %v3395 = vsel %vm240, %v3392, %v3394
    %v3396 = vrot.slane %v3163, 1
    %v3397 = vrot.slane %v3164, 1
    %v3398 = vsel %vm240, %v3396, %v3397
    %v3399 = vrot.slane %v3165, 1
    %v3400 = vsel %vm240, %v3397, %v3399
    %v3401 = vrot.slane %v3166, 1
    %v3402 = vrot.slane %v3167, 1
    %v3403 = vsel %vm240, %v3401, %v3402
    %v3404 = vrot.slane %v3168, 1
    %v3405 = vsel %vm240, %v3402, %v3404
    %v3406 = vrot.slane %v3169, 1
    %v3407 = vrot.slane %v3170, 1
    %v3408 = vsel %vm240, %v3406, %v3407
    %v3409 = vrot.slane %v3171, 1
    %v3410 = vsel %vm240, %v3407, %v3409
    %v3411 = vrot.slane %v3172, 1
    %v3412 = vrot.slane %v3173, 1
    %v3413 = vsel %vm240, %v3411, %v3412
    %v3414 = vrot.slane %v3174, 1
    %v3415 = vsel %vm240, %v3412, %v3414
    %v3416 = vrot.slane %v3175, 1
    %v3417 = vrot.slane %v3176, 1
    %v3418 = vsel %vm240, %v3416, %v3417
    %v3419 = vrot.slane %v3177, 1
    %v3420 = vsel %vm240, %v3417, %v3419
    %v3421 = vrot.slane %v3178, 1
    %v3422 = vrot.slane %v3179, 1
    %v3423 = vsel %vm240, %v3421, %v3422
    %v3424 = vrot.slane %v3180, 1
    %v3425 = vsel %vm240, %v3422, %v3424
    %v3426 = vrot.slane %v3181, 1
    %v3427 = vrot.slane %v3182, 1
    %v3428 = vsel %vm240, %v3426, %v3427
    %v3429 = vrot.slane %v3183, 1
    %v3430 = vsel %vm240, %v3427, %v3429
    %v3431 = vrot.slane %v3184, 1
    %v3432 = vrot.slane %v3185, 1
    %v3433 = vsel %vm240, %v3431, %v3432
    %v3434 = vrot.slane %v3186, 1
    %v3435 = vsel %vm240, %v3432, %v3434
    %v3436 = vrot.slane %v3187, 1
    %v3437 = vrot.slane %v3188, 1
    %v3438 = vsel %vm240, %v3436, %v3437
    %v3439 = vrot.slane %v3189, 1
    %v3440 = vsel %vm240, %v3437, %v3439
    %v3441 = vrot.slane %v3190, 1
    %v3442 = vrot.slane %v3191, 1
    %v3443 = vsel %vm240, %v3441, %v3442
    %v3444 = vrot.slane %v3192, 1
    %v3445 = vsel %vm240, %v3442, %v3444
    %v3446 = vrot.slane %v3193, 1
    %v3447 = vrot.slane %v3194, 1
    %v3448 = vsel %vm240, %v3446, %v3447
    %v3449 = vrot.slane %v3195, 1
    %v3450 = vsel %vm240, %v3447, %v3449
    %v3451 = vrot.slane %v3196, 1
    %v3452 = vrot.slane %v3197, 1
    %v3453 = vsel %vm240, %v3451, %v3452
    %v3454 = vrot.slane %v3198, 1
    %v3455 = vsel %vm240, %v3452, %v3454
    %v3456 = vrot.slane %v3199, 1
    %v3457 = vrot.slane %v3200, 1
    %v3458 = vsel %vm240, %v3456, %v3457
    %v3459 = vrot.slane %v3201, 1
    %v3460 = vsel %vm240, %v3457, %v3459
    %v3461 = vrot.slane %v3202, 1
    %v3462 = vrot.slane %v3203, 1
    %v3463 = vsel %vm240, %v3461, %v3462
    %v3464 = vrot.slane %v3204, 1
    %v3465 = vsel %vm240, %v3462, %v3464
    %v3466 = vrot.slane %v3205, 1
    %v3467 = vrot.slane %v3206, 1
    %v3468 = vsel %vm240, %v3466, %v3467
    %v3469 = vrot.slane %v3207, 1
    %v3470 = vsel %vm240, %v3467, %v3469
    %v3471 = vrot.slane %v3208, 1
    %v3472 = vrot.slane %v3209, 1
    %v3473 = vsel %vm240, %v3471, %v3472
    %v3474 = vrot.slane %v3210, 1
    %v3475 = vsel %vm240, %v3472, %v3474
    %v3476 = vrot.slane %v3211, 1
    %v3477 = vrot.slane %v3212, 1
    %v3478 = vsel %vm240, %v3476, %v3477
    %v3479 = vrot.slane %v3213, 1
    %v3480 = vsel %vm240, %v3477, %v3479
    %v3481 = vrot.slane %v3214, 1
    %v3482 = vrot.slane %v3215, 1
    %v3483 = vsel %vm240, %v3481, %v3482
    %v3484 = vrot.slane %v3216, 1
    %v3485 = vsel %vm240, %v3482, %v3484
    %v3486 = vrot.slane %v3217, 1
    %v3487 = vrot.slane %v3218, 1
    %v3488 = vsel %vm240, %v3486, %v3487
    %v3489 = vrot.slane %v3219, 1
    %v3490 = vsel %vm240, %v3487, %v3489
    %v3491 = vrot.slane %v3220, 1
    %v3492 = vrot.slane %v3221, 1
    %v3493 = vsel %vm240, %v3491, %v3492
    %v3494 = vrot.slane %v3222, 1
    %v3495 = vsel %vm240, %v3492, %v3494
    %v3496 = vrot.slane %v3223, 1
    %v3497 = vrot.slane %v3224, 1
    %v3498 = vsel %vm240, %v3496, %v3497
    %v3499 = vrot.slane %v3225, 1
    %v3500 = vsel %vm240, %v3497, %v3499
    %v3501 = vrot.slane %v3226, 1
    %v3502 = vrot.slane %v3227, 1
    %v3503 = vsel %vm240, %v3501, %v3502
    %v3504 = vrot.slane %v3228, 1
    %v3505 = vsel %vm240, %v3502, %v3504
    %v3506 = vrot.slane %v3229, 1
    %v3507 = vrot.slane %v3230, 1
    %v3508 = vsel %vm240, %v3506, %v3507
    %v3509 = vrot.slane %v3231, 1
    %v3510 = vsel %vm240, %v3507, %v3509
    %v3511 = vrot.slane %v3232, 1
    %v3512 = vrot.slane %v3233, 1
    %v3513 = vsel %vm240, %v3511, %v3512
    %v3514 = vrot.slane %v3234, 1
    %v3515 = vsel %vm240, %v3512, %v3514
    %v3516 = vrot.slane %v3235, 1
    %v3517 = vrot.slane %v3236, 1
    %v3518 = vsel %vm240, %v3516, %v3517
    %v3519 = vrot.slane %v3237, 1
    %v3520 = vsel %vm240, %v3517, %v3519
    %v3521 = vrot.slane %v3238, 1
    %v3522 = vrot.slane %v3239, 1
    %v3523 = vsel %vm240, %v3521, %v3522
    %v3524 = vrot.slane %v3240, 1
    %v3525 = vsel %vm240, %v3522, %v3524
    %v3526 = vrot.slane %v3241, 1
    %v3527 = vrot.slane %v3242, 1
    %v3528 = vsel %vm240, %v3526, %v3527
    %v3529 = vrot.slane %v3243, 1
    %v3530 = vsel %vm240, %v3527, %v3529
    %v3531 = vrot.slane %v3244, 1
    %v3532 = vrot.slane %v3245, 1
    %v3533 = vsel %vm240, %v3531, %v3532
    %v3534 = vrot.slane %v3246, 1
    %v3535 = vsel %vm240, %v3532, %v3534
    %v3536 = vrot.slane %v3247, 1
    %v3537 = vrot.slane %v3248, 1
    %v3538 = vsel %vm240, %v3536, %v3537
    %v3539 = vrot.slane %v3249, 1
    %v3540 = vsel %vm240, %v3537, %v3539
    %v3541 = vrot.slane %v3250, 1
    %v3542 = vrot.slane %v3251, 1
    %v3543 = vsel %vm240, %v3541, %v3542
    %v3544 = vrot.slane %v3252, 1
    %v3545 = vsel %vm240, %v3542, %v3544
    %v3546 = vrot.slane %v3253, 1
    %v3547 = vrot.slane %v3254, 1
    %v3548 = vsel %vm240, %v3546, %v3547
    %v3549 = vrot.slane %v3255, 1
    %v3550 = vsel %vm240, %v3547, %v3549
    %v3551 = vrot.slane %v3256, 1
    %v3552 = vrot.slane %v3257, 1
    %v3553 = vsel %vm240, %v3551, %v3552
    %v3554 = vrot.slane %v3258, 1
    %v3555 = vsel %vm240, %v3552, %v3554
    %3556 = vrot.lane.b32.xlu0 %v3378, 8
    %v3557 = vpop.permute.xlu0 %3556
    %3558 = vrot.lane.b32.xlu0 %v3380, 8
    %v3559 = vpop.permute.xlu0 %3558
    %3560 = vrot.lane.b32.xlu0 %v3383, 8
    %v3561 = vpop.permute.xlu0 %3560
    %3562 = vrot.lane.b32.xlu0 %v3385, 8
    %v3563 = vpop.permute.xlu0 %3562
    %3564 = vrot.lane.b32.xlu0 %v3388, 8
    %v3565 = vpop.permute.xlu0 %3564
    %3566 = vrot.lane.b32.xlu0 %v3390, 8
    %v3567 = vpop.permute.xlu0 %3566
    %3568 = vrot.lane.b32.xlu0 %v3393, 8
    %v3569 = vpop.permute.xlu0 %3568
    %3570 = vrot.lane.b32.xlu0 %v3395, 8
    %v3571 = vpop.permute.xlu0 %3570
    %3572 = vrot.lane.b32.xlu0 %v3398, 8
    %v3573 = vpop.permute.xlu0 %3572
    %3574 = vrot.lane.b32.xlu0 %v3400, 8
    %v3575 = vpop.permute.xlu0 %3574
    %3576 = vrot.lane.b32.xlu0 %v3403, 8
    %v3577 = vpop.permute.xlu0 %3576
    %3578 = vrot.lane.b32.xlu0 %v3405, 8
    %v3579 = vpop.permute.xlu0 %3578
    %3580 = vrot.lane.b32.xlu0 %v3408, 8
    %v3581 = vpop.permute.xlu0 %3580
    %3582 = vrot.lane.b32.xlu0 %v3410, 8
    %v3583 = vpop.permute.xlu0 %3582
    %3584 = vrot.lane.b32.xlu0 %v3413, 8
    %v3585 = vpop.permute.xlu0 %3584
    %3586 = vrot.lane.b32.xlu0 %v3415, 8
    %v3587 = vpop.permute.xlu0 %3586
    %3588 = vrot.lane.b32.xlu0 %v3418, 8
    %v3589 = vpop.permute.xlu0 %3588
    %3590 = vrot.lane.b32.xlu0 %v3420, 8
    %v3591 = vpop.permute.xlu0 %3590
    %3592 = vrot.lane.b32.xlu0 %v3423, 8
    %v3593 = vpop.permute.xlu0 %3592
    %3594 = vrot.lane.b32.xlu0 %v3425, 8
    %v3595 = vpop.permute.xlu0 %3594
    %3596 = vrot.lane.b32.xlu0 %v3428, 8
    %v3597 = vpop.permute.xlu0 %3596
    %3598 = vrot.lane.b32.xlu0 %v3430, 8
    %v3599 = vpop.permute.xlu0 %3598
    %3600 = vrot.lane.b32.xlu0 %v3433, 8
    %v3601 = vpop.permute.xlu0 %3600
    %3602 = vrot.lane.b32.xlu0 %v3435, 8
    %v3603 = vpop.permute.xlu0 %3602
    %3604 = vrot.lane.b32.xlu0 %v3438, 8
    %v3605 = vpop.permute.xlu0 %3604
    %3606 = vrot.lane.b32.xlu0 %v3440, 8
    %v3607 = vpop.permute.xlu0 %3606
    %3608 = vrot.lane.b32.xlu0 %v3443, 8
    %v3609 = vpop.permute.xlu0 %3608
    %3610 = vrot.lane.b32.xlu0 %v3445, 8
    %v3611 = vpop.permute.xlu0 %3610
    %3612 = vrot.lane.b32.xlu0 %v3448, 8
    %v3613 = vpop.permute.xlu0 %3612
    %3614 = vrot.lane.b32.xlu0 %v3450, 8
    %v3615 = vpop.permute.xlu0 %3614
    %3616 = vrot.lane.b32.xlu0 %v3453, 8
    %v3617 = vpop.permute.xlu0 %3616
    %3618 = vrot.lane.b32.xlu0 %v3455, 8
    %v3619 = vpop.permute.xlu0 %3618
    %3620 = vrot.lane.b32.xlu0 %v3458, 8
    %v3621 = vpop.permute.xlu0 %3620
    %3622 = vrot.lane.b32.xlu0 %v3460, 8
    %v3623 = vpop.permute.xlu0 %3622
    %3624 = vrot.lane.b32.xlu0 %v3463, 8
    %v3625 = vpop.permute.xlu0 %3624
    %3626 = vrot.lane.b32.xlu0 %v3465, 8
    %v3627 = vpop.permute.xlu0 %3626
    %3628 = vrot.lane.b32.xlu0 %v3468, 8
    %v3629 = vpop.permute.xlu0 %3628
    %3630 = vrot.lane.b32.xlu0 %v3470, 8
    %v3631 = vpop.permute.xlu0 %3630
    %3632 = vrot.lane.b32.xlu0 %v3473, 8
    %v3633 = vpop.permute.xlu0 %3632
    %3634 = vrot.lane.b32.xlu0 %v3475, 8
    %v3635 = vpop.permute.xlu0 %3634
    %3636 = vrot.lane.b32.xlu0 %v3478, 8
    %v3637 = vpop.permute.xlu0 %3636
    %3638 = vrot.lane.b32.xlu0 %v3480, 8
    %v3639 = vpop.permute.xlu0 %3638
    %3640 = vrot.lane.b32.xlu0 %v3483, 8
    %v3641 = vpop.permute.xlu0 %3640
    %3642 = vrot.lane.b32.xlu0 %v3485, 8
    %v3643 = vpop.permute.xlu0 %3642
    %3644 = vrot.lane.b32.xlu0 %v3488, 8
    %v3645 = vpop.permute.xlu0 %3644
    %3646 = vrot.lane.b32.xlu0 %v3490, 8
    %v3647 = vpop.permute.xlu0 %3646
    %3648 = vrot.lane.b32.xlu0 %v3493, 8
    %v3649 = vpop.permute.xlu0 %3648
    %3650 = vrot.lane.b32.xlu0 %v3495, 8
    %v3651 = vpop.permute.xlu0 %3650
    %3652 = vrot.lane.b32.xlu0 %v3498, 8
    %v3653 = vpop.permute.xlu0 %3652
    %3654 = vrot.lane.b32.xlu0 %v3500, 8
    %v3655 = vpop.permute.xlu0 %3654
    %3656 = vrot.lane.b32.xlu0 %v3503, 8
    %v3657 = vpop.permute.xlu0 %3656
    %3658 = vrot.lane.b32.xlu0 %v3505, 8
    %v3659 = vpop.permute.xlu0 %3658
    %3660 = vrot.lane.b32.xlu0 %v3508, 8
    %v3661 = vpop.permute.xlu0 %3660
    %3662 = vrot.lane.b32.xlu0 %v3510, 8
    %v3663 = vpop.permute.xlu0 %3662
    %3664 = vrot.lane.b32.xlu0 %v3513, 8
    %v3665 = vpop.permute.xlu0 %3664
    %3666 = vrot.lane.b32.xlu0 %v3515, 8
    %v3667 = vpop.permute.xlu0 %3666
    %3668 = vrot.lane.b32.xlu0 %v3518, 8
    %v3669 = vpop.permute.xlu0 %3668
    %3670 = vrot.lane.b32.xlu0 %v3520, 8
    %v3671 = vpop.permute.xlu0 %3670
    %3672 = vrot.lane.b32.xlu0 %v3523, 8
    %v3673 = vpop.permute.xlu0 %3672
    %3674 = vrot.lane.b32.xlu0 %v3525, 8
    %v3675 = vpop.permute.xlu0 %3674
    %3676 = vrot.lane.b32.xlu0 %v3528, 8
    %v3677 = vpop.permute.xlu0 %3676
    %3678 = vrot.lane.b32.xlu0 %v3530, 8
    %v3679 = vpop.permute.xlu0 %3678
    %3680 = vrot.lane.b32.xlu0 %v3533, 8
    %v3681 = vpop.permute.xlu0 %3680
    %3682 = vrot.lane.b32.xlu0 %v3535, 8
    %v3683 = vpop.permute.xlu0 %3682
    %3684 = vrot.lane.b32.xlu0 %v3538, 8
    %v3685 = vpop.permute.xlu0 %3684
    %3686 = vrot.lane.b32.xlu0 %v3540, 8
    %v3687 = vpop.permute.xlu0 %3686
    %3688 = vrot.lane.b32.xlu0 %v3543, 8
    %v3689 = vpop.permute.xlu0 %3688
    %3690 = vrot.lane.b32.xlu0 %v3545, 8
    %v3691 = vpop.permute.xlu0 %3690
    %3692 = vrot.lane.b32.xlu0 %v3548, 8
    %v3693 = vpop.permute.xlu0 %3692
    %3694 = vrot.lane.b32.xlu0 %v3550, 8
    %v3695 = vpop.permute.xlu0 %3694
    %3696 = vrot.lane.b32.xlu0 %v3553, 8
    %v3697 = vpop.permute.xlu0 %3696
    %3698 = vrot.lane.b32.xlu0 %v3555, 8
    %v3699 = vpop.permute.xlu0 %3698
    %v3772 = vrot.slane %v3151, 2
    %v3773 = vrot.slane %v3152, 2
    %v3774 = vsel %vm637, %v3772, %v3773
    %v3775 = vrot.slane %v3153, 2
    %v3776 = vsel %vm637, %v3773, %v3775
    %v3777 = vrot.slane %v3154, 2
    %v3778 = vrot.slane %v3155, 2
    %v3779 = vsel %vm637, %v3777, %v3778
    %v3780 = vrot.slane %v3156, 2
    %v3781 = vsel %vm637, %v3778, %v3780
    %v3782 = vrot.slane %v3157, 2
    %v3783 = vrot.slane %v3158, 2
    %v3784 = vsel %vm637, %v3782, %v3783
    %v3785 = vrot.slane %v3159, 2
    %v3786 = vsel %vm637, %v3783, %v3785
    %v3787 = vrot.slane %v3160, 2
    %v3788 = vrot.slane %v3161, 2
    %v3789 = vsel %vm637, %v3787, %v3788
    %v3790 = vrot.slane %v3162, 2
    %v3791 = vsel %vm637, %v3788, %v3790
    %v3792 = vrot.slane %v3163, 2
    %v3793 = vrot.slane %v3164, 2
    %v3794 = vsel %vm637, %v3792, %v3793
    %v3795 = vrot.slane %v3165, 2
    %v3796 = vsel %vm637, %v3793, %v3795
    %v3797 = vrot.slane %v3166, 2
    %v3798 = vrot.slane %v3167, 2
    %v3799 = vsel %vm637, %v3797, %v3798
    %v3800 = vrot.slane %v3168, 2
    %v3801 = vsel %vm637, %v3798, %v3800
    %v3802 = vrot.slane %v3169, 2
    %v3803 = vrot.slane %v3170, 2
    %v3804 = vsel %vm637, %v3802, %v3803
    %v3805 = vrot.slane %v3171, 2
    %v3806 = vsel %vm637, %v3803, %v3805
    %v3807 = vrot.slane %v3172, 2
    %v3808 = vrot.slane %v3173, 2
    %v3809 = vsel %vm637, %v3807, %v3808
    %v3810 = vrot.slane %v3174, 2
    %v3811 = vsel %vm637, %v3808, %v3810
    %v3812 = vrot.slane %v3175, 2
    %v3813 = vrot.slane %v3176, 2
    %v3814 = vsel %vm637, %v3812, %v3813
    %v3815 = vrot.slane %v3177, 2
    %v3816 = vsel %vm637, %v3813, %v3815
    %v3817 = vrot.slane %v3178, 2
    %v3818 = vrot.slane %v3179, 2
    %v3819 = vsel %vm637, %v3817, %v3818
    %v3820 = vrot.slane %v3180, 2
    %v3821 = vsel %vm637, %v3818, %v3820
    %v3822 = vrot.slane %v3181, 2
    %v3823 = vrot.slane %v3182, 2
    %v3824 = vsel %vm637, %v3822, %v3823
    %v3825 = vrot.slane %v3183, 2
    %v3826 = vsel %vm637, %v3823, %v3825
    %v3827 = vrot.slane %v3184, 2
    %v3828 = vrot.slane %v3185, 2
    %v3829 = vsel %vm637, %v3827, %v3828
    %v3830 = vrot.slane %v3186, 2
    %v3831 = vsel %vm637, %v3828, %v3830
    %v3832 = vrot.slane %v3187, 2
    %v3833 = vrot.slane %v3188, 2
    %v3834 = vsel %vm637, %v3832, %v3833
    %v3835 = vrot.slane %v3189, 2
    %v3836 = vsel %vm637, %v3833, %v3835
    %v3837 = vrot.slane %v3190, 2
    %v3838 = vrot.slane %v3191, 2
    %v3839 = vsel %vm637, %v3837, %v3838
    %v3840 = vrot.slane %v3192, 2
    %v3841 = vsel %vm637, %v3838, %v3840
    %v3842 = vrot.slane %v3193, 2
    %v3843 = vrot.slane %v3194, 2
    %v3844 = vsel %vm637, %v3842, %v3843
    %v3845 = vrot.slane %v3195, 2
    %v3846 = vsel %vm637, %v3843, %v3845
    %v3847 = vrot.slane %v3196, 2
    %v3848 = vrot.slane %v3197, 2
    %v3849 = vsel %vm637, %v3847, %v3848
    %v3850 = vrot.slane %v3198, 2
    %v3851 = vsel %vm637, %v3848, %v3850
    %v3852 = vrot.slane %v3199, 2
    %v3853 = vrot.slane %v3200, 2
    %v3854 = vsel %vm637, %v3852, %v3853
    %v3855 = vrot.slane %v3201, 2
    %v3856 = vsel %vm637, %v3853, %v3855
    %v3857 = vrot.slane %v3202, 2
    %v3858 = vrot.slane %v3203, 2
    %v3859 = vsel %vm637, %v3857, %v3858
    %v3860 = vrot.slane %v3204, 2
    %v3861 = vsel %vm637, %v3858, %v3860
    %v3862 = vrot.slane %v3205, 2
    %v3863 = vrot.slane %v3206, 2
    %v3864 = vsel %vm637, %v3862, %v3863
    %v3865 = vrot.slane %v3207, 2
    %v3866 = vsel %vm637, %v3863, %v3865
    %v3867 = vrot.slane %v3208, 2
    %v3868 = vrot.slane %v3209, 2
    %v3869 = vsel %vm637, %v3867, %v3868
    %v3870 = vrot.slane %v3210, 2
    %v3871 = vsel %vm637, %v3868, %v3870
    %v3872 = vrot.slane %v3211, 2
    %v3873 = vrot.slane %v3212, 2
    %v3874 = vsel %vm637, %v3872, %v3873
    %v3875 = vrot.slane %v3213, 2
    %v3876 = vsel %vm637, %v3873, %v3875
    %v3877 = vrot.slane %v3214, 2
    %v3878 = vrot.slane %v3215, 2
    %v3879 = vsel %vm637, %v3877, %v3878
    %v3880 = vrot.slane %v3216, 2
    %v3881 = vsel %vm637, %v3878, %v3880
    %v3882 = vrot.slane %v3217, 2
    %v3883 = vrot.slane %v3218, 2
    %v3884 = vsel %vm637, %v3882, %v3883
    %v3885 = vrot.slane %v3219, 2
    %v3886 = vsel %vm637, %v3883, %v3885
    %v3887 = vrot.slane %v3220, 2
    %v3888 = vrot.slane %v3221, 2
    %v3889 = vsel %vm637, %v3887, %v3888
    %v3890 = vrot.slane %v3222, 2
    %v3891 = vsel %vm637, %v3888, %v3890
    %v3892 = vrot.slane %v3223, 2
    %v3893 = vrot.slane %v3224, 2
    %v3894 = vsel %vm637, %v3892, %v3893
    %v3895 = vrot.slane %v3225, 2
    %v3896 = vsel %vm637, %v3893, %v3895
    %v3897 = vrot.slane %v3226, 2
    %v3898 = vrot.slane %v3227, 2
    %v3899 = vsel %vm637, %v3897, %v3898
    %v3900 = vrot.slane %v3228, 2
    %v3901 = vsel %vm637, %v3898, %v3900
    %v3902 = vrot.slane %v3229, 2
    %v3903 = vrot.slane %v3230, 2
    %v3904 = vsel %vm637, %v3902, %v3903
    %v3905 = vrot.slane %v3231, 2
    %v3906 = vsel %vm637, %v3903, %v3905
    %v3907 = vrot.slane %v3232, 2
    %v3908 = vrot.slane %v3233, 2
    %v3909 = vsel %vm637, %v3907, %v3908
    %v3910 = vrot.slane %v3234, 2
    %v3911 = vsel %vm637, %v3908, %v3910
    %v3912 = vrot.slane %v3235, 2
    %v3913 = vrot.slane %v3236, 2
    %v3914 = vsel %vm637, %v3912, %v3913
    %v3915 = vrot.slane %v3237, 2
    %v3916 = vsel %vm637, %v3913, %v3915
    %v3917 = vrot.slane %v3238, 2
    %v3918 = vrot.slane %v3239, 2
    %v3919 = vsel %vm637, %v3917, %v3918
    %v3920 = vrot.slane %v3240, 2
    %v3921 = vsel %vm637, %v3918, %v3920
    %v3922 = vrot.slane %v3241, 2
    %v3923 = vrot.slane %v3242, 2
    %v3924 = vsel %vm637, %v3922, %v3923
    %v3925 = vrot.slane %v3243, 2
    %v3926 = vsel %vm637, %v3923, %v3925
    %v3927 = vrot.slane %v3244, 2
    %v3928 = vrot.slane %v3245, 2
    %v3929 = vsel %vm637, %v3927, %v3928
    %v3930 = vrot.slane %v3246, 2
    %v3931 = vsel %vm637, %v3928, %v3930
    %v3932 = vrot.slane %v3247, 2
    %v3933 = vrot.slane %v3248, 2
    %v3934 = vsel %vm637, %v3932, %v3933
    %v3935 = vrot.slane %v3249, 2
    %v3936 = vsel %vm637, %v3933, %v3935
    %v3937 = vrot.slane %v3250, 2
    %v3938 = vrot.slane %v3251, 2
    %v3939 = vsel %vm637, %v3937, %v3938
    %v3940 = vrot.slane %v3252, 2
    %v3941 = vsel %vm637, %v3938, %v3940
    %v3942 = vrot.slane %v3253, 2
    %v3943 = vrot.slane %v3254, 2
    %v3944 = vsel %vm637, %v3942, %v3943
    %v3945 = vrot.slane %v3255, 2
    %v3946 = vsel %vm637, %v3943, %v3945
    %v3947 = vrot.slane %v3256, 2
    %v3948 = vrot.slane %v3257, 2
    %v3949 = vsel %vm637, %v3947, %v3948
    %v3950 = vrot.slane %v3258, 2
    %v3951 = vsel %vm637, %v3948, %v3950
    %3952 = vrot.lane.b32.xlu0 %v3774, 16
    %v3953 = vpop.permute.xlu0 %3952
    %3954 = vrot.lane.b32.xlu0 %v3776, 16
    %v3955 = vpop.permute.xlu0 %3954
    %3956 = vrot.lane.b32.xlu0 %v3779, 16
    %v3957 = vpop.permute.xlu0 %3956
    %3958 = vrot.lane.b32.xlu0 %v3781, 16
    %v3959 = vpop.permute.xlu0 %3958
    %3960 = vrot.lane.b32.xlu0 %v3784, 16
    %v3961 = vpop.permute.xlu0 %3960
    %3962 = vrot.lane.b32.xlu0 %v3786, 16
    %v3963 = vpop.permute.xlu0 %3962
    %3964 = vrot.lane.b32.xlu0 %v3789, 16
    %v3965 = vpop.permute.xlu0 %3964
    %3966 = vrot.lane.b32.xlu0 %v3791, 16
    %v3967 = vpop.permute.xlu0 %3966
    %3968 = vrot.lane.b32.xlu0 %v3794, 16
    %v3969 = vpop.permute.xlu0 %3968
    %3970 = vrot.lane.b32.xlu0 %v3796, 16
    %v3971 = vpop.permute.xlu0 %3970
    %3972 = vrot.lane.b32.xlu0 %v3799, 16
    %v3973 = vpop.permute.xlu0 %3972
    %3974 = vrot.lane.b32.xlu0 %v3801, 16
    %v3975 = vpop.permute.xlu0 %3974
    %3976 = vrot.lane.b32.xlu0 %v3804, 16
    %v3977 = vpop.permute.xlu0 %3976
    %3978 = vrot.lane.b32.xlu0 %v3806, 16
    %v3979 = vpop.permute.xlu0 %3978
    %3980 = vrot.lane.b32.xlu0 %v3809, 16
    %v3981 = vpop.permute.xlu0 %3980
    %3982 = vrot.lane.b32.xlu0 %v3811, 16
    %v3983 = vpop.permute.xlu0 %3982
    %3984 = vrot.lane.b32.xlu0 %v3814, 16
    %v3985 = vpop.permute.xlu0 %3984
    %3986 = vrot.lane.b32.xlu0 %v3816, 16
    %v3987 = vpop.permute.xlu0 %3986
    %3988 = vrot.lane.b32.xlu0 %v3819, 16
    %v3989 = vpop.permute.xlu0 %3988
    %3990 = vrot.lane.b32.xlu0 %v3821, 16
    %v3991 = vpop.permute.xlu0 %3990
    %3992 = vrot.lane.b32.xlu0 %v3824, 16
    %v3993 = vpop.permute.xlu0 %3992
    %3994 = vrot.lane.b32.xlu0 %v3826, 16
    %v3995 = vpop.permute.xlu0 %3994
    %3996 = vrot.lane.b32.xlu0 %v3829, 16
    %v3997 = vpop.permute.xlu0 %3996
    %3998 = vrot.lane.b32.xlu0 %v3831, 16
    %v3999 = vpop.permute.xlu0 %3998
    %4000 = vrot.lane.b32.xlu0 %v3834, 16
    %v4001 = vpop.permute.xlu0 %4000
    %4002 = vrot.lane.b32.xlu0 %v3836, 16
    %v4003 = vpop.permute.xlu0 %4002
    %4004 = vrot.lane.b32.xlu0 %v3839, 16
    %v4005 = vpop.permute.xlu0 %4004
    %4006 = vrot.lane.b32.xlu0 %v3841, 16
    %v4007 = vpop.permute.xlu0 %4006
    %4008 = vrot.lane.b32.xlu0 %v3844, 16
    %v4009 = vpop.permute.xlu0 %4008
    %4010 = vrot.lane.b32.xlu0 %v3846, 16
    %v4011 = vpop.permute.xlu0 %4010
    %4012 = vrot.lane.b32.xlu0 %v3849, 16
    %v4013 = vpop.permute.xlu0 %4012
    %4014 = vrot.lane.b32.xlu0 %v3851, 16
    %v4015 = vpop.permute.xlu0 %4014
    %4016 = vrot.lane.b32.xlu0 %v3854, 16
    %v4017 = vpop.permute.xlu0 %4016
    %4018 = vrot.lane.b32.xlu0 %v3856, 16
    %v4019 = vpop.permute.xlu0 %4018
    %4020 = vrot.lane.b32.xlu0 %v3859, 16
    %v4021 = vpop.permute.xlu0 %4020
    %4022 = vrot.lane.b32.xlu0 %v3861, 16
    %v4023 = vpop.permute.xlu0 %4022
    %4024 = vrot.lane.b32.xlu0 %v3864, 16
    %v4025 = vpop.permute.xlu0 %4024
    %4026 = vrot.lane.b32.xlu0 %v3866, 16
    %v4027 = vpop.permute.xlu0 %4026
    %4028 = vrot.lane.b32.xlu0 %v3869, 16
    %v4029 = vpop.permute.xlu0 %4028
    %4030 = vrot.lane.b32.xlu0 %v3871, 16
    %v4031 = vpop.permute.xlu0 %4030
    %4032 = vrot.lane.b32.xlu0 %v3874, 16
    %v4033 = vpop.permute.xlu0 %4032
    %4034 = vrot.lane.b32.xlu0 %v3876, 16
    %v4035 = vpop.permute.xlu0 %4034
    %4036 = vrot.lane.b32.xlu0 %v3879, 16
    %v4037 = vpop.permute.xlu0 %4036
    %4038 = vrot.lane.b32.xlu0 %v3881, 16
    %v4039 = vpop.permute.xlu0 %4038
    %4040 = vrot.lane.b32.xlu0 %v3884, 16
    %v4041 = vpop.permute.xlu0 %4040
    %4042 = vrot.lane.b32.xlu0 %v3886, 16
    %v4043 = vpop.permute.xlu0 %4042
    %4044 = vrot.lane.b32.xlu0 %v3889, 16
    %v4045 = vpop.permute.xlu0 %4044
    %4046 = vrot.lane.b32.xlu0 %v3891, 16
    %v4047 = vpop.permute.xlu0 %4046
    %4048 = vrot.lane.b32.xlu0 %v3894, 16
    %v4049 = vpop.permute.xlu0 %4048
    %4050 = vrot.lane.b32.xlu0 %v3896, 16
    %v4051 = vpop.permute.xlu0 %4050
    %4052 = vrot.lane.b32.xlu0 %v3899, 16
    %v4053 = vpop.permute.xlu0 %4052
    %4054 = vrot.lane.b32.xlu0 %v3901, 16
    %v4055 = vpop.permute.xlu0 %4054
    %4056 = vrot.lane.b32.xlu0 %v3904, 16
    %v4057 = vpop.permute.xlu0 %4056
    %4058 = vrot.lane.b32.xlu0 %v3906, 16
    %v4059 = vpop.permute.xlu0 %4058
    %4060 = vrot.lane.b32.xlu0 %v3909, 16
    %v4061 = vpop.permute.xlu0 %4060
    %4062 = vrot.lane.b32.xlu0 %v3911, 16
    %v4063 = vpop.permute.xlu0 %4062
    %4064 = vrot.lane.b32.xlu0 %v3914, 16
    %v4065 = vpop.permute.xlu0 %4064
    %4066 = vrot.lane.b32.xlu0 %v3916, 16
    %v4067 = vpop.permute.xlu0 %4066
    %4068 = vrot.lane.b32.xlu0 %v3919, 16
    %v4069 = vpop.permute.xlu0 %4068
    %4070 = vrot.lane.b32.xlu0 %v3921, 16
    %v4071 = vpop.permute.xlu0 %4070
    %4072 = vrot.lane.b32.xlu0 %v3924, 16
    %v4073 = vpop.permute.xlu0 %4072
    %4074 = vrot.lane.b32.xlu0 %v3926, 16
    %v4075 = vpop.permute.xlu0 %4074
    %4076 = vrot.lane.b32.xlu0 %v3929, 16
    %v4077 = vpop.permute.xlu0 %4076
    %4078 = vrot.lane.b32.xlu0 %v3931, 16
    %v4079 = vpop.permute.xlu0 %4078
    %4080 = vrot.lane.b32.xlu0 %v3934, 16
    %v4081 = vpop.permute.xlu0 %4080
    %4082 = vrot.lane.b32.xlu0 %v3936, 16
    %v4083 = vpop.permute.xlu0 %4082
    %4084 = vrot.lane.b32.xlu0 %v3939, 16
    %v4085 = vpop.permute.xlu0 %4084
    %4086 = vrot.lane.b32.xlu0 %v3941, 16
    %v4087 = vpop.permute.xlu0 %4086
    %4088 = vrot.lane.b32.xlu0 %v3944, 16
    %v4089 = vpop.permute.xlu0 %4088
    %4090 = vrot.lane.b32.xlu0 %v3946, 16
    %v4091 = vpop.permute.xlu0 %4090
    %4092 = vrot.lane.b32.xlu0 %v3949, 16
    %v4093 = vpop.permute.xlu0 %4092
    %4094 = vrot.lane.b32.xlu0 %v3951, 16
    %v4095 = vpop.permute.xlu0 %4094
    %v4168 = vsel %vm1107, %v3151, %v3557
    %v4169 = vsel %vm1107, %v3152, %v3559
    %v4170 = vsel %vm1107, %v3154, %v3561
    %v4171 = vsel %vm1107, %v3155, %v3563
    %v4172 = vsel %vm1107, %v3157, %v3565
    %v4173 = vsel %vm1107, %v3158, %v3567
    %v4174 = vsel %vm1107, %v3160, %v3569
    %v4175 = vsel %vm1107, %v3161, %v3571
    %v4176 = vsel %vm1107, %v3163, %v3573
    %v4177 = vsel %vm1107, %v3164, %v3575
    %v4178 = vsel %vm1107, %v3166, %v3577
    %v4179 = vsel %vm1107, %v3167, %v3579
    %v4180 = vsel %vm1107, %v3169, %v3581
    %v4181 = vsel %vm1107, %v3170, %v3583
    %v4182 = vsel %vm1107, %v3172, %v3585
    %v4183 = vsel %vm1107, %v3173, %v3587
    %v4184 = vsel %vm1107, %v3175, %v3589
    %v4185 = vsel %vm1107, %v3176, %v3591
    %v4186 = vsel %vm1107, %v3178, %v3593
    %v4187 = vsel %vm1107, %v3179, %v3595
    %v4188 = vsel %vm1107, %v3181, %v3597
    %v4189 = vsel %vm1107, %v3182, %v3599
    %v4190 = vsel %vm1107, %v3184, %v3601
    %v4191 = vsel %vm1107, %v3185, %v3603
    %v4192 = vsel %vm1107, %v3187, %v3605
    %v4193 = vsel %vm1107, %v3188, %v3607
    %v4194 = vsel %vm1107, %v3190, %v3609
    %v4195 = vsel %vm1107, %v3191, %v3611
    %v4196 = vsel %vm1107, %v3193, %v3613
    %v4197 = vsel %vm1107, %v3194, %v3615
    %v4198 = vsel %vm1107, %v3196, %v3617
    %v4199 = vsel %vm1107, %v3197, %v3619
    %v4200 = vsel %vm1107, %v3199, %v3621
    %v4201 = vsel %vm1107, %v3200, %v3623
    %v4202 = vsel %vm1107, %v3202, %v3625
    %v4203 = vsel %vm1107, %v3203, %v3627
    %v4204 = vsel %vm1107, %v3205, %v3629
    %v4205 = vsel %vm1107, %v3206, %v3631
    %v4206 = vsel %vm1107, %v3208, %v3633
    %v4207 = vsel %vm1107, %v3209, %v3635
    %v4208 = vsel %vm1107, %v3211, %v3637
    %v4209 = vsel %vm1107, %v3212, %v3639
    %v4210 = vsel %vm1107, %v3214, %v3641
    %v4211 = vsel %vm1107, %v3215, %v3643
    %v4212 = vsel %vm1107, %v3217, %v3645
    %v4213 = vsel %vm1107, %v3218, %v3647
    %v4214 = vsel %vm1107, %v3220, %v3649
    %v4215 = vsel %vm1107, %v3221, %v3651
    %v4216 = vsel %vm1107, %v3223, %v3653
    %v4217 = vsel %vm1107, %v3224, %v3655
    %v4218 = vsel %vm1107, %v3226, %v3657
    %v4219 = vsel %vm1107, %v3227, %v3659
    %v4220 = vsel %vm1107, %v3229, %v3661
    %v4221 = vsel %vm1107, %v3230, %v3663
    %v4222 = vsel %vm1107, %v3232, %v3665
    %v4223 = vsel %vm1107, %v3233, %v3667
    %v4224 = vsel %vm1107, %v3235, %v3669
    %v4225 = vsel %vm1107, %v3236, %v3671
    %v4226 = vsel %vm1107, %v3238, %v3673
    %v4227 = vsel %vm1107, %v3239, %v3675
    %v4228 = vsel %vm1107, %v3241, %v3677
    %v4229 = vsel %vm1107, %v3242, %v3679
    %v4230 = vsel %vm1107, %v3244, %v3681
    %v4231 = vsel %vm1107, %v3245, %v3683
    %v4232 = vsel %vm1107, %v3247, %v3685
    %v4233 = vsel %vm1107, %v3248, %v3687
    %v4234 = vsel %vm1107, %v3250, %v3689
    %v4235 = vsel %vm1107, %v3251, %v3691
    %v4236 = vsel %vm1107, %v3253, %v3693
    %v4237 = vsel %vm1107, %v3254, %v3695
    %v4238 = vsel %vm1107, %v3256, %v3697
    %v4239 = vsel %vm1107, %v3257, %v3699
    %vm4240 = vcmask 130048
    %v4241 = vsel %vm4240, %v4168, %v3953
    %v4242 = vsel %vm4240, %v4169, %v3955
    %v4243 = vsel %vm4240, %v4170, %v3957
    %v4244 = vsel %vm4240, %v4171, %v3959
    %v4245 = vsel %vm4240, %v4172, %v3961
    %v4246 = vsel %vm4240, %v4173, %v3963
    %v4247 = vsel %vm4240, %v4174, %v3965
    %v4248 = vsel %vm4240, %v4175, %v3967
    %v4249 = vsel %vm4240, %v4176, %v3969
    %v4250 = vsel %vm4240, %v4177, %v3971
    %v4251 = vsel %vm4240, %v4178, %v3973
    %v4252 = vsel %vm4240, %v4179, %v3975
    %v4253 = vsel %vm4240, %v4180, %v3977
    %v4254 = vsel %vm4240, %v4181, %v3979
    %v4255 = vsel %vm4240, %v4182, %v3981
    %v4256 = vsel %vm4240, %v4183, %v3983
    %v4257 = vsel %vm4240, %v4184, %v3985
    %v4258 = vsel %vm4240, %v4185, %v3987
    %v4259 = vsel %vm4240, %v4186, %v3989
    %v4260 = vsel %vm4240, %v4187, %v3991
    %v4261 = vsel %vm4240, %v4188, %v3993
    %v4262 = vsel %vm4240, %v4189, %v3995
    %v4263 = vsel %vm4240, %v4190, %v3997
    %v4264 = vsel %vm4240, %v4191, %v3999
    %v4265 = vsel %vm4240, %v4192, %v4001
    %v4266 = vsel %vm4240, %v4193, %v4003
    %v4267 = vsel %vm4240, %v4194, %v4005
    %v4268 = vsel %vm4240, %v4195, %v4007
    %v4269 = vsel %vm4240, %v4196, %v4009
    %v4270 = vsel %vm4240, %v4197, %v4011
    %v4271 = vsel %vm4240, %v4198, %v4013
    %v4272 = vsel %vm4240, %v4199, %v4015
    %v4273 = vsel %vm4240, %v4200, %v4017
    %v4274 = vsel %vm4240, %v4201, %v4019
    %v4275 = vsel %vm4240, %v4202, %v4021
    %v4276 = vsel %vm4240, %v4203, %v4023
    %v4277 = vsel %vm4240, %v4204, %v4025
    %v4278 = vsel %vm4240, %v4205, %v4027
    %v4279 = vsel %vm4240, %v4206, %v4029
    %v4280 = vsel %vm4240, %v4207, %v4031
    %v4281 = vsel %vm4240, %v4208, %v4033
    %v4282 = vsel %vm4240, %v4209, %v4035
    %v4283 = vsel %vm4240, %v4210, %v4037
    %v4284 = vsel %vm4240, %v4211, %v4039
    %v4285 = vsel %vm4240, %v4212, %v4041
    %v4286 = vsel %vm4240, %v4213, %v4043
    %v4287 = vsel %vm4240, %v4214, %v4045
    %v4288 = vsel %vm4240, %v4215, %v4047
    %v4289 = vsel %vm4240, %v4216, %v4049
    %v4290 = vsel %vm4240, %v4217, %v4051
    %v4291 = vsel %vm4240, %v4218, %v4053
    %v4292 = vsel %vm4240, %v4219, %v4055
    %v4293 = vsel %vm4240, %v4220, %v4057
    %v4294 = vsel %vm4240, %v4221, %v4059
    %v4295 = vsel %vm4240, %v4222, %v4061
    %v4296 = vsel %vm4240, %v4223, %v4063
    %v4297 = vsel %vm4240, %v4224, %v4065
    %v4298 = vsel %vm4240, %v4225, %v4067
    %v4299 = vsel %vm4240, %v4226, %v4069
    %v4300 = vsel %vm4240, %v4227, %v4071
    %v4301 = vsel %vm4240, %v4228, %v4073
    %v4302 = vsel %vm4240, %v4229, %v4075
    %v4303 = vsel %vm4240, %v4230, %v4077
    %v4304 = vsel %vm4240, %v4231, %v4079
    %v4305 = vsel %vm4240, %v4232, %v4081
    %v4306 = vsel %vm4240, %v4233, %v4083
    %v4307 = vsel %vm4240, %v4234, %v4085
    %v4308 = vsel %vm4240, %v4235, %v4087
    %v4309 = vsel %vm4240, %v4236, %v4089
    %v4310 = vsel %vm4240, %v4237, %v4091
    %v4311 = vsel %vm4240, %v4238, %v4093
    %v4312 = vsel %vm4240, %v4239, %v4095
    %4377 = vrot.lane.b32.xlu0 %v4243, 24
    %v4378 = vpop.permute.xlu0 %4377
    %4379 = vrot.lane.b32.xlu0 %v4244, 24
    %v4380 = vpop.permute.xlu0 %4379
    %4381 = vrot.lane.b32.xlu0 %v4245, 24
    %v4382 = vpop.permute.xlu0 %4381
    %4383 = vrot.lane.b32.xlu0 %v4246, 24
    %v4384 = vpop.permute.xlu0 %4383
    %4385 = vrot.lane.b32.xlu0 %v4247, 24
    %v4386 = vpop.permute.xlu0 %4385
    %4387 = vrot.lane.b32.xlu0 %v4248, 24
    %v4388 = vpop.permute.xlu0 %4387
    %4389 = vrot.lane.b32.xlu0 %v4249, 24
    %v4390 = vpop.permute.xlu0 %4389
    %4391 = vrot.lane.b32.xlu0 %v4250, 24
    %v4392 = vpop.permute.xlu0 %4391
    %4393 = vrot.lane.b32.xlu0 %v4251, 24
    %v4394 = vpop.permute.xlu0 %4393
    %4395 = vrot.lane.b32.xlu0 %v4252, 24
    %v4396 = vpop.permute.xlu0 %4395
    %4397 = vrot.lane.b32.xlu0 %v4253, 24
    %v4398 = vpop.permute.xlu0 %4397
    %4399 = vrot.lane.b32.xlu0 %v4254, 24
    %v4400 = vpop.permute.xlu0 %4399
    %4401 = vrot.lane.b32.xlu0 %v4255, 24
    %v4402 = vpop.permute.xlu0 %4401
    %4403 = vrot.lane.b32.xlu0 %v4256, 24
    %v4404 = vpop.permute.xlu0 %4403
    %4405 = vrot.lane.b32.xlu0 %v4257, 24
    %v4406 = vpop.permute.xlu0 %4405
    %4407 = vrot.lane.b32.xlu0 %v4258, 24
    %v4408 = vpop.permute.xlu0 %4407
    %4409 = vrot.lane.b32.xlu0 %v4259, 24
    %v4410 = vpop.permute.xlu0 %4409
    %4411 = vrot.lane.b32.xlu0 %v4260, 24
    %v4412 = vpop.permute.xlu0 %4411
    %4413 = vrot.lane.b32.xlu0 %v4261, 24
    %v4414 = vpop.permute.xlu0 %4413
    %4415 = vrot.lane.b32.xlu0 %v4262, 24
    %v4416 = vpop.permute.xlu0 %4415
    %4417 = vrot.lane.b32.xlu0 %v4263, 24
    %v4418 = vpop.permute.xlu0 %4417
    %4419 = vrot.lane.b32.xlu0 %v4264, 24
    %v4420 = vpop.permute.xlu0 %4419
    %4421 = vrot.lane.b32.xlu0 %v4265, 24
    %v4422 = vpop.permute.xlu0 %4421
    %4423 = vrot.lane.b32.xlu0 %v4266, 24
    %v4424 = vpop.permute.xlu0 %4423
    %4425 = vrot.lane.b32.xlu0 %v4267, 24
    %v4426 = vpop.permute.xlu0 %4425
    %4427 = vrot.lane.b32.xlu0 %v4268, 24
    %v4428 = vpop.permute.xlu0 %4427
    %4429 = vrot.lane.b32.xlu0 %v4269, 24
    %v4430 = vpop.permute.xlu0 %4429
    %4431 = vrot.lane.b32.xlu0 %v4270, 24
    %v4432 = vpop.permute.xlu0 %4431
    %4433 = vrot.lane.b32.xlu0 %v4271, 24
    %v4434 = vpop.permute.xlu0 %4433
    %4435 = vrot.lane.b32.xlu0 %v4272, 24
    %v4436 = vpop.permute.xlu0 %4435
    %4437 = vrot.lane.b32.xlu0 %v4273, 24
    %v4438 = vpop.permute.xlu0 %4437
    %4439 = vrot.lane.b32.xlu0 %v4274, 24
    %v4440 = vpop.permute.xlu0 %4439
    %4441 = vrot.lane.b32.xlu0 %v4279, 24
    %v4442 = vpop.permute.xlu0 %4441
    %4443 = vrot.lane.b32.xlu0 %v4280, 24
    %v4444 = vpop.permute.xlu0 %4443
    %4445 = vrot.lane.b32.xlu0 %v4281, 24
    %v4446 = vpop.permute.xlu0 %4445
    %4447 = vrot.lane.b32.xlu0 %v4282, 24
    %v4448 = vpop.permute.xlu0 %4447
    %4449 = vrot.lane.b32.xlu0 %v4283, 24
    %v4450 = vpop.permute.xlu0 %4449
    %4451 = vrot.lane.b32.xlu0 %v4284, 24
    %v4452 = vpop.permute.xlu0 %4451
    %4453 = vrot.lane.b32.xlu0 %v4285, 24
    %v4454 = vpop.permute.xlu0 %4453
    %4455 = vrot.lane.b32.xlu0 %v4286, 24
    %v4456 = vpop.permute.xlu0 %4455
    %4457 = vrot.lane.b32.xlu0 %v4287, 24
    %v4458 = vpop.permute.xlu0 %4457
    %4459 = vrot.lane.b32.xlu0 %v4288, 24
    %v4460 = vpop.permute.xlu0 %4459
    %4461 = vrot.lane.b32.xlu0 %v4289, 24
    %v4462 = vpop.permute.xlu0 %4461
    %4463 = vrot.lane.b32.xlu0 %v4290, 24
    %v4464 = vpop.permute.xlu0 %4463
    %4465 = vrot.lane.b32.xlu0 %v4291, 24
    %v4466 = vpop.permute.xlu0 %4465
    %4467 = vrot.lane.b32.xlu0 %v4292, 24
    %v4468 = vpop.permute.xlu0 %4467
    %4469 = vrot.lane.b32.xlu0 %v4293, 24
    %v4470 = vpop.permute.xlu0 %4469
    %4471 = vrot.lane.b32.xlu0 %v4294, 24
    %v4472 = vpop.permute.xlu0 %4471
    %4473 = vrot.lane.b32.xlu0 %v4295, 24
    %v4474 = vpop.permute.xlu0 %4473
    %4475 = vrot.lane.b32.xlu0 %v4296, 24
    %v4476 = vpop.permute.xlu0 %4475
    %4477 = vrot.lane.b32.xlu0 %v4297, 24
    %v4478 = vpop.permute.xlu0 %4477
    %4479 = vrot.lane.b32.xlu0 %v4298, 24
    %v4480 = vpop.permute.xlu0 %4479
    %4481 = vrot.lane.b32.xlu0 %v4299, 24
    %v4482 = vpop.permute.xlu0 %4481
    %4483 = vrot.lane.b32.xlu0 %v4300, 24
    %v4484 = vpop.permute.xlu0 %4483
    %4485 = vrot.lane.b32.xlu0 %v4301, 24
    %v4486 = vpop.permute.xlu0 %4485
    %4487 = vrot.lane.b32.xlu0 %v4302, 24
    %v4488 = vpop.permute.xlu0 %4487
    %4489 = vrot.lane.b32.xlu0 %v4303, 24
    %v4490 = vpop.permute.xlu0 %4489
    %4491 = vrot.lane.b32.xlu0 %v4304, 24
    %v4492 = vpop.permute.xlu0 %4491
    %4493 = vrot.lane.b32.xlu0 %v4305, 24
    %v4494 = vpop.permute.xlu0 %4493
    %4495 = vrot.lane.b32.xlu0 %v4306, 24
    %v4496 = vpop.permute.xlu0 %4495
    %4497 = vrot.lane.b32.xlu0 %v4307, 24
    %v4498 = vpop.permute.xlu0 %4497
    %4499 = vrot.lane.b32.xlu0 %v4308, 24
    %v4500 = vpop.permute.xlu0 %4499
    %4501 = vrot.lane.b32.xlu0 %v4309, 24
    %v4502 = vpop.permute.xlu0 %4501
    %4503 = vrot.lane.b32.xlu0 %v4310, 24
    %v4504 = vpop.permute.xlu0 %4503
    %4573 = vrot.lane.b32.xlu0 %v4245, 48
    %v4574 = vpop.permute.xlu0 %4573
    %4575 = vrot.lane.b32.xlu0 %v4246, 48
    %v4576 = vpop.permute.xlu0 %4575
    %4577 = vrot.lane.b32.xlu0 %v4247, 48
    %v4578 = vpop.permute.xlu0 %4577
    %4579 = vrot.lane.b32.xlu0 %v4248, 48
    %v4580 = vpop.permute.xlu0 %4579
    %4581 = vrot.lane.b32.xlu0 %v4249, 48
    %v4582 = vpop.permute.xlu0 %4581
    %4583 = vrot.lane.b32.xlu0 %v4250, 48
    %v4584 = vpop.permute.xlu0 %4583
    %4585 = vrot.lane.b32.xlu0 %v4251, 48
    %v4586 = vpop.permute.xlu0 %4585
    %4587 = vrot.lane.b32.xlu0 %v4252, 48
    %v4588 = vpop.permute.xlu0 %4587
    %4589 = vrot.lane.b32.xlu0 %v4253, 48
    %v4590 = vpop.permute.xlu0 %4589
    %4591 = vrot.lane.b32.xlu0 %v4254, 48
    %v4592 = vpop.permute.xlu0 %4591
    %4593 = vrot.lane.b32.xlu0 %v4255, 48
    %v4594 = vpop.permute.xlu0 %4593
    %4595 = vrot.lane.b32.xlu0 %v4256, 48
    %v4596 = vpop.permute.xlu0 %4595
    %4597 = vrot.lane.b32.xlu0 %v4257, 48
    %v4598 = vpop.permute.xlu0 %4597
    %4599 = vrot.lane.b32.xlu0 %v4258, 48
    %v4600 = vpop.permute.xlu0 %4599
    %4601 = vrot.lane.b32.xlu0 %v4259, 48
    %v4602 = vpop.permute.xlu0 %4601
    %4603 = vrot.lane.b32.xlu0 %v4260, 48
    %v4604 = vpop.permute.xlu0 %4603
    %4605 = vrot.lane.b32.xlu0 %v4261, 48
    %v4606 = vpop.permute.xlu0 %4605
    %4607 = vrot.lane.b32.xlu0 %v4262, 48
    %v4608 = vpop.permute.xlu0 %4607
    %4609 = vrot.lane.b32.xlu0 %v4263, 48
    %v4610 = vpop.permute.xlu0 %4609
    %4611 = vrot.lane.b32.xlu0 %v4264, 48
    %v4612 = vpop.permute.xlu0 %4611
    %4613 = vrot.lane.b32.xlu0 %v4265, 48
    %v4614 = vpop.permute.xlu0 %4613
    %4615 = vrot.lane.b32.xlu0 %v4266, 48
    %v4616 = vpop.permute.xlu0 %4615
    %4617 = vrot.lane.b32.xlu0 %v4267, 48
    %v4618 = vpop.permute.xlu0 %4617
    %4619 = vrot.lane.b32.xlu0 %v4268, 48
    %v4620 = vpop.permute.xlu0 %4619
    %4621 = vrot.lane.b32.xlu0 %v4269, 48
    %v4622 = vpop.permute.xlu0 %4621
    %4623 = vrot.lane.b32.xlu0 %v4270, 48
    %v4624 = vpop.permute.xlu0 %4623
    %4625 = vrot.lane.b32.xlu0 %v4271, 48
    %v4626 = vpop.permute.xlu0 %4625
    %4627 = vrot.lane.b32.xlu0 %v4272, 48
    %v4628 = vpop.permute.xlu0 %4627
    %4629 = vrot.lane.b32.xlu0 %v4273, 48
    %v4630 = vpop.permute.xlu0 %4629
    %4631 = vrot.lane.b32.xlu0 %v4274, 48
    %v4632 = vpop.permute.xlu0 %4631
    %4633 = vrot.lane.b32.xlu0 %v4275, 48
    %v4634 = vpop.permute.xlu0 %4633
    %4635 = vrot.lane.b32.xlu0 %v4276, 48
    %v4636 = vpop.permute.xlu0 %4635
    %4637 = vrot.lane.b32.xlu0 %v4281, 48
    %v4638 = vpop.permute.xlu0 %4637
    %4639 = vrot.lane.b32.xlu0 %v4282, 48
    %v4640 = vpop.permute.xlu0 %4639
    %4641 = vrot.lane.b32.xlu0 %v4283, 48
    %v4642 = vpop.permute.xlu0 %4641
    %4643 = vrot.lane.b32.xlu0 %v4284, 48
    %v4644 = vpop.permute.xlu0 %4643
    %4645 = vrot.lane.b32.xlu0 %v4285, 48
    %v4646 = vpop.permute.xlu0 %4645
    %4647 = vrot.lane.b32.xlu0 %v4286, 48
    %v4648 = vpop.permute.xlu0 %4647
    %4649 = vrot.lane.b32.xlu0 %v4287, 48
    %v4650 = vpop.permute.xlu0 %4649
    %4651 = vrot.lane.b32.xlu0 %v4288, 48
    %v4652 = vpop.permute.xlu0 %4651
    %4653 = vrot.lane.b32.xlu0 %v4289, 48
    %v4654 = vpop.permute.xlu0 %4653
    %4655 = vrot.lane.b32.xlu0 %v4290, 48
    %v4656 = vpop.permute.xlu0 %4655
    %4657 = vrot.lane.b32.xlu0 %v4291, 48
    %v4658 = vpop.permute.xlu0 %4657
    %4659 = vrot.lane.b32.xlu0 %v4292, 48
    %v4660 = vpop.permute.xlu0 %4659
    %4661 = vrot.lane.b32.xlu0 %v4293, 48
    %v4662 = vpop.permute.xlu0 %4661
    %4663 = vrot.lane.b32.xlu0 %v4294, 48
    %v4664 = vpop.permute.xlu0 %4663
    %4665 = vrot.lane.b32.xlu0 %v4295, 48
    %v4666 = vpop.permute.xlu0 %4665
    %4667 = vrot.lane.b32.xlu0 %v4296, 48
    %v4668 = vpop.permute.xlu0 %4667
    %4669 = vrot.lane.b32.xlu0 %v4297, 48
    %v4670 = vpop.permute.xlu0 %4669
    %4671 = vrot.lane.b32.xlu0 %v4298, 48
    %v4672 = vpop.permute.xlu0 %4671
    %4673 = vrot.lane.b32.xlu0 %v4299, 48
    %v4674 = vpop.permute.xlu0 %4673
    %4675 = vrot.lane.b32.xlu0 %v4300, 48
    %v4676 = vpop.permute.xlu0 %4675
    %4677 = vrot.lane.b32.xlu0 %v4301, 48
    %v4678 = vpop.permute.xlu0 %4677
    %4679 = vrot.lane.b32.xlu0 %v4302, 48
    %v4680 = vpop.permute.xlu0 %4679
    %4681 = vrot.lane.b32.xlu0 %v4303, 48
    %v4682 = vpop.permute.xlu0 %4681
    %4683 = vrot.lane.b32.xlu0 %v4304, 48
    %v4684 = vpop.permute.xlu0 %4683
    %4685 = vrot.lane.b32.xlu0 %v4305, 48
    %v4686 = vpop.permute.xlu0 %4685
    %4687 = vrot.lane.b32.xlu0 %v4306, 48
    %v4688 = vpop.permute.xlu0 %4687
    %4689 = vrot.lane.b32.xlu0 %v4307, 48
    %v4690 = vpop.permute.xlu0 %4689
    %4691 = vrot.lane.b32.xlu0 %v4308, 48
    %v4692 = vpop.permute.xlu0 %4691
    %4693 = vrot.lane.b32.xlu0 %v4309, 48
    %v4694 = vpop.permute.xlu0 %4693
    %4695 = vrot.lane.b32.xlu0 %v4310, 48
    %v4696 = vpop.permute.xlu0 %4695
    %4697 = vrot.lane.b32.xlu0 %v4311, 48
    %v4698 = vpop.permute.xlu0 %4697
    %4699 = vrot.lane.b32.xlu0 %v4312, 48
    %v4700 = vpop.permute.xlu0 %4699
    %v4765 = vsel %vm1697, %v4241, %v4378
    %v4766 = vsel %vm1697, %v4242, %v4380
    %v4767 = vsel %vm1697, %v4243, %v4382
    %v4768 = vsel %vm1697, %v4244, %v4384
    %v4769 = vsel %vm1697, %v4245, %v4386
    %v4770 = vsel %vm1697, %v4246, %v4388
    %v4771 = vsel %vm1697, %v4247, %v4390
    %v4772 = vsel %vm1697, %v4248, %v4392
    %v4773 = vsel %vm1697, %v4249, %v4394
    %v4774 = vsel %vm1697, %v4250, %v4396
    %v4775 = vsel %vm1697, %v4251, %v4398
    %v4776 = vsel %vm1697, %v4252, %v4400
    %v4777 = vsel %vm1697, %v4253, %v4402
    %v4778 = vsel %vm1697, %v4254, %v4404
    %v4779 = vsel %vm1697, %v4255, %v4406
    %v4780 = vsel %vm1697, %v4256, %v4408
    %v4781 = vsel %vm1697, %v4257, %v4410
    %v4782 = vsel %vm1697, %v4258, %v4412
    %v4783 = vsel %vm1697, %v4259, %v4414
    %v4784 = vsel %vm1697, %v4260, %v4416
    %v4785 = vsel %vm1697, %v4261, %v4418
    %v4786 = vsel %vm1697, %v4262, %v4420
    %v4787 = vsel %vm1697, %v4263, %v4422
    %v4788 = vsel %vm1697, %v4264, %v4424
    %v4789 = vsel %vm1697, %v4265, %v4426
    %v4790 = vsel %vm1697, %v4266, %v4428
    %v4791 = vsel %vm1697, %v4267, %v4430
    %v4792 = vsel %vm1697, %v4268, %v4432
    %v4793 = vsel %vm1697, %v4269, %v4434
    %v4794 = vsel %vm1697, %v4270, %v4436
    %v4795 = vsel %vm1697, %v4271, %v4438
    %v4796 = vsel %vm1697, %v4272, %v4440
    %v4797 = vsel %vm1697, %v4277, %v4442
    %v4798 = vsel %vm1697, %v4278, %v4444
    %v4799 = vsel %vm1697, %v4279, %v4446
    %v4800 = vsel %vm1697, %v4280, %v4448
    %v4801 = vsel %vm1697, %v4281, %v4450
    %v4802 = vsel %vm1697, %v4282, %v4452
    %v4803 = vsel %vm1697, %v4283, %v4454
    %v4804 = vsel %vm1697, %v4284, %v4456
    %v4805 = vsel %vm1697, %v4285, %v4458
    %v4806 = vsel %vm1697, %v4286, %v4460
    %v4807 = vsel %vm1697, %v4287, %v4462
    %v4808 = vsel %vm1697, %v4288, %v4464
    %v4809 = vsel %vm1697, %v4289, %v4466
    %v4810 = vsel %vm1697, %v4290, %v4468
    %v4811 = vsel %vm1697, %v4291, %v4470
    %v4812 = vsel %vm1697, %v4292, %v4472
    %v4813 = vsel %vm1697, %v4293, %v4474
    %v4814 = vsel %vm1697, %v4294, %v4476
    %v4815 = vsel %vm1697, %v4295, %v4478
    %v4816 = vsel %vm1697, %v4296, %v4480
    %v4817 = vsel %vm1697, %v4297, %v4482
    %v4818 = vsel %vm1697, %v4298, %v4484
    %v4819 = vsel %vm1697, %v4299, %v4486
    %v4820 = vsel %vm1697, %v4300, %v4488
    %v4821 = vsel %vm1697, %v4301, %v4490
    %v4822 = vsel %vm1697, %v4302, %v4492
    %v4823 = vsel %vm1697, %v4303, %v4494
    %v4824 = vsel %vm1697, %v4304, %v4496
    %v4825 = vsel %vm1697, %v4305, %v4498
    %v4826 = vsel %vm1697, %v4306, %v4500
    %v4827 = vsel %vm1697, %v4307, %v4502
    %v4828 = vsel %vm1697, %v4308, %v4504
    %vm4829 = vcmask 392192
    %v4830 = vsel %vm4829, %v4765, %v4574
    %v4831 = vsel %vm4829, %v4766, %v4576
    %v4832 = vsel %vm4829, %v4767, %v4578
    %v4833 = vsel %vm4829, %v4768, %v4580
    %v4834 = vsel %vm4829, %v4769, %v4582
    %v4835 = vsel %vm4829, %v4770, %v4584
    %v4836 = vsel %vm4829, %v4771, %v4586
    %v4837 = vsel %vm4829, %v4772, %v4588
    %v4838 = vsel %vm4829, %v4773, %v4590
    %v4839 = vsel %vm4829, %v4774, %v4592
    %v4840 = vsel %vm4829, %v4775, %v4594
    %v4841 = vsel %vm4829, %v4776, %v4596
    %v4842 = vsel %vm4829, %v4777, %v4598
    %v4843 = vsel %vm4829, %v4778, %v4600
    %v4844 = vsel %vm4829, %v4779, %v4602
    %v4845 = vsel %vm4829, %v4780, %v4604
    %v4846 = vsel %vm4829, %v4781, %v4606
    %v4847 = vsel %vm4829, %v4782, %v4608
    %v4848 = vsel %vm4829, %v4783, %v4610
    %v4849 = vsel %vm4829, %v4784, %v4612
    %v4850 = vsel %vm4829, %v4785, %v4614
    %v4851 = vsel %vm4829, %v4786, %v4616
    %v4852 = vsel %vm4829, %v4787, %v4618
    %v4853 = vsel %vm4829, %v4788, %v4620
    %v4854 = vsel %vm4829, %v4789, %v4622
    %v4855 = vsel %vm4829, %v4790, %v4624
    %v4856 = vsel %vm4829, %v4791, %v4626
    %v4857 = vsel %vm4829, %v4792, %v4628
    %v4858 = vsel %vm4829, %v4793, %v4630
    %v4859 = vsel %vm4829, %v4794, %v4632
    %v4860 = vsel %vm4829, %v4795, %v4634
    %v4861 = vsel %vm4829, %v4796, %v4636
    %v4862 = vsel %vm4829, %v4797, %v4638
    %v4863 = vsel %vm4829, %v4798, %v4640
    %v4864 = vsel %vm4829, %v4799, %v4642
    %v4865 = vsel %vm4829, %v4800, %v4644
    %v4866 = vsel %vm4829, %v4801, %v4646
    %v4867 = vsel %vm4829, %v4802, %v4648
    %v4868 = vsel %vm4829, %v4803, %v4650
    %v4869 = vsel %vm4829, %v4804, %v4652
    %v4870 = vsel %vm4829, %v4805, %v4654
    %v4871 = vsel %vm4829, %v4806, %v4656
    %v4872 = vsel %vm4829, %v4807, %v4658
    %v4873 = vsel %vm4829, %v4808, %v4660
    %v4874 = vsel %vm4829, %v4809, %v4662
    %v4875 = vsel %vm4829, %v4810, %v4664
    %v4876 = vsel %vm4829, %v4811, %v4666
    %v4877 = vsel %vm4829, %v4812, %v4668
    %v4878 = vsel %vm4829, %v4813, %v4670
    %v4879 = vsel %vm4829, %v4814, %v4672
    %v4880 = vsel %vm4829, %v4815, %v4674
    %v4881 = vsel %vm4829, %v4816, %v4676
    %v4882 = vsel %vm4829, %v4817, %v4678
    %v4883 = vsel %vm4829, %v4818, %v4680
    %v4884 = vsel %vm4829, %v4819, %v4682
    %v4885 = vsel %vm4829, %v4820, %v4684
    %v4886 = vsel %vm4829, %v4821, %v4686
    %v4887 = vsel %vm4829, %v4822, %v4688
    %v4888 = vsel %vm4829, %v4823, %v4690
    %v4889 = vsel %vm4829, %v4824, %v4692
    %v4890 = vsel %vm4829, %v4825, %v4694
    %v4891 = vsel %vm4829, %v4826, %v4696
    %v4892 = vsel %vm4829, %v4827, %v4698
    %v4893 = vsel %vm4829, %v4828, %v4700
    %vm4894 = vcmask 588800
    %v4896 = vsel %vm4894, %v4830, 0
    %v4899 = vsel %vm4894, %v4831, 0
    %v4902 = vsel %vm4894, %v4832, 0
    %v4905 = vsel %vm4894, %v4833, 0
    %v4908 = vsel %vm4894, %v4834, 0
    %v4911 = vsel %vm4894, %v4835, 0
    %v4914 = vsel %vm4894, %v4836, 0
    %v4917 = vsel %vm4894, %v4837, 0
    %v4920 = vsel %vm4894, %v4838, 0
    %v4923 = vsel %vm4894, %v4839, 0
    %v4926 = vsel %vm4894, %v4840, 0
    %v4929 = vsel %vm4894, %v4841, 0
    %v4932 = vsel %vm4894, %v4842, 0
    %v4935 = vsel %vm4894, %v4843, 0
    %v4938 = vsel %vm4894, %v4844, 0
    %v4941 = vsel %vm4894, %v4845, 0
    %v4944 = vsel %vm4894, %v4846, 0
    %v4947 = vsel %vm4894, %v4847, 0
    %v4950 = vsel %vm4894, %v4848, 0
    %v4953 = vsel %vm4894, %v4849, 0
    %v4956 = vsel %vm4894, %v4850, 0
    %v4959 = vsel %vm4894, %v4851, 0
    %v4962 = vsel %vm4894, %v4852, 0
    %v4965 = vsel %vm4894, %v4853, 0
    %v4968 = vsel %vm4894, %v4854, 0
    %v4971 = vsel %vm4894, %v4855, 0
    %v4974 = vsel %vm4894, %v4856, 0
    %v4977 = vsel %vm4894, %v4857, 0
    %v4980 = vsel %vm4894, %v4858, 0
    %v4983 = vsel %vm4894, %v4859, 0
    %v4986 = vsel %vm4894, %v4860, 0
    %v4989 = vsel %vm4894, %v4861, 0
    %v4992 = vsel %vm4894, %v4862, 0
    %v4995 = vsel %vm4894, %v4863, 0
    %v4998 = vsel %vm4894, %v4864, 0
    %v5001 = vsel %vm4894, %v4865, 0
    %v5004 = vsel %vm4894, %v4866, 0
    %v5007 = vsel %vm4894, %v4867, 0
    %v5010 = vsel %vm4894, %v4868, 0
    %v5013 = vsel %vm4894, %v4869, 0
    %v5016 = vsel %vm4894, %v4870, 0
    %v5019 = vsel %vm4894, %v4871, 0
    %v5022 = vsel %vm4894, %v4872, 0
    %v5025 = vsel %vm4894, %v4873, 0
    %v5028 = vsel %vm4894, %v4874, 0
    %v5031 = vsel %vm4894, %v4875, 0
    %v5034 = vsel %vm4894, %v4876, 0
    %v5037 = vsel %vm4894, %v4877, 0
    %v5040 = vsel %vm4894, %v4878, 0
    %v5043 = vsel %vm4894, %v4879, 0
    %v5046 = vsel %vm4894, %v4880, 0
    %v5049 = vsel %vm4894, %v4881, 0
    %v5052 = vsel %vm4894, %v4882, 0
    %v5055 = vsel %vm4894, %v4883, 0
    %v5058 = vsel %vm4894, %v4884, 0
    %v5061 = vsel %vm4894, %v4885, 0
    %v5064 = vsel %vm4894, %v4886, 0
    %v5067 = vsel %vm4894, %v4887, 0
    %v5070 = vsel %vm4894, %v4888, 0
    %v5073 = vsel %vm4894, %v4889, 0
    %v5076 = vsel %vm4894, %v4890, 0
    %v5079 = vsel %vm4894, %v4891, 0
    %v5082 = vsel %vm4894, %v4892, 0
    %v5085 = vsel %vm4894, %v4893, 0
    %5087 = vmatprep.subr.mxu0 0.0
    %5088 = vmatpush1.msra.mxu0 0.0
    %5089 = vmatprep.subr.mxu0 0.0
    %5090 = vmatpush1.msra.mxu0 0.0
    %5091 = vmatprep.subr.mxu0 0.0
    %5092 = vmatpush1.msra.mxu0 0.0
    %5093 = vmatprep.subr.mxu0 0.0
    %5094 = vmatpush1.msra.mxu0 0.0
    %5095 = vmatprep.subr.mxu0 0.0
    %5096 = vmatpush1.msra.mxu0 0.0
    %5097 = vmatprep.subr.mxu0 0.0
    %5098 = vmatpush1.msra.mxu0 0.0
    %5099 = vmatprep.subr.mxu0 0.0
    %5100 = vmatpush1.msra.mxu0 0.0
    %5101 = vmatprep.subr.mxu0 0.0
    %5102 = vmatpush1.msra.mxu0 %v3267
    %5103 = vmatprep.subr.mxu0 0.0
    %5104 = vmatpush1.msra.mxu0 %v3266
    %5105 = vmatprep.subr.mxu0 0.0
    %5106 = vmatpush1.msra.mxu0 %v3265
    %5107 = vmatprep.subr.mxu0 0.0
    %5108 = vmatpush1.msra.mxu0 %v3264
    %5109 = vmatprep.subr.mxu0 0.0
    %5110 = vmatpush1.msra.mxu0 %v3263
    %5111 = vmatprep.subr.mxu0 0.0
    %5112 = vmatpush1.msra.mxu0 %v3262
    %5113 = vmatprep.subr.mxu0 0.0
    %5114 = vmatpush1.msra.mxu0 %v3261
    %5115 = vmatprep.subr.mxu0 0.0
    %5116 = vmatpush1.msra.mxu0 %v3260
    %5117 = vmatprep.subr.mxu0 0.0
    %5118 = vmatpush1.msra.mxu0 %v3259
    %5119 = vmatprep.subr.mxu0 0.0
    %5120 = vmatpush2.msra.mxu0 0.0
    %5121 = vmatprep.subr.mxu0 0.0
    %5122 = vmatpush2.msra.mxu0 0.0
    %5123 = vmatprep.subr.mxu0 0.0
    %5124 = vmatpush2.msra.mxu0 0.0
    %5125 = vmatprep.subr.mxu0 0.0
    %5126 = vmatpush2.msra.mxu0 0.0
    %5127 = vmatprep.subr.mxu0 0.0
    %5128 = vmatpush2.msra.mxu0 0.0
    %5129 = vmatprep.subr.mxu0 0.0
    %5130 = vmatpush2.msra.mxu0 0.0
    %5131 = vmatprep.subr.mxu0 0.0
    %5132 = vmatpush2.msra.mxu0 0.0
    %5133 = vmatprep.subr.mxu0 0.0
    %5134 = vmatpush2.msra.mxu0 0.0
    %5135 = vmatprep.subr.mxu0 0.0
    %5136 = vmatpush2.msra.mxu0 0.0
    %5137 = vmatprep.subr.mxu0 0.0
    %5138 = vmatpush2.msra.mxu0 0.0
    %5139 = vmatprep.subr.mxu0 0.0
    %5140 = vmatpush2.msra.mxu0 0.0
    %5141 = vmatprep.subr.mxu0 0.0
    %5142 = vmatpush2.msra.mxu0 0.0
    %5143 = vmatprep.subr.mxu0 0.0
    %5144 = vmatpush2.msra.mxu0 0.0
    %5145 = vmatprep.subr.mxu0 0.0
    %5146 = vmatpush2.msra.mxu0 0.0
    %5147 = vmatprep.subr.mxu0 0.0
    %5148 = vmatpush2.msra.mxu0 0.0
    %5149 = vmatprep.subr.mxu0 0.0
    %5150 = vmatpush2.msra.mxu0 0.0
    %5151 = vmatprep.mubr.f32.mxu0 0.0
    %5152 = vmatmul.mubr.f32.gmra.mxu0 %v4896
    %v5153 = vpop.f32.mrf.mxu0
    %v5154 = vadd.f32 0.0, %v5153
    %v5155 = vpop.f32.mrf.mxu0
    %5156 = vmatprep.mubr.f32.mxu0 0.0
    %5157 = vmatmul.mubr.f32.gmra.mxu0 %v4899
    %v5158 = vpop.f32.mrf.mxu0
    %v5159 = vadd.f32 0.0, %v5158
    %v5160 = vpop.f32.mrf.mxu0
    %5161 = vmatprep.mubr.f32.mxu0 0.0
    %5162 = vmatmul.mubr.f32.gmra.mxu0 %v4902
    %v5163 = vpop.f32.mrf.mxu0
    %v5164 = vadd.f32 0.0, %v5163
    %v5165 = vpop.f32.mrf.mxu0
    %5166 = vmatprep.mubr.f32.mxu0 0.0
    %5167 = vmatmul.mubr.f32.gmra.mxu0 %v4905
    %v5168 = vpop.f32.mrf.mxu0
    %v5169 = vadd.f32 0.0, %v5168
    %v5170 = vpop.f32.mrf.mxu0
    %5171 = vmatprep.mubr.f32.mxu0 0.0
    %5172 = vmatmul.mubr.f32.gmra.mxu0 %v4908
    %v5173 = vpop.f32.mrf.mxu0
    %v5174 = vadd.f32 0.0, %v5173
    %v5175 = vpop.f32.mrf.mxu0
    %5176 = vmatprep.mubr.f32.mxu0 0.0
    %5177 = vmatmul.mubr.f32.gmra.mxu0 %v4911
    %v5178 = vpop.f32.mrf.mxu0
    %v5179 = vadd.f32 0.0, %v5178
    %v5180 = vpop.f32.mrf.mxu0
    %5181 = vmatprep.mubr.f32.mxu0 0.0
    %5182 = vmatmul.mubr.f32.gmra.mxu0 %v4914
    %v5183 = vpop.f32.mrf.mxu0
    %v5184 = vadd.f32 0.0, %v5183
    %v5185 = vpop.f32.mrf.mxu0
    %5186 = vmatprep.mubr.f32.mxu0 0.0
    %5187 = vmatmul.mubr.f32.gmra.mxu0 %v4917
    %v5188 = vpop.f32.mrf.mxu0
    %v5189 = vadd.f32 0.0, %v5188
    %v5190 = vpop.f32.mrf.mxu0
    %5191 = vmatprep.mubr.f32.mxu0 0.0
    %5192 = vmatmul.mubr.f32.gmra.mxu0 %v4920
    %v5193 = vpop.f32.mrf.mxu0
    %v5194 = vadd.f32 0.0, %v5193
    %v5195 = vpop.f32.mrf.mxu0
    %5196 = vmatprep.mubr.f32.mxu0 0.0
    %5197 = vmatmul.mubr.f32.gmra.mxu0 %v4923
    %v5198 = vpop.f32.mrf.mxu0
    %v5199 = vadd.f32 0.0, %v5198
    %v5200 = vpop.f32.mrf.mxu0
    %5201 = vmatprep.mubr.f32.mxu0 0.0
    %5202 = vmatmul.mubr.f32.gmra.mxu0 %v4926
    %v5203 = vpop.f32.mrf.mxu0
    %v5204 = vadd.f32 0.0, %v5203
    %v5205 = vpop.f32.mrf.mxu0
    %5206 = vmatprep.mubr.f32.mxu0 0.0
    %5207 = vmatmul.mubr.f32.gmra.mxu0 %v4929
    %v5208 = vpop.f32.mrf.mxu0
    %v5209 = vadd.f32 0.0, %v5208
    %v5210 = vpop.f32.mrf.mxu0
    %5211 = vmatprep.mubr.f32.mxu0 0.0
    %5212 = vmatmul.mubr.f32.gmra.mxu0 %v4932
    %v5213 = vpop.f32.mrf.mxu0
    %v5214 = vadd.f32 0.0, %v5213
    %v5215 = vpop.f32.mrf.mxu0
    %5216 = vmatprep.mubr.f32.mxu0 0.0
    %5217 = vmatmul.mubr.f32.gmra.mxu0 %v4935
    %v5218 = vpop.f32.mrf.mxu0
    %v5219 = vadd.f32 0.0, %v5218
    %v5220 = vpop.f32.mrf.mxu0
    %5221 = vmatprep.mubr.f32.mxu0 0.0
    %5222 = vmatmul.mubr.f32.gmra.mxu0 %v4938
    %v5223 = vpop.f32.mrf.mxu0
    %v5224 = vadd.f32 0.0, %v5223
    %v5225 = vpop.f32.mrf.mxu0
    %5226 = vmatprep.mubr.f32.mxu0 0.0
    %5227 = vmatmul.mubr.f32.gmra.mxu0 %v4941
    %v5228 = vpop.f32.mrf.mxu0
    %v5229 = vadd.f32 0.0, %v5228
    %v5230 = vpop.f32.mrf.mxu0
    %5231 = vmatprep.mubr.f32.mxu0 0.0
    %5232 = vmatmul.mubr.f32.gmra.mxu0 %v4944
    %v5233 = vpop.f32.mrf.mxu0
    %v5234 = vadd.f32 0.0, %v5233
    %v5235 = vpop.f32.mrf.mxu0
    %5236 = vmatprep.mubr.f32.mxu0 0.0
    %5237 = vmatmul.mubr.f32.gmra.mxu0 %v4947
    %v5238 = vpop.f32.mrf.mxu0
    %v5239 = vadd.f32 0.0, %v5238
    %v5240 = vpop.f32.mrf.mxu0
    %5241 = vmatprep.mubr.f32.mxu0 0.0
    %5242 = vmatmul.mubr.f32.gmra.mxu0 %v4950
    %v5243 = vpop.f32.mrf.mxu0
    %v5244 = vadd.f32 0.0, %v5243
    %v5245 = vpop.f32.mrf.mxu0
    %5246 = vmatprep.mubr.f32.mxu0 0.0
    %5247 = vmatmul.mubr.f32.gmra.mxu0 %v4953
    %v5248 = vpop.f32.mrf.mxu0
    %v5249 = vadd.f32 0.0, %v5248
    %v5250 = vpop.f32.mrf.mxu0
    %5251 = vmatprep.mubr.f32.mxu0 0.0
    %5252 = vmatmul.mubr.f32.gmra.mxu0 %v4956
    %v5253 = vpop.f32.mrf.mxu0
    %v5254 = vadd.f32 0.0, %v5253
    %v5255 = vpop.f32.mrf.mxu0
    %5256 = vmatprep.mubr.f32.mxu0 0.0
    %5257 = vmatmul.mubr.f32.gmra.mxu0 %v4959
    %v5258 = vpop.f32.mrf.mxu0
    %v5259 = vadd.f32 0.0, %v5258
    %v5260 = vpop.f32.mrf.mxu0
    %5261 = vmatprep.mubr.f32.mxu0 0.0
    %5262 = vmatmul.mubr.f32.gmra.mxu0 %v4962
    %v5263 = vpop.f32.mrf.mxu0
    %v5264 = vadd.f32 0.0, %v5263
    %v5265 = vpop.f32.mrf.mxu0
    %5266 = vmatprep.mubr.f32.mxu0 0.0
    %5267 = vmatmul.mubr.f32.gmra.mxu0 %v4965
    %v5268 = vpop.f32.mrf.mxu0
    %v5269 = vadd.f32 0.0, %v5268
    %v5270 = vpop.f32.mrf.mxu0
    %5271 = vmatprep.mubr.f32.mxu0 0.0
    %5272 = vmatmul.mubr.f32.gmra.mxu0 %v4968
    %v5273 = vpop.f32.mrf.mxu0
    %v5274 = vadd.f32 0.0, %v5273
    %v5275 = vpop.f32.mrf.mxu0
    %5276 = vmatprep.mubr.f32.mxu0 0.0
    %5277 = vmatmul.mubr.f32.gmra.mxu0 %v4971
    %v5278 = vpop.f32.mrf.mxu0
    %v5279 = vadd.f32 0.0, %v5278
    %v5280 = vpop.f32.mrf.mxu0
    %5281 = vmatprep.mubr.f32.mxu0 0.0
    %5282 = vmatmul.mubr.f32.gmra.mxu0 %v4974
    %v5283 = vpop.f32.mrf.mxu0
    %v5284 = vadd.f32 0.0, %v5283
    %v5285 = vpop.f32.mrf.mxu0
    %5286 = vmatprep.mubr.f32.mxu0 0.0
    %5287 = vmatmul.mubr.f32.gmra.mxu0 %v4977
    %v5288 = vpop.f32.mrf.mxu0
    %v5289 = vadd.f32 0.0, %v5288
    %v5290 = vpop.f32.mrf.mxu0
    %5291 = vmatprep.mubr.f32.mxu0 0.0
    %5292 = vmatmul.mubr.f32.gmra.mxu0 %v4980
    %v5293 = vpop.f32.mrf.mxu0
    %v5294 = vadd.f32 0.0, %v5293
    %v5295 = vpop.f32.mrf.mxu0
    %5296 = vmatprep.mubr.f32.mxu0 0.0
    %5297 = vmatmul.mubr.f32.gmra.mxu0 %v4983
    %v5298 = vpop.f32.mrf.mxu0
    %v5299 = vadd.f32 0.0, %v5298
    %v5300 = vpop.f32.mrf.mxu0
    %5301 = vmatprep.mubr.f32.mxu0 0.0
    %5302 = vmatmul.mubr.f32.gmra.mxu0 %v4986
    %v5303 = vpop.f32.mrf.mxu0
    %v5304 = vadd.f32 0.0, %v5303
    %v5305 = vpop.f32.mrf.mxu0
    %5306 = vmatprep.mubr.f32.mxu0 0.0
    %5307 = vmatmul.mubr.f32.gmra.mxu0 %v4989
    %v5308 = vpop.f32.mrf.mxu0
    %v5309 = vadd.f32 0.0, %v5308
    %v5310 = vpop.f32.mrf.mxu0
    %5311 = vmatprep.mubr.f32.mxu0 0.0
    %5312 = vmatmul.mubr.f32.gmra.mxu0 %v4992
    %v5313 = vpop.f32.mrf.mxu0
    %v5314 = vadd.f32 0.0, %v5313
    %v5315 = vpop.f32.mrf.mxu0
    %5316 = vmatprep.mubr.f32.mxu0 0.0
    %5317 = vmatmul.mubr.f32.gmra.mxu0 %v4995
    %v5318 = vpop.f32.mrf.mxu0
    %v5319 = vadd.f32 0.0, %v5318
    %v5320 = vpop.f32.mrf.mxu0
    %5321 = vmatprep.mubr.f32.mxu0 0.0
    %5322 = vmatmul.mubr.f32.gmra.mxu0 %v4998
    %v5323 = vpop.f32.mrf.mxu0
    %v5324 = vadd.f32 0.0, %v5323
    %v5325 = vpop.f32.mrf.mxu0
    %5326 = vmatprep.mubr.f32.mxu0 0.0
    %5327 = vmatmul.mubr.f32.gmra.mxu0 %v5001
    %v5328 = vpop.f32.mrf.mxu0
    %v5329 = vadd.f32 0.0, %v5328
    %v5330 = vpop.f32.mrf.mxu0
    %5331 = vmatprep.mubr.f32.mxu0 0.0
    %5332 = vmatmul.mubr.f32.gmra.mxu0 %v5004
    %v5333 = vpop.f32.mrf.mxu0
    %v5334 = vadd.f32 0.0, %v5333
    %v5335 = vpop.f32.mrf.mxu0
    %5336 = vmatprep.mubr.f32.mxu0 0.0
    %5337 = vmatmul.mubr.f32.gmra.mxu0 %v5007
    %v5338 = vpop.f32.mrf.mxu0
    %v5339 = vadd.f32 0.0, %v5338
    %v5340 = vpop.f32.mrf.mxu0
    %5341 = vmatprep.mubr.f32.mxu0 0.0
    %5342 = vmatmul.mubr.f32.gmra.mxu0 %v5010
    %v5343 = vpop.f32.mrf.mxu0
    %v5344 = vadd.f32 0.0, %v5343
    %v5345 = vpop.f32.mrf.mxu0
    %5346 = vmatprep.mubr.f32.mxu0 0.0
    %5347 = vmatmul.mubr.f32.gmra.mxu0 %v5013
    %v5348 = vpop.f32.mrf.mxu0
    %v5349 = vadd.f32 0.0, %v5348
    %v5350 = vpop.f32.mrf.mxu0
    %5351 = vmatprep.mubr.f32.mxu0 0.0
    %5352 = vmatmul.mubr.f32.gmra.mxu0 %v5016
    %v5353 = vpop.f32.mrf.mxu0
    %v5354 = vadd.f32 0.0, %v5353
    %v5355 = vpop.f32.mrf.mxu0
    %5356 = vmatprep.mubr.f32.mxu0 0.0
    %5357 = vmatmul.mubr.f32.gmra.mxu0 %v5019
    %v5358 = vpop.f32.mrf.mxu0
    %v5359 = vadd.f32 0.0, %v5358
    %v5360 = vpop.f32.mrf.mxu0
    %5361 = vmatprep.mubr.f32.mxu0 0.0
    %5362 = vmatmul.mubr.f32.gmra.mxu0 %v5022
    %v5363 = vpop.f32.mrf.mxu0
    %v5364 = vadd.f32 0.0, %v5363
    %v5365 = vpop.f32.mrf.mxu0
    %5366 = vmatprep.mubr.f32.mxu0 0.0
    %5367 = vmatmul.mubr.f32.gmra.mxu0 %v5025
    %v5368 = vpop.f32.mrf.mxu0
    %v5369 = vadd.f32 0.0, %v5368
    %v5370 = vpop.f32.mrf.mxu0
    %5371 = vmatprep.mubr.f32.mxu0 0.0
    %5372 = vmatmul.mubr.f32.gmra.mxu0 %v5028
    %v5373 = vpop.f32.mrf.mxu0
    %v5374 = vadd.f32 0.0, %v5373
    %v5375 = vpop.f32.mrf.mxu0
    %5376 = vmatprep.mubr.f32.mxu0 0.0
    %5377 = vmatmul.mubr.f32.gmra.mxu0 %v5031
    %v5378 = vpop.f32.mrf.mxu0
    %v5379 = vadd.f32 0.0, %v5378
    %v5380 = vpop.f32.mrf.mxu0
    %5381 = vmatprep.mubr.f32.mxu0 0.0
    %5382 = vmatmul.mubr.f32.gmra.mxu0 %v5034
    %v5383 = vpop.f32.mrf.mxu0
    %v5384 = vadd.f32 0.0, %v5383
    %v5385 = vpop.f32.mrf.mxu0
    %5386 = vmatprep.mubr.f32.mxu0 0.0
    %5387 = vmatmul.mubr.f32.gmra.mxu0 %v5037
    %v5388 = vpop.f32.mrf.mxu0
    %v5389 = vadd.f32 0.0, %v5388
    %v5390 = vpop.f32.mrf.mxu0
    %5391 = vmatprep.mubr.f32.mxu0 0.0
    %5392 = vmatmul.mubr.f32.gmra.mxu0 %v5040
    %v5393 = vpop.f32.mrf.mxu0
    %v5394 = vadd.f32 0.0, %v5393
    %v5395 = vpop.f32.mrf.mxu0
    %5396 = vmatprep.mubr.f32.mxu0 0.0
    %5397 = vmatmul.mubr.f32.gmra.mxu0 %v5043
    %v5398 = vpop.f32.mrf.mxu0
    %v5399 = vadd.f32 0.0, %v5398
    %v5400 = vpop.f32.mrf.mxu0
    %5401 = vmatprep.mubr.f32.mxu0 0.0
    %5402 = vmatmul.mubr.f32.gmra.mxu0 %v5046
    %v5403 = vpop.f32.mrf.mxu0
    %v5404 = vadd.f32 0.0, %v5403
    %v5405 = vpop.f32.mrf.mxu0
    %5406 = vmatprep.mubr.f32.mxu0 0.0
    %5407 = vmatmul.mubr.f32.gmra.mxu0 %v5049
    %v5408 = vpop.f32.mrf.mxu0
    %v5409 = vadd.f32 0.0, %v5408
    %v5410 = vpop.f32.mrf.mxu0
    %5411 = vmatprep.mubr.f32.mxu0 0.0
    %5412 = vmatmul.mubr.f32.gmra.mxu0 %v5052
    %v5413 = vpop.f32.mrf.mxu0
    %v5414 = vadd.f32 0.0, %v5413
    %v5415 = vpop.f32.mrf.mxu0
    %5416 = vmatprep.mubr.f32.mxu0 0.0
    %5417 = vmatmul.mubr.f32.gmra.mxu0 %v5055
    %v5418 = vpop.f32.mrf.mxu0
    %v5419 = vadd.f32 0.0, %v5418
    %v5420 = vpop.f32.mrf.mxu0
    %5421 = vmatprep.mubr.f32.mxu0 0.0
    %5422 = vmatmul.mubr.f32.gmra.mxu0 %v5058
    %v5423 = vpop.f32.mrf.mxu0
    %v5424 = vadd.f32 0.0, %v5423
    %v5425 = vpop.f32.mrf.mxu0
    %5426 = vmatprep.mubr.f32.mxu0 0.0
    %5427 = vmatmul.mubr.f32.gmra.mxu0 %v5061
    %v5428 = vpop.f32.mrf.mxu0
    %v5429 = vadd.f32 0.0, %v5428
    %v5430 = vpop.f32.mrf.mxu0
    %5431 = vmatprep.mubr.f32.mxu0 0.0
    %5432 = vmatmul.mubr.f32.gmra.mxu0 %v5064
    %v5433 = vpop.f32.mrf.mxu0
    %v5434 = vadd.f32 0.0, %v5433
    %v5435 = vpop.f32.mrf.mxu0
    %5436 = vmatprep.mubr.f32.mxu0 0.0
    %5437 = vmatmul.mubr.f32.gmra.mxu0 %v5067
    %v5438 = vpop.f32.mrf.mxu0
    %v5439 = vadd.f32 0.0, %v5438
    %v5440 = vpop.f32.mrf.mxu0
    %5441 = vmatprep.mubr.f32.mxu0 0.0
    %5442 = vmatmul.mubr.f32.gmra.mxu0 %v5070
    %v5443 = vpop.f32.mrf.mxu0
    %v5444 = vadd.f32 0.0, %v5443
    %v5445 = vpop.f32.mrf.mxu0
    %5446 = vmatprep.mubr.f32.mxu0 0.0
    %5447 = vmatmul.mubr.f32.gmra.mxu0 %v5073
    %v5448 = vpop.f32.mrf.mxu0
    %v5449 = vadd.f32 0.0, %v5448
    %v5450 = vpop.f32.mrf.mxu0
    %5451 = vmatprep.mubr.f32.mxu0 0.0
    %5452 = vmatmul.mubr.f32.gmra.mxu0 %v5076
    %v5453 = vpop.f32.mrf.mxu0
    %v5454 = vadd.f32 0.0, %v5453
    %v5455 = vpop.f32.mrf.mxu0
    %5456 = vmatprep.mubr.f32.mxu0 0.0
    %5457 = vmatmul.mubr.f32.gmra.mxu0 %v5079
    %v5458 = vpop.f32.mrf.mxu0
    %v5459 = vadd.f32 0.0, %v5458
    %v5460 = vpop.f32.mrf.mxu0
    %5461 = vmatprep.mubr.f32.mxu0 0.0
    %5462 = vmatmul.mubr.f32.gmra.mxu0 %v5082
    %v5463 = vpop.f32.mrf.mxu0
    %v5464 = vadd.f32 0.0, %v5463
    %v5465 = vpop.f32.mrf.mxu0
    %5466 = vmatprep.mubr.f32.mxu0 0.0
    %5467 = vmatmul.mubr.f32.gmra.mxu0 %v5085
    %v5468 = vpop.f32.mrf.mxu0
    %v5469 = vadd.f32 0.0, %v5468
    %v5470 = vpop.f32.mrf.mxu0
    %5471 = vdwg.mxu0
    %v5472 = vsel %vm1107, %v5154, 0.0
    %v5473 = vsel %vm1107, %v5159, 0.0
    %v5474 = vadd.f32 %v5472, %v5473
    %v5475 = vsel %vm1107, %v5164, 0.0
    %v5476 = vadd.f32 %v5474, %v5475
    %v5477 = vsel %vm1107, %v5169, 0.0
    %v5478 = vadd.f32 %v5476, %v5477
    %v5479 = vsel %vm1107, %v5174, 0.0
    %v5480 = vadd.f32 %v5478, %v5479
    %v5481 = vsel %vm1107, %v5179, 0.0
    %v5482 = vadd.f32 %v5480, %v5481
    %v5483 = vsel %vm1107, %v5184, 0.0
    %v5484 = vadd.f32 %v5482, %v5483
    %v5485 = vsel %vm1107, %v5189, 0.0
    %v5486 = vadd.f32 %v5484, %v5485
    %v5487 = vsel %vm1107, %v5194, 0.0
    %v5488 = vadd.f32 %v5486, %v5487
    %v5489 = vsel %vm1107, %v5199, 0.0
    %v5490 = vadd.f32 %v5488, %v5489
    %v5491 = vsel %vm1107, %v5204, 0.0
    %v5492 = vadd.f32 %v5490, %v5491
    %v5493 = vsel %vm1107, %v5209, 0.0
    %v5494 = vadd.f32 %v5492, %v5493
    %v5495 = vsel %vm1107, %v5214, 0.0
    %v5496 = vadd.f32 %v5494, %v5495
    %v5497 = vsel %vm1107, %v5219, 0.0
    %v5498 = vadd.f32 %v5496, %v5497
    %v5499 = vsel %vm1107, %v5224, 0.0
    %v5500 = vadd.f32 %v5498, %v5499
    %v5501 = vsel %vm1107, %v5229, 0.0
    %v5502 = vadd.f32 %v5500, %v5501
    %v5503 = vsel %vm1107, %v5234, 0.0
    %v5504 = vadd.f32 %v5502, %v5503
    %v5505 = vsel %vm1107, %v5239, 0.0
    %v5506 = vadd.f32 %v5504, %v5505
    %v5507 = vsel %vm1107, %v5244, 0.0
    %v5508 = vadd.f32 %v5506, %v5507
    %v5509 = vsel %vm1107, %v5249, 0.0
    %v5510 = vadd.f32 %v5508, %v5509
    %v5511 = vsel %vm1107, %v5254, 0.0
    %v5512 = vadd.f32 %v5510, %v5511
    %v5513 = vsel %vm1107, %v5259, 0.0
    %v5514 = vadd.f32 %v5512, %v5513
    %v5515 = vsel %vm1107, %v5264, 0.0
    %v5516 = vadd.f32 %v5514, %v5515
    %v5517 = vsel %vm1107, %v5269, 0.0
    %v5518 = vadd.f32 %v5516, %v5517
    %v5519 = vsel %vm1107, %v5274, 0.0
    %v5520 = vadd.f32 %v5518, %v5519
    %v5521 = vsel %vm1107, %v5279, 0.0
    %v5522 = vadd.f32 %v5520, %v5521
    %v5523 = vsel %vm1107, %v5284, 0.0
    %v5524 = vadd.f32 %v5522, %v5523
    %v5525 = vsel %vm1107, %v5289, 0.0
    %v5526 = vadd.f32 %v5524, %v5525
    %v5527 = vsel %vm1107, %v5294, 0.0
    %v5528 = vadd.f32 %v5526, %v5527
    %v5529 = vsel %vm1107, %v5299, 0.0
    %v5530 = vadd.f32 %v5528, %v5529
    %v5531 = vsel %vm1107, %v5304, 0.0
    %v5532 = vadd.f32 %v5530, %v5531
    %v5533 = vsel %vm1107, %v5309, 0.0
    %v5534 = vadd.f32 %v5532, %v5533
    %v5535 = vsel %vm1107, %v5314, 0.0
    %v5536 = vadd.f32 %v5534, %v5535
    %v5537 = vsel %vm1107, %v5319, 0.0
    %v5538 = vadd.f32 %v5536, %v5537
    %v5539 = vsel %vm1107, %v5324, 0.0
    %v5540 = vadd.f32 %v5538, %v5539
    %v5541 = vsel %vm1107, %v5329, 0.0
    %v5542 = vadd.f32 %v5540, %v5541
    %v5543 = vsel %vm1107, %v5334, 0.0
    %v5544 = vadd.f32 %v5542, %v5543
    %v5545 = vsel %vm1107, %v5339, 0.0
    %v5546 = vadd.f32 %v5544, %v5545
    %v5547 = vsel %vm1107, %v5344, 0.0
    %v5548 = vadd.f32 %v5546, %v5547
    %v5549 = vsel %vm1107, %v5349, 0.0
    %v5550 = vadd.f32 %v5548, %v5549
    %v5551 = vsel %vm1107, %v5354, 0.0
    %v5552 = vadd.f32 %v5550, %v5551
    %v5553 = vsel %vm1107, %v5359, 0.0
    %v5554 = vadd.f32 %v5552, %v5553
    %v5555 = vsel %vm1107, %v5364, 0.0
    %v5556 = vadd.f32 %v5554, %v5555
    %v5557 = vsel %vm1107, %v5369, 0.0
    %v5558 = vadd.f32 %v5556, %v5557
    %v5559 = vsel %vm1107, %v5374, 0.0
    %v5560 = vadd.f32 %v5558, %v5559
    %v5561 = vsel %vm1107, %v5379, 0.0
    %v5562 = vadd.f32 %v5560, %v5561
    %v5563 = vsel %vm1107, %v5384, 0.0
    %v5564 = vadd.f32 %v5562, %v5563
    %v5565 = vsel %vm1107, %v5389, 0.0
    %v5566 = vadd.f32 %v5564, %v5565
    %v5567 = vsel %vm1107, %v5394, 0.0
    %v5568 = vadd.f32 %v5566, %v5567
    %v5569 = vsel %vm1107, %v5399, 0.0
    %v5570 = vadd.f32 %v5568, %v5569
    %v5571 = vsel %vm1107, %v5404, 0.0
    %v5572 = vadd.f32 %v5570, %v5571
    %v5573 = vsel %vm1107, %v5409, 0.0
    %v5574 = vadd.f32 %v5572, %v5573
    %v5575 = vsel %vm1107, %v5414, 0.0
    %v5576 = vadd.f32 %v5574, %v5575
    %v5577 = vsel %vm1107, %v5419, 0.0
    %v5578 = vadd.f32 %v5576, %v5577
    %v5579 = vsel %vm1107, %v5424, 0.0
    %v5580 = vadd.f32 %v5578, %v5579
    %v5581 = vsel %vm1107, %v5429, 0.0
    %v5582 = vadd.f32 %v5580, %v5581
    %v5583 = vsel %vm1107, %v5434, 0.0
    %v5584 = vadd.f32 %v5582, %v5583
    %v5585 = vsel %vm1107, %v5439, 0.0
    %v5586 = vadd.f32 %v5584, %v5585
    %v5587 = vsel %vm1107, %v5444, 0.0
    %v5588 = vadd.f32 %v5586, %v5587
    %v5589 = vsel %vm1107, %v5449, 0.0
    %v5590 = vadd.f32 %v5588, %v5589
    %v5591 = vsel %vm1107, %v5454, 0.0
    %v5592 = vadd.f32 %v5590, %v5591
    %v5593 = vsel %vm1107, %v5459, 0.0
    %v5594 = vadd.f32 %v5592, %v5593
    %v5595 = vsel %vm1107, %v5464, 0.0
    %v5596 = vadd.f32 %v5594, %v5595
    %v5597 = vsel %vm1107, %v5469, 0.0
    %v5598 = vadd.f32 %v5596, %v5597
    %v5599 = vrot.slane %v5598, 4
    %v5600 = vadd.f32 %v5598, %v5599
    %v5601 = vrot.slane %v5600, 2
    %v5602 = vadd.f32 %v5600, %v5601
    %v5603 = vrot.slane %v5602, 1
    %v5604 = vadd.f32 %v5602, %v5603
    %v5605 = vmul.f32 %v5604, %v2477
    %v5606 = vsub.f32 %v5154, %v5605
    %v5607 = vsub.f32 %v5159, %v5605
    %v5608 = vsub.f32 %v5164, %v5605
    %v5609 = vsub.f32 %v5169, %v5605
    %v5610 = vsub.f32 %v5174, %v5605
    %v5611 = vsub.f32 %v5179, %v5605
    %v5612 = vsub.f32 %v5184, %v5605
    %v5613 = vsub.f32 %v5189, %v5605
    %v5614 = vsub.f32 %v5194, %v5605
    %v5615 = vsub.f32 %v5199, %v5605
    %v5616 = vsub.f32 %v5204, %v5605
    %v5617 = vsub.f32 %v5209, %v5605
    %v5618 = vsub.f32 %v5214, %v5605
    %v5619 = vsub.f32 %v5219, %v5605
    %v5620 = vsub.f32 %v5224, %v5605
    %v5621 = vsub.f32 %v5229, %v5605
    %v5622 = vsub.f32 %v5234, %v5605
    %v5623 = vsub.f32 %v5239, %v5605
    %v5624 = vsub.f32 %v5244, %v5605
    %v5625 = vsub.f32 %v5249, %v5605
    %v5626 = vsub.f32 %v5254, %v5605
    %v5627 = vsub.f32 %v5259, %v5605
    %v5628 = vsub.f32 %v5264, %v5605
    %v5629 = vsub.f32 %v5269, %v5605
    %v5630 = vsub.f32 %v5274, %v5605
    %v5631 = vsub.f32 %v5279, %v5605
    %v5632 = vsub.f32 %v5284, %v5605
    %v5633 = vsub.f32 %v5289, %v5605
    %v5634 = vsub.f32 %v5294, %v5605
    %v5635 = vsub.f32 %v5299, %v5605
    %v5636 = vsub.f32 %v5304, %v5605
    %v5637 = vsub.f32 %v5309, %v5605
    %v5638 = vsub.f32 %v5314, %v5605
    %v5639 = vsub.f32 %v5319, %v5605
    %v5640 = vsub.f32 %v5324, %v5605
    %v5641 = vsub.f32 %v5329, %v5605
    %v5642 = vsub.f32 %v5334, %v5605
    %v5643 = vsub.f32 %v5339, %v5605
    %v5644 = vsub.f32 %v5344, %v5605
    %v5645 = vsub.f32 %v5349, %v5605
    %v5646 = vsub.f32 %v5354, %v5605
    %v5647 = vsub.f32 %v5359, %v5605
    %v5648 = vsub.f32 %v5364, %v5605
    %v5649 = vsub.f32 %v5369, %v5605
    %v5650 = vsub.f32 %v5374, %v5605
    %v5651 = vsub.f32 %v5379, %v5605
    %v5652 = vsub.f32 %v5384, %v5605
    %v5653 = vsub.f32 %v5389, %v5605
    %v5654 = vsub.f32 %v5394, %v5605
    %v5655 = vsub.f32 %v5399, %v5605
    %v5656 = vsub.f32 %v5404, %v5605
    %v5657 = vsub.f32 %v5409, %v5605
    %v5658 = vsub.f32 %v5414, %v5605
    %v5659 = vsub.f32 %v5419, %v5605
    %v5660 = vsub.f32 %v5424, %v5605
    %v5661 = vsub.f32 %v5429, %v5605
    %v5662 = vsub.f32 %v5434, %v5605
    %v5663 = vsub.f32 %v5439, %v5605
    %v5664 = vsub.f32 %v5444, %v5605
    %v5665 = vsub.f32 %v5449, %v5605
    %v5666 = vsub.f32 %v5454, %v5605
    %v5667 = vsub.f32 %v5459, %v5605
    %v5668 = vsub.f32 %v5464, %v5605
    %v5669 = vsub.f32 %v5469, %v5605
    %v5670 = vmul.f32 %v5606, %v5606
    %v5671 = vmul.f32 %v5607, %v5607
    %v5672 = vmul.f32 %v5608, %v5608
    %v5673 = vmul.f32 %v5609, %v5609
    %v5674 = vmul.f32 %v5610, %v5610
    %v5675 = vmul.f32 %v5611, %v5611
    %v5676 = vmul.f32 %v5612, %v5612
    %v5677 = vmul.f32 %v5613, %v5613
    %v5678 = vmul.f32 %v5614, %v5614
    %v5679 = vmul.f32 %v5615, %v5615
    %v5680 = vmul.f32 %v5616, %v5616
    %v5681 = vmul.f32 %v5617, %v5617
    %v5682 = vmul.f32 %v5618, %v5618
    %v5683 = vmul.f32 %v5619, %v5619
    %v5684 = vmul.f32 %v5620, %v5620
    %v5685 = vmul.f32 %v5621, %v5621
    %v5686 = vmul.f32 %v5622, %v5622
    %v5687 = vmul.f32 %v5623, %v5623
    %v5688 = vmul.f32 %v5624, %v5624
    %v5689 = vmul.f32 %v5625, %v5625
    %v5690 = vmul.f32 %v5626, %v5626
    %v5691 = vmul.f32 %v5627, %v5627
    %v5692 = vmul.f32 %v5628, %v5628
    %v5693 = vmul.f32 %v5629, %v5629
    %v5694 = vmul.f32 %v5630, %v5630
    %v5695 = vmul.f32 %v5631, %v5631
    %v5696 = vmul.f32 %v5632, %v5632
    %v5697 = vmul.f32 %v5633, %v5633
    %v5698 = vmul.f32 %v5634, %v5634
    %v5699 = vmul.f32 %v5635, %v5635
    %v5700 = vmul.f32 %v5636, %v5636
    %v5701 = vmul.f32 %v5637, %v5637
    %v5702 = vmul.f32 %v5638, %v5638
    %v5703 = vmul.f32 %v5639, %v5639
    %v5704 = vmul.f32 %v5640, %v5640
    %v5705 = vmul.f32 %v5641, %v5641
    %v5706 = vmul.f32 %v5642, %v5642
    %v5707 = vmul.f32 %v5643, %v5643
    %v5708 = vmul.f32 %v5644, %v5644
    %v5709 = vmul.f32 %v5645, %v5645
    %v5710 = vmul.f32 %v5646, %v5646
    %v5711 = vmul.f32 %v5647, %v5647
    %v5712 = vmul.f32 %v5648, %v5648
    %v5713 = vmul.f32 %v5649, %v5649
    %v5714 = vmul.f32 %v5650, %v5650
    %v5715 = vmul.f32 %v5651, %v5651
    %v5716 = vmul.f32 %v5652, %v5652
    %v5717 = vmul.f32 %v5653, %v5653
    %v5718 = vmul.f32 %v5654, %v5654
    %v5719 = vmul.f32 %v5655, %v5655
    %v5720 = vmul.f32 %v5656, %v5656
    %v5721 = vmul.f32 %v5657, %v5657
    %v5722 = vmul.f32 %v5658, %v5658
    %v5723 = vmul.f32 %v5659, %v5659
    %v5724 = vmul.f32 %v5660, %v5660
    %v5725 = vmul.f32 %v5661, %v5661
    %v5726 = vmul.f32 %v5662, %v5662
    %v5727 = vmul.f32 %v5663, %v5663
    %v5728 = vmul.f32 %v5664, %v5664
    %v5729 = vmul.f32 %v5665, %v5665
    %v5730 = vmul.f32 %v5666, %v5666
    %v5731 = vmul.f32 %v5667, %v5667
    %v5732 = vmul.f32 %v5668, %v5668
    %v5733 = vmul.f32 %v5669, %v5669
    %v5734 = vsel %vm1107, %v5670, 0.0
    %v5735 = vsel %vm1107, %v5671, 0.0
    %v5736 = vadd.f32 %v5734, %v5735
    %v5737 = vsel %vm1107, %v5672, 0.0
    %v5738 = vadd.f32 %v5736, %v5737
    %v5739 = vsel %vm1107, %v5673, 0.0
    %v5740 = vadd.f32 %v5738, %v5739
    %v5741 = vsel %vm1107, %v5674, 0.0
    %v5742 = vadd.f32 %v5740, %v5741
    %v5743 = vsel %vm1107, %v5675, 0.0
    %v5744 = vadd.f32 %v5742, %v5743
    %v5745 = vsel %vm1107, %v5676, 0.0
    %v5746 = vadd.f32 %v5744, %v5745
    %v5747 = vsel %vm1107, %v5677, 0.0
    %v5748 = vadd.f32 %v5746, %v5747
    %v5749 = vsel %vm1107, %v5678, 0.0
    %v5750 = vadd.f32 %v5748, %v5749
    %v5751 = vsel %vm1107, %v5679, 0.0
    %v5752 = vadd.f32 %v5750, %v5751
    %v5753 = vsel %vm1107, %v5680, 0.0
    %v5754 = vadd.f32 %v5752, %v5753
    %v5755 = vsel %vm1107, %v5681, 0.0
    %v5756 = vadd.f32 %v5754, %v5755
    %v5757 = vsel %vm1107, %v5682, 0.0
    %v5758 = vadd.f32 %v5756, %v5757
    %v5759 = vsel %vm1107, %v5683, 0.0
    %v5760 = vadd.f32 %v5758, %v5759
    %v5761 = vsel %vm1107, %v5684, 0.0
    %v5762 = vadd.f32 %v5760, %v5761
    %v5763 = vsel %vm1107, %v5685, 0.0
    %v5764 = vadd.f32 %v5762, %v5763
    %v5765 = vsel %vm1107, %v5686, 0.0
    %v5766 = vadd.f32 %v5764, %v5765
    %v5767 = vsel %vm1107, %v5687, 0.0
    %v5768 = vadd.f32 %v5766, %v5767
    %v5769 = vsel %vm1107, %v5688, 0.0
    %v5770 = vadd.f32 %v5768, %v5769
    %v5771 = vsel %vm1107, %v5689, 0.0
    %v5772 = vadd.f32 %v5770, %v5771
    %v5773 = vsel %vm1107, %v5690, 0.0
    %v5774 = vadd.f32 %v5772, %v5773
    %v5775 = vsel %vm1107, %v5691, 0.0
    %v5776 = vadd.f32 %v5774, %v5775
    %v5777 = vsel %vm1107, %v5692, 0.0
    %v5778 = vadd.f32 %v5776, %v5777
    %v5779 = vsel %vm1107, %v5693, 0.0
    %v5780 = vadd.f32 %v5778, %v5779
    %v5781 = vsel %vm1107, %v5694, 0.0
    %v5782 = vadd.f32 %v5780, %v5781
    %v5783 = vsel %vm1107, %v5695, 0.0
    %v5784 = vadd.f32 %v5782, %v5783
    %v5785 = vsel %vm1107, %v5696, 0.0
    %v5786 = vadd.f32 %v5784, %v5785
    %v5787 = vsel %vm1107, %v5697, 0.0
    %v5788 = vadd.f32 %v5786, %v5787
    %v5789 = vsel %vm1107, %v5698, 0.0
    %v5790 = vadd.f32 %v5788, %v5789
    %v5791 = vsel %vm1107, %v5699, 0.0
    %v5792 = vadd.f32 %v5790, %v5791
    %v5793 = vsel %vm1107, %v5700, 0.0
    %v5794 = vadd.f32 %v5792, %v5793
    %v5795 = vsel %vm1107, %v5701, 0.0
    %v5796 = vadd.f32 %v5794, %v5795
    %v5797 = vsel %vm1107, %v5702, 0.0
    %v5798 = vadd.f32 %v5796, %v5797
    %v5799 = vsel %vm1107, %v5703, 0.0
    %v5800 = vadd.f32 %v5798, %v5799
    %v5801 = vsel %vm1107, %v5704, 0.0
    %v5802 = vadd.f32 %v5800, %v5801
    %v5803 = vsel %vm1107, %v5705, 0.0
    %v5804 = vadd.f32 %v5802, %v5803
    %v5805 = vsel %vm1107, %v5706, 0.0
    %v5806 = vadd.f32 %v5804, %v5805
    %v5807 = vsel %vm1107, %v5707, 0.0
    %v5808 = vadd.f32 %v5806, %v5807
    %v5809 = vsel %vm1107, %v5708, 0.0
    %v5810 = vadd.f32 %v5808, %v5809
    %v5811 = vsel %vm1107, %v5709, 0.0
    %v5812 = vadd.f32 %v5810, %v5811
    %v5813 = vsel %vm1107, %v5710, 0.0
    %v5814 = vadd.f32 %v5812, %v5813
    %v5815 = vsel %vm1107, %v5711, 0.0
    %v5816 = vadd.f32 %v5814, %v5815
    %v5817 = vsel %vm1107, %v5712, 0.0
    %v5818 = vadd.f32 %v5816, %v5817
    %v5819 = vsel %vm1107, %v5713, 0.0
    %v5820 = vadd.f32 %v5818, %v5819
    %v5821 = vsel %vm1107, %v5714, 0.0
    %v5822 = vadd.f32 %v5820, %v5821
    %v5823 = vsel %vm1107, %v5715, 0.0
    %v5824 = vadd.f32 %v5822, %v5823
    %v5825 = vsel %vm1107, %v5716, 0.0
    %v5826 = vadd.f32 %v5824, %v5825
    %v5827 = vsel %vm1107, %v5717, 0.0
    %v5828 = vadd.f32 %v5826, %v5827
    %v5829 = vsel %vm1107, %v5718, 0.0
    %v5830 = vadd.f32 %v5828, %v5829
    %v5831 = vsel %vm1107, %v5719, 0.0
    %v5832 = vadd.f32 %v5830, %v5831
    %v5833 = vsel %vm1107, %v5720, 0.0
    %v5834 = vadd.f32 %v5832, %v5833
    %v5835 = vsel %vm1107, %v5721, 0.0
    %v5836 = vadd.f32 %v5834, %v5835
    %v5837 = vsel %vm1107, %v5722, 0.0
    %v5838 = vadd.f32 %v5836, %v5837
    %v5839 = vsel %vm1107, %v5723, 0.0
    %v5840 = vadd.f32 %v5838, %v5839
    %v5841 = vsel %vm1107, %v5724, 0.0
    %v5842 = vadd.f32 %v5840, %v5841
    %v5843 = vsel %vm1107, %v5725, 0.0
    %v5844 = vadd.f32 %v5842, %v5843
    %v5845 = vsel %vm1107, %v5726, 0.0
    %v5846 = vadd.f32 %v5844, %v5845
    %v5847 = vsel %vm1107, %v5727, 0.0
    %v5848 = vadd.f32 %v5846, %v5847
    %v5849 = vsel %vm1107, %v5728, 0.0
    %v5850 = vadd.f32 %v5848, %v5849
    %v5851 = vsel %vm1107, %v5729, 0.0
    %v5852 = vadd.f32 %v5850, %v5851
    %v5853 = vsel %vm1107, %v5730, 0.0
    %v5854 = vadd.f32 %v5852, %v5853
    %v5855 = vsel %vm1107, %v5731, 0.0
    %v5856 = vadd.f32 %v5854, %v5855
    %v5857 = vsel %vm1107, %v5732, 0.0
    %v5858 = vadd.f32 %v5856, %v5857
    %v5859 = vsel %vm1107, %v5733, 0.0
    %v5860 = vadd.f32 %v5858, %v5859
    %v5861 = vrot.slane %v5860, 4
    %v5862 = vadd.f32 %v5860, %v5861
    %v5863 = vrot.slane %v5862, 2
    %v5864 = vadd.f32 %v5862, %v5863
    %v5865 = vrot.slane %v5864, 1
    %v5866 = vadd.f32 %v5864, %v5865
    %v5867 = vmul.f32 %v5866, %v2477
    %v5868 = vadd.f32 %v5867, 1e-05
    %v5869 = vrsqrt.pop %v5868
    %v5870 = vmul.f32 %v5606, %v5869
    %v5871 = vmul.f32 %v5607, %v5869
    %v5872 = vmul.f32 %v5608, %v5869
    %v5873 = vmul.f32 %v5609, %v5869
    %v5874 = vmul.f32 %v5610, %v5869
    %v5875 = vmul.f32 %v5611, %v5869
    %v5876 = vmul.f32 %v5612, %v5869
    %v5877 = vmul.f32 %v5613, %v5869
    %v5878 = vmul.f32 %v5614, %v5869
    %v5879 = vmul.f32 %v5615, %v5869
    %v5880 = vmul.f32 %v5616, %v5869
    %v5881 = vmul.f32 %v5617, %v5869
    %v5882 = vmul.f32 %v5618, %v5869
    %v5883 = vmul.f32 %v5619, %v5869
    %v5884 = vmul.f32 %v5620, %v5869
    %v5885 = vmul.f32 %v5621, %v5869
    %v5886 = vmul.f32 %v5622, %v5869
    %v5887 = vmul.f32 %v5623, %v5869
    %v5888 = vmul.f32 %v5624, %v5869
    %v5889 = vmul.f32 %v5625, %v5869
    %v5890 = vmul.f32 %v5626, %v5869
    %v5891 = vmul.f32 %v5627, %v5869
    %v5892 = vmul.f32 %v5628, %v5869
    %v5893 = vmul.f32 %v5629, %v5869
    %v5894 = vmul.f32 %v5630, %v5869
    %v5895 = vmul.f32 %v5631, %v5869
    %v5896 = vmul.f32 %v5632, %v5869
    %v5897 = vmul.f32 %v5633, %v5869
    %v5898 = vmul.f32 %v5634, %v5869
    %v5899 = vmul.f32 %v5635, %v5869
    %v5900 = vmul.f32 %v5636, %v5869
    %v5901 = vmul.f32 %v5637, %v5869
    %v5902 = vmul.f32 %v5638, %v5869
    %v5903 = vmul.f32 %v5639, %v5869
    %v5904 = vmul.f32 %v5640, %v5869
    %v5905 = vmul.f32 %v5641, %v5869
    %v5906 = vmul.f32 %v5642, %v5869
    %v5907 = vmul.f32 %v5643, %v5869
    %v5908 = vmul.f32 %v5644, %v5869
    %v5909 = vmul.f32 %v5645, %v5869
    %v5910 = vmul.f32 %v5646, %v5869
    %v5911 = vmul.f32 %v5647, %v5869
    %v5912 = vmul.f32 %v5648, %v5869
    %v5913 = vmul.f32 %v5649, %v5869
    %v5914 = vmul.f32 %v5650, %v5869
    %v5915 = vmul.f32 %v5651, %v5869
    %v5916 = vmul.f32 %v5652, %v5869
    %v5917 = vmul.f32 %v5653, %v5869
    %v5918 = vmul.f32 %v5654, %v5869
    %v5919 = vmul.f32 %v5655, %v5869
    %v5920 = vmul.f32 %v5656, %v5869
    %v5921 = vmul.f32 %v5657, %v5869
    %v5922 = vmul.f32 %v5658, %v5869
    %v5923 = vmul.f32 %v5659, %v5869
    %v5924 = vmul.f32 %v5660, %v5869
    %v5925 = vmul.f32 %v5661, %v5869
    %v5926 = vmul.f32 %v5662, %v5869
    %v5927 = vmul.f32 %v5663, %v5869
    %v5928 = vmul.f32 %v5664, %v5869
    %v5929 = vmul.f32 %v5665, %v5869
    %v5930 = vmul.f32 %v5666, %v5869
    %v5931 = vmul.f32 %v5667, %v5869
    %v5932 = vmul.f32 %v5668, %v5869
    %v5933 = vmul.f32 %v5669, %v5869
    %v5934 = vlaneseq
    %v5935 = vshrl.u32 %v5934, 7
    %v5936 = vsub.s32 2, %v5935
    %v5937 = vrot.slane %v18, %v5936
    %v5938 = vmul.f32 %v5870, %v5937
    %v5939 = vmul.f32 %v5871, %v5937
    %v5940 = vmul.f32 %v5872, %v5937
    %v5941 = vmul.f32 %v5873, %v5937
    %v5942 = vmul.f32 %v5874, %v5937
    %v5943 = vmul.f32 %v5875, %v5937
    %v5944 = vmul.f32 %v5876, %v5937
    %v5945 = vmul.f32 %v5877, %v5937
    %v5946 = vmul.f32 %v5878, %v5937
    %v5947 = vmul.f32 %v5879, %v5937
    %v5948 = vmul.f32 %v5880, %v5937
    %v5949 = vmul.f32 %v5881, %v5937
    %v5950 = vmul.f32 %v5882, %v5937
    %v5951 = vmul.f32 %v5883, %v5937
    %v5952 = vmul.f32 %v5884, %v5937
    %v5953 = vmul.f32 %v5885, %v5937
    %v5954 = vmul.f32 %v5886, %v5937
    %v5955 = vmul.f32 %v5887, %v5937
    %v5956 = vmul.f32 %v5888, %v5937
    %v5957 = vmul.f32 %v5889, %v5937
    %v5958 = vmul.f32 %v5890, %v5937
    %v5959 = vmul.f32 %v5891, %v5937
    %v5960 = vmul.f32 %v5892, %v5937
    %v5961 = vmul.f32 %v5893, %v5937
    %v5962 = vmul.f32 %v5894, %v5937
    %v5963 = vmul.f32 %v5895, %v5937
    %v5964 = vmul.f32 %v5896, %v5937
    %v5965 = vmul.f32 %v5897, %v5937
    %v5966 = vmul.f32 %v5898, %v5937
    %v5967 = vmul.f32 %v5899, %v5937
    %v5968 = vmul.f32 %v5900, %v5937
    %v5969 = vmul.f32 %v5901, %v5937
    %v5970 = vmul.f32 %v5902, %v5937
    %v5971 = vmul.f32 %v5903, %v5937
    %v5972 = vmul.f32 %v5904, %v5937
    %v5973 = vmul.f32 %v5905, %v5937
    %v5974 = vmul.f32 %v5906, %v5937
    %v5975 = vmul.f32 %v5907, %v5937
    %v5976 = vmul.f32 %v5908, %v5937
    %v5977 = vmul.f32 %v5909, %v5937
    %v5978 = vmul.f32 %v5910, %v5937
    %v5979 = vmul.f32 %v5911, %v5937
    %v5980 = vmul.f32 %v5912, %v5937
    %v5981 = vmul.f32 %v5913, %v5937
    %v5982 = vmul.f32 %v5914, %v5937
    %v5983 = vmul.f32 %v5915, %v5937
    %v5984 = vmul.f32 %v5916, %v5937
    %v5985 = vmul.f32 %v5917, %v5937
    %v5986 = vmul.f32 %v5918, %v5937
    %v5987 = vmul.f32 %v5919, %v5937
    %v5988 = vmul.f32 %v5920, %v5937
    %v5989 = vmul.f32 %v5921, %v5937
    %v5990 = vmul.f32 %v5922, %v5937
    %v5991 = vmul.f32 %v5923, %v5937
    %v5992 = vmul.f32 %v5924, %v5937
    %v5993 = vmul.f32 %v5925, %v5937
    %v5994 = vmul.f32 %v5926, %v5937
    %v5995 = vmul.f32 %v5927, %v5937
    %v5996 = vmul.f32 %v5928, %v5937
    %v5997 = vmul.f32 %v5929, %v5937
    %v5998 = vmul.f32 %v5930, %v5937
    %v5999 = vmul.f32 %v5931, %v5937
    %v6000 = vmul.f32 %v5932, %v5937
    %v6001 = vmul.f32 %v5933, %v5937
    %v6002 = vlaneseq
    %v6003 = vshrl.u32 %v6002, 7
    %v6004 = vsub.s32 3, %v6003
    %v6005 = vrot.slane %v18, %v6004
    %v6006 = vadd.f32 %v5938, %v6005
    %v6007 = vadd.f32 %v5939, %v6005
    %v6008 = vadd.f32 %v5940, %v6005
    %v6009 = vadd.f32 %v5941, %v6005
    %v6010 = vadd.f32 %v5942, %v6005
    %v6011 = vadd.f32 %v5943, %v6005
    %v6012 = vadd.f32 %v5944, %v6005
    %v6013 = vadd.f32 %v5945, %v6005
    %v6014 = vadd.f32 %v5946, %v6005
    %v6015 = vadd.f32 %v5947, %v6005
    %v6016 = vadd.f32 %v5948, %v6005
    %v6017 = vadd.f32 %v5949, %v6005
    %v6018 = vadd.f32 %v5950, %v6005
    %v6019 = vadd.f32 %v5951, %v6005
    %v6020 = vadd.f32 %v5952, %v6005
    %v6021 = vadd.f32 %v5953, %v6005
    %v6022 = vadd.f32 %v5954, %v6005
    %v6023 = vadd.f32 %v5955, %v6005
    %v6024 = vadd.f32 %v5956, %v6005
    %v6025 = vadd.f32 %v5957, %v6005
    %v6026 = vadd.f32 %v5958, %v6005
    %v6027 = vadd.f32 %v5959, %v6005
    %v6028 = vadd.f32 %v5960, %v6005
    %v6029 = vadd.f32 %v5961, %v6005
    %v6030 = vadd.f32 %v5962, %v6005
    %v6031 = vadd.f32 %v5963, %v6005
    %v6032 = vadd.f32 %v5964, %v6005
    %v6033 = vadd.f32 %v5965, %v6005
    %v6034 = vadd.f32 %v5966, %v6005
    %v6035 = vadd.f32 %v5967, %v6005
    %v6036 = vadd.f32 %v5968, %v6005
    %v6037 = vadd.f32 %v5969, %v6005
    %v6038 = vadd.f32 %v5970, %v6005
    %v6039 = vadd.f32 %v5971, %v6005
    %v6040 = vadd.f32 %v5972, %v6005
    %v6041 = vadd.f32 %v5973, %v6005
    %v6042 = vadd.f32 %v5974, %v6005
    %v6043 = vadd.f32 %v5975, %v6005
    %v6044 = vadd.f32 %v5976, %v6005
    %v6045 = vadd.f32 %v5977, %v6005
    %v6046 = vadd.f32 %v5978, %v6005
    %v6047 = vadd.f32 %v5979, %v6005
    %v6048 = vadd.f32 %v5980, %v6005
    %v6049 = vadd.f32 %v5981, %v6005
    %v6050 = vadd.f32 %v5982, %v6005
    %v6051 = vadd.f32 %v5983, %v6005
    %v6052 = vadd.f32 %v5984, %v6005
    %v6053 = vadd.f32 %v5985, %v6005
    %v6054 = vadd.f32 %v5986, %v6005
    %v6055 = vadd.f32 %v5987, %v6005
    %v6056 = vadd.f32 %v5988, %v6005
    %v6057 = vadd.f32 %v5989, %v6005
    %v6058 = vadd.f32 %v5990, %v6005
    %v6059 = vadd.f32 %v5991, %v6005
    %v6060 = vadd.f32 %v5992, %v6005
    %v6061 = vadd.f32 %v5993, %v6005
    %v6062 = vadd.f32 %v5994, %v6005
    %v6063 = vadd.f32 %v5995, %v6005
    %v6064 = vadd.f32 %v5996, %v6005
    %v6065 = vadd.f32 %v5997, %v6005
    %v6066 = vadd.f32 %v5998, %v6005
    %v6067 = vadd.f32 %v5999, %v6005
    %v6068 = vadd.f32 %v6000, %v6005
    %v6069 = vadd.f32 %v6001, %v6005
    %v6070 = vmax.f32 %v6006, 0.0
    %v6071 = vmax.f32 %v6007, 0.0
    %v6072 = vmax.f32 %v6008, 0.0
    %v6073 = vmax.f32 %v6009, 0.0
    %v6074 = vmax.f32 %v6010, 0.0
    %v6075 = vmax.f32 %v6011, 0.0
    %v6076 = vmax.f32 %v6012, 0.0
    %v6077 = vmax.f32 %v6013, 0.0
    %v6078 = vmax.f32 %v6014, 0.0
    %v6079 = vmax.f32 %v6015, 0.0
    %v6080 = vmax.f32 %v6016, 0.0
    %v6081 = vmax.f32 %v6017, 0.0
    %v6082 = vmax.f32 %v6018, 0.0
    %v6083 = vmax.f32 %v6019, 0.0
    %v6084 = vmax.f32 %v6020, 0.0
    %v6085 = vmax.f32 %v6021, 0.0
    %v6086 = vmax.f32 %v6022, 0.0
    %v6087 = vmax.f32 %v6023, 0.0
    %v6088 = vmax.f32 %v6024, 0.0
    %v6089 = vmax.f32 %v6025, 0.0
    %v6090 = vmax.f32 %v6026, 0.0
    %v6091 = vmax.f32 %v6027, 0.0
    %v6092 = vmax.f32 %v6028, 0.0
    %v6093 = vmax.f32 %v6029, 0.0
    %v6094 = vmax.f32 %v6030, 0.0
    %v6095 = vmax.f32 %v6031, 0.0
    %v6096 = vmax.f32 %v6032, 0.0
    %v6097 = vmax.f32 %v6033, 0.0
    %v6098 = vmax.f32 %v6034, 0.0
    %v6099 = vmax.f32 %v6035, 0.0
    %v6100 = vmax.f32 %v6036, 0.0
    %v6101 = vmax.f32 %v6037, 0.0
    %v6102 = vmax.f32 %v6038, 0.0
    %v6103 = vmax.f32 %v6039, 0.0
    %v6104 = vmax.f32 %v6040, 0.0
    %v6105 = vmax.f32 %v6041, 0.0
    %v6106 = vmax.f32 %v6042, 0.0
    %v6107 = vmax.f32 %v6043, 0.0
    %v6108 = vmax.f32 %v6044, 0.0
    %v6109 = vmax.f32 %v6045, 0.0
    %v6110 = vmax.f32 %v6046, 0.0
    %v6111 = vmax.f32 %v6047, 0.0
    %v6112 = vmax.f32 %v6048, 0.0
    %v6113 = vmax.f32 %v6049, 0.0
    %v6114 = vmax.f32 %v6050, 0.0
    %v6115 = vmax.f32 %v6051, 0.0
    %v6116 = vmax.f32 %v6052, 0.0
    %v6117 = vmax.f32 %v6053, 0.0
    %v6118 = vmax.f32 %v6054, 0.0
    %v6119 = vmax.f32 %v6055, 0.0
    %v6120 = vmax.f32 %v6056, 0.0
    %v6121 = vmax.f32 %v6057, 0.0
    %v6122 = vmax.f32 %v6058, 0.0
    %v6123 = vmax.f32 %v6059, 0.0
    %v6124 = vmax.f32 %v6060, 0.0
    %v6125 = vmax.f32 %v6061, 0.0
    %v6126 = vmax.f32 %v6062, 0.0
    %v6127 = vmax.f32 %v6063, 0.0
    %v6128 = vmax.f32 %v6064, 0.0
    %v6129 = vmax.f32 %v6065, 0.0
    %v6130 = vmax.f32 %v6066, 0.0
    %v6131 = vmax.f32 %v6067, 0.0
    %v6132 = vmax.f32 %v6068, 0.0
    %v6133 = vmax.f32 %v6069, 0.0
    %v6134 = vadd.f32 %v6070, %v6072
    %v6135 = vadd.f32 %v6071, %v6073
    %v6136 = vadd.f32 %v6074, %v6076
    %v6137 = vadd.f32 %v6075, %v6077
    %v6138 = vadd.f32 %v6078, %v6080
    %v6139 = vadd.f32 %v6079, %v6081
    %v6140 = vadd.f32 %v6082, %v6084
    %v6141 = vadd.f32 %v6083, %v6085
    %v6142 = vadd.f32 %v6086, %v6088
    %v6143 = vadd.f32 %v6087, %v6089
    %v6144 = vadd.f32 %v6090, %v6092
    %v6145 = vadd.f32 %v6091, %v6093
    %v6146 = vadd.f32 %v6094, %v6096
    %v6147 = vadd.f32 %v6095, %v6097
    %v6148 = vadd.f32 %v6098, %v6100
    %v6149 = vadd.f32 %v6099, %v6101
    %v6150 = vadd.f32 %v6102, %v6104
    %v6151 = vadd.f32 %v6103, %v6105
    %v6152 = vadd.f32 %v6106, %v6108
    %v6153 = vadd.f32 %v6107, %v6109
    %v6154 = vadd.f32 %v6110, %v6112
    %v6155 = vadd.f32 %v6111, %v6113
    %v6156 = vadd.f32 %v6114, %v6116
    %v6157 = vadd.f32 %v6115, %v6117
    %v6158 = vadd.f32 %v6118, %v6120
    %v6159 = vadd.f32 %v6119, %v6121
    %v6160 = vadd.f32 %v6122, %v6124
    %v6161 = vadd.f32 %v6123, %v6125
    %v6162 = vadd.f32 %v6126, %v6128
    %v6163 = vadd.f32 %v6127, %v6129
    %v6164 = vadd.f32 %v6130, %v6132
    %v6165 = vadd.f32 %v6131, %v6133
    %v6198 = vcombine.high %v6134, %v6134
    %v6200 = vunpack.c.l.s4 1983009808
    %v6201 = vunpack.c.0.s8 %v6200
    %v6202 = vlaneseq
    %v6203 = vshrl.u32 %v6202, 7
    %v6204 = vsub.s32 %v6201, %v6203
    %v6205 = vrot.slane %v6134, %v6204
    %v6207 = vunpack.c.l.s4 1983009808
    %v6208 = vunpack.c.0.s8 %v6207
    %v6209 = vlaneseq
    %v6210 = vshrl.u32 %v6209, 7
    %v6211 = vsub.s32 %v6208, %v6210
    %v6212 = vrot.slane %v6198, %v6211
    %v6213 = vcombine.high %v6205, %v6205
    %v6214 = vcombine.high %v6212, %v6212
    %v6215 = vcombine.high %v6135, %v6135
    %v6217 = vunpack.c.l.s4 1983009808
    %v6218 = vunpack.c.0.s8 %v6217
    %v6219 = vlaneseq
    %v6220 = vshrl.u32 %v6219, 7
    %v6221 = vsub.s32 %v6218, %v6220
    %v6222 = vrot.slane %v6135, %v6221
    %v6224 = vunpack.c.l.s4 1983009808
    %v6225 = vunpack.c.0.s8 %v6224
    %v6226 = vlaneseq
    %v6227 = vshrl.u32 %v6226, 7
    %v6228 = vsub.s32 %v6225, %v6227
    %v6229 = vrot.slane %v6215, %v6228
    %v6230 = vcombine.high %v6222, %v6222
    %v6231 = vcombine.high %v6229, %v6229
    %v6232 = vcombine.high %v6136, %v6136
    %v6234 = vunpack.c.l.s4 1983009808
    %v6235 = vunpack.c.0.s8 %v6234
    %v6236 = vlaneseq
    %v6237 = vshrl.u32 %v6236, 7
    %v6238 = vsub.s32 %v6235, %v6237
    %v6239 = vrot.slane %v6136, %v6238
    %v6241 = vunpack.c.l.s4 1983009808
    %v6242 = vunpack.c.0.s8 %v6241
    %v6243 = vlaneseq
    %v6244 = vshrl.u32 %v6243, 7
    %v6245 = vsub.s32 %v6242, %v6244
    %v6246 = vrot.slane %v6232, %v6245
    %v6247 = vcombine.high %v6239, %v6239
    %v6248 = vcombine.high %v6246, %v6246
    %v6249 = vcombine.high %v6137, %v6137
    %v6251 = vunpack.c.l.s4 1983009808
    %v6252 = vunpack.c.0.s8 %v6251
    %v6253 = vlaneseq
    %v6254 = vshrl.u32 %v6253, 7
    %v6255 = vsub.s32 %v6252, %v6254
    %v6256 = vrot.slane %v6137, %v6255
    %v6258 = vunpack.c.l.s4 1983009808
    %v6259 = vunpack.c.0.s8 %v6258
    %v6260 = vlaneseq
    %v6261 = vshrl.u32 %v6260, 7
    %v6262 = vsub.s32 %v6259, %v6261
    %v6263 = vrot.slane %v6249, %v6262
    %v6264 = vcombine.high %v6256, %v6256
    %v6265 = vcombine.high %v6263, %v6263
    %v6266 = vcombine.high %v6138, %v6138
    %v6268 = vunpack.c.l.s4 1983009808
    %v6269 = vunpack.c.0.s8 %v6268
    %v6270 = vlaneseq
    %v6271 = vshrl.u32 %v6270, 7
    %v6272 = vsub.s32 %v6269, %v6271
    %v6273 = vrot.slane %v6138, %v6272
    %v6275 = vunpack.c.l.s4 1983009808
    %v6276 = vunpack.c.0.s8 %v6275
    %v6277 = vlaneseq
    %v6278 = vshrl.u32 %v6277, 7
    %v6279 = vsub.s32 %v6276, %v6278
    %v6280 = vrot.slane %v6266, %v6279
    %v6281 = vcombine.high %v6273, %v6273
    %v6282 = vcombine.high %v6280, %v6280
    %v6283 = vcombine.high %v6139, %v6139
    %v6285 = vunpack.c.l.s4 1983009808
    %v6286 = vunpack.c.0.s8 %v6285
    %v6287 = vlaneseq
    %v6288 = vshrl.u32 %v6287, 7
    %v6289 = vsub.s32 %v6286, %v6288
    %v6290 = vrot.slane %v6139, %v6289
    %v6292 = vunpack.c.l.s4 1983009808
    %v6293 = vunpack.c.0.s8 %v6292
    %v6294 = vlaneseq
    %v6295 = vshrl.u32 %v6294, 7
    %v6296 = vsub.s32 %v6293, %v6295
    %v6297 = vrot.slane %v6283, %v6296
    %v6298 = vcombine.high %v6290, %v6290
    %v6299 = vcombine.high %v6297, %v6297
    %v6300 = vcombine.high %v6140, %v6140
    %v6302 = vunpack.c.l.s4 1983009808
    %v6303 = vunpack.c.0.s8 %v6302
    %v6304 = vlaneseq
    %v6305 = vshrl.u32 %v6304, 7
    %v6306 = vsub.s32 %v6303, %v6305
    %v6307 = vrot.slane %v6140, %v6306
    %v6309 = vunpack.c.l.s4 1983009808
    %v6310 = vunpack.c.0.s8 %v6309
    %v6311 = vlaneseq
    %v6312 = vshrl.u32 %v6311, 7
    %v6313 = vsub.s32 %v6310, %v6312
    %v6314 = vrot.slane %v6300, %v6313
    %v6315 = vcombine.high %v6307, %v6307
    %v6316 = vcombine.high %v6314, %v6314
    %v6317 = vcombine.high %v6141, %v6141
    %v6319 = vunpack.c.l.s4 1983009808
    %v6320 = vunpack.c.0.s8 %v6319
    %v6321 = vlaneseq
    %v6322 = vshrl.u32 %v6321, 7
    %v6323 = vsub.s32 %v6320, %v6322
    %v6324 = vrot.slane %v6141, %v6323
    %v6326 = vunpack.c.l.s4 1983009808
    %v6327 = vunpack.c.0.s8 %v6326
    %v6328 = vlaneseq
    %v6329 = vshrl.u32 %v6328, 7
    %v6330 = vsub.s32 %v6327, %v6329
    %v6331 = vrot.slane %v6317, %v6330
    %v6332 = vcombine.high %v6324, %v6324
    %v6333 = vcombine.high %v6331, %v6331
    %v6334 = vcombine.high %v6142, %v6142
    %v6336 = vunpack.c.l.s4 1983009808
    %v6337 = vunpack.c.0.s8 %v6336
    %v6338 = vlaneseq
    %v6339 = vshrl.u32 %v6338, 7
    %v6340 = vsub.s32 %v6337, %v6339
    %v6341 = vrot.slane %v6142, %v6340
    %v6343 = vunpack.c.l.s4 1983009808
    %v6344 = vunpack.c.0.s8 %v6343
    %v6345 = vlaneseq
    %v6346 = vshrl.u32 %v6345, 7
    %v6347 = vsub.s32 %v6344, %v6346
    %v6348 = vrot.slane %v6334, %v6347
    %v6349 = vcombine.high %v6341, %v6341
    %v6350 = vcombine.high %v6348, %v6348
    %v6351 = vcombine.high %v6143, %v6143
    %v6353 = vunpack.c.l.s4 1983009808
    %v6354 = vunpack.c.0.s8 %v6353
    %v6355 = vlaneseq
    %v6356 = vshrl.u32 %v6355, 7
    %v6357 = vsub.s32 %v6354, %v6356
    %v6358 = vrot.slane %v6143, %v6357
    %v6360 = vunpack.c.l.s4 1983009808
    %v6361 = vunpack.c.0.s8 %v6360
    %v6362 = vlaneseq
    %v6363 = vshrl.u32 %v6362, 7
    %v6364 = vsub.s32 %v6361, %v6363
    %v6365 = vrot.slane %v6351, %v6364
    %v6366 = vcombine.high %v6358, %v6358
    %v6367 = vcombine.high %v6365, %v6365
    %v6368 = vcombine.high %v6144, %v6144
    %v6370 = vunpack.c.l.s4 1983009808
    %v6371 = vunpack.c.0.s8 %v6370
    %v6372 = vlaneseq
    %v6373 = vshrl.u32 %v6372, 7
    %v6374 = vsub.s32 %v6371, %v6373
    %v6375 = vrot.slane %v6144, %v6374
    %v6377 = vunpack.c.l.s4 1983009808
    %v6378 = vunpack.c.0.s8 %v6377
    %v6379 = vlaneseq
    %v6380 = vshrl.u32 %v6379, 7
    %v6381 = vsub.s32 %v6378, %v6380
    %v6382 = vrot.slane %v6368, %v6381
    %v6383 = vcombine.high %v6375, %v6375
    %v6384 = vcombine.high %v6382, %v6382
    %v6385 = vcombine.high %v6145, %v6145
    %v6387 = vunpack.c.l.s4 1983009808
    %v6388 = vunpack.c.0.s8 %v6387
    %v6389 = vlaneseq
    %v6390 = vshrl.u32 %v6389, 7
    %v6391 = vsub.s32 %v6388, %v6390
    %v6392 = vrot.slane %v6145, %v6391
    %v6394 = vunpack.c.l.s4 1983009808
    %v6395 = vunpack.c.0.s8 %v6394
    %v6396 = vlaneseq
    %v6397 = vshrl.u32 %v6396, 7
    %v6398 = vsub.s32 %v6395, %v6397
    %v6399 = vrot.slane %v6385, %v6398
    %v6400 = vcombine.high %v6392, %v6392
    %v6401 = vcombine.high %v6399, %v6399
    %v6402 = vcombine.high %v6146, %v6146
    %v6404 = vunpack.c.l.s4 1983009808
    %v6405 = vunpack.c.0.s8 %v6404
    %v6406 = vlaneseq
    %v6407 = vshrl.u32 %v6406, 7
    %v6408 = vsub.s32 %v6405, %v6407
    %v6409 = vrot.slane %v6146, %v6408
    %v6411 = vunpack.c.l.s4 1983009808
    %v6412 = vunpack.c.0.s8 %v6411
    %v6413 = vlaneseq
    %v6414 = vshrl.u32 %v6413, 7
    %v6415 = vsub.s32 %v6412, %v6414
    %v6416 = vrot.slane %v6402, %v6415
    %v6417 = vcombine.high %v6409, %v6409
    %v6418 = vcombine.high %v6416, %v6416
    %v6419 = vcombine.high %v6147, %v6147
    %v6421 = vunpack.c.l.s4 1983009808
    %v6422 = vunpack.c.0.s8 %v6421
    %v6423 = vlaneseq
    %v6424 = vshrl.u32 %v6423, 7
    %v6425 = vsub.s32 %v6422, %v6424
    %v6426 = vrot.slane %v6147, %v6425
    %v6428 = vunpack.c.l.s4 1983009808
    %v6429 = vunpack.c.0.s8 %v6428
    %v6430 = vlaneseq
    %v6431 = vshrl.u32 %v6430, 7
    %v6432 = vsub.s32 %v6429, %v6431
    %v6433 = vrot.slane %v6419, %v6432
    %v6434 = vcombine.high %v6426, %v6426
    %v6435 = vcombine.high %v6433, %v6433
    %v6436 = vcombine.high %v6148, %v6148
    %v6438 = vunpack.c.l.s4 1983009808
    %v6439 = vunpack.c.0.s8 %v6438
    %v6440 = vlaneseq
    %v6441 = vshrl.u32 %v6440, 7
    %v6442 = vsub.s32 %v6439, %v6441
    %v6443 = vrot.slane %v6148, %v6442
    %v6445 = vunpack.c.l.s4 1983009808
    %v6446 = vunpack.c.0.s8 %v6445
    %v6447 = vlaneseq
    %v6448 = vshrl.u32 %v6447, 7
    %v6449 = vsub.s32 %v6446, %v6448
    %v6450 = vrot.slane %v6436, %v6449
    %v6451 = vcombine.high %v6443, %v6443
    %v6452 = vcombine.high %v6450, %v6450
    %v6453 = vcombine.high %v6149, %v6149
    %v6455 = vunpack.c.l.s4 1983009808
    %v6456 = vunpack.c.0.s8 %v6455
    %v6457 = vlaneseq
    %v6458 = vshrl.u32 %v6457, 7
    %v6459 = vsub.s32 %v6456, %v6458
    %v6460 = vrot.slane %v6149, %v6459
    %v6462 = vunpack.c.l.s4 1983009808
    %v6463 = vunpack.c.0.s8 %v6462
    %v6464 = vlaneseq
    %v6465 = vshrl.u32 %v6464, 7
    %v6466 = vsub.s32 %v6463, %v6465
    %v6467 = vrot.slane %v6453, %v6466
    %v6468 = vcombine.high %v6460, %v6460
    %v6469 = vcombine.high %v6467, %v6467
    %v6470 = vcombine.high %v6150, %v6150
    %v6472 = vunpack.c.l.s4 1983009808
    %v6473 = vunpack.c.0.s8 %v6472
    %v6474 = vlaneseq
    %v6475 = vshrl.u32 %v6474, 7
    %v6476 = vsub.s32 %v6473, %v6475
    %v6477 = vrot.slane %v6150, %v6476
    %v6479 = vunpack.c.l.s4 1983009808
    %v6480 = vunpack.c.0.s8 %v6479
    %v6481 = vlaneseq
    %v6482 = vshrl.u32 %v6481, 7
    %v6483 = vsub.s32 %v6480, %v6482
    %v6484 = vrot.slane %v6470, %v6483
    %v6485 = vcombine.high %v6477, %v6477
    %v6486 = vcombine.high %v6484, %v6484
    %v6487 = vcombine.high %v6151, %v6151
    %v6489 = vunpack.c.l.s4 1983009808
    %v6490 = vunpack.c.0.s8 %v6489
    %v6491 = vlaneseq
    %v6492 = vshrl.u32 %v6491, 7
    %v6493 = vsub.s32 %v6490, %v6492
    %v6494 = vrot.slane %v6151, %v6493
    %v6496 = vunpack.c.l.s4 1983009808
    %v6497 = vunpack.c.0.s8 %v6496
    %v6498 = vlaneseq
    %v6499 = vshrl.u32 %v6498, 7
    %v6500 = vsub.s32 %v6497, %v6499
    %v6501 = vrot.slane %v6487, %v6500
    %v6502 = vcombine.high %v6494, %v6494
    %v6503 = vcombine.high %v6501, %v6501
    %v6504 = vcombine.high %v6152, %v6152
    %v6506 = vunpack.c.l.s4 1983009808
    %v6507 = vunpack.c.0.s8 %v6506
    %v6508 = vlaneseq
    %v6509 = vshrl.u32 %v6508, 7
    %v6510 = vsub.s32 %v6507, %v6509
    %v6511 = vrot.slane %v6152, %v6510
    %v6513 = vunpack.c.l.s4 1983009808
    %v6514 = vunpack.c.0.s8 %v6513
    %v6515 = vlaneseq
    %v6516 = vshrl.u32 %v6515, 7
    %v6517 = vsub.s32 %v6514, %v6516
    %v6518 = vrot.slane %v6504, %v6517
    %v6519 = vcombine.high %v6511, %v6511
    %v6520 = vcombine.high %v6518, %v6518
    %v6521 = vcombine.high %v6153, %v6153
    %v6523 = vunpack.c.l.s4 1983009808
    %v6524 = vunpack.c.0.s8 %v6523
    %v6525 = vlaneseq
    %v6526 = vshrl.u32 %v6525, 7
    %v6527 = vsub.s32 %v6524, %v6526
    %v6528 = vrot.slane %v6153, %v6527
    %v6530 = vunpack.c.l.s4 1983009808
    %v6531 = vunpack.c.0.s8 %v6530
    %v6532 = vlaneseq
    %v6533 = vshrl.u32 %v6532, 7
    %v6534 = vsub.s32 %v6531, %v6533
    %v6535 = vrot.slane %v6521, %v6534
    %v6536 = vcombine.high %v6528, %v6528
    %v6537 = vcombine.high %v6535, %v6535
    %v6538 = vcombine.high %v6154, %v6154
    %v6540 = vunpack.c.l.s4 1983009808
    %v6541 = vunpack.c.0.s8 %v6540
    %v6542 = vlaneseq
    %v6543 = vshrl.u32 %v6542, 7
    %v6544 = vsub.s32 %v6541, %v6543
    %v6545 = vrot.slane %v6154, %v6544
    %v6547 = vunpack.c.l.s4 1983009808
    %v6548 = vunpack.c.0.s8 %v6547
    %v6549 = vlaneseq
    %v6550 = vshrl.u32 %v6549, 7
    %v6551 = vsub.s32 %v6548, %v6550
    %v6552 = vrot.slane %v6538, %v6551
    %v6553 = vcombine.high %v6545, %v6545
    %v6554 = vcombine.high %v6552, %v6552
    %v6555 = vcombine.high %v6155, %v6155
    %v6557 = vunpack.c.l.s4 1983009808
    %v6558 = vunpack.c.0.s8 %v6557
    %v6559 = vlaneseq
    %v6560 = vshrl.u32 %v6559, 7
    %v6561 = vsub.s32 %v6558, %v6560
    %v6562 = vrot.slane %v6155, %v6561
    %v6564 = vunpack.c.l.s4 1983009808
    %v6565 = vunpack.c.0.s8 %v6564
    %v6566 = vlaneseq
    %v6567 = vshrl.u32 %v6566, 7
    %v6568 = vsub.s32 %v6565, %v6567
    %v6569 = vrot.slane %v6555, %v6568
    %v6570 = vcombine.high %v6562, %v6562
    %v6571 = vcombine.high %v6569, %v6569
    %v6572 = vcombine.high %v6156, %v6156
    %v6574 = vunpack.c.l.s4 1983009808
    %v6575 = vunpack.c.0.s8 %v6574
    %v6576 = vlaneseq
    %v6577 = vshrl.u32 %v6576, 7
    %v6578 = vsub.s32 %v6575, %v6577
    %v6579 = vrot.slane %v6156, %v6578
    %v6581 = vunpack.c.l.s4 1983009808
    %v6582 = vunpack.c.0.s8 %v6581
    %v6583 = vlaneseq
    %v6584 = vshrl.u32 %v6583, 7
    %v6585 = vsub.s32 %v6582, %v6584
    %v6586 = vrot.slane %v6572, %v6585
    %v6587 = vcombine.high %v6579, %v6579
    %v6588 = vcombine.high %v6586, %v6586
    %v6589 = vcombine.high %v6157, %v6157
    %v6591 = vunpack.c.l.s4 1983009808
    %v6592 = vunpack.c.0.s8 %v6591
    %v6593 = vlaneseq
    %v6594 = vshrl.u32 %v6593, 7
    %v6595 = vsub.s32 %v6592, %v6594
    %v6596 = vrot.slane %v6157, %v6595
    %v6598 = vunpack.c.l.s4 1983009808
    %v6599 = vunpack.c.0.s8 %v6598
    %v6600 = vlaneseq
    %v6601 = vshrl.u32 %v6600, 7
    %v6602 = vsub.s32 %v6599, %v6601
    %v6603 = vrot.slane %v6589, %v6602
    %v6604 = vcombine.high %v6596, %v6596
    %v6605 = vcombine.high %v6603, %v6603
    %v6606 = vcombine.high %v6158, %v6158
    %v6608 = vunpack.c.l.s4 1983009808
    %v6609 = vunpack.c.0.s8 %v6608
    %v6610 = vlaneseq
    %v6611 = vshrl.u32 %v6610, 7
    %v6612 = vsub.s32 %v6609, %v6611
    %v6613 = vrot.slane %v6158, %v6612
    %v6615 = vunpack.c.l.s4 1983009808
    %v6616 = vunpack.c.0.s8 %v6615
    %v6617 = vlaneseq
    %v6618 = vshrl.u32 %v6617, 7
    %v6619 = vsub.s32 %v6616, %v6618
    %v6620 = vrot.slane %v6606, %v6619
    %v6621 = vcombine.high %v6613, %v6613
    %v6622 = vcombine.high %v6620, %v6620
    %v6623 = vcombine.high %v6159, %v6159
    %v6625 = vunpack.c.l.s4 1983009808
    %v6626 = vunpack.c.0.s8 %v6625
    %v6627 = vlaneseq
    %v6628 = vshrl.u32 %v6627, 7
    %v6629 = vsub.s32 %v6626, %v6628
    %v6630 = vrot.slane %v6159, %v6629
    %v6632 = vunpack.c.l.s4 1983009808
    %v6633 = vunpack.c.0.s8 %v6632
    %v6634 = vlaneseq
    %v6635 = vshrl.u32 %v6634, 7
    %v6636 = vsub.s32 %v6633, %v6635
    %v6637 = vrot.slane %v6623, %v6636
    %v6638 = vcombine.high %v6630, %v6630
    %v6639 = vcombine.high %v6637, %v6637
    %v6640 = vcombine.high %v6160, %v6160
    %v6642 = vunpack.c.l.s4 1983009808
    %v6643 = vunpack.c.0.s8 %v6642
    %v6644 = vlaneseq
    %v6645 = vshrl.u32 %v6644, 7
    %v6646 = vsub.s32 %v6643, %v6645
    %v6647 = vrot.slane %v6160, %v6646
    %v6649 = vunpack.c.l.s4 1983009808
    %v6650 = vunpack.c.0.s8 %v6649
    %v6651 = vlaneseq
    %v6652 = vshrl.u32 %v6651, 7
    %v6653 = vsub.s32 %v6650, %v6652
    %v6654 = vrot.slane %v6640, %v6653
    %v6655 = vcombine.high %v6647, %v6647
    %v6656 = vcombine.high %v6654, %v6654
    %v6657 = vcombine.high %v6161, %v6161
    %v6659 = vunpack.c.l.s4 1983009808
    %v6660 = vunpack.c.0.s8 %v6659
    %v6661 = vlaneseq
    %v6662 = vshrl.u32 %v6661, 7
    %v6663 = vsub.s32 %v6660, %v6662
    %v6664 = vrot.slane %v6161, %v6663
    %v6666 = vunpack.c.l.s4 1983009808
    %v6667 = vunpack.c.0.s8 %v6666
    %v6668 = vlaneseq
    %v6669 = vshrl.u32 %v6668, 7
    %v6670 = vsub.s32 %v6667, %v6669
    %v6671 = vrot.slane %v6657, %v6670
    %v6672 = vcombine.high %v6664, %v6664
    %v6673 = vcombine.high %v6671, %v6671
    %v6674 = vcombine.high %v6162, %v6162
    %v6676 = vunpack.c.l.s4 1983009808
    %v6677 = vunpack.c.0.s8 %v6676
    %v6678 = vlaneseq
    %v6679 = vshrl.u32 %v6678, 7
    %v6680 = vsub.s32 %v6677, %v6679
    %v6681 = vrot.slane %v6162, %v6680
    %v6683 = vunpack.c.l.s4 1983009808
    %v6684 = vunpack.c.0.s8 %v6683
    %v6685 = vlaneseq
    %v6686 = vshrl.u32 %v6685, 7
    %v6687 = vsub.s32 %v6684, %v6686
    %v6688 = vrot.slane %v6674, %v6687
    %v6689 = vcombine.high %v6681, %v6681
    %v6690 = vcombine.high %v6688, %v6688
    %v6691 = vcombine.high %v6163, %v6163
    %v6693 = vunpack.c.l.s4 1983009808
    %v6694 = vunpack.c.0.s8 %v6693
    %v6695 = vlaneseq
    %v6696 = vshrl.u32 %v6695, 7
    %v6697 = vsub.s32 %v6694, %v6696
    %v6698 = vrot.slane %v6163, %v6697
    %v6700 = vunpack.c.l.s4 1983009808
    %v6701 = vunpack.c.0.s8 %v6700
    %v6702 = vlaneseq
    %v6703 = vshrl.u32 %v6702, 7
    %v6704 = vsub.s32 %v6701, %v6703
    %v6705 = vrot.slane %v6691, %v6704
    %v6706 = vcombine.high %v6698, %v6698
    %v6707 = vcombine.high %v6705, %v6705
    %v6708 = vcombine.high %v6164, %v6164
    %v6710 = vunpack.c.l.s4 1983009808
    %v6711 = vunpack.c.0.s8 %v6710
    %v6712 = vlaneseq
    %v6713 = vshrl.u32 %v6712, 7
    %v6714 = vsub.s32 %v6711, %v6713
    %v6715 = vrot.slane %v6164, %v6714
    %v6717 = vunpack.c.l.s4 1983009808
    %v6718 = vunpack.c.0.s8 %v6717
    %v6719 = vlaneseq
    %v6720 = vshrl.u32 %v6719, 7
    %v6721 = vsub.s32 %v6718, %v6720
    %v6722 = vrot.slane %v6708, %v6721
    %v6723 = vcombine.high %v6715, %v6715
    %v6724 = vcombine.high %v6722, %v6722
    %v6725 = vcombine.high %v6165, %v6165
    %v6727 = vunpack.c.l.s4 1983009808
    %v6728 = vunpack.c.0.s8 %v6727
    %v6729 = vlaneseq
    %v6730 = vshrl.u32 %v6729, 7
    %v6731 = vsub.s32 %v6728, %v6730
    %v6732 = vrot.slane %v6165, %v6731
    %v6734 = vunpack.c.l.s4 1983009808
    %v6735 = vunpack.c.0.s8 %v6734
    %v6736 = vlaneseq
    %v6737 = vshrl.u32 %v6736, 7
    %v6738 = vsub.s32 %v6735, %v6737
    %v6739 = vrot.slane %v6725, %v6738
    %v6740 = vcombine.high %v6732, %v6732
    %v6741 = vcombine.high %v6739, %v6739
    %v6870 = vrot.slane %v6205, 7
    %v6871 = vrot.slane %v6870, 2
    %v6872 = vrot.slane %v6213, 7
    %v6873 = vrot.slane %v6872, 2
    %v6874 = vrot.slane %v6212, 7
    %v6875 = vrot.slane %v6874, 2
    %v6876 = vrot.slane %v6214, 7
    %v6877 = vrot.slane %v6876, 2
    %v6878 = vrot.slane %v6222, 7
    %v6879 = vrot.slane %v6878, 2
    %v6880 = vrot.slane %v6230, 7
    %v6881 = vrot.slane %v6880, 2
    %v6882 = vrot.slane %v6229, 7
    %v6883 = vrot.slane %v6882, 2
    %v6884 = vrot.slane %v6231, 7
    %v6885 = vrot.slane %v6884, 2
    %v6886 = vrot.slane %v6239, 7
    %v6887 = vrot.slane %v6886, 2
    %v6888 = vrot.slane %v6247, 7
    %v6889 = vrot.slane %v6888, 2
    %v6890 = vrot.slane %v6246, 7
    %v6891 = vrot.slane %v6890, 2
    %v6892 = vrot.slane %v6248, 7
    %v6893 = vrot.slane %v6892, 2
    %v6894 = vrot.slane %v6256, 7
    %v6895 = vrot.slane %v6894, 2
    %v6896 = vrot.slane %v6264, 7
    %v6897 = vrot.slane %v6896, 2
    %v6898 = vrot.slane %v6263, 7
    %v6899 = vrot.slane %v6898, 2
    %v6900 = vrot.slane %v6265, 7
    %v6901 = vrot.slane %v6900, 2
    %v6902 = vrot.slane %v6273, 7
    %v6903 = vrot.slane %v6902, 2
    %v6904 = vrot.slane %v6281, 7
    %v6905 = vrot.slane %v6904, 2
    %v6906 = vrot.slane %v6280, 7
    %v6907 = vrot.slane %v6906, 2
    %v6908 = vrot.slane %v6282, 7
    %v6909 = vrot.slane %v6908, 2
    %v6910 = vrot.slane %v6290, 7
    %v6911 = vrot.slane %v6910, 2
    %v6912 = vrot.slane %v6298, 7
    %v6913 = vrot.slane %v6912, 2
    %v6914 = vrot.slane %v6297, 7
    %v6915 = vrot.slane %v6914, 2
    %v6916 = vrot.slane %v6299, 7
    %v6917 = vrot.slane %v6916, 2
    %v6918 = vrot.slane %v6307, 7
    %v6919 = vrot.slane %v6918, 2
    %v6920 = vrot.slane %v6315, 7
    %v6921 = vrot.slane %v6920, 2
    %v6922 = vrot.slane %v6314, 7
    %v6923 = vrot.slane %v6922, 2
    %v6924 = vrot.slane %v6316, 7
    %v6925 = vrot.slane %v6924, 2
    %v6926 = vrot.slane %v6324, 7
    %v6927 = vrot.slane %v6926, 2
    %v6928 = vrot.slane %v6332, 7
    %v6929 = vrot.slane %v6928, 2
    %v6930 = vrot.slane %v6331, 7
    %v6931 = vrot.slane %v6930, 2
    %v6932 = vrot.slane %v6333, 7
    %v6933 = vrot.slane %v6932, 2
    %v6934 = vrot.slane %v6341, 7
    %v6935 = vrot.slane %v6934, 2
    %v6936 = vrot.slane %v6349, 7
    %v6937 = vrot.slane %v6936, 2
    %v6938 = vrot.slane %v6348, 7
    %v6939 = vrot.slane %v6938, 2
    %v6940 = vrot.slane %v6350, 7
    %v6941 = vrot.slane %v6940, 2
    %v6942 = vrot.slane %v6358, 7
    %v6943 = vrot.slane %v6942, 2
    %v6944 = vrot.slane %v6366, 7
    %v6945 = vrot.slane %v6944, 2
    %v6946 = vrot.slane %v6365, 7
    %v6947 = vrot.slane %v6946, 2
    %v6948 = vrot.slane %v6367, 7
    %v6949 = vrot.slane %v6948, 2
    %v6950 = vrot.slane %v6375, 7
    %v6951 = vrot.slane %v6950, 2
    %v6952 = vrot.slane %v6383, 7
    %v6953 = vrot.slane %v6952, 2
    %v6954 = vrot.slane %v6382, 7
    %v6955 = vrot.slane %v6954, 2
    %v6956 = vrot.slane %v6384, 7
    %v6957 = vrot.slane %v6956, 2
    %v6958 = vrot.slane %v6392, 7
    %v6959 = vrot.slane %v6958, 2
    %v6960 = vrot.slane %v6400, 7
    %v6961 = vrot.slane %v6960, 2
    %v6962 = vrot.slane %v6399, 7
    %v6963 = vrot.slane %v6962, 2
    %v6964 = vrot.slane %v6401, 7
    %v6965 = vrot.slane %v6964, 2
    %v6966 = vrot.slane %v6409, 7
    %v6967 = vrot.slane %v6966, 2
    %v6968 = vrot.slane %v6417, 7
    %v6969 = vrot.slane %v6968, 2
    %v6970 = vrot.slane %v6416, 7
    %v6971 = vrot.slane %v6970, 2
    %v6972 = vrot.slane %v6418, 7
    %v6973 = vrot.slane %v6972, 2
    %v6974 = vrot.slane %v6426, 7
    %v6975 = vrot.slane %v6974, 2
    %v6976 = vrot.slane %v6434, 7
    %v6977 = vrot.slane %v6976, 2
    %v6978 = vrot.slane %v6433, 7
    %v6979 = vrot.slane %v6978, 2
    %v6980 = vrot.slane %v6435, 7
    %v6981 = vrot.slane %v6980, 2
    %v6982 = vrot.slane %v6443, 7
    %v6983 = vrot.slane %v6982, 2
    %v6984 = vrot.slane %v6451, 7
    %v6985 = vrot.slane %v6984, 2
    %v6986 = vrot.slane %v6450, 7
    %v6987 = vrot.slane %v6986, 2
    %v6988 = vrot.slane %v6452, 7
    %v6989 = vrot.slane %v6988, 2
    %v6990 = vrot.slane %v6460, 7
    %v6991 = vrot.slane %v6990, 2
    %v6992 = vrot.slane %v6468, 7
    %v6993 = vrot.slane %v6992, 2
    %v6994 = vrot.slane %v6467, 7
    %v6995 = vrot.slane %v6994, 2
    %v6996 = vrot.slane %v6469, 7
    %v6997 = vrot.slane %v6996, 2
    %v6998 = vrot.slane %v6477, 7
    %v6999 = vrot.slane %v6998, 2
    %v7000 = vrot.slane %v6485, 7
    %v7001 = vrot.slane %v7000, 2
    %v7002 = vrot.slane %v6484, 7
    %v7003 = vrot.slane %v7002, 2
    %v7004 = vrot.slane %v6486, 7
    %v7005 = vrot.slane %v7004, 2
    %v7006 = vrot.slane %v6494, 7
    %v7007 = vrot.slane %v7006, 2
    %v7008 = vrot.slane %v6502, 7
    %v7009 = vrot.slane %v7008, 2
    %v7010 = vrot.slane %v6501, 7
    %v7011 = vrot.slane %v7010, 2
    %v7012 = vrot.slane %v6503, 7
    %v7013 = vrot.slane %v7012, 2
    %v7014 = vrot.slane %v6511, 7
    %v7015 = vrot.slane %v7014, 2
    %v7016 = vrot.slane %v6519, 7
    %v7017 = vrot.slane %v7016, 2
    %v7018 = vrot.slane %v6518, 7
    %v7019 = vrot.slane %v7018, 2
    %v7020 = vrot.slane %v6520, 7
    %v7021 = vrot.slane %v7020, 2
    %v7022 = vrot.slane %v6528, 7
    %v7023 = vrot.slane %v7022, 2
    %v7024 = vrot.slane %v6536, 7
    %v7025 = vrot.slane %v7024, 2
    %v7026 = vrot.slane %v6535, 7
    %v7027 = vrot.slane %v7026, 2
    %v7028 = vrot.slane %v6537, 7
    %v7029 = vrot.slane %v7028, 2
    %v7030 = vrot.slane %v6545, 7
    %v7031 = vrot.slane %v7030, 2
    %v7032 = vrot.slane %v6553, 7
    %v7033 = vrot.slane %v7032, 2
    %v7034 = vrot.slane %v6552, 7
    %v7035 = vrot.slane %v7034, 2
    %v7036 = vrot.slane %v6554, 7
    %v7037 = vrot.slane %v7036, 2
    %v7038 = vrot.slane %v6562, 7
    %v7039 = vrot.slane %v7038, 2
    %v7040 = vrot.slane %v6570, 7
    %v7041 = vrot.slane %v7040, 2
    %v7042 = vrot.slane %v6569, 7
    %v7043 = vrot.slane %v7042, 2
    %v7044 = vrot.slane %v6571, 7
    %v7045 = vrot.slane %v7044, 2
    %v7046 = vrot.slane %v6579, 7
    %v7047 = vrot.slane %v7046, 2
    %v7048 = vrot.slane %v6587, 7
    %v7049 = vrot.slane %v7048, 2
    %v7050 = vrot.slane %v6586, 7
    %v7051 = vrot.slane %v7050, 2
    %v7052 = vrot.slane %v6588, 7
    %v7053 = vrot.slane %v7052, 2
    %v7054 = vrot.slane %v6596, 7
    %v7055 = vrot.slane %v7054, 2
    %v7056 = vrot.slane %v6604, 7
    %v7057 = vrot.slane %v7056, 2
    %v7058 = vrot.slane %v6603, 7
    %v7059 = vrot.slane %v7058, 2
    %v7060 = vrot.slane %v6605, 7
    %v7061 = vrot.slane %v7060, 2
    %v7062 = vrot.slane %v6613, 7
    %v7063 = vrot.slane %v7062, 2
    %v7064 = vrot.slane %v6621, 7
    %v7065 = vrot.slane %v7064, 2
    %v7066 = vrot.slane %v6620, 7
    %v7067 = vrot.slane %v7066, 2
    %v7068 = vrot.slane %v6622, 7
    %v7069 = vrot.slane %v7068, 2
    %v7070 = vrot.slane %v6630, 7
    %v7071 = vrot.slane %v7070, 2
    %v7072 = vrot.slane %v6638, 7
    %v7073 = vrot.slane %v7072, 2
    %v7074 = vrot.slane %v6637, 7
    %v7075 = vrot.slane %v7074, 2
    %v7076 = vrot.slane %v6639, 7
    %v7077 = vrot.slane %v7076, 2
    %v7078 = vrot.slane %v6647, 7
    %v7079 = vrot.slane %v7078, 2
    %v7080 = vrot.slane %v6655, 7
    %v7081 = vrot.slane %v7080, 2
    %v7082 = vrot.slane %v6654, 7
    %v7083 = vrot.slane %v7082, 2
    %v7084 = vrot.slane %v6656, 7
    %v7085 = vrot.slane %v7084, 2
    %v7086 = vrot.slane %v6664, 7
    %v7087 = vrot.slane %v7086, 2
    %v7088 = vrot.slane %v6672, 7
    %v7089 = vrot.slane %v7088, 2
    %v7090 = vrot.slane %v6671, 7
    %v7091 = vrot.slane %v7090, 2
    %v7092 = vrot.slane %v6673, 7
    %v7093 = vrot.slane %v7092, 2
    %v7094 = vrot.slane %v6681, 7
    %v7095 = vrot.slane %v7094, 2
    %v7096 = vrot.slane %v6689, 7
    %v7097 = vrot.slane %v7096, 2
    %v7098 = vrot.slane %v6688, 7
    %v7099 = vrot.slane %v7098, 2
    %v7100 = vrot.slane %v6690, 7
    %v7101 = vrot.slane %v7100, 2
    %v7102 = vrot.slane %v6698, 7
    %v7103 = vrot.slane %v7102, 2
    %v7104 = vrot.slane %v6706, 7
    %v7105 = vrot.slane %v7104, 2
    %v7106 = vrot.slane %v6705, 7
    %v7107 = vrot.slane %v7106, 2
    %v7108 = vrot.slane %v6707, 7
    %v7109 = vrot.slane %v7108, 2
    %v7110 = vrot.slane %v6715, 7
    %v7111 = vrot.slane %v7110, 2
    %v7112 = vrot.slane %v6723, 7
    %v7113 = vrot.slane %v7112, 2
    %v7114 = vrot.slane %v6722, 7
    %v7115 = vrot.slane %v7114, 2
    %v7116 = vrot.slane %v6724, 7
    %v7117 = vrot.slane %v7116, 2
    %v7118 = vrot.slane %v6732, 7
    %v7119 = vrot.slane %v7118, 2
    %v7120 = vrot.slane %v6740, 7
    %v7121 = vrot.slane %v7120, 2
    %v7122 = vrot.slane %v6739, 7
    %v7123 = vrot.slane %v7122, 2
    %v7124 = vrot.slane %v6741, 7
    %v7125 = vrot.slane %v7124, 2
    %v7254 = vadd.f32 %v6205, %v6871
    %v7255 = vadd.f32 %v6213, %v6873
    %v7256 = vadd.f32 %v6212, %v6875
    %v7257 = vadd.f32 %v6214, %v6877
    %v7258 = vadd.f32 %v6222, %v6879
    %v7259 = vadd.f32 %v6230, %v6881
    %v7260 = vadd.f32 %v6229, %v6883
    %v7261 = vadd.f32 %v6231, %v6885
    %v7262 = vadd.f32 %v6239, %v6887
    %v7263 = vadd.f32 %v6247, %v6889
    %v7264 = vadd.f32 %v6246, %v6891
    %v7265 = vadd.f32 %v6248, %v6893
    %v7266 = vadd.f32 %v6256, %v6895
    %v7267 = vadd.f32 %v6264, %v6897
    %v7268 = vadd.f32 %v6263, %v6899
    %v7269 = vadd.f32 %v6265, %v6901
    %v7270 = vadd.f32 %v6273, %v6903
    %v7271 = vadd.f32 %v6281, %v6905
    %v7272 = vadd.f32 %v6280, %v6907
    %v7273 = vadd.f32 %v6282, %v6909
    %v7274 = vadd.f32 %v6290, %v6911
    %v7275 = vadd.f32 %v6298, %v6913
    %v7276 = vadd.f32 %v6297, %v6915
    %v7277 = vadd.f32 %v6299, %v6917
    %v7278 = vadd.f32 %v6307, %v6919
    %v7279 = vadd.f32 %v6315, %v6921
    %v7280 = vadd.f32 %v6314, %v6923
    %v7281 = vadd.f32 %v6316, %v6925
    %v7282 = vadd.f32 %v6324, %v6927
    %v7283 = vadd.f32 %v6332, %v6929
    %v7284 = vadd.f32 %v6331, %v6931
    %v7285 = vadd.f32 %v6333, %v6933
    %v7286 = vadd.f32 %v6341, %v6935
    %v7287 = vadd.f32 %v6349, %v6937
    %v7288 = vadd.f32 %v6348, %v6939
    %v7289 = vadd.f32 %v6350, %v6941
    %v7290 = vadd.f32 %v6358, %v6943
    %v7291 = vadd.f32 %v6366, %v6945
    %v7292 = vadd.f32 %v6365, %v6947
    %v7293 = vadd.f32 %v6367, %v6949
    %v7294 = vadd.f32 %v6375, %v6951
    %v7295 = vadd.f32 %v6383, %v6953
    %v7296 = vadd.f32 %v6382, %v6955
    %v7297 = vadd.f32 %v6384, %v6957
    %v7298 = vadd.f32 %v6392, %v6959
    %v7299 = vadd.f32 %v6400, %v6961
    %v7300 = vadd.f32 %v6399, %v6963
    %v7301 = vadd.f32 %v6401, %v6965
    %v7302 = vadd.f32 %v6409, %v6967
    %v7303 = vadd.f32 %v6417, %v6969
    %v7304 = vadd.f32 %v6416, %v6971
    %v7305 = vadd.f32 %v6418, %v6973
    %v7306 = vadd.f32 %v6426, %v6975
    %v7307 = vadd.f32 %v6434, %v6977
    %v7308 = vadd.f32 %v6433, %v6979
    %v7309 = vadd.f32 %v6435, %v6981
    %v7310 = vadd.f32 %v6443, %v6983
    %v7311 = vadd.f32 %v6451, %v6985
    %v7312 = vadd.f32 %v6450, %v6987
    %v7313 = vadd.f32 %v6452, %v6989
    %v7314 = vadd.f32 %v6460, %v6991
    %v7315 = vadd.f32 %v6468, %v6993
    %v7316 = vadd.f32 %v6467, %v6995
    %v7317 = vadd.f32 %v6469, %v6997
    %v7318 = vadd.f32 %v6477, %v6999
    %v7319 = vadd.f32 %v6485, %v7001
    %v7320 = vadd.f32 %v6484, %v7003
    %v7321 = vadd.f32 %v6486, %v7005
    %v7322 = vadd.f32 %v6494, %v7007
    %v7323 = vadd.f32 %v6502, %v7009
    %v7324 = vadd.f32 %v6501, %v7011
    %v7325 = vadd.f32 %v6503, %v7013
    %v7326 = vadd.f32 %v6511, %v7015
    %v7327 = vadd.f32 %v6519, %v7017
    %v7328 = vadd.f32 %v6518, %v7019
    %v7329 = vadd.f32 %v6520, %v7021
    %v7330 = vadd.f32 %v6528, %v7023
    %v7331 = vadd.f32 %v6536, %v7025
    %v7332 = vadd.f32 %v6535, %v7027
    %v7333 = vadd.f32 %v6537, %v7029
    %v7334 = vadd.f32 %v6545, %v7031
    %v7335 = vadd.f32 %v6553, %v7033
    %v7336 = vadd.f32 %v6552, %v7035
    %v7337 = vadd.f32 %v6554, %v7037
    %v7338 = vadd.f32 %v6562, %v7039
    %v7339 = vadd.f32 %v6570, %v7041
    %v7340 = vadd.f32 %v6569, %v7043
    %v7341 = vadd.f32 %v6571, %v7045
    %v7342 = vadd.f32 %v6579, %v7047
    %v7343 = vadd.f32 %v6587, %v7049
    %v7344 = vadd.f32 %v6586, %v7051
    %v7345 = vadd.f32 %v6588, %v7053
    %v7346 = vadd.f32 %v6596, %v7055
    %v7347 = vadd.f32 %v6604, %v7057
    %v7348 = vadd.f32 %v6603, %v7059
    %v7349 = vadd.f32 %v6605, %v7061
    %v7350 = vadd.f32 %v6613, %v7063
    %v7351 = vadd.f32 %v6621, %v7065
    %v7352 = vadd.f32 %v6620, %v7067
    %v7353 = vadd.f32 %v6622, %v7069
    %v7354 = vadd.f32 %v6630, %v7071
    %v7355 = vadd.f32 %v6638, %v7073
    %v7356 = vadd.f32 %v6637, %v7075
    %v7357 = vadd.f32 %v6639, %v7077
    %v7358 = vadd.f32 %v6647, %v7079
    %v7359 = vadd.f32 %v6655, %v7081
    %v7360 = vadd.f32 %v6654, %v7083
    %v7361 = vadd.f32 %v6656, %v7085
    %v7362 = vadd.f32 %v6664, %v7087
    %v7363 = vadd.f32 %v6672, %v7089
    %v7364 = vadd.f32 %v6671, %v7091
    %v7365 = vadd.f32 %v6673, %v7093
    %v7366 = vadd.f32 %v6681, %v7095
    %v7367 = vadd.f32 %v6689, %v7097
    %v7368 = vadd.f32 %v6688, %v7099
    %v7369 = vadd.f32 %v6690, %v7101
    %v7370 = vadd.f32 %v6698, %v7103
    %v7371 = vadd.f32 %v6706, %v7105
    %v7372 = vadd.f32 %v6705, %v7107
    %v7373 = vadd.f32 %v6707, %v7109
    %v7374 = vadd.f32 %v6715, %v7111
    %v7375 = vadd.f32 %v6723, %v7113
    %v7376 = vadd.f32 %v6722, %v7115
    %v7377 = vadd.f32 %v6724, %v7117
    %v7378 = vadd.f32 %v6732, %v7119
    %v7379 = vadd.f32 %v6740, %v7121
    %v7380 = vadd.f32 %v6739, %v7123
    %v7381 = vadd.f32 %v6741, %v7125
    %v7382 = vmul.f32 %v7254, 0.25
    %v7383 = vmul.f32 %v7255, 0.25
    %v7384 = vmul.f32 %v7256, 0.25
    %v7385 = vmul.f32 %v7257, 0.25
    %v7386 = vmul.f32 %v7258, 0.25
    %v7387 = vmul.f32 %v7259, 0.25
    %v7388 = vmul.f32 %v7260, 0.25
    %v7389 = vmul.f32 %v7261, 0.25
    %v7390 = vmul.f32 %v7262, 0.25
    %v7391 = vmul.f32 %v7263, 0.25
    %v7392 = vmul.f32 %v7264, 0.25
    %v7393 = vmul.f32 %v7265, 0.25
    %v7394 = vmul.f32 %v7266, 0.25
    %v7395 = vmul.f32 %v7267, 0.25
    %v7396 = vmul.f32 %v7268, 0.25
    %v7397 = vmul.f32 %v7269, 0.25
    %v7398 = vmul.f32 %v7270, 0.25
    %v7399 = vmul.f32 %v7271, 0.25
    %v7400 = vmul.f32 %v7272, 0.25
    %v7401 = vmul.f32 %v7273, 0.25
    %v7402 = vmul.f32 %v7274, 0.25
    %v7403 = vmul.f32 %v7275, 0.25
    %v7404 = vmul.f32 %v7276, 0.25
    %v7405 = vmul.f32 %v7277, 0.25
    %v7406 = vmul.f32 %v7278, 0.25
    %v7407 = vmul.f32 %v7279, 0.25
    %v7408 = vmul.f32 %v7280, 0.25
    %v7409 = vmul.f32 %v7281, 0.25
    %v7410 = vmul.f32 %v7282, 0.25
    %v7411 = vmul.f32 %v7283, 0.25
    %v7412 = vmul.f32 %v7284, 0.25
    %v7413 = vmul.f32 %v7285, 0.25
    %v7414 = vmul.f32 %v7286, 0.25
    %v7415 = vmul.f32 %v7287, 0.25
    %v7416 = vmul.f32 %v7288, 0.25
    %v7417 = vmul.f32 %v7289, 0.25
    %v7418 = vmul.f32 %v7290, 0.25
    %v7419 = vmul.f32 %v7291, 0.25
    %v7420 = vmul.f32 %v7292, 0.25
    %v7421 = vmul.f32 %v7293, 0.25
    %v7422 = vmul.f32 %v7294, 0.25
    %v7423 = vmul.f32 %v7295, 0.25
    %v7424 = vmul.f32 %v7296, 0.25
    %v7425 = vmul.f32 %v7297, 0.25
    %v7426 = vmul.f32 %v7298, 0.25
    %v7427 = vmul.f32 %v7299, 0.25
    %v7428 = vmul.f32 %v7300, 0.25
    %v7429 = vmul.f32 %v7301, 0.25
    %v7430 = vmul.f32 %v7302, 0.25
    %v7431 = vmul.f32 %v7303, 0.25
    %v7432 = vmul.f32 %v7304, 0.25
    %v7433 = vmul.f32 %v7305, 0.25
    %v7434 = vmul.f32 %v7306, 0.25
    %v7435 = vmul.f32 %v7307, 0.25
    %v7436 = vmul.f32 %v7308, 0.25
    %v7437 = vmul.f32 %v7309, 0.25
    %v7438 = vmul.f32 %v7310, 0.25
    %v7439 = vmul.f32 %v7311, 0.25
    %v7440 = vmul.f32 %v7312, 0.25
    %v7441 = vmul.f32 %v7313, 0.25
    %v7442 = vmul.f32 %v7314, 0.25
    %v7443 = vmul.f32 %v7315, 0.25
    %v7444 = vmul.f32 %v7316, 0.25
    %v7445 = vmul.f32 %v7317, 0.25
    %v7446 = vmul.f32 %v7318, 0.25
    %v7447 = vmul.f32 %v7319, 0.25
    %v7448 = vmul.f32 %v7320, 0.25
    %v7449 = vmul.f32 %v7321, 0.25
    %v7450 = vmul.f32 %v7322, 0.25
    %v7451 = vmul.f32 %v7323, 0.25
    %v7452 = vmul.f32 %v7324, 0.25
    %v7453 = vmul.f32 %v7325, 0.25
    %v7454 = vmul.f32 %v7326, 0.25
    %v7455 = vmul.f32 %v7327, 0.25
    %v7456 = vmul.f32 %v7328, 0.25
    %v7457 = vmul.f32 %v7329, 0.25
    %v7458 = vmul.f32 %v7330, 0.25
    %v7459 = vmul.f32 %v7331, 0.25
    %v7460 = vmul.f32 %v7332, 0.25
    %v7461 = vmul.f32 %v7333, 0.25
    %v7462 = vmul.f32 %v7334, 0.25
    %v7463 = vmul.f32 %v7335, 0.25
    %v7464 = vmul.f32 %v7336, 0.25
    %v7465 = vmul.f32 %v7337, 0.25
    %v7466 = vmul.f32 %v7338, 0.25
    %v7467 = vmul.f32 %v7339, 0.25
    %v7468 = vmul.f32 %v7340, 0.25
    %v7469 = vmul.f32 %v7341, 0.25
    %v7470 = vmul.f32 %v7342, 0.25
    %v7471 = vmul.f32 %v7343, 0.25
    %v7472 = vmul.f32 %v7344, 0.25
    %v7473 = vmul.f32 %v7345, 0.25
    %v7474 = vmul.f32 %v7346, 0.25
    %v7475 = vmul.f32 %v7347, 0.25
    %v7476 = vmul.f32 %v7348, 0.25
    %v7477 = vmul.f32 %v7349, 0.25
    %v7478 = vmul.f32 %v7350, 0.25
    %v7479 = vmul.f32 %v7351, 0.25
    %v7480 = vmul.f32 %v7352, 0.25
    %v7481 = vmul.f32 %v7353, 0.25
    %v7482 = vmul.f32 %v7354, 0.25
    %v7483 = vmul.f32 %v7355, 0.25
    %v7484 = vmul.f32 %v7356, 0.25
    %v7485 = vmul.f32 %v7357, 0.25
    %v7486 = vmul.f32 %v7358, 0.25
    %v7487 = vmul.f32 %v7359, 0.25
    %v7488 = vmul.f32 %v7360, 0.25
    %v7489 = vmul.f32 %v7361, 0.25
    %v7490 = vmul.f32 %v7362, 0.25
    %v7491 = vmul.f32 %v7363, 0.25
    %v7492 = vmul.f32 %v7364, 0.25
    %v7493 = vmul.f32 %v7365, 0.25
    %v7494 = vmul.f32 %v7366, 0.25
    %v7495 = vmul.f32 %v7367, 0.25
    %v7496 = vmul.f32 %v7368, 0.25
    %v7497 = vmul.f32 %v7369, 0.25
    %v7498 = vmul.f32 %v7370, 0.25
    %v7499 = vmul.f32 %v7371, 0.25
    %v7500 = vmul.f32 %v7372, 0.25
    %v7501 = vmul.f32 %v7373, 0.25
    %v7502 = vmul.f32 %v7374, 0.25
    %v7503 = vmul.f32 %v7375, 0.25
    %v7504 = vmul.f32 %v7376, 0.25
    %v7505 = vmul.f32 %v7377, 0.25
    %v7506 = vmul.f32 %v7378, 0.25
    %v7507 = vmul.f32 %v7379, 0.25
    %v7508 = vmul.f32 %v7380, 0.25
    %v7509 = vmul.f32 %v7381, 0.25
    %v7638 = vlaneseq
    %v7639 = vshrl.u32 %v7638, 7
    %v7640 = vsub.s32 0, %v7639
    %v7641 = vrot.slane %v7382, %v7640
    %v7642 = vlaneseq
    %v7643 = vshrl.u32 %v7642, 7
    %v7644 = vsub.s32 0, %v7643
    %v7645 = vrot.slane %v7383, %v7644
    %v7646 = vlaneseq
    %v7647 = vshrl.u32 %v7646, 7
    %v7648 = vsub.s32 0, %v7647
    %v7649 = vrot.slane %v7384, %v7648
    %v7650 = vlaneseq
    %v7651 = vshrl.u32 %v7650, 7
    %v7652 = vsub.s32 0, %v7651
    %v7653 = vrot.slane %v7385, %v7652
    %v7654 = vlaneseq
    %v7655 = vshrl.u32 %v7654, 7
    %v7656 = vsub.s32 0, %v7655
    %v7657 = vrot.slane %v7386, %v7656
    %v7658 = vlaneseq
    %v7659 = vshrl.u32 %v7658, 7
    %v7660 = vsub.s32 0, %v7659
    %v7661 = vrot.slane %v7387, %v7660
    %v7662 = vlaneseq
    %v7663 = vshrl.u32 %v7662, 7
    %v7664 = vsub.s32 0, %v7663
    %v7665 = vrot.slane %v7388, %v7664
    %v7666 = vlaneseq
    %v7667 = vshrl.u32 %v7666, 7
    %v7668 = vsub.s32 0, %v7667
    %v7669 = vrot.slane %v7389, %v7668
    %v7670 = vlaneseq
    %v7671 = vshrl.u32 %v7670, 7
    %v7672 = vsub.s32 0, %v7671
    %v7673 = vrot.slane %v7390, %v7672
    %v7674 = vlaneseq
    %v7675 = vshrl.u32 %v7674, 7
    %v7676 = vsub.s32 0, %v7675
    %v7677 = vrot.slane %v7391, %v7676
    %v7678 = vlaneseq
    %v7679 = vshrl.u32 %v7678, 7
    %v7680 = vsub.s32 0, %v7679
    %v7681 = vrot.slane %v7392, %v7680
    %v7682 = vlaneseq
    %v7683 = vshrl.u32 %v7682, 7
    %v7684 = vsub.s32 0, %v7683
    %v7685 = vrot.slane %v7393, %v7684
    %v7686 = vlaneseq
    %v7687 = vshrl.u32 %v7686, 7
    %v7688 = vsub.s32 0, %v7687
    %v7689 = vrot.slane %v7394, %v7688
    %v7690 = vlaneseq
    %v7691 = vshrl.u32 %v7690, 7
    %v7692 = vsub.s32 0, %v7691
    %v7693 = vrot.slane %v7395, %v7692
    %v7694 = vlaneseq
    %v7695 = vshrl.u32 %v7694, 7
    %v7696 = vsub.s32 0, %v7695
    %v7697 = vrot.slane %v7396, %v7696
    %v7698 = vlaneseq
    %v7699 = vshrl.u32 %v7698, 7
    %v7700 = vsub.s32 0, %v7699
    %v7701 = vrot.slane %v7397, %v7700
    %v7702 = vlaneseq
    %v7703 = vshrl.u32 %v7702, 7
    %v7704 = vsub.s32 0, %v7703
    %v7705 = vrot.slane %v7398, %v7704
    %v7706 = vlaneseq
    %v7707 = vshrl.u32 %v7706, 7
    %v7708 = vsub.s32 0, %v7707
    %v7709 = vrot.slane %v7399, %v7708
    %v7710 = vlaneseq
    %v7711 = vshrl.u32 %v7710, 7
    %v7712 = vsub.s32 0, %v7711
    %v7713 = vrot.slane %v7400, %v7712
    %v7714 = vlaneseq
    %v7715 = vshrl.u32 %v7714, 7
    %v7716 = vsub.s32 0, %v7715
    %v7717 = vrot.slane %v7401, %v7716
    %v7718 = vlaneseq
    %v7719 = vshrl.u32 %v7718, 7
    %v7720 = vsub.s32 0, %v7719
    %v7721 = vrot.slane %v7402, %v7720
    %v7722 = vlaneseq
    %v7723 = vshrl.u32 %v7722, 7
    %v7724 = vsub.s32 0, %v7723
    %v7725 = vrot.slane %v7403, %v7724
    %v7726 = vlaneseq
    %v7727 = vshrl.u32 %v7726, 7
    %v7728 = vsub.s32 0, %v7727
    %v7729 = vrot.slane %v7404, %v7728
    %v7730 = vlaneseq
    %v7731 = vshrl.u32 %v7730, 7
    %v7732 = vsub.s32 0, %v7731
    %v7733 = vrot.slane %v7405, %v7732
    %v7734 = vlaneseq
    %v7735 = vshrl.u32 %v7734, 7
    %v7736 = vsub.s32 0, %v7735
    %v7737 = vrot.slane %v7406, %v7736
    %v7738 = vlaneseq
    %v7739 = vshrl.u32 %v7738, 7
    %v7740 = vsub.s32 0, %v7739
    %v7741 = vrot.slane %v7407, %v7740
    %v7742 = vlaneseq
    %v7743 = vshrl.u32 %v7742, 7
    %v7744 = vsub.s32 0, %v7743
    %v7745 = vrot.slane %v7408, %v7744
    %v7746 = vlaneseq
    %v7747 = vshrl.u32 %v7746, 7
    %v7748 = vsub.s32 0, %v7747
    %v7749 = vrot.slane %v7409, %v7748
    %v7750 = vlaneseq
    %v7751 = vshrl.u32 %v7750, 7
    %v7752 = vsub.s32 0, %v7751
    %v7753 = vrot.slane %v7410, %v7752
    %v7754 = vlaneseq
    %v7755 = vshrl.u32 %v7754, 7
    %v7756 = vsub.s32 0, %v7755
    %v7757 = vrot.slane %v7411, %v7756
    %v7758 = vlaneseq
    %v7759 = vshrl.u32 %v7758, 7
    %v7760 = vsub.s32 0, %v7759
    %v7761 = vrot.slane %v7412, %v7760
    %v7762 = vlaneseq
    %v7763 = vshrl.u32 %v7762, 7
    %v7764 = vsub.s32 0, %v7763
    %v7765 = vrot.slane %v7413, %v7764
    %v7766 = vlaneseq
    %v7767 = vshrl.u32 %v7766, 7
    %v7768 = vsub.s32 0, %v7767
    %v7769 = vrot.slane %v7414, %v7768
    %v7770 = vlaneseq
    %v7771 = vshrl.u32 %v7770, 7
    %v7772 = vsub.s32 0, %v7771
    %v7773 = vrot.slane %v7415, %v7772
    %v7774 = vlaneseq
    %v7775 = vshrl.u32 %v7774, 7
    %v7776 = vsub.s32 0, %v7775
    %v7777 = vrot.slane %v7416, %v7776
    %v7778 = vlaneseq
    %v7779 = vshrl.u32 %v7778, 7
    %v7780 = vsub.s32 0, %v7779
    %v7781 = vrot.slane %v7417, %v7780
    %v7782 = vlaneseq
    %v7783 = vshrl.u32 %v7782, 7
    %v7784 = vsub.s32 0, %v7783
    %v7785 = vrot.slane %v7418, %v7784
    %v7786 = vlaneseq
    %v7787 = vshrl.u32 %v7786, 7
    %v7788 = vsub.s32 0, %v7787
    %v7789 = vrot.slane %v7419, %v7788
    %v7790 = vlaneseq
    %v7791 = vshrl.u32 %v7790, 7
    %v7792 = vsub.s32 0, %v7791
    %v7793 = vrot.slane %v7420, %v7792
    %v7794 = vlaneseq
    %v7795 = vshrl.u32 %v7794, 7
    %v7796 = vsub.s32 0, %v7795
    %v7797 = vrot.slane %v7421, %v7796
    %v7798 = vlaneseq
    %v7799 = vshrl.u32 %v7798, 7
    %v7800 = vsub.s32 0, %v7799
    %v7801 = vrot.slane %v7422, %v7800
    %v7802 = vlaneseq
    %v7803 = vshrl.u32 %v7802, 7
    %v7804 = vsub.s32 0, %v7803
    %v7805 = vrot.slane %v7423, %v7804
    %v7806 = vlaneseq
    %v7807 = vshrl.u32 %v7806, 7
    %v7808 = vsub.s32 0, %v7807
    %v7809 = vrot.slane %v7424, %v7808
    %v7810 = vlaneseq
    %v7811 = vshrl.u32 %v7810, 7
    %v7812 = vsub.s32 0, %v7811
    %v7813 = vrot.slane %v7425, %v7812
    %v7814 = vlaneseq
    %v7815 = vshrl.u32 %v7814, 7
    %v7816 = vsub.s32 0, %v7815
    %v7817 = vrot.slane %v7426, %v7816
    %v7818 = vlaneseq
    %v7819 = vshrl.u32 %v7818, 7
    %v7820 = vsub.s32 0, %v7819
    %v7821 = vrot.slane %v7427, %v7820
    %v7822 = vlaneseq
    %v7823 = vshrl.u32 %v7822, 7
    %v7824 = vsub.s32 0, %v7823
    %v7825 = vrot.slane %v7428, %v7824
    %v7826 = vlaneseq
    %v7827 = vshrl.u32 %v7826, 7
    %v7828 = vsub.s32 0, %v7827
    %v7829 = vrot.slane %v7429, %v7828
    %v7830 = vlaneseq
    %v7831 = vshrl.u32 %v7830, 7
    %v7832 = vsub.s32 0, %v7831
    %v7833 = vrot.slane %v7430, %v7832
    %v7834 = vlaneseq
    %v7835 = vshrl.u32 %v7834, 7
    %v7836 = vsub.s32 0, %v7835
    %v7837 = vrot.slane %v7431, %v7836
    %v7838 = vlaneseq
    %v7839 = vshrl.u32 %v7838, 7
    %v7840 = vsub.s32 0, %v7839
    %v7841 = vrot.slane %v7432, %v7840
    %v7842 = vlaneseq
    %v7843 = vshrl.u32 %v7842, 7
    %v7844 = vsub.s32 0, %v7843
    %v7845 = vrot.slane %v7433, %v7844
    %v7846 = vlaneseq
    %v7847 = vshrl.u32 %v7846, 7
    %v7848 = vsub.s32 0, %v7847
    %v7849 = vrot.slane %v7434, %v7848
    %v7850 = vlaneseq
    %v7851 = vshrl.u32 %v7850, 7
    %v7852 = vsub.s32 0, %v7851
    %v7853 = vrot.slane %v7435, %v7852
    %v7854 = vlaneseq
    %v7855 = vshrl.u32 %v7854, 7
    %v7856 = vsub.s32 0, %v7855
    %v7857 = vrot.slane %v7436, %v7856
    %v7858 = vlaneseq
    %v7859 = vshrl.u32 %v7858, 7
    %v7860 = vsub.s32 0, %v7859
    %v7861 = vrot.slane %v7437, %v7860
    %v7862 = vlaneseq
    %v7863 = vshrl.u32 %v7862, 7
    %v7864 = vsub.s32 0, %v7863
    %v7865 = vrot.slane %v7438, %v7864
    %v7866 = vlaneseq
    %v7867 = vshrl.u32 %v7866, 7
    %v7868 = vsub.s32 0, %v7867
    %v7869 = vrot.slane %v7439, %v7868
    %v7870 = vlaneseq
    %v7871 = vshrl.u32 %v7870, 7
    %v7872 = vsub.s32 0, %v7871
    %v7873 = vrot.slane %v7440, %v7872
    %v7874 = vlaneseq
    %v7875 = vshrl.u32 %v7874, 7
    %v7876 = vsub.s32 0, %v7875
    %v7877 = vrot.slane %v7441, %v7876
    %v7878 = vlaneseq
    %v7879 = vshrl.u32 %v7878, 7
    %v7880 = vsub.s32 0, %v7879
    %v7881 = vrot.slane %v7442, %v7880
    %v7882 = vlaneseq
    %v7883 = vshrl.u32 %v7882, 7
    %v7884 = vsub.s32 0, %v7883
    %v7885 = vrot.slane %v7443, %v7884
    %v7886 = vlaneseq
    %v7887 = vshrl.u32 %v7886, 7
    %v7888 = vsub.s32 0, %v7887
    %v7889 = vrot.slane %v7444, %v7888
    %v7890 = vlaneseq
    %v7891 = vshrl.u32 %v7890, 7
    %v7892 = vsub.s32 0, %v7891
    %v7893 = vrot.slane %v7445, %v7892
    %v7894 = vlaneseq
    %v7895 = vshrl.u32 %v7894, 7
    %v7896 = vsub.s32 0, %v7895
    %v7897 = vrot.slane %v7446, %v7896
    %v7898 = vlaneseq
    %v7899 = vshrl.u32 %v7898, 7
    %v7900 = vsub.s32 0, %v7899
    %v7901 = vrot.slane %v7447, %v7900
    %v7902 = vlaneseq
    %v7903 = vshrl.u32 %v7902, 7
    %v7904 = vsub.s32 0, %v7903
    %v7905 = vrot.slane %v7448, %v7904
    %v7906 = vlaneseq
    %v7907 = vshrl.u32 %v7906, 7
    %v7908 = vsub.s32 0, %v7907
    %v7909 = vrot.slane %v7449, %v7908
    %v7910 = vlaneseq
    %v7911 = vshrl.u32 %v7910, 7
    %v7912 = vsub.s32 0, %v7911
    %v7913 = vrot.slane %v7450, %v7912
    %v7914 = vlaneseq
    %v7915 = vshrl.u32 %v7914, 7
    %v7916 = vsub.s32 0, %v7915
    %v7917 = vrot.slane %v7451, %v7916
    %v7918 = vlaneseq
    %v7919 = vshrl.u32 %v7918, 7
    %v7920 = vsub.s32 0, %v7919
    %v7921 = vrot.slane %v7452, %v7920
    %v7922 = vlaneseq
    %v7923 = vshrl.u32 %v7922, 7
    %v7924 = vsub.s32 0, %v7923
    %v7925 = vrot.slane %v7453, %v7924
    %v7926 = vlaneseq
    %v7927 = vshrl.u32 %v7926, 7
    %v7928 = vsub.s32 0, %v7927
    %v7929 = vrot.slane %v7454, %v7928
    %v7930 = vlaneseq
    %v7931 = vshrl.u32 %v7930, 7
    %v7932 = vsub.s32 0, %v7931
    %v7933 = vrot.slane %v7455, %v7932
    %v7934 = vlaneseq
    %v7935 = vshrl.u32 %v7934, 7
    %v7936 = vsub.s32 0, %v7935
    %v7937 = vrot.slane %v7456, %v7936
    %v7938 = vlaneseq
    %v7939 = vshrl.u32 %v7938, 7
    %v7940 = vsub.s32 0, %v7939
    %v7941 = vrot.slane %v7457, %v7940
    %v7942 = vlaneseq
    %v7943 = vshrl.u32 %v7942, 7
    %v7944 = vsub.s32 0, %v7943
    %v7945 = vrot.slane %v7458, %v7944
    %v7946 = vlaneseq
    %v7947 = vshrl.u32 %v7946, 7
    %v7948 = vsub.s32 0, %v7947
    %v7949 = vrot.slane %v7459, %v7948
    %v7950 = vlaneseq
    %v7951 = vshrl.u32 %v7950, 7
    %v7952 = vsub.s32 0, %v7951
    %v7953 = vrot.slane %v7460, %v7952
    %v7954 = vlaneseq
    %v7955 = vshrl.u32 %v7954, 7
    %v7956 = vsub.s32 0, %v7955
    %v7957 = vrot.slane %v7461, %v7956
    %v7958 = vlaneseq
    %v7959 = vshrl.u32 %v7958, 7
    %v7960 = vsub.s32 0, %v7959
    %v7961 = vrot.slane %v7462, %v7960
    %v7962 = vlaneseq
    %v7963 = vshrl.u32 %v7962, 7
    %v7964 = vsub.s32 0, %v7963
    %v7965 = vrot.slane %v7463, %v7964
    %v7966 = vlaneseq
    %v7967 = vshrl.u32 %v7966, 7
    %v7968 = vsub.s32 0, %v7967
    %v7969 = vrot.slane %v7464, %v7968
    %v7970 = vlaneseq
    %v7971 = vshrl.u32 %v7970, 7
    %v7972 = vsub.s32 0, %v7971
    %v7973 = vrot.slane %v7465, %v7972
    %v7974 = vlaneseq
    %v7975 = vshrl.u32 %v7974, 7
    %v7976 = vsub.s32 0, %v7975
    %v7977 = vrot.slane %v7466, %v7976
    %v7978 = vlaneseq
    %v7979 = vshrl.u32 %v7978, 7
    %v7980 = vsub.s32 0, %v7979
    %v7981 = vrot.slane %v7467, %v7980
    %v7982 = vlaneseq
    %v7983 = vshrl.u32 %v7982, 7
    %v7984 = vsub.s32 0, %v7983
    %v7985 = vrot.slane %v7468, %v7984
    %v7986 = vlaneseq
    %v7987 = vshrl.u32 %v7986, 7
    %v7988 = vsub.s32 0, %v7987
    %v7989 = vrot.slane %v7469, %v7988
    %v7990 = vlaneseq
    %v7991 = vshrl.u32 %v7990, 7
    %v7992 = vsub.s32 0, %v7991
    %v7993 = vrot.slane %v7470, %v7992
    %v7994 = vlaneseq
    %v7995 = vshrl.u32 %v7994, 7
    %v7996 = vsub.s32 0, %v7995
    %v7997 = vrot.slane %v7471, %v7996
    %v7998 = vlaneseq
    %v7999 = vshrl.u32 %v7998, 7
    %v8000 = vsub.s32 0, %v7999
    %v8001 = vrot.slane %v7472, %v8000
    %v8002 = vlaneseq
    %v8003 = vshrl.u32 %v8002, 7
    %v8004 = vsub.s32 0, %v8003
    %v8005 = vrot.slane %v7473, %v8004
    %v8006 = vlaneseq
    %v8007 = vshrl.u32 %v8006, 7
    %v8008 = vsub.s32 0, %v8007
    %v8009 = vrot.slane %v7474, %v8008
    %v8010 = vlaneseq
    %v8011 = vshrl.u32 %v8010, 7
    %v8012 = vsub.s32 0, %v8011
    %v8013 = vrot.slane %v7475, %v8012
    %v8014 = vlaneseq
    %v8015 = vshrl.u32 %v8014, 7
    %v8016 = vsub.s32 0, %v8015
    %v8017 = vrot.slane %v7476, %v8016
    %v8018 = vlaneseq
    %v8019 = vshrl.u32 %v8018, 7
    %v8020 = vsub.s32 0, %v8019
    %v8021 = vrot.slane %v7477, %v8020
    %v8022 = vlaneseq
    %v8023 = vshrl.u32 %v8022, 7
    %v8024 = vsub.s32 0, %v8023
    %v8025 = vrot.slane %v7478, %v8024
    %v8026 = vlaneseq
    %v8027 = vshrl.u32 %v8026, 7
    %v8028 = vsub.s32 0, %v8027
    %v8029 = vrot.slane %v7479, %v8028
    %v8030 = vlaneseq
    %v8031 = vshrl.u32 %v8030, 7
    %v8032 = vsub.s32 0, %v8031
    %v8033 = vrot.slane %v7480, %v8032
    %v8034 = vlaneseq
    %v8035 = vshrl.u32 %v8034, 7
    %v8036 = vsub.s32 0, %v8035
    %v8037 = vrot.slane %v7481, %v8036
    %v8038 = vlaneseq
    %v8039 = vshrl.u32 %v8038, 7
    %v8040 = vsub.s32 0, %v8039
    %v8041 = vrot.slane %v7482, %v8040
    %v8042 = vlaneseq
    %v8043 = vshrl.u32 %v8042, 7
    %v8044 = vsub.s32 0, %v8043
    %v8045 = vrot.slane %v7483, %v8044
    %v8046 = vlaneseq
    %v8047 = vshrl.u32 %v8046, 7
    %v8048 = vsub.s32 0, %v8047
    %v8049 = vrot.slane %v7484, %v8048
    %v8050 = vlaneseq
    %v8051 = vshrl.u32 %v8050, 7
    %v8052 = vsub.s32 0, %v8051
    %v8053 = vrot.slane %v7485, %v8052
    %v8054 = vlaneseq
    %v8055 = vshrl.u32 %v8054, 7
    %v8056 = vsub.s32 0, %v8055
    %v8057 = vrot.slane %v7486, %v8056
    %v8058 = vlaneseq
    %v8059 = vshrl.u32 %v8058, 7
    %v8060 = vsub.s32 0, %v8059
    %v8061 = vrot.slane %v7487, %v8060
    %v8062 = vlaneseq
    %v8063 = vshrl.u32 %v8062, 7
    %v8064 = vsub.s32 0, %v8063
    %v8065 = vrot.slane %v7488, %v8064
    %v8066 = vlaneseq
    %v8067 = vshrl.u32 %v8066, 7
    %v8068 = vsub.s32 0, %v8067
    %v8069 = vrot.slane %v7489, %v8068
    %v8070 = vlaneseq
    %v8071 = vshrl.u32 %v8070, 7
    %v8072 = vsub.s32 0, %v8071
    %v8073 = vrot.slane %v7490, %v8072
    %v8074 = vlaneseq
    %v8075 = vshrl.u32 %v8074, 7
    %v8076 = vsub.s32 0, %v8075
    %v8077 = vrot.slane %v7491, %v8076
    %v8078 = vlaneseq
    %v8079 = vshrl.u32 %v8078, 7
    %v8080 = vsub.s32 0, %v8079
    %v8081 = vrot.slane %v7492, %v8080
    %v8082 = vlaneseq
    %v8083 = vshrl.u32 %v8082, 7
    %v8084 = vsub.s32 0, %v8083
    %v8085 = vrot.slane %v7493, %v8084
    %v8086 = vlaneseq
    %v8087 = vshrl.u32 %v8086, 7
    %v8088 = vsub.s32 0, %v8087
    %v8089 = vrot.slane %v7494, %v8088
    %v8090 = vlaneseq
    %v8091 = vshrl.u32 %v8090, 7
    %v8092 = vsub.s32 0, %v8091
    %v8093 = vrot.slane %v7495, %v8092
    %v8094 = vlaneseq
    %v8095 = vshrl.u32 %v8094, 7
    %v8096 = vsub.s32 0, %v8095
    %v8097 = vrot.slane %v7496, %v8096
    %v8098 = vlaneseq
    %v8099 = vshrl.u32 %v8098, 7
    %v8100 = vsub.s32 0, %v8099
    %v8101 = vrot.slane %v7497, %v8100
    %v8102 = vlaneseq
    %v8103 = vshrl.u32 %v8102, 7
    %v8104 = vsub.s32 0, %v8103
    %v8105 = vrot.slane %v7498, %v8104
    %v8106 = vlaneseq
    %v8107 = vshrl.u32 %v8106, 7
    %v8108 = vsub.s32 0, %v8107
    %v8109 = vrot.slane %v7499, %v8108
    %v8110 = vlaneseq
    %v8111 = vshrl.u32 %v8110, 7
    %v8112 = vsub.s32 0, %v8111
    %v8113 = vrot.slane %v7500, %v8112
    %v8114 = vlaneseq
    %v8115 = vshrl.u32 %v8114, 7
    %v8116 = vsub.s32 0, %v8115
    %v8117 = vrot.slane %v7501, %v8116
    %v8118 = vlaneseq
    %v8119 = vshrl.u32 %v8118, 7
    %v8120 = vsub.s32 0, %v8119
    %v8121 = vrot.slane %v7502, %v8120
    %v8122 = vlaneseq
    %v8123 = vshrl.u32 %v8122, 7
    %v8124 = vsub.s32 0, %v8123
    %v8125 = vrot.slane %v7503, %v8124
    %v8126 = vlaneseq
    %v8127 = vshrl.u32 %v8126, 7
    %v8128 = vsub.s32 0, %v8127
    %v8129 = vrot.slane %v7504, %v8128
    %v8130 = vlaneseq
    %v8131 = vshrl.u32 %v8130, 7
    %v8132 = vsub.s32 0, %v8131
    %v8133 = vrot.slane %v7505, %v8132
    %v8134 = vlaneseq
    %v8135 = vshrl.u32 %v8134, 7
    %v8136 = vsub.s32 0, %v8135
    %v8137 = vrot.slane %v7506, %v8136
    %v8138 = vlaneseq
    %v8139 = vshrl.u32 %v8138, 7
    %v8140 = vsub.s32 0, %v8139
    %v8141 = vrot.slane %v7507, %v8140
    %v8142 = vlaneseq
    %v8143 = vshrl.u32 %v8142, 7
    %v8144 = vsub.s32 0, %v8143
    %v8145 = vrot.slane %v7508, %v8144
    %v8146 = vlaneseq
    %v8147 = vshrl.u32 %v8146, 7
    %v8148 = vsub.s32 0, %v8147
    %v8149 = vrot.slane %v7509, %v8148
    %vm8150 = vcmask 1041409
    %v8151 = vsel %vm8150, %v7645, %v7641
    %vm8152 = vcmask 1042434
    %v8153 = vsel %vm8152, %v7649, %v8151
    %vm8154 = vcmask 1043459
    %v8155 = vsel %vm8154, %v7653, %v8153
    %vm8156 = vcmask 1044484
    %v8157 = vsel %vm8156, %v7657, %v8155
    %vm8158 = vcmask 1045509
    %v8159 = vsel %vm8158, %v7661, %v8157
    %vm8160 = vcmask 1046534
    %v8161 = vsel %vm8160, %v7665, %v8159
    %vm8162 = vcmask 1047559
    %v8163 = vsel %vm8162, %v7669, %v8161
    %v8164 = vsel %vm8150, %v7677, %v7673
    %v8165 = vsel %vm8152, %v7681, %v8164
    %v8166 = vsel %vm8154, %v7685, %v8165
    %v8167 = vsel %vm8156, %v7689, %v8166
    %v8168 = vsel %vm8158, %v7693, %v8167
    %v8169 = vsel %vm8160, %v7697, %v8168
    %v8170 = vsel %vm8162, %v7701, %v8169
    %v8171 = vsel %vm8150, %v7709, %v7705
    %v8172 = vsel %vm8152, %v7713, %v8171
    %v8173 = vsel %vm8154, %v7717, %v8172
    %v8174 = vsel %vm8156, %v7721, %v8173
    %v8175 = vsel %vm8158, %v7725, %v8174
    %v8176 = vsel %vm8160, %v7729, %v8175
    %v8177 = vsel %vm8162, %v7733, %v8176
    %v8178 = vsel %vm8150, %v7741, %v7737
    %v8179 = vsel %vm8152, %v7745, %v8178
    %v8180 = vsel %vm8154, %v7749, %v8179
    %v8181 = vsel %vm8156, %v7753, %v8180
    %v8182 = vsel %vm8158, %v7757, %v8181
    %v8183 = vsel %vm8160, %v7761, %v8182
    %v8184 = vsel %vm8162, %v7765, %v8183
    %v8185 = vsel %vm8150, %v7773, %v7769
    %v8186 = vsel %vm8152, %v7777, %v8185
    %v8187 = vsel %vm8154, %v7781, %v8186
    %v8188 = vsel %vm8156, %v7785, %v8187
    %v8189 = vsel %vm8158, %v7789, %v8188
    %v8190 = vsel %vm8160, %v7793, %v8189
    %v8191 = vsel %vm8162, %v7797, %v8190
    %v8192 = vsel %vm8150, %v7805, %v7801
    %v8193 = vsel %vm8152, %v7809, %v8192
    %v8194 = vsel %vm8154, %v7813, %v8193
    %v8195 = vsel %vm8156, %v7817, %v8194
    %v8196 = vsel %vm8158, %v7821, %v8195
    %v8197 = vsel %vm8160, %v7825, %v8196
    %v8198 = vsel %vm8162, %v7829, %v8197
    %v8199 = vsel %vm8150, %v7837, %v7833
    %v8200 = vsel %vm8152, %v7841, %v8199
    %v8201 = vsel %vm8154, %v7845, %v8200
    %v8202 = vsel %vm8156, %v7849, %v8201
    %v8203 = vsel %vm8158, %v7853, %v8202
    %v8204 = vsel %vm8160, %v7857, %v8203
    %v8205 = vsel %vm8162, %v7861, %v8204
    %v8206 = vsel %vm8150, %v7869, %v7865
    %v8207 = vsel %vm8152, %v7873, %v8206
    %v8208 = vsel %vm8154, %v7877, %v8207
    %v8209 = vsel %vm8156, %v7881, %v8208
    %v8210 = vsel %vm8158, %v7885, %v8209
    %v8211 = vsel %vm8160, %v7889, %v8210
    %v8212 = vsel %vm8162, %v7893, %v8211
    %v8213 = vsel %vm8150, %v7901, %v7897
    %v8214 = vsel %vm8152, %v7905, %v8213
    %v8215 = vsel %vm8154, %v7909, %v8214
    %v8216 = vsel %vm8156, %v7913, %v8215
    %v8217 = vsel %vm8158, %v7917, %v8216
    %v8218 = vsel %vm8160, %v7921, %v8217
    %v8219 = vsel %vm8162, %v7925, %v8218
    %v8220 = vsel %vm8150, %v7933, %v7929
    %v8221 = vsel %vm8152, %v7937, %v8220
    %v8222 = vsel %vm8154, %v7941, %v8221
    %v8223 = vsel %vm8156, %v7945, %v8222
    %v8224 = vsel %vm8158, %v7949, %v8223
    %v8225 = vsel %vm8160, %v7953, %v8224
    %v8226 = vsel %vm8162, %v7957, %v8225
    %v8227 = vsel %vm8150, %v7965, %v7961
    %v8228 = vsel %vm8152, %v7969, %v8227
    %v8229 = vsel %vm8154, %v7973, %v8228
    %v8230 = vsel %vm8156, %v7977, %v8229
    %v8231 = vsel %vm8158, %v7981, %v8230
    %v8232 = vsel %vm8160, %v7985, %v8231
    %v8233 = vsel %vm8162, %v7989, %v8232
    %v8234 = vsel %vm8150, %v7997, %v7993
    %v8235 = vsel %vm8152, %v8001, %v8234
    %v8236 = vsel %vm8154, %v8005, %v8235
    %v8237 = vsel %vm8156, %v8009, %v8236
    %v8238 = vsel %vm8158, %v8013, %v8237
    %v8239 = vsel %vm8160, %v8017, %v8238
    %v8240 = vsel %vm8162, %v8021, %v8239
    %v8241 = vsel %vm8150, %v8029, %v8025
    %v8242 = vsel %vm8152, %v8033, %v8241
    %v8243 = vsel %vm8154, %v8037, %v8242
    %v8244 = vsel %vm8156, %v8041, %v8243
    %v8245 = vsel %vm8158, %v8045, %v8244
    %v8246 = vsel %vm8160, %v8049, %v8245
    %v8247 = vsel %vm8162, %v8053, %v8246
    %v8248 = vsel %vm8150, %v8061, %v8057
    %v8249 = vsel %vm8152, %v8065, %v8248
    %v8250 = vsel %vm8154, %v8069, %v8249
    %v8251 = vsel %vm8156, %v8073, %v8250
    %v8252 = vsel %vm8158, %v8077, %v8251
    %v8253 = vsel %vm8160, %v8081, %v8252
    %v8254 = vsel %vm8162, %v8085, %v8253
    %v8255 = vsel %vm8150, %v8093, %v8089
    %v8256 = vsel %vm8152, %v8097, %v8255
    %v8257 = vsel %vm8154, %v8101, %v8256
    %v8258 = vsel %vm8156, %v8105, %v8257
    %v8259 = vsel %vm8158, %v8109, %v8258
    %v8260 = vsel %vm8160, %v8113, %v8259
    %v8261 = vsel %vm8162, %v8117, %v8260
    %v8262 = vsel %vm8150, %v8125, %v8121
    %v8263 = vsel %vm8152, %v8129, %v8262
    %v8264 = vsel %vm8154, %v8133, %v8263
    %v8265 = vsel %vm8156, %v8137, %v8264
    %v8266 = vsel %vm8158, %v8141, %v8265
    %v8267 = vsel %vm8160, %v8145, %v8266
    %v8268 = vsel %vm8162, %v8149, %v8267
    %8285 = vst.msk [vmem:[#allocation3] sm:$0xff] %vm1107, %v8163
    %8286 = vst.msk [vmem:[#allocation3 + $0x8] sm:$0xff] %vm1107, %v8170
    %8287 = vst.msk [vmem:[#allocation3 + $0x10] sm:$0xff] %vm1107, %v8177
    %8288 = vst.msk [vmem:[#allocation3 + $0x18] sm:$0xff] %vm1107, %v8184
    %8289 = vst.msk [vmem:[#allocation3 + $0x20] sm:$0xff] %vm1107, %v8191
    %8290 = vst.msk [vmem:[#allocation3 + $0x28] sm:$0xff] %vm1107, %v8198
    %8291 = vst.msk [vmem:[#allocation3 + $0x30] sm:$0xff] %vm1107, %v8205
    %8292 = vst.msk [vmem:[#allocation3 + $0x38] sm:$0xff] %vm1107, %v8212
    %8293 = vst.msk [vmem:[#allocation3 + $0x40] sm:$0xff] %vm1107, %v8219
    %8294 = vst.msk [vmem:[#allocation3 + $0x48] sm:$0xff] %vm1107, %v8226
    %8295 = vst.msk [vmem:[#allocation3 + $0x50] sm:$0xff] %vm1107, %v8233
    %8296 = vst.msk [vmem:[#allocation3 + $0x58] sm:$0xff] %vm1107, %v8240
    %8297 = vst.msk [vmem:[#allocation3 + $0x60] sm:$0xff] %vm1107, %v8247
    %8298 = vst.msk [vmem:[#allocation3 + $0x68] sm:$0xff] %vm1107, %v8254
    %8299 = vst.msk [vmem:[#allocation3 + $0x70] sm:$0xff] %vm1107, %v8261
    %8300 = vst.msk [vmem:[#allocation3 + $0x78] sm:$0xff] %vm1107, %v8268
    // Predicated region
    $region18: #{conv_block_forward_nhwc.1} parent=1 // pred_check
      _
    $region19: #{conv_block_forward_nhwc.1} parent=1 // pred_check_branch
      %8302 = sbr.rel (0) target = $region21
    $region20: #{conv_block_forward_nhwc.1} parent=1 // pred_region
      %s8304 = ssub.s32 2048, 2048
      %8305 = vsyncadd [#allocation4], %s8304
      %s8306 = sshll.u32 [#allocation3], 4
      %s8307 = int_to_ptr.vmem [resolvable:$true] %s8306
      %8312 = dma.vmem_to_hbm [thread:$0]  %s8307, 2048, %s4, [#allocation4], 128, 128, 8
    $region21: #{conv_block_forward_nhwc.1} parent=1 // pred_fallthru
      _
    // Predicated region
    $region22: #{conv_block_forward_nhwc.1} parent=1 // pred_check
      _
    $region23: #{conv_block_forward_nhwc.1} parent=1 // pred_check_branch
      %8314 = sbr.rel (0) target = $region25
    $region24: #{conv_block_forward_nhwc.1} parent=1 // pred_region
      %8315 = dma.done [#allocation4], 2048
    $region25: #{conv_block_forward_nhwc.1} parent=1 // pred_fallthru
      _
    %8316 = vsyncpa [#allocation4], 1

</llo_original>
